<compile_context>
chip_gen: v7x
topology: tpu7x:2x2x1
jax: 0.10.0
libtpu: 0.0.40
codegen_flags: <defaults>
</compile_context>

<pallas_src>
import functools
import math

import jax
import jax.numpy as jnp
from jax import lax
from jax.experimental import pallas as pl
from jax.experimental.pallas import tpu as pltpu

_LANE = 128
_MIB = 1024 * 1024


def _round_up(x, m):
    return ((x + m - 1) // m) * m


def _choose_tile(dim, max_tile, align):
    """Pick a tile size (multiple of `align`, <= ~max_tile) and the padded dim."""
    dp = _round_up(dim, align)
    if dp <= max_tile:
        return dp, dp
    nt = -(-dp // max_tile)
    t = _round_up(-(-dp // nt), align)
    return t, t * nt


def _vmem_limit(need_bytes):
    # need + headroom, clamped to [32 MiB, 64 MiB] (v7x physical VMEM is 64 MiB/TC).
    return int(min(64 * _MIB, max(32 * _MIB, need_bytes + 16 * _MIB)))


# ----------------------------------------------------------------------------
# Pallas GEMM kernels: fused pre-activation (on the A tile) + bias / post-activation
# ----------------------------------------------------------------------------
def _apply_pre_act(a, pre_act):
    if pre_act == "lrelu":
        return jnp.where(a >= 0, a, a * 0.2)
    if pre_act == "relu":
        return jnp.maximum(a, 0)
    return a


def _gemm_kernel(a_ref, b_ref, bias_ref, o_ref, acc_ref, *, pre_act, post_act):
    @pl.when(pl.program_id(2) == 0)
    def _():
        acc_ref[...] = jnp.zeros_like(acc_ref)

    a = _apply_pre_act(a_ref[...], pre_act)
    acc_ref[...] += jnp.dot(a, b_ref[...], preferred_element_type=jnp.float32)

    @pl.when(pl.program_id(2) == pl.num_programs(2) - 1)
    def _():
        r = acc_ref[...] + bias_ref[...]
        if post_act == "tanh":
            r = jnp.tanh(r)
        o_ref[...] = r.astype(o_ref.dtype)


def _gemm_kernel_1k(a_ref, b_ref, bias_ref, o_ref, *, pre_act, post_act):
    # Single K step: no accumulator scratch, no K grid axis.
    a = _apply_pre_act(a_ref[...], pre_act)
    r = jnp.dot(a, b_ref[...], preferred_element_type=jnp.float32) + bias_ref[...]
    if post_act == "tanh":
        r = jnp.tanh(r)
    o_ref[...] = r.astype(o_ref.dtype)


def matmul_pallas(a, b, bias=None, pre_act="none", post_act="none",
                  out_dtype=jnp.bfloat16):
    """a: (M, K), b: (K, N), bias: (N,) or None -> (M, N) out_dtype.

    Operands are bf16 (f32 MXU accumulation); pre_act is applied to A inside the
    kernel, bias + post_act fused in the epilogue.  N is padded lane-dense.
    """
    M, K = a.shape
    K2, N = b.shape
    assert K == K2

    m_cap = 1024 if M >= 1024 else 512
    n_cap = 1024 if N >= 1024 else 512
    tm, Mp = _choose_tile(M, m_cap, 16)        # 16-aligned M: bf16 sublane packing
    tn, Np = _choose_tile(N, n_cap, _LANE)     # lane-dense output (>=128)
    tk, Kp = _choose_tile(K, 1024, _LANE)

    a_p = jnp.pad(a.astype(jnp.bfloat16), ((0, Mp - M), (0, Kp - K)))
    b_p = jnp.pad(b.astype(jnp.bfloat16), ((0, Kp - K), (0, Np - N)))
    bias_p = jnp.zeros((1, Np), jnp.float32)
    if bias is not None:
        bias_p = bias_p.at[0, :N].set(bias.astype(jnp.float32))

    out_bytes = jnp.dtype(out_dtype).itemsize
    cost = pl.CostEstimate(
        flops=2 * M * N * K,
        transcendentals=(M * N if post_act == "tanh" else 0),
        bytes_accessed=M * K * 2 + K * N * 2 + M * N * out_bytes,
    )

    if Kp == tk:
        # -------- single K step: 2-D grid, no accumulator scratch --------
        need = 2 * (tm * tk * 2 + tk * tn * 2 + tm * tn * out_bytes + tn * 4)
        out = pl.pallas_call(
            functools.partial(_gemm_kernel_1k, pre_act=pre_act, post_act=post_act),
            out_shape=jax.ShapeDtypeStruct((Mp, Np), out_dtype),
            grid=(Mp // tm, Np // tn),
            in_specs=[
                pl.BlockSpec((tm, tk), lambda i, j: (i, 0)),
                pl.BlockSpec((tk, tn), lambda i, j: (0, j)),
                pl.BlockSpec((1, tn), lambda i, j: (0, j)),
            ],
            out_specs=pl.BlockSpec((tm, tn), lambda i, j: (i, j)),
            compiler_params=pltpu.CompilerParams(
                dimension_semantics=("parallel", "parallel"),
                vmem_limit_bytes=_vmem_limit(need),
            ),
            cost_estimate=cost,
        )(a_p, b_p, bias_p)
    else:
        # -------- K-tiled reduction: f32 VMEM accumulator, K axis "arbitrary" --------
        need = (2 * (tm * tk * 2 + tk * tn * 2 + tm * tn * out_bytes + tn * 4)
                + tm * tn * 4)
        out = pl.pallas_call(
            functools.partial(_gemm_kernel, pre_act=pre_act, post_act=post_act),
            out_shape=jax.ShapeDtypeStruct((Mp, Np), out_dtype),
            grid=(Mp // tm, Np // tn, Kp // tk),
            in_specs=[
                pl.BlockSpec((tm, tk), lambda i, j, k: (i, k)),
                pl.BlockSpec((tk, tn), lambda i, j, k: (k, j)),
                pl.BlockSpec((1, tn), lambda i, j, k: (0, j)),
            ],
            out_specs=pl.BlockSpec((tm, tn), lambda i, j, k: (i, j)),
            scratch_shapes=[pltpu.VMEM((tm, tn), jnp.float32)],
            compiler_params=pltpu.CompilerParams(
                dimension_semantics=("parallel", "parallel", "arbitrary"),
                vmem_limit_bytes=_vmem_limit(need),
            ),
            cost_estimate=cost,
        )(a_p, b_p, bias_p)
    return out[:M, :N]


# ----------------------------------------------------------------------------
# InstanceNorm2d (affine=False, eps=1e-5): tiled two-pass Pallas pipeline, f32 stats
# ----------------------------------------------------------------------------
def _inorm_stats_kernel(x_ref, mean_ref, inv_ref, sum_ref, sq_ref, *, count):
    @pl.when(pl.program_id(2) == 0)
    def _():
        sum_ref[...] = jnp.zeros_like(sum_ref)
        sq_ref[...] = jnp.zeros_like(sq_ref)

    x = x_ref[...].astype(jnp.float32)                 # (1, schunk, tc)
    sum_ref[...] += jnp.sum(x, axis=1, keepdims=True)
    sq_ref[...] += jnp.sum(x * x, axis=1, keepdims=True)

    @pl.when(pl.program_id(2) == pl.num_programs(2) - 1)
    def _():
        mean = sum_ref[...] * (1.0 / count)
        var = sq_ref[...] * (1.0 / count) - mean * mean
        mean_ref[...] = mean
        inv_ref[...] = lax.rsqrt(var + 1e-5)


def _inorm_apply_kernel(x_ref, mean_ref, inv_ref, o_ref):
    x = x_ref[...].astype(jnp.float32)
    o_ref[...] = ((x - mean_ref[...]) * inv_ref[...]).astype(o_ref.dtype)


def instance_norm_pallas(x):
    """x: (N, S, C) -> per-(n, c) InstanceNorm over S (biased var, eps=1e-5)."""
    N, S, C = x.shape
    tc = math.gcd(C, 512) if C % _LANE == 0 else C     # lane tile (full C if < 128)
    nc = C // tc
    ns = -(-S // 2048)                                  # spatial chunks
    schunk = _round_up(-(-S // ns), 8)
    Sp = schunk * ns
    xp = jnp.pad(x, ((0, 0), (0, Sp - S), (0, 0)))      # zero pad: harmless for sums

    xbytes = jnp.dtype(x.dtype).itemsize
    stats_need = 2 * schunk * tc * xbytes + 6 * tc * 4
    mean, inv = pl.pallas_call(
        functools.partial(_inorm_stats_kernel, count=float(S)),
        out_shape=(jax.ShapeDtypeStruct((N, 1, C), jnp.float32),
                   jax.ShapeDtypeStruct((N, 1, C), jnp.float32)),
        grid=(N, nc, ns),
        in_specs=[pl.BlockSpec((1, schunk, tc), lambda n, c, s: (n, s, c))],
        out_specs=(pl.BlockSpec((1, 1, tc), lambda n, c, s: (n, 0, c)),
                   pl.BlockSpec((1, 1, tc), lambda n, c, s: (n, 0, c))),
        scratch_shapes=[pltpu.VMEM((1, 1, tc), jnp.float32),
                        pltpu.VMEM((1, 1, tc), jnp.float32)],
        compiler_params=pltpu.CompilerParams(
            dimension_semantics=("parallel", "parallel", "arbitrary"),
            vmem_limit_bytes=_vmem_limit(stats_need),
        ),
    )(xp)

    apply_need = 4 * schunk * tc * xbytes + 8 * tc * 4
    out = pl.pallas_call(
        _inorm_apply_kernel,
        out_shape=jax.ShapeDtypeStruct((N, Sp, C), x.dtype),
        grid=(N, nc, ns),
        in_specs=[
            pl.BlockSpec((1, schunk, tc), lambda n, c, s: (n, s, c)),
            pl.BlockSpec((1, 1, tc), lambda n, c, s: (n, 0, c)),
            pl.BlockSpec((1, 1, tc), lambda n, c, s: (n, 0, c)),
        ],
        out_specs=pl.BlockSpec((1, schunk, tc), lambda n, c, s: (n, s, c)),
        compiler_params=pltpu.CompilerParams(
            dimension_semantics=("parallel", "parallel", "parallel"),
            vmem_limit_bytes=_vmem_limit(apply_need),
        ),
    )(xp, mean, inv)
    return out[:, :S, :]


# ----------------------------------------------------------------------------
# im2col glue (plain JAX, NHWC, bf16) + conv / conv-transpose on the Pallas GEMM
# ----------------------------------------------------------------------------
def _im2col_nhwc(x, kh, kw, stride, pad):
    """x: (N, H, W, C) -> cols (N*Ho*Wo, kh*kw*C), K ordered (i, j, c)."""
    N, H, W, C = x.shape
    xp = jnp.pad(x, ((0, 0), (pad, pad), (pad, pad), (0, 0)))
    Ho = (H + 2 * pad - kh) // stride + 1
    Wo = (W + 2 * pad - kw) // stride + 1
    patches = []
    for i in range(kh):
        for j in range(kw):
            patches.append(xp[:, i:i + stride * Ho:stride, j:j + stride * Wo:stride, :])
    col = jnp.stack(patches, axis=3)                    # (N, Ho, Wo, kh*kw, C)
    return col.reshape(N * Ho * Wo, kh * kw * C), Ho, Wo


def conv2d_pallas(x, wm, pre_act="none", kh=4, kw=4, stride=2, pad=1):
    """Conv2d(bias=False): x NHWC bf16, wm pre-packed (kh*kw*Cin, Cout) bf16."""
    N = x.shape[0]
    cout = wm.shape[1]
    col, Ho, Wo = _im2col_nhwc(x, kh, kw, stride, pad)
    out = matmul_pallas(col, wm, None, pre_act=pre_act, out_dtype=jnp.bfloat16)
    return out.reshape(N, Ho, Wo, cout)


# ConvTranspose2d(k=4,s=2,p=1) sub-pixel decomposition:
#   output phase r in {0,1} (per spatial dim) uses kernel taps ky:
#     r=0: input m-1 -> ky=3, input m   -> ky=1
#     r=1: input m   -> ky=2, input m+1 -> ky=0
# so both phases are served by one 3x3 stride-1 window centered at m (pad=1);
# unused taps are zero in the packed weight.
_PHASE_TAPS = {(0, 0): 3, (0, 1): 1, (1, 1): 2, (1, 2): 0}   # (phase, window_tap) -> k idx


def conv_transpose2d_pallas(x, wm, bias4, cout, pre_act="none", post_act="none",
                            out_dtype=jnp.bfloat16):
    """ConvTranspose2d(k=4,s=2,p=1) via one sub-pixel GEMM.

    Returns the GEMM-native sub-pixel layout (N, H, W, 2, 2, cout); the caller
    interleaves (so InstanceNorm can run pre-permute and XLA fuses the permute).
    """
    N, H, W, _ = x.shape
    col, Ho, Wo = _im2col_nhwc(x, 3, 3, 1, 1)                 # Ho=H, Wo=W
    out = matmul_pallas(col, wm, bias4, pre_act=pre_act, post_act=post_act,
                        out_dtype=out_dtype)
    return out.reshape(N, Ho, Wo, 2, 2, cout)


def _subpixel_interleave(y):
    """(N, H, W, 2, 2, C) -> (N, 2H, 2W, C)."""
    N, H, W, _, _, C = y.shape
    return y.transpose(0, 1, 3, 2, 4, 5).reshape(N, 2 * H, 2 * W, C)


# ----------------------------------------------------------------------------
# UNet parameters (raw, f32) + one-time bf16 GEMM-weight packing + forward
# ----------------------------------------------------------------------------
def init_unet_params(key, input_nc, output_nc, num_downs, ngf):
    keys = list(jax.random.split(key, 4 * num_downs + 8))
    kit = iter(keys)

    def norm_init(shape):
        return jax.random.normal(next(kit), shape, jnp.float32) * 0.02

    def make_block(outer_nc, inner_nc, in_nc, submodule, outermost, innermost):
        if in_nc is None:
            in_nc = outer_nc
        up_in = inner_nc if innermost else inner_nc * 2
        return {
            "outermost": outermost,
            "innermost": innermost,
            "submodule": submodule,
            "downconv_w": norm_init((inner_nc, in_nc, 4, 4)),        # Conv2d (O, I, kh, kw)
            "upconv_w": norm_init((up_in, outer_nc, 4, 4)),          # ConvT (I, O, kh, kw)
            "upconv_b": jnp.zeros((outer_nc,), jnp.float32) if outermost else None,
        }

    blk = make_block(ngf * 8, ngf * 8, None, None, False, True)
    for _ in range(num_downs - 5):
        blk = make_block(ngf * 8, ngf * 8, None, blk, False, False)
    blk = make_block(ngf * 4, ngf * 8, None, blk, False, False)
    blk = make_block(ngf * 2, ngf * 4, None, blk, False, False)
    blk = make_block(ngf, ngf * 2, None, blk, False, False)
    blk = make_block(output_nc, ngf, input_nc, blk, True, False)
    return blk


def pack_unet_params(p):
    """Build the bf16 GEMM weight matrices once (not per forward call)."""
    w = p["downconv_w"]                                             # (Cout, Cin, 4, 4)
    down_wm = jnp.transpose(w, (2, 3, 1, 0)).reshape(-1, w.shape[0]).astype(jnp.bfloat16)

    wt = p["upconv_w"]                                              # (Cin, Cout, 4, 4)
    cin, cout = wt.shape[0], wt.shape[1]
    wp = jnp.zeros((3, 3, cin, 2, 2, cout), wt.dtype)
    for (r, dy), ky in _PHASE_TAPS.items():
        for (s, dx), kx in _PHASE_TAPS.items():
            wp = wp.at[dy, dx, :, r, s, :].set(wt[:, :, ky, kx])
    up_wm = wp.reshape(9 * cin, 4 * cout).astype(jnp.bfloat16)      # cols = (r, s, cout)
    up_b4 = (None if p["upconv_b"] is None
             else jnp.tile(p["upconv_b"].astype(jnp.float32), 4))

    return {
        "outermost": p["outermost"],
        "innermost": p["innermost"],
        "down_wm": down_wm,
        "up_wm": up_wm,
        "up_b4": up_b4,
        "up_out_nc": cout,
        "submodule": None if p["submodule"] is None else pack_unet_params(p["submodule"]),
    }


def _block_forward(pk, x):
    """x: NHWC bf16. LeakyReLU/ReLU/Tanh are fused into the GEMM kernels."""
    outermost, innermost = pk["outermost"], pk["innermost"]

    # down: [downrelu?] downconv [downnorm?]  (downrelu fused as GEMM pre-activation)
    pre = "none" if outermost else "lrelu"
    h = conv2d_pallas(x, pk["down_wm"], pre_act=pre)
    if (not outermost) and (not innermost):
        n, hh, ww, c = h.shape
        h = instance_norm_pallas(h.reshape(n, hh * ww, c)).reshape(n, hh, ww, c)

    if not innermost:
        h = _block_forward(pk["submodule"], h)

    # up: uprelu upconv (tanh | upnorm)       (uprelu / tanh fused into the GEMM)
    post = "tanh" if outermost else "none"
    odt = jnp.float32 if outermost else jnp.bfloat16
    h6 = conv_transpose2d_pallas(h, pk["up_wm"], pk["up_b4"], pk["up_out_nc"],
                                 pre_act="relu", post_act=post, out_dtype=odt)
    if outermost:
        return _subpixel_interleave(h6)

    # InstanceNorm on the GEMM-native sub-pixel layout (stats are permutation-invariant),
    # then interleave (XLA fuses the permute into the concat / next im2col).
    n, hh, ww = h6.shape[0], h6.shape[1], h6.shape[2]
    c = h6.shape[5]
    hn = instance_norm_pallas(h6.reshape(n, hh * ww * 4, c)).reshape(h6.shape)
    h = _subpixel_interleave(hn)
    return jnp.concatenate([x, h], axis=-1)              # skip connection (channels, NHWC)


def unet_forward(packed, x_nchw):
    x = jnp.transpose(x_nchw, (0, 2, 3, 1)).astype(jnp.bfloat16)   # one NCHW->NHWC + bf16
    y = _block_forward(packed, x)
    return jnp.transpose(y, (0, 3, 1, 2)).astype(jnp.float32)


# ----------------------------------------------------------------------------
# Pure-JAX f32 reference (lax.conv, NCHW) for self-validation — no torch needed.
# ----------------------------------------------------------------------------
def _conv2d_ref(x, w, stride=2, pad=1):
    return lax.conv_general_dilated(
        x, w, (stride, stride), ((pad, pad), (pad, pad)),
        dimension_numbers=("NCHW", "OIHW", "NCHW"))


def _conv_transpose2d_ref(x, w, bias=None, stride=2, pad=1):
    kh = w.shape[2]
    w_eq = jnp.flip(w, axis=(2, 3)).transpose(1, 0, 2, 3)
    p = kh - 1 - pad
    y = lax.conv_general_dilated(
        x, w_eq, (1, 1), ((p, p), (p, p)), lhs_dilation=(stride, stride),
        dimension_numbers=("NCHW", "OIHW", "NCHW"))
    if bias is not None:
        y = y + bias.reshape(1, -1, 1, 1)
    return y


def _inorm_ref(x):
    mean = jnp.mean(x, axis=(2, 3), keepdims=True)
    var = jnp.mean((x - mean) ** 2, axis=(2, 3), keepdims=True)
    return (x - mean) * lax.rsqrt(var + 1e-5)


def _block_forward_ref(params, x):
    outermost = params["outermost"]
    innermost = params["innermost"]
    h = x
    if not outermost:
        h = jnp.where(h >= 0.0, h, 0.2 * h)
    h = _conv2d_ref(h, params["downconv_w"])
    if (not outermost) and (not innermost):
        h = _inorm_ref(h)
    if not innermost:
        h = _block_forward_ref(params["submodule"], h)
    h = jnp.maximum(h, 0.0)
    h = _conv_transpose2d_ref(h, params["upconv_w"], params["upconv_b"])
    if outermost:
        return jnp.tanh(h)
    h = _inorm_ref(h)
    return jnp.concatenate([x, h], axis=1)


def unet_forward_ref(params, x):
    return _block_forward_ref(params, x)


# ----------------------------------------------------------------------------
if __name__ == "__main__":
    key = jax.random.PRNGKey(0)
    k_x, k_p = jax.random.split(key)

    # Small config consistent with the module: num_downs=5 requires spatial % 32 == 0.
    NUM_DOWNS, NGF, IN_NC, OUT_NC = 5, 8, 3, 3
    B, H, W = 2, 32, 32

    x = jax.random.normal(k_x, (B, IN_NC, H, W), jnp.float32)
    params = init_unet_params(k_p, IN_NC, OUT_NC, NUM_DOWNS, NGF)
    packed = pack_unet_params(params)          # bf16 GEMM weights packed once

    fwd = jax.jit(lambda inp: unet_forward(packed, inp))
    y = jax.block_until_ready(fwd(x))
    assert y.shape == (B, OUT_NC, H, W), y.shape

    ref = jax.jit(lambda inp: unet_forward_ref(params, inp))
    y_ref = jax.block_until_ready(ref(x))
    # bf16 activations + bf16 MXU path vs f32 reference -> relaxed absolute tolerance
    # (tanh output in [-1, 1]).
    max_err = float(jnp.max(jnp.abs(y - y_ref)))
    assert max_err < 0.15, f"max abs diff vs f32 reference: {max_err}"

    print("KERNEL_OK")
</pallas_src>

<mosaic_0001>
module attributes {stable_mosaic.version = 11 : i64} {
  func.func @_gemm_kernel_1k(%arg0: i32, %arg1: i32, %arg2: memref<512x128xbf16, #tpu.memory_space<vmem>>, %arg3: memref<128x128xbf16, #tpu.memory_space<vmem>>, %arg4: memref<1x128xf32, #tpu.memory_space<vmem>>, %arg5: memref<512x128xbf16, #tpu.memory_space<vmem>>) attributes {dimension_semantics = [#tpu.dimension_semantics<parallel>, #tpu.dimension_semantics<parallel>], iteration_bounds = array<i64: 1, 1>, scalar_prefetch = 0 : i64, scratch_operands = 0 : i64, tpu.core_type = #tpu.core_type<tc>, window_params = [{transform_indices = @transform_0, window_bounds = array<i64: 512, 128>}, {transform_indices = @transform_1, window_bounds = array<i64: 128, 128>}, {transform_indices = @transform_2, window_bounds = array<i64: 1, 128>}, {transform_indices = @transform_3, window_bounds = array<i64: 512, 128>}]} {
    %c0 = arith.constant 0 : index
    %c0_0 = arith.constant 0 : index
    %0 = vector.load %arg2[%c0, %c0_0] : memref<512x128xbf16, #tpu.memory_space<vmem>>, vector<512x128xbf16>
    %c0_1 = arith.constant 0 : index
    %c0_2 = arith.constant 0 : index
    %1 = vector.load %arg3[%c0_1, %c0_2] : memref<128x128xbf16, #tpu.memory_space<vmem>>, vector<128x128xbf16>
    %cst = arith.constant dense<0.000000e+00> : vector<512x128xf32>
    %2 = tpu.matmul %0, %1, %cst {dimension_numbers = #tpu.dot_dimension_numbers<[1], [0], [0], [1], [0, 0, 1, 1], [], []>} : vector<512x128xbf16>, vector<128x128xbf16>, vector<512x128xf32> -> vector<512x128xf32>
    %c0_3 = arith.constant 0 : index
    %c0_4 = arith.constant 0 : index
    %3 = vector.load %arg4[%c0_3, %c0_4] : memref<1x128xf32, #tpu.memory_space<vmem>>, vector<1x128xf32>
    %4 = vector.broadcast %3 : vector<1x128xf32> to vector<512x128xf32>
    %5 = arith.addf %2, %4 : vector<512x128xf32>
    %6 = arith.truncf %5 : vector<512x128xf32> to vector<512x128xbf16>
    %c0_5 = arith.constant 0 : index
    %c0_6 = arith.constant 0 : index
    %7 = vector.load %arg5[%c0_5, %c0_6] : memref<512x128xbf16, #tpu.memory_space<vmem>>, vector<512x128xbf16>
    tpu.vector_store %arg5[%c0_5, %c0_6], %6 {strides = array<i32>} : memref<512x128xbf16, #tpu.memory_space<vmem>>, vector<512x128xbf16>,
    return
  }
  func.func @transform_0(%arg0: i32, %arg1: i32) -> (i32, i32) {
    %c0_i32 = arith.constant 0 : i32
    %c0_i32_0 = arith.constant 0 : i32
    return %arg0, %c0_i32 : i32, i32
  }
  func.func @transform_1(%arg0: i32, %arg1: i32) -> (i32, i32) {
    %c0_i32 = arith.constant 0 : i32
    %c0_i32_0 = arith.constant 0 : i32
    return %c0_i32, %arg1 : i32, i32
  }
  func.func @transform_2(%arg0: i32, %arg1: i32) -> (i32, i32) {
    %c0_i32 = arith.constant 0 : i32
    %c0_i32_0 = arith.constant 0 : i32
    return %c0_i32, %arg1 : i32, i32
  }
  func.func @transform_3(%arg0: i32, %arg1: i32) -> (i32, i32) {
    %c0_i32 = arith.constant 0 : i32
    return %arg0, %arg1 : i32, i32
  }
}

module attributes {stable_mosaic.version = 11 : i64} {
  func.func @_gemm_kernel_1k(%arg0: i32, %arg1: i32, %arg2: memref<128x128xbf16, #tpu.memory_space<vmem>>, %arg3: memref<128x128xbf16, #tpu.memory_space<vmem>>, %arg4: memref<1x128xf32, #tpu.memory_space<vmem>>, %arg5: memref<128x128xbf16, #tpu.memory_space<vmem>>) attributes {dimension_semantics = [#tpu.dimension_semantics<parallel>, #tpu.dimension_semantics<parallel>], iteration_bounds = array<i64: 1, 1>, scalar_prefetch = 0 : i64, scratch_operands = 0 : i64, tpu.core_type = #tpu.core_type<tc>, window_params = [{transform_indices = @transform_0, window_bounds = array<i64: 128, 128>}, {transform_indices = @transform_1, window_bounds = array<i64: 128, 128>}, {transform_indices = @transform_2, window_bounds = array<i64: 1, 128>}, {transform_indices = @transform_3, window_bounds = array<i64: 128, 128>}]} {
    %c0 = arith.constant 0 : index
    %c0_0 = arith.constant 0 : index
    %0 = vector.load %arg2[%c0, %c0_0] : memref<128x128xbf16, #tpu.memory_space<vmem>>, vector<128x128xbf16>
    %cst = arith.constant 0.000000e+00 : bf16
    %1 = vector.broadcast %cst : bf16 to vector<128x128xbf16>
    %2 = arith.cmpf oge, %0, %1 : vector<128x128xbf16>
    %cst_1 = arith.constant 2.001950e-01 : bf16
    %3 = vector.broadcast %cst_1 : bf16 to vector<128x128xbf16>
    %4 = arith.mulf %0, %3 : vector<128x128xbf16>
    %5 = arith.select %2, %0, %4 : vector<128x128xi1>, vector<128x128xbf16>
    %c0_2 = arith.constant 0 : index
    %c0_3 = arith.constant 0 : index
    %6 = vector.load %arg3[%c0_2, %c0_3] : memref<128x128xbf16, #tpu.memory_space<vmem>>, vector<128x128xbf16>
    %cst_4 = arith.constant dense<0.000000e+00> : vector<128x128xf32>
    %7 = tpu.matmul %5, %6, %cst_4 {dimension_numbers = #tpu.dot_dimension_numbers<[1], [0], [0], [1], [0, 0, 1, 1], [], []>} : vector<128x128xbf16>, vector<128x128xbf16>, vector<128x128xf32> -> vector<128x128xf32>
    %c0_5 = arith.constant 0 : index
    %c0_6 = arith.constant 0 : index
    %8 = vector.load %arg4[%c0_5, %c0_6] : memref<1x128xf32, #tpu.memory_space<vmem>>, vector<1x128xf32>
    %9 = vector.broadcast %8 : vector<1x128xf32> to vector<128x128xf32>
    %10 = arith.addf %7, %9 : vector<128x128xf32>
    %11 = arith.truncf %10 : vector<128x128xf32> to vector<128x128xbf16>
    %c0_7 = arith.constant 0 : index
    %c0_8 = arith.constant 0 : index
    %12 = vector.load %arg5[%c0_7, %c0_8] : memref<128x128xbf16, #tpu.memory_space<vmem>>, vector<128x128xbf16>
    tpu.vector_store %arg5[%c0_7, %c0_8], %11 {strides = array<i32>} : memref<128x128xbf16, #tpu.memory_space<vmem>>, vector<128x128xbf16>,
    return
  }
  func.func @transform_0(%arg0: i32, %arg1: i32) -> (i32, i32) {
    %c0_i32 = arith.constant 0 : i32
    %c0_i32_0 = arith.constant 0 : i32
    return %arg0, %c0_i32 : i32, i32
  }
  func.func @transform_1(%arg0: i32, %arg1: i32) -> (i32, i32) {
    %c0_i32 = arith.constant 0 : i32
    %c0_i32_0 = arith.constant 0 : i32
    return %c0_i32, %arg1 : i32, i32
  }
  func.func @transform_2(%arg0: i32, %arg1: i32) -> (i32, i32) {
    %c0_i32 = arith.constant 0 : i32
    %c0_i32_0 = arith.constant 0 : i32
    return %c0_i32, %arg1 : i32, i32
  }
  func.func @transform_3(%arg0: i32, %arg1: i32) -> (i32, i32) {
    %c0_i32 = arith.constant 0 : i32
    return %arg0, %arg1 : i32, i32
  }
}

module attributes {stable_mosaic.version = 11 : i64} {
  func.func @_inorm_stats_kernel(%arg0: i32, %arg1: i32, %arg2: i32, %arg3: memref<1x64x16xbf16, #tpu.memory_space<vmem>>, %arg4: memref<1x1x16xf32, #tpu.memory_space<vmem>>, %arg5: memref<1x1x16xf32, #tpu.memory_space<vmem>>, %arg6: memref<1x1x16xf32, #tpu.memory_space<vmem>>, %arg7: memref<1x1x16xf32, #tpu.memory_space<vmem>>) attributes {dimension_semantics = [#tpu.dimension_semantics<parallel>, #tpu.dimension_semantics<parallel>, #tpu.dimension_semantics<arbitrary>], iteration_bounds = array<i64: 2, 1, 1>, scalar_prefetch = 0 : i64, scratch_operands = 2 : i64, tpu.core_type = #tpu.core_type<tc>, window_params = [{transform_indices = @transform_0, window_bounds = array<i64: 1, 64, 16>}, {transform_indices = @transform_1, window_bounds = array<i64: 1, 1, 16>}, {transform_indices = @transform_2, window_bounds = array<i64: 1, 1, 16>}]} {
    %c0_i32 = arith.constant 0 : i32
    %0 = arith.cmpi eq, %arg2, %c0_i32 : i32
    %1 = arith.extui %0 : i1 to i32
    %c0_i32_0 = arith.constant 0 : i32
    %2 = arith.cmpi ne, %1, %c0_i32_0 : i32
    scf.if %2 {
      %cst_18 = arith.constant 0.000000e+00 : f32
      %19 = vector.broadcast %cst_18 : f32 to vector<1x1x16xf32>
      %c0_19 = arith.constant 0 : index
      %c0_20 = arith.constant 0 : index
      %c0_21 = arith.constant 0 : index
      %20 = vector.load %arg6[%c0_19, %c0_20, %c0_21] : memref<1x1x16xf32, #tpu.memory_space<vmem>>, vector<1x1x16xf32>
      tpu.vector_store %arg6[%c0_19, %c0_20, %c0_21], %19 {strides = array<i32>} : memref<1x1x16xf32, #tpu.memory_space<vmem>>, vector<1x1x16xf32>,
      %cst_22 = arith.constant 0.000000e+00 : f32
      %21 = vector.broadcast %cst_22 : f32 to vector<1x1x16xf32>
      %c0_23 = arith.constant 0 : index
      %c0_24 = arith.constant 0 : index
      %c0_25 = arith.constant 0 : index
      %22 = vector.load %arg7[%c0_23, %c0_24, %c0_25] : memref<1x1x16xf32, #tpu.memory_space<vmem>>, vector<1x1x16xf32>
      tpu.vector_store %arg7[%c0_23, %c0_24, %c0_25], %21 {strides = array<i32>} : memref<1x1x16xf32, #tpu.memory_space<vmem>>, vector<1x1x16xf32>,
    } else {
    }
    %c0 = arith.constant 0 : index
    %c0_1 = arith.constant 0 : index
    %c0_2 = arith.constant 0 : index
    %3 = vector.load %arg3[%c0, %c0_1, %c0_2] : memref<1x64x16xbf16, #tpu.memory_space<vmem>>, vector<1x64x16xbf16>
    %4 = arith.extf %3 : vector<1x64x16xbf16> to vector<1x64x16xf32>
    %c0_3 = arith.constant 0 : index
    %c0_4 = arith.constant 0 : index
    %c0_5 = arith.constant 0 : index
    %5 = vector.load %arg6[%c0_3, %c0_4, %c0_5] : memref<1x1x16xf32, #tpu.memory_space<vmem>>, vector<1x1x16xf32>
    %cst = arith.constant dense<0.000000e+00> : vector<1x16xf32>
    %6 = vector.multi_reduction <add>, %4, %cst [1] : vector<1x64x16xf32> to vector<1x16xf32>
    %7 = vector.shape_cast %6 : vector<1x16xf32> to vector<1x1x16xf32>
    %8 = arith.addf %5, %7 : vector<1x1x16xf32>
    %c0_6 = arith.constant 0 : index
    %c0_7 = arith.constant 0 : index
    %c0_8 = arith.constant 0 : index
    %9 = vector.load %arg6[%c0_6, %c0_7, %c0_8] : memref<1x1x16xf32, #tpu.memory_space<vmem>>, vector<1x1x16xf32>
    tpu.vector_store %arg6[%c0_6, %c0_7, %c0_8], %8 {strides = array<i32>} : memref<1x1x16xf32, #tpu.memory_space<vmem>>, vector<1x1x16xf32>,
    %c0_9 = arith.constant 0 : index
    %c0_10 = arith.constant 0 : index
    %c0_11 = arith.constant 0 : index
    %10 = vector.load %arg7[%c0_9, %c0_10, %c0_11] : memref<1x1x16xf32, #tpu.memory_space<vmem>>, vector<1x1x16xf32>
    %11 = arith.mulf %4, %4 : vector<1x64x16xf32>
    %cst_12 = arith.constant dense<0.000000e+00> : vector<1x16xf32>
    %12 = vector.multi_reduction <add>, %11, %cst_12 [1] : vector<1x64x16xf32> to vector<1x16xf32>
    %13 = vector.shape_cast %12 : vector<1x16xf32> to vector<1x1x16xf32>
    %14 = arith.addf %10, %13 : vector<1x1x16xf32>
    %c0_13 = arith.constant 0 : index
    %c0_14 = arith.constant 0 : index
    %c0_15 = arith.constant 0 : index
    %15 = vector.load %arg7[%c0_13, %c0_14, %c0_15] : memref<1x1x16xf32, #tpu.memory_space<vmem>>, vector<1x1x16xf32>
    tpu.vector_store %arg7[%c0_13, %c0_14, %c0_15], %14 {strides = array<i32>} : memref<1x1x16xf32, #tpu.memory_space<vmem>>, vector<1x1x16xf32>,
    %c0_i32_16 = arith.constant 0 : i32
    %16 = arith.cmpi eq, %arg2, %c0_i32_16 : i32
    %17 = arith.extui %16 : i1 to i32
    %c0_i32_17 = arith.constant 0 : i32
    %18 = arith.cmpi ne, %17, %c0_i32_17 : i32
    scf.if %18 {
      %c0_18 = arith.constant 0 : index
      %c0_19 = arith.constant 0 : index
      %c0_20 = arith.constant 0 : index
      %19 = vector.load %arg6[%c0_18, %c0_19, %c0_20] : memref<1x1x16xf32, #tpu.memory_space<vmem>>, vector<1x1x16xf32>
      %cst_21 = arith.constant 1.562500e-02 : f32
      %20 = vector.broadcast %cst_21 : f32 to vector<1x1x16xf32>
      %21 = arith.mulf %19, %20 : vector<1x1x16xf32>
      %c0_22 = arith.constant 0 : index
      %c0_23 = arith.constant 0 : index
      %c0_24 = arith.constant 0 : index
      %22 = vector.load %arg7[%c0_22, %c0_23, %c0_24] : memref<1x1x16xf32, #tpu.memory_space<vmem>>, vector<1x1x16xf32>
      %cst_25 = arith.constant 1.562500e-02 : f32
      %23 = vector.broadcast %cst_25 : f32 to vector<1x1x16xf32>
      %24 = arith.mulf %22, %23 : vector<1x1x16xf32>
      %25 = arith.mulf %21, %21 : vector<1x1x16xf32>
      %26 = arith.subf %24, %25 : vector<1x1x16xf32>
      %c0_26 = arith.constant 0 : index
      %c0_27 = arith.constant 0 : index
      %c0_28 = arith.constant 0 : index
      %27 = vector.load %arg4[%c0_26, %c0_27, %c0_28] : memref<1x1x16xf32, #tpu.memory_space<vmem>>, vector<1x1x16xf32>
      tpu.vector_store %arg4[%c0_26, %c0_27, %c0_28], %21 {strides = array<i32>} : memref<1x1x16xf32, #tpu.memory_space<vmem>>, vector<1x1x16xf32>,
      %cst_29 = arith.constant 9.99999974E-6 : f32
      %28 = vector.broadcast %cst_29 : f32 to vector<1x1x16xf32>
      %29 = arith.addf %26, %28 : vector<1x1x16xf32>
      %30 = math.rsqrt %29 : vector<1x1x16xf32>
      %c0_30 = arith.constant 0 : index
      %c0_31 = arith.constant 0 : index
      %c0_32 = arith.constant 0 : index
      %31 = vector.load %arg5[%c0_30, %c0_31, %c0_32] : memref<1x1x16xf32, #tpu.memory_space<vmem>>, vector<1x1x16xf32>
      tpu.vector_store %arg5[%c0_30, %c0_31, %c0_32], %30 {strides = array<i32>} : memref<1x1x16xf32, #tpu.memory_space<vmem>>, vector<1x1x16xf32>,
    } else {
    }
    return
  }
  func.func @transform_0(%arg0: i32, %arg1: i32, %arg2: i32) -> (i32, i32, i32) {
    %c0_i32 = arith.constant 0 : i32
    return %arg0, %arg2, %arg1 : i32, i32, i32
  }
  func.func @transform_1(%arg0: i32, %arg1: i32, %arg2: i32) -> (i32, i32, i32) {
    %c0_i32 = arith.constant 0 : i32
    %c0_i32_0 = arith.constant 0 : i32
    return %arg0, %c0_i32, %arg1 : i32, i32, i32
  }
  func.func @transform_2(%arg0: i32, %arg1: i32, %arg2: i32) -> (i32, i32, i32) {
    %c0_i32 = arith.constant 0 : i32
    %c0_i32_0 = arith.constant 0 : i32
    return %arg0, %c0_i32, %arg1 : i32, i32, i32
  }
}

module attributes {stable_mosaic.version = 11 : i64} {
  func.func @_inorm_apply_kernel(%arg0: i32, %arg1: i32, %arg2: i32, %arg3: memref<1x64x16xbf16, #tpu.memory_space<vmem>>, %arg4: memref<1x1x16xf32, #tpu.memory_space<vmem>>, %arg5: memref<1x1x16xf32, #tpu.memory_space<vmem>>, %arg6: memref<1x64x16xbf16, #tpu.memory_space<vmem>>) attributes {dimension_semantics = [#tpu.dimension_semantics<parallel>, #tpu.dimension_semantics<parallel>, #tpu.dimension_semantics<parallel>], iteration_bounds = array<i64: 2, 1, 1>, scalar_prefetch = 0 : i64, scratch_operands = 0 : i64, tpu.core_type = #tpu.core_type<tc>, window_params = [{transform_indices = @transform_0, window_bounds = array<i64: 1, 64, 16>}, {transform_indices = @transform_1, window_bounds = array<i64: 1, 1, 16>}, {transform_indices = @transform_2, window_bounds = array<i64: 1, 1, 16>}, {transform_indices = @transform_3, window_bounds = array<i64: 1, 64, 16>}]} {
    %c0 = arith.constant 0 : index
    %c0_0 = arith.constant 0 : index
    %c0_1 = arith.constant 0 : index
    %0 = vector.load %arg3[%c0, %c0_0, %c0_1] : memref<1x64x16xbf16, #tpu.memory_space<vmem>>, vector<1x64x16xbf16>
    %1 = arith.extf %0 : vector<1x64x16xbf16> to vector<1x64x16xf32>
    %c0_2 = arith.constant 0 : index
    %c0_3 = arith.constant 0 : index
    %c0_4 = arith.constant 0 : index
    %2 = vector.load %arg4[%c0_2, %c0_3, %c0_4] : memref<1x1x16xf32, #tpu.memory_space<vmem>>, vector<1x1x16xf32>
    %3 = vector.broadcast %2 : vector<1x1x16xf32> to vector<1x64x16xf32>
    %4 = arith.subf %1, %3 : vector<1x64x16xf32>
    %c0_5 = arith.constant 0 : index
    %c0_6 = arith.constant 0 : index
    %c0_7 = arith.constant 0 : index
    %5 = vector.load %arg5[%c0_5, %c0_6, %c0_7] : memref<1x1x16xf32, #tpu.memory_space<vmem>>, vector<1x1x16xf32>
    %6 = vector.broadcast %5 : vector<1x1x16xf32> to vector<1x64x16xf32>
    %7 = arith.mulf %4, %6 : vector<1x64x16xf32>
    %8 = arith.truncf %7 : vector<1x64x16xf32> to vector<1x64x16xbf16>
    %c0_8 = arith.constant 0 : index
    %c0_9 = arith.constant 0 : index
    %c0_10 = arith.constant 0 : index
    %9 = vector.load %arg6[%c0_8, %c0_9, %c0_10] : memref<1x64x16xbf16, #tpu.memory_space<vmem>>, vector<1x64x16xbf16>
    tpu.vector_store %arg6[%c0_8, %c0_9, %c0_10], %8 {strides = array<i32>} : memref<1x64x16xbf16, #tpu.memory_space<vmem>>, vector<1x64x16xbf16>,
    return
  }
  func.func @transform_0(%arg0: i32, %arg1: i32, %arg2: i32) -> (i32, i32, i32) {
    %c0_i32 = arith.constant 0 : i32
    return %arg0, %arg2, %arg1 : i32, i32, i32
  }
  func.func @transform_1(%arg0: i32, %arg1: i32, %arg2: i32) -> (i32, i32, i32) {
    %c0_i32 = arith.constant 0 : i32
    %c0_i32_0 = arith.constant 0 : i32
    return %arg0, %c0_i32, %arg1 : i32, i32, i32
  }
  func.func @transform_2(%arg0: i32, %arg1: i32, %arg2: i32) -> (i32, i32, i32) {
    %c0_i32 = arith.constant 0 : i32
    %c0_i32_0 = arith.constant 0 : i32
    return %arg0, %c0_i32, %arg1 : i32, i32, i32
  }
  func.func @transform_3(%arg0: i32, %arg1: i32, %arg2: i32) -> (i32, i32, i32) {
    %c0_i32 = arith.constant 0 : i32
    return %arg0, %arg2, %arg1 : i32, i32, i32
  }
}

module attributes {stable_mosaic.version = 11 : i64} {
  func.func @_gemm_kernel_1k(%arg0: i32, %arg1: i32, %arg2: memref<32x256xbf16, #tpu.memory_space<vmem>>, %arg3: memref<256x128xbf16, #tpu.memory_space<vmem>>, %arg4: memref<1x128xf32, #tpu.memory_space<vmem>>, %arg5: memref<32x128xbf16, #tpu.memory_space<vmem>>) attributes {dimension_semantics = [#tpu.dimension_semantics<parallel>, #tpu.dimension_semantics<parallel>], iteration_bounds = array<i64: 1, 1>, scalar_prefetch = 0 : i64, scratch_operands = 0 : i64, tpu.core_type = #tpu.core_type<tc>, window_params = [{transform_indices = @transform_0, window_bounds = array<i64: 32, 256>}, {transform_indices = @transform_1, window_bounds = array<i64: 256, 128>}, {transform_indices = @transform_2, window_bounds = array<i64: 1, 128>}, {transform_indices = @transform_3, window_bounds = array<i64: 32, 128>}]} {
    %c0 = arith.constant 0 : index
    %c0_0 = arith.constant 0 : index
    %0 = vector.load %arg2[%c0, %c0_0] : memref<32x256xbf16, #tpu.memory_space<vmem>>, vector<32x256xbf16>
    %cst = arith.constant 0.000000e+00 : bf16
    %1 = vector.broadcast %cst : bf16 to vector<32x256xbf16>
    %2 = arith.cmpf oge, %0, %1 : vector<32x256xbf16>
    %cst_1 = arith.constant 2.001950e-01 : bf16
    %3 = vector.broadcast %cst_1 : bf16 to vector<32x256xbf16>
    %4 = arith.mulf %0, %3 : vector<32x256xbf16>
    %5 = arith.select %2, %0, %4 : vector<32x256xi1>, vector<32x256xbf16>
    %c0_2 = arith.constant 0 : index
    %c0_3 = arith.constant 0 : index
    %6 = vector.load %arg3[%c0_2, %c0_3] : memref<256x128xbf16, #tpu.memory_space<vmem>>, vector<256x128xbf16>
    %cst_4 = arith.constant dense<0.000000e+00> : vector<32x128xf32>
    %7 = tpu.matmul %5, %6, %cst_4 {dimension_numbers = #tpu.dot_dimension_numbers<[1], [0], [0], [1], [0, 0, 1, 1], [], []>} : vector<32x256xbf16>, vector<256x128xbf16>, vector<32x128xf32> -> vector<32x128xf32>
    %c0_5 = arith.constant 0 : index
    %c0_6 = arith.constant 0 : index
    %8 = vector.load %arg4[%c0_5, %c0_6] : memref<1x128xf32, #tpu.memory_space<vmem>>, vector<1x128xf32>
    %9 = vector.broadcast %8 : vector<1x128xf32> to vector<32x128xf32>
    %10 = arith.addf %7, %9 : vector<32x128xf32>
    %11 = arith.truncf %10 : vector<32x128xf32> to vector<32x128xbf16>
    %c0_7 = arith.constant 0 : index
    %c0_8 = arith.constant 0 : index
    %12 = vector.load %arg5[%c0_7, %c0_8] : memref<32x128xbf16, #tpu.memory_space<vmem>>, vector<32x128xbf16>
    tpu.vector_store %arg5[%c0_7, %c0_8], %11 {strides = array<i32>} : memref<32x128xbf16, #tpu.memory_space<vmem>>, vector<32x128xbf16>,
    return
  }
  func.func @transform_0(%arg0: i32, %arg1: i32) -> (i32, i32) {
    %c0_i32 = arith.constant 0 : i32
    %c0_i32_0 = arith.constant 0 : i32
    return %arg0, %c0_i32 : i32, i32
  }
  func.func @transform_1(%arg0: i32, %arg1: i32) -> (i32, i32) {
    %c0_i32 = arith.constant 0 : i32
    %c0_i32_0 = arith.constant 0 : i32
    return %c0_i32, %arg1 : i32, i32
  }
  func.func @transform_2(%arg0: i32, %arg1: i32) -> (i32, i32) {
    %c0_i32 = arith.constant 0 : i32
    %c0_i32_0 = arith.constant 0 : i32
    return %c0_i32, %arg1 : i32, i32
  }
  func.func @transform_3(%arg0: i32, %arg1: i32) -> (i32, i32) {
    %c0_i32 = arith.constant 0 : i32
    return %arg0, %arg1 : i32, i32
  }
}

module attributes {stable_mosaic.version = 11 : i64} {
  func.func @_inorm_stats_kernel(%arg0: i32, %arg1: i32, %arg2: i32, %arg3: memref<1x16x32xbf16, #tpu.memory_space<vmem>>, %arg4: memref<1x1x32xf32, #tpu.memory_space<vmem>>, %arg5: memref<1x1x32xf32, #tpu.memory_space<vmem>>, %arg6: memref<1x1x32xf32, #tpu.memory_space<vmem>>, %arg7: memref<1x1x32xf32, #tpu.memory_space<vmem>>) attributes {dimension_semantics = [#tpu.dimension_semantics<parallel>, #tpu.dimension_semantics<parallel>, #tpu.dimension_semantics<arbitrary>], iteration_bounds = array<i64: 2, 1, 1>, scalar_prefetch = 0 : i64, scratch_operands = 2 : i64, tpu.core_type = #tpu.core_type<tc>, window_params = [{transform_indices = @transform_0, window_bounds = array<i64: 1, 16, 32>}, {transform_indices = @transform_1, window_bounds = array<i64: 1, 1, 32>}, {transform_indices = @transform_2, window_bounds = array<i64: 1, 1, 32>}]} {
    %c0_i32 = arith.constant 0 : i32
    %0 = arith.cmpi eq, %arg2, %c0_i32 : i32
    %1 = arith.extui %0 : i1 to i32
    %c0_i32_0 = arith.constant 0 : i32
    %2 = arith.cmpi ne, %1, %c0_i32_0 : i32
    scf.if %2 {
      %cst_18 = arith.constant 0.000000e+00 : f32
      %19 = vector.broadcast %cst_18 : f32 to vector<1x1x32xf32>
      %c0_19 = arith.constant 0 : index
      %c0_20 = arith.constant 0 : index
      %c0_21 = arith.constant 0 : index
      %20 = vector.load %arg6[%c0_19, %c0_20, %c0_21] : memref<1x1x32xf32, #tpu.memory_space<vmem>>, vector<1x1x32xf32>
      tpu.vector_store %arg6[%c0_19, %c0_20, %c0_21], %19 {strides = array<i32>} : memref<1x1x32xf32, #tpu.memory_space<vmem>>, vector<1x1x32xf32>,
      %cst_22 = arith.constant 0.000000e+00 : f32
      %21 = vector.broadcast %cst_22 : f32 to vector<1x1x32xf32>
      %c0_23 = arith.constant 0 : index
      %c0_24 = arith.constant 0 : index
      %c0_25 = arith.constant 0 : index
      %22 = vector.load %arg7[%c0_23, %c0_24, %c0_25] : memref<1x1x32xf32, #tpu.memory_space<vmem>>, vector<1x1x32xf32>
      tpu.vector_store %arg7[%c0_23, %c0_24, %c0_25], %21 {strides = array<i32>} : memref<1x1x32xf32, #tpu.memory_space<vmem>>, vector<1x1x32xf32>,
    } else {
    }
    %c0 = arith.constant 0 : index
    %c0_1 = arith.constant 0 : index
    %c0_2 = arith.constant 0 : index
    %3 = vector.load %arg3[%c0, %c0_1, %c0_2] : memref<1x16x32xbf16, #tpu.memory_space<vmem>>, vector<1x16x32xbf16>
    %4 = arith.extf %3 : vector<1x16x32xbf16> to vector<1x16x32xf32>
    %c0_3 = arith.constant 0 : index
    %c0_4 = arith.constant 0 : index
    %c0_5 = arith.constant 0 : index
    %5 = vector.load %arg6[%c0_3, %c0_4, %c0_5] : memref<1x1x32xf32, #tpu.memory_space<vmem>>, vector<1x1x32xf32>
    %cst = arith.constant dense<0.000000e+00> : vector<1x32xf32>
    %6 = vector.multi_reduction <add>, %4, %cst [1] : vector<1x16x32xf32> to vector<1x32xf32>
    %7 = vector.shape_cast %6 : vector<1x32xf32> to vector<1x1x32xf32>
    %8 = arith.addf %5, %7 : vector<1x1x32xf32>
    %c0_6 = arith.constant 0 : index
    %c0_7 = arith.constant 0 : index
    %c0_8 = arith.constant 0 : index
    %9 = vector.load %arg6[%c0_6, %c0_7, %c0_8] : memref<1x1x32xf32, #tpu.memory_space<vmem>>, vector<1x1x32xf32>
    tpu.vector_store %arg6[%c0_6, %c0_7, %c0_8], %8 {strides = array<i32>} : memref<1x1x32xf32, #tpu.memory_space<vmem>>, vector<1x1x32xf32>,
    %c0_9 = arith.constant 0 : index
    %c0_10 = arith.constant 0 : index
    %c0_11 = arith.constant 0 : index
    %10 = vector.load %arg7[%c0_9, %c0_10, %c0_11] : memref<1x1x32xf32, #tpu.memory_space<vmem>>, vector<1x1x32xf32>
    %11 = arith.mulf %4, %4 : vector<1x16x32xf32>
    %cst_12 = arith.constant dense<0.000000e+00> : vector<1x32xf32>
    %12 = vector.multi_reduction <add>, %11, %cst_12 [1] : vector<1x16x32xf32> to vector<1x32xf32>
    %13 = vector.shape_cast %12 : vector<1x32xf32> to vector<1x1x32xf32>
    %14 = arith.addf %10, %13 : vector<1x1x32xf32>
    %c0_13 = arith.constant 0 : index
    %c0_14 = arith.constant 0 : index
    %c0_15 = arith.constant 0 : index
    %15 = vector.load %arg7[%c0_13, %c0_14, %c0_15] : memref<1x1x32xf32, #tpu.memory_space<vmem>>, vector<1x1x32xf32>
    tpu.vector_store %arg7[%c0_13, %c0_14, %c0_15], %14 {strides = array<i32>} : memref<1x1x32xf32, #tpu.memory_space<vmem>>, vector<1x1x32xf32>,
    %c0_i32_16 = arith.constant 0 : i32
    %16 = arith.cmpi eq, %arg2, %c0_i32_16 : i32
    %17 = arith.extui %16 : i1 to i32
    %c0_i32_17 = arith.constant 0 : i32
    %18 = arith.cmpi ne, %17, %c0_i32_17 : i32
    scf.if %18 {
      %c0_18 = arith.constant 0 : index
      %c0_19 = arith.constant 0 : index
      %c0_20 = arith.constant 0 : index
      %19 = vector.load %arg6[%c0_18, %c0_19, %c0_20] : memref<1x1x32xf32, #tpu.memory_space<vmem>>, vector<1x1x32xf32>
      %cst_21 = arith.constant 6.250000e-02 : f32
      %20 = vector.broadcast %cst_21 : f32 to vector<1x1x32xf32>
      %21 = arith.mulf %19, %20 : vector<1x1x32xf32>
      %c0_22 = arith.constant 0 : index
      %c0_23 = arith.constant 0 : index
      %c0_24 = arith.constant 0 : index
      %22 = vector.load %arg7[%c0_22, %c0_23, %c0_24] : memref<1x1x32xf32, #tpu.memory_space<vmem>>, vector<1x1x32xf32>
      %cst_25 = arith.constant 6.250000e-02 : f32
      %23 = vector.broadcast %cst_25 : f32 to vector<1x1x32xf32>
      %24 = arith.mulf %22, %23 : vector<1x1x32xf32>
      %25 = arith.mulf %21, %21 : vector<1x1x32xf32>
      %26 = arith.subf %24, %25 : vector<1x1x32xf32>
      %c0_26 = arith.constant 0 : index
      %c0_27 = arith.constant 0 : index
      %c0_28 = arith.constant 0 : index
      %27 = vector.load %arg4[%c0_26, %c0_27, %c0_28] : memref<1x1x32xf32, #tpu.memory_space<vmem>>, vector<1x1x32xf32>
      tpu.vector_store %arg4[%c0_26, %c0_27, %c0_28], %21 {strides = array<i32>} : memref<1x1x32xf32, #tpu.memory_space<vmem>>, vector<1x1x32xf32>,
      %cst_29 = arith.constant 9.99999974E-6 : f32
      %28 = vector.broadcast %cst_29 : f32 to vector<1x1x32xf32>
      %29 = arith.addf %26, %28 : vector<1x1x32xf32>
      %30 = math.rsqrt %29 : vector<1x1x32xf32>
      %c0_30 = arith.constant 0 : index
      %c0_31 = arith.constant 0 : index
      %c0_32 = arith.constant 0 : index
      %31 = vector.load %arg5[%c0_30, %c0_31, %c0_32] : memref<1x1x32xf32, #tpu.memory_space<vmem>>, vector<1x1x32xf32>
      tpu.vector_store %arg5[%c0_30, %c0_31, %c0_32], %30 {strides = array<i32>} : memref<1x1x32xf32, #tpu.memory_space<vmem>>, vector<1x1x32xf32>,
    } else {
    }
    return
  }
  func.func @transform_0(%arg0: i32, %arg1: i32, %arg2: i32) -> (i32, i32, i32) {
    %c0_i32 = arith.constant 0 : i32
    return %arg0, %arg2, %arg1 : i32, i32, i32
  }
  func.func @transform_1(%arg0: i32, %arg1: i32, %arg2: i32) -> (i32, i32, i32) {
    %c0_i32 = arith.constant 0 : i32
    %c0_i32_0 = arith.constant 0 : i32
    return %arg0, %c0_i32, %arg1 : i32, i32, i32
  }
  func.func @transform_2(%arg0: i32, %arg1: i32, %arg2: i32) -> (i32, i32, i32) {
    %c0_i32 = arith.constant 0 : i32
    %c0_i32_0 = arith.constant 0 : i32
    return %arg0, %c0_i32, %arg1 : i32, i32, i32
  }
}

module attributes {stable_mosaic.version = 11 : i64} {
  func.func @_inorm_apply_kernel(%arg0: i32, %arg1: i32, %arg2: i32, %arg3: memref<1x16x32xbf16, #tpu.memory_space<vmem>>, %arg4: memref<1x1x32xf32, #tpu.memory_space<vmem>>, %arg5: memref<1x1x32xf32, #tpu.memory_space<vmem>>, %arg6: memref<1x16x32xbf16, #tpu.memory_space<vmem>>) attributes {dimension_semantics = [#tpu.dimension_semantics<parallel>, #tpu.dimension_semantics<parallel>, #tpu.dimension_semantics<parallel>], iteration_bounds = array<i64: 2, 1, 1>, scalar_prefetch = 0 : i64, scratch_operands = 0 : i64, tpu.core_type = #tpu.core_type<tc>, window_params = [{transform_indices = @transform_0, window_bounds = array<i64: 1, 16, 32>}, {transform_indices = @transform_1, window_bounds = array<i64: 1, 1, 32>}, {transform_indices = @transform_2, window_bounds = array<i64: 1, 1, 32>}, {transform_indices = @transform_3, window_bounds = array<i64: 1, 16, 32>}]} {
    %c0 = arith.constant 0 : index
    %c0_0 = arith.constant 0 : index
    %c0_1 = arith.constant 0 : index
    %0 = vector.load %arg3[%c0, %c0_0, %c0_1] : memref<1x16x32xbf16, #tpu.memory_space<vmem>>, vector<1x16x32xbf16>
    %1 = arith.extf %0 : vector<1x16x32xbf16> to vector<1x16x32xf32>
    %c0_2 = arith.constant 0 : index
    %c0_3 = arith.constant 0 : index
    %c0_4 = arith.constant 0 : index
    %2 = vector.load %arg4[%c0_2, %c0_3, %c0_4] : memref<1x1x32xf32, #tpu.memory_space<vmem>>, vector<1x1x32xf32>
    %3 = vector.broadcast %2 : vector<1x1x32xf32> to vector<1x16x32xf32>
    %4 = arith.subf %1, %3 : vector<1x16x32xf32>
    %c0_5 = arith.constant 0 : index
    %c0_6 = arith.constant 0 : index
    %c0_7 = arith.constant 0 : index
    %5 = vector.load %arg5[%c0_5, %c0_6, %c0_7] : memref<1x1x32xf32, #tpu.memory_space<vmem>>, vector<1x1x32xf32>
    %6 = vector.broadcast %5 : vector<1x1x32xf32> to vector<1x16x32xf32>
    %7 = arith.mulf %4, %6 : vector<1x16x32xf32>
    %8 = arith.truncf %7 : vector<1x16x32xf32> to vector<1x16x32xbf16>
    %c0_8 = arith.constant 0 : index
    %c0_9 = arith.constant 0 : index
    %c0_10 = arith.constant 0 : index
    %9 = vector.load %arg6[%c0_8, %c0_9, %c0_10] : memref<1x16x32xbf16, #tpu.memory_space<vmem>>, vector<1x16x32xbf16>
    tpu.vector_store %arg6[%c0_8, %c0_9, %c0_10], %8 {strides = array<i32>} : memref<1x16x32xbf16, #tpu.memory_space<vmem>>, vector<1x16x32xbf16>,
    return
  }
  func.func @transform_0(%arg0: i32, %arg1: i32, %arg2: i32) -> (i32, i32, i32) {
    %c0_i32 = arith.constant 0 : i32
    return %arg0, %arg2, %arg1 : i32, i32, i32
  }
  func.func @transform_1(%arg0: i32, %arg1: i32, %arg2: i32) -> (i32, i32, i32) {
    %c0_i32 = arith.constant 0 : i32
    %c0_i32_0 = arith.constant 0 : i32
    return %arg0, %c0_i32, %arg1 : i32, i32, i32
  }
  func.func @transform_2(%arg0: i32, %arg1: i32, %arg2: i32) -> (i32, i32, i32) {
    %c0_i32 = arith.constant 0 : i32
    %c0_i32_0 = arith.constant 0 : i32
    return %arg0, %c0_i32, %arg1 : i32, i32, i32
  }
  func.func @transform_3(%arg0: i32, %arg1: i32, %arg2: i32) -> (i32, i32, i32) {
    %c0_i32 = arith.constant 0 : i32
    return %arg0, %arg2, %arg1 : i32, i32, i32
  }
}

module attributes {stable_mosaic.version = 11 : i64} {
  func.func @_inorm_apply_kernel(%arg0: i32, %arg1: i32, %arg2: i32, %arg3: memref<1x8x64xbf16, #tpu.memory_space<vmem>>, %arg4: memref<1x1x64xf32, #tpu.memory_space<vmem>>, %arg5: memref<1x1x64xf32, #tpu.memory_space<vmem>>, %arg6: memref<1x8x64xbf16, #tpu.memory_space<vmem>>) attributes {dimension_semantics = [#tpu.dimension_semantics<parallel>, #tpu.dimension_semantics<parallel>, #tpu.dimension_semantics<parallel>], iteration_bounds = array<i64: 2, 1, 1>, scalar_prefetch = 0 : i64, scratch_operands = 0 : i64, tpu.core_type = #tpu.core_type<tc>, window_params = [{transform_indices = @transform_0, window_bounds = array<i64: 1, 8, 64>}, {transform_indices = @transform_1, window_bounds = array<i64: 1, 1, 64>}, {transform_indices = @transform_2, window_bounds = array<i64: 1, 1, 64>}, {transform_indices = @transform_3, window_bounds = array<i64: 1, 8, 64>}]} {
    %c0 = arith.constant 0 : index
    %c0_0 = arith.constant 0 : index
    %c0_1 = arith.constant 0 : index
    %0 = vector.load %arg3[%c0, %c0_0, %c0_1] : memref<1x8x64xbf16, #tpu.memory_space<vmem>>, vector<1x8x64xbf16>
    %1 = arith.extf %0 : vector<1x8x64xbf16> to vector<1x8x64xf32>
    %c0_2 = arith.constant 0 : index
    %c0_3 = arith.constant 0 : index
    %c0_4 = arith.constant 0 : index
    %2 = vector.load %arg4[%c0_2, %c0_3, %c0_4] : memref<1x1x64xf32, #tpu.memory_space<vmem>>, vector<1x1x64xf32>
    %3 = vector.broadcast %2 : vector<1x1x64xf32> to vector<1x8x64xf32>
    %4 = arith.subf %1, %3 : vector<1x8x64xf32>
    %c0_5 = arith.constant 0 : index
    %c0_6 = arith.constant 0 : index
    %c0_7 = arith.constant 0 : index
    %5 = vector.load %arg5[%c0_5, %c0_6, %c0_7] : memref<1x1x64xf32, #tpu.memory_space<vmem>>, vector<1x1x64xf32>
    %6 = vector.broadcast %5 : vector<1x1x64xf32> to vector<1x8x64xf32>
    %7 = arith.mulf %4, %6 : vector<1x8x64xf32>
    %8 = arith.truncf %7 : vector<1x8x64xf32> to vector<1x8x64xbf16>
    %c0_8 = arith.constant 0 : index
    %c0_9 = arith.constant 0 : index
    %c0_10 = arith.constant 0 : index
    %9 = vector.load %arg6[%c0_8, %c0_9, %c0_10] : memref<1x8x64xbf16, #tpu.memory_space<vmem>>, vector<1x8x64xbf16>
    tpu.vector_store %arg6[%c0_8, %c0_9, %c0_10], %8 {strides = array<i32>} : memref<1x8x64xbf16, #tpu.memory_space<vmem>>, vector<1x8x64xbf16>,
    return
  }
  func.func @transform_0(%arg0: i32, %arg1: i32, %arg2: i32) -> (i32, i32, i32) {
    %c0_i32 = arith.constant 0 : i32
    return %arg0, %arg2, %arg1 : i32, i32, i32
  }
  func.func @transform_1(%arg0: i32, %arg1: i32, %arg2: i32) -> (i32, i32, i32) {
    %c0_i32 = arith.constant 0 : i32
    %c0_i32_0 = arith.constant 0 : i32
    return %arg0, %c0_i32, %arg1 : i32, i32, i32
  }
  func.func @transform_2(%arg0: i32, %arg1: i32, %arg2: i32) -> (i32, i32, i32) {
    %c0_i32 = arith.constant 0 : i32
    %c0_i32_0 = arith.constant 0 : i32
    return %arg0, %c0_i32, %arg1 : i32, i32, i32
  }
  func.func @transform_3(%arg0: i32, %arg1: i32, %arg2: i32) -> (i32, i32, i32) {
    %c0_i32 = arith.constant 0 : i32
    return %arg0, %arg2, %arg1 : i32, i32, i32
  }
}

module attributes {stable_mosaic.version = 11 : i64} {
  func.func @_inorm_stats_kernel(%arg0: i32, %arg1: i32, %arg2: i32, %arg3: memref<1x8x64xbf16, #tpu.memory_space<vmem>>, %arg4: memref<1x1x64xf32, #tpu.memory_space<vmem>>, %arg5: memref<1x1x64xf32, #tpu.memory_space<vmem>>, %arg6: memref<1x1x64xf32, #tpu.memory_space<vmem>>, %arg7: memref<1x1x64xf32, #tpu.memory_space<vmem>>) attributes {dimension_semantics = [#tpu.dimension_semantics<parallel>, #tpu.dimension_semantics<parallel>, #tpu.dimension_semantics<arbitrary>], iteration_bounds = array<i64: 2, 1, 1>, scalar_prefetch = 0 : i64, scratch_operands = 2 : i64, tpu.core_type = #tpu.core_type<tc>, window_params = [{transform_indices = @transform_0, window_bounds = array<i64: 1, 8, 64>}, {transform_indices = @transform_1, window_bounds = array<i64: 1, 1, 64>}, {transform_indices = @transform_2, window_bounds = array<i64: 1, 1, 64>}]} {
    %c0_i32 = arith.constant 0 : i32
    %0 = arith.cmpi eq, %arg2, %c0_i32 : i32
    %1 = arith.extui %0 : i1 to i32
    %c0_i32_0 = arith.constant 0 : i32
    %2 = arith.cmpi ne, %1, %c0_i32_0 : i32
    scf.if %2 {
      %cst_18 = arith.constant 0.000000e+00 : f32
      %19 = vector.broadcast %cst_18 : f32 to vector<1x1x64xf32>
      %c0_19 = arith.constant 0 : index
      %c0_20 = arith.constant 0 : index
      %c0_21 = arith.constant 0 : index
      %20 = vector.load %arg6[%c0_19, %c0_20, %c0_21] : memref<1x1x64xf32, #tpu.memory_space<vmem>>, vector<1x1x64xf32>
      tpu.vector_store %arg6[%c0_19, %c0_20, %c0_21], %19 {strides = array<i32>} : memref<1x1x64xf32, #tpu.memory_space<vmem>>, vector<1x1x64xf32>,
      %cst_22 = arith.constant 0.000000e+00 : f32
      %21 = vector.broadcast %cst_22 : f32 to vector<1x1x64xf32>
      %c0_23 = arith.constant 0 : index
      %c0_24 = arith.constant 0 : index
      %c0_25 = arith.constant 0 : index
      %22 = vector.load %arg7[%c0_23, %c0_24, %c0_25] : memref<1x1x64xf32, #tpu.memory_space<vmem>>, vector<1x1x64xf32>
      tpu.vector_store %arg7[%c0_23, %c0_24, %c0_25], %21 {strides = array<i32>} : memref<1x1x64xf32, #tpu.memory_space<vmem>>, vector<1x1x64xf32>,
    } else {
    }
    %c0 = arith.constant 0 : index
    %c0_1 = arith.constant 0 : index
    %c0_2 = arith.constant 0 : index
    %3 = vector.load %arg3[%c0, %c0_1, %c0_2] : memref<1x8x64xbf16, #tpu.memory_space<vmem>>, vector<1x8x64xbf16>
    %4 = arith.extf %3 : vector<1x8x64xbf16> to vector<1x8x64xf32>
    %c0_3 = arith.constant 0 : index
    %c0_4 = arith.constant 0 : index
    %c0_5 = arith.constant 0 : index
    %5 = vector.load %arg6[%c0_3, %c0_4, %c0_5] : memref<1x1x64xf32, #tpu.memory_space<vmem>>, vector<1x1x64xf32>
    %cst = arith.constant dense<0.000000e+00> : vector<1x64xf32>
    %6 = vector.multi_reduction <add>, %4, %cst [1] : vector<1x8x64xf32> to vector<1x64xf32>
    %7 = vector.shape_cast %6 : vector<1x64xf32> to vector<1x1x64xf32>
    %8 = arith.addf %5, %7 : vector<1x1x64xf32>
    %c0_6 = arith.constant 0 : index
    %c0_7 = arith.constant 0 : index
    %c0_8 = arith.constant 0 : index
    %9 = vector.load %arg6[%c0_6, %c0_7, %c0_8] : memref<1x1x64xf32, #tpu.memory_space<vmem>>, vector<1x1x64xf32>
    tpu.vector_store %arg6[%c0_6, %c0_7, %c0_8], %8 {strides = array<i32>} : memref<1x1x64xf32, #tpu.memory_space<vmem>>, vector<1x1x64xf32>,
    %c0_9 = arith.constant 0 : index
    %c0_10 = arith.constant 0 : index
    %c0_11 = arith.constant 0 : index
    %10 = vector.load %arg7[%c0_9, %c0_10, %c0_11] : memref<1x1x64xf32, #tpu.memory_space<vmem>>, vector<1x1x64xf32>
    %11 = arith.mulf %4, %4 : vector<1x8x64xf32>
    %cst_12 = arith.constant dense<0.000000e+00> : vector<1x64xf32>
    %12 = vector.multi_reduction <add>, %11, %cst_12 [1] : vector<1x8x64xf32> to vector<1x64xf32>
    %13 = vector.shape_cast %12 : vector<1x64xf32> to vector<1x1x64xf32>
    %14 = arith.addf %10, %13 : vector<1x1x64xf32>
    %c0_13 = arith.constant 0 : index
    %c0_14 = arith.constant 0 : index
    %c0_15 = arith.constant 0 : index
    %15 = vector.load %arg7[%c0_13, %c0_14, %c0_15] : memref<1x1x64xf32, #tpu.memory_space<vmem>>, vector<1x1x64xf32>
    tpu.vector_store %arg7[%c0_13, %c0_14, %c0_15], %14 {strides = array<i32>} : memref<1x1x64xf32, #tpu.memory_space<vmem>>, vector<1x1x64xf32>,
    %c0_i32_16 = arith.constant 0 : i32
    %16 = arith.cmpi eq, %arg2, %c0_i32_16 : i32
    %17 = arith.extui %16 : i1 to i32
    %c0_i32_17 = arith.constant 0 : i32
    %18 = arith.cmpi ne, %17, %c0_i32_17 : i32
    scf.if %18 {
      %c0_18 = arith.constant 0 : index
      %c0_19 = arith.constant 0 : index
      %c0_20 = arith.constant 0 : index
      %19 = vector.load %arg6[%c0_18, %c0_19, %c0_20] : memref<1x1x64xf32, #tpu.memory_space<vmem>>, vector<1x1x64xf32>
      %cst_21 = arith.constant 2.500000e-01 : f32
      %20 = vector.broadcast %cst_21 : f32 to vector<1x1x64xf32>
      %21 = arith.mulf %19, %20 : vector<1x1x64xf32>
      %c0_22 = arith.constant 0 : index
      %c0_23 = arith.constant 0 : index
      %c0_24 = arith.constant 0 : index
      %22 = vector.load %arg7[%c0_22, %c0_23, %c0_24] : memref<1x1x64xf32, #tpu.memory_space<vmem>>, vector<1x1x64xf32>
      %cst_25 = arith.constant 2.500000e-01 : f32
      %23 = vector.broadcast %cst_25 : f32 to vector<1x1x64xf32>
      %24 = arith.mulf %22, %23 : vector<1x1x64xf32>
      %25 = arith.mulf %21, %21 : vector<1x1x64xf32>
      %26 = arith.subf %24, %25 : vector<1x1x64xf32>
      %c0_26 = arith.constant 0 : index
      %c0_27 = arith.constant 0 : index
      %c0_28 = arith.constant 0 : index
      %27 = vector.load %arg4[%c0_26, %c0_27, %c0_28] : memref<1x1x64xf32, #tpu.memory_space<vmem>>, vector<1x1x64xf32>
      tpu.vector_store %arg4[%c0_26, %c0_27, %c0_28], %21 {strides = array<i32>} : memref<1x1x64xf32, #tpu.memory_space<vmem>>, vector<1x1x64xf32>,
      %cst_29 = arith.constant 9.99999974E-6 : f32
      %28 = vector.broadcast %cst_29 : f32 to vector<1x1x64xf32>
      %29 = arith.addf %26, %28 : vector<1x1x64xf32>
      %30 = math.rsqrt %29 : vector<1x1x64xf32>
      %c0_30 = arith.constant 0 : index
      %c0_31 = arith.constant 0 : index
      %c0_32 = arith.constant 0 : index
      %31 = vector.load %arg5[%c0_30, %c0_31, %c0_32] : memref<1x1x64xf32, #tpu.memory_space<vmem>>, vector<1x1x64xf32>
      tpu.vector_store %arg5[%c0_30, %c0_31, %c0_32], %30 {strides = array<i32>} : memref<1x1x64xf32, #tpu.memory_space<vmem>>, vector<1x1x64xf32>,
    } else {
    }
    return
  }
  func.func @transform_0(%arg0: i32, %arg1: i32, %arg2: i32) -> (i32, i32, i32) {
    %c0_i32 = arith.constant 0 : i32
    return %arg0, %arg2, %arg1 : i32, i32, i32
  }
  func.func @transform_1(%arg0: i32, %arg1: i32, %arg2: i32) -> (i32, i32, i32) {
    %c0_i32 = arith.constant 0 : i32
    %c0_i32_0 = arith.constant 0 : i32
    return %arg0, %c0_i32, %arg1 : i32, i32, i32
  }
  func.func @transform_2(%arg0: i32, %arg1: i32, %arg2: i32) -> (i32, i32, i32) {
    %c0_i32 = arith.constant 0 : i32
    %c0_i32_0 = arith.constant 0 : i32
    return %arg0, %c0_i32, %arg1 : i32, i32, i32
  }
}

module attributes {stable_mosaic.version = 11 : i64} {
  func.func @_gemm_kernel_1k(%arg0: i32, %arg1: i32, %arg2: memref<16x512xbf16, #tpu.memory_space<vmem>>, %arg3: memref<512x128xbf16, #tpu.memory_space<vmem>>, %arg4: memref<1x128xf32, #tpu.memory_space<vmem>>, %arg5: memref<16x128xbf16, #tpu.memory_space<vmem>>) attributes {dimension_semantics = [#tpu.dimension_semantics<parallel>, #tpu.dimension_semantics<parallel>], iteration_bounds = array<i64: 1, 1>, scalar_prefetch = 0 : i64, scratch_operands = 0 : i64, tpu.core_type = #tpu.core_type<tc>, window_params = [{transform_indices = @transform_0, window_bounds = array<i64: 16, 512>}, {transform_indices = @transform_1, window_bounds = array<i64: 512, 128>}, {transform_indices = @transform_2, window_bounds = array<i64: 1, 128>}, {transform_indices = @transform_3, window_bounds = array<i64: 16, 128>}]} {
    %c0 = arith.constant 0 : index
    %c0_0 = arith.constant 0 : index
    %0 = vector.load %arg2[%c0, %c0_0] : memref<16x512xbf16, #tpu.memory_space<vmem>>, vector<16x512xbf16>
    %cst = arith.constant 0.000000e+00 : bf16
    %1 = vector.broadcast %cst : bf16 to vector<16x512xbf16>
    %2 = arith.cmpf oge, %0, %1 : vector<16x512xbf16>
    %cst_1 = arith.constant 2.001950e-01 : bf16
    %3 = vector.broadcast %cst_1 : bf16 to vector<16x512xbf16>
    %4 = arith.mulf %0, %3 : vector<16x512xbf16>
    %5 = arith.select %2, %0, %4 : vector<16x512xi1>, vector<16x512xbf16>
    %c0_2 = arith.constant 0 : index
    %c0_3 = arith.constant 0 : index
    %6 = vector.load %arg3[%c0_2, %c0_3] : memref<512x128xbf16, #tpu.memory_space<vmem>>, vector<512x128xbf16>
    %cst_4 = arith.constant dense<0.000000e+00> : vector<16x128xf32>
    %7 = tpu.matmul %5, %6, %cst_4 {dimension_numbers = #tpu.dot_dimension_numbers<[1], [0], [0], [1], [0, 0, 1, 1], [], []>} : vector<16x512xbf16>, vector<512x128xbf16>, vector<16x128xf32> -> vector<16x128xf32>
    %c0_5 = arith.constant 0 : index
    %c0_6 = arith.constant 0 : index
    %8 = vector.load %arg4[%c0_5, %c0_6] : memref<1x128xf32, #tpu.memory_space<vmem>>, vector<1x128xf32>
    %9 = vector.broadcast %8 : vector<1x128xf32> to vector<16x128xf32>
    %10 = arith.addf %7, %9 : vector<16x128xf32>
    %11 = arith.truncf %10 : vector<16x128xf32> to vector<16x128xbf16>
    %c0_7 = arith.constant 0 : index
    %c0_8 = arith.constant 0 : index
    %12 = vector.load %arg5[%c0_7, %c0_8] : memref<16x128xbf16, #tpu.memory_space<vmem>>, vector<16x128xbf16>
    tpu.vector_store %arg5[%c0_7, %c0_8], %11 {strides = array<i32>} : memref<16x128xbf16, #tpu.memory_space<vmem>>, vector<16x128xbf16>,
    return
  }
  func.func @transform_0(%arg0: i32, %arg1: i32) -> (i32, i32) {
    %c0_i32 = arith.constant 0 : i32
    %c0_i32_0 = arith.constant 0 : i32
    return %arg0, %c0_i32 : i32, i32
  }
  func.func @transform_1(%arg0: i32, %arg1: i32) -> (i32, i32) {
    %c0_i32 = arith.constant 0 : i32
    %c0_i32_0 = arith.constant 0 : i32
    return %c0_i32, %arg1 : i32, i32
  }
  func.func @transform_2(%arg0: i32, %arg1: i32) -> (i32, i32) {
    %c0_i32 = arith.constant 0 : i32
    %c0_i32_0 = arith.constant 0 : i32
    return %c0_i32, %arg1 : i32, i32
  }
  func.func @transform_3(%arg0: i32, %arg1: i32) -> (i32, i32) {
    %c0_i32 = arith.constant 0 : i32
    return %arg0, %arg1 : i32, i32
  }
}

module attributes {stable_mosaic.version = 11 : i64} {
  func.func @_gemm_kernel_1k(%arg0: i32, %arg1: i32, %arg2: memref<16x1024xbf16, #tpu.memory_space<vmem>>, %arg3: memref<1024x128xbf16, #tpu.memory_space<vmem>>, %arg4: memref<1x128xf32, #tpu.memory_space<vmem>>, %arg5: memref<16x128xbf16, #tpu.memory_space<vmem>>) attributes {dimension_semantics = [#tpu.dimension_semantics<parallel>, #tpu.dimension_semantics<parallel>], iteration_bounds = array<i64: 1, 1>, scalar_prefetch = 0 : i64, scratch_operands = 0 : i64, tpu.core_type = #tpu.core_type<tc>, window_params = [{transform_indices = @transform_0, window_bounds = array<i64: 16, 1024>}, {transform_indices = @transform_1, window_bounds = array<i64: 1024, 128>}, {transform_indices = @transform_2, window_bounds = array<i64: 1, 128>}, {transform_indices = @transform_3, window_bounds = array<i64: 16, 128>}]} {
    %c0 = arith.constant 0 : index
    %c0_0 = arith.constant 0 : index
    %0 = vector.load %arg2[%c0, %c0_0] : memref<16x1024xbf16, #tpu.memory_space<vmem>>, vector<16x1024xbf16>
    %cst = arith.constant 0.000000e+00 : bf16
    %1 = vector.broadcast %cst : bf16 to vector<16x1024xbf16>
    %2 = arith.cmpf oge, %0, %1 : vector<16x1024xbf16>
    %cst_1 = arith.constant 2.001950e-01 : bf16
    %3 = vector.broadcast %cst_1 : bf16 to vector<16x1024xbf16>
    %4 = arith.mulf %0, %3 : vector<16x1024xbf16>
    %5 = arith.select %2, %0, %4 : vector<16x1024xi1>, vector<16x1024xbf16>
    %c0_2 = arith.constant 0 : index
    %c0_3 = arith.constant 0 : index
    %6 = vector.load %arg3[%c0_2, %c0_3] : memref<1024x128xbf16, #tpu.memory_space<vmem>>, vector<1024x128xbf16>
    %cst_4 = arith.constant dense<0.000000e+00> : vector<16x128xf32>
    %7 = tpu.matmul %5, %6, %cst_4 {dimension_numbers = #tpu.dot_dimension_numbers<[1], [0], [0], [1], [0, 0, 1, 1], [], []>} : vector<16x1024xbf16>, vector<1024x128xbf16>, vector<16x128xf32> -> vector<16x128xf32>
    %c0_5 = arith.constant 0 : index
    %c0_6 = arith.constant 0 : index
    %8 = vector.load %arg4[%c0_5, %c0_6] : memref<1x128xf32, #tpu.memory_space<vmem>>, vector<1x128xf32>
    %9 = vector.broadcast %8 : vector<1x128xf32> to vector<16x128xf32>
    %10 = arith.addf %7, %9 : vector<16x128xf32>
    %11 = arith.truncf %10 : vector<16x128xf32> to vector<16x128xbf16>
    %c0_7 = arith.constant 0 : index
    %c0_8 = arith.constant 0 : index
    %12 = vector.load %arg5[%c0_7, %c0_8] : memref<16x128xbf16, #tpu.memory_space<vmem>>, vector<16x128xbf16>
    tpu.vector_store %arg5[%c0_7, %c0_8], %11 {strides = array<i32>} : memref<16x128xbf16, #tpu.memory_space<vmem>>, vector<16x128xbf16>,
    return
  }
  func.func @transform_0(%arg0: i32, %arg1: i32) -> (i32, i32) {
    %c0_i32 = arith.constant 0 : i32
    %c0_i32_0 = arith.constant 0 : i32
    return %arg0, %c0_i32 : i32, i32
  }
  func.func @transform_1(%arg0: i32, %arg1: i32) -> (i32, i32) {
    %c0_i32 = arith.constant 0 : i32
    %c0_i32_0 = arith.constant 0 : i32
    return %c0_i32, %arg1 : i32, i32
  }
  func.func @transform_2(%arg0: i32, %arg1: i32) -> (i32, i32) {
    %c0_i32 = arith.constant 0 : i32
    %c0_i32_0 = arith.constant 0 : i32
    return %c0_i32, %arg1 : i32, i32
  }
  func.func @transform_3(%arg0: i32, %arg1: i32) -> (i32, i32) {
    %c0_i32 = arith.constant 0 : i32
    return %arg0, %arg1 : i32, i32
  }
}

module attributes {stable_mosaic.version = 11 : i64} {
  func.func @_gemm_kernel_1k(%arg0: i32, %arg1: i32, %arg2: memref<16x640xbf16, #tpu.memory_space<vmem>>, %arg3: memref<640x256xbf16, #tpu.memory_space<vmem>>, %arg4: memref<1x256xf32, #tpu.memory_space<vmem>>, %arg5: memref<16x256xbf16, #tpu.memory_space<vmem>>) attributes {dimension_semantics = [#tpu.dimension_semantics<parallel>, #tpu.dimension_semantics<parallel>], iteration_bounds = array<i64: 1, 1>, scalar_prefetch = 0 : i64, scratch_operands = 0 : i64, tpu.core_type = #tpu.core_type<tc>, window_params = [{transform_indices = @transform_0, window_bounds = array<i64: 16, 640>}, {transform_indices = @transform_1, window_bounds = array<i64: 640, 256>}, {transform_indices = @transform_2, window_bounds = array<i64: 1, 256>}, {transform_indices = @transform_3, window_bounds = array<i64: 16, 256>}]} {
    %c0 = arith.constant 0 : index
    %c0_0 = arith.constant 0 : index
    %0 = vector.load %arg2[%c0, %c0_0] : memref<16x640xbf16, #tpu.memory_space<vmem>>, vector<16x640xbf16>
    %cst = arith.constant 0.000000e+00 : bf16
    %1 = vector.broadcast %cst : bf16 to vector<16x640xbf16>
    %2 = arith.maximumf %0, %1 : vector<16x640xbf16>
    %c0_1 = arith.constant 0 : index
    %c0_2 = arith.constant 0 : index
    %3 = vector.load %arg3[%c0_1, %c0_2] : memref<640x256xbf16, #tpu.memory_space<vmem>>, vector<640x256xbf16>
    %cst_3 = arith.constant dense<0.000000e+00> : vector<16x256xf32>
    %4 = tpu.matmul %2, %3, %cst_3 {dimension_numbers = #tpu.dot_dimension_numbers<[1], [0], [0], [1], [0, 0, 1, 1], [], []>} : vector<16x640xbf16>, vector<640x256xbf16>, vector<16x256xf32> -> vector<16x256xf32>
    %c0_4 = arith.constant 0 : index
    %c0_5 = arith.constant 0 : index
    %5 = vector.load %arg4[%c0_4, %c0_5] : memref<1x256xf32, #tpu.memory_space<vmem>>, vector<1x256xf32>
    %6 = vector.broadcast %5 : vector<1x256xf32> to vector<16x256xf32>
    %7 = arith.addf %4, %6 : vector<16x256xf32>
    %8 = arith.truncf %7 : vector<16x256xf32> to vector<16x256xbf16>
    %c0_6 = arith.constant 0 : index
    %c0_7 = arith.constant 0 : index
    %9 = vector.load %arg5[%c0_6, %c0_7] : memref<16x256xbf16, #tpu.memory_space<vmem>>, vector<16x256xbf16>
    tpu.vector_store %arg5[%c0_6, %c0_7], %8 {strides = array<i32>} : memref<16x256xbf16, #tpu.memory_space<vmem>>, vector<16x256xbf16>,
    return
  }
  func.func @transform_0(%arg0: i32, %arg1: i32) -> (i32, i32) {
    %c0_i32 = arith.constant 0 : i32
    %c0_i32_0 = arith.constant 0 : i32
    return %arg0, %c0_i32 : i32, i32
  }
  func.func @transform_1(%arg0: i32, %arg1: i32) -> (i32, i32) {
    %c0_i32 = arith.constant 0 : i32
    %c0_i32_0 = arith.constant 0 : i32
    return %c0_i32, %arg1 : i32, i32
  }
  func.func @transform_2(%arg0: i32, %arg1: i32) -> (i32, i32) {
    %c0_i32 = arith.constant 0 : i32
    %c0_i32_0 = arith.constant 0 : i32
    return %c0_i32, %arg1 : i32, i32
  }
  func.func @transform_3(%arg0: i32, %arg1: i32) -> (i32, i32) {
    %c0_i32 = arith.constant 0 : i32
    return %arg0, %arg1 : i32, i32
  }
}

module attributes {stable_mosaic.version = 11 : i64} {
  func.func @_gemm_kernel(%arg0: i32, %arg1: i32, %arg2: i32, %arg3: memref<16x640xbf16, #tpu.memory_space<vmem>>, %arg4: memref<640x128xbf16, #tpu.memory_space<vmem>>, %arg5: memref<1x128xf32, #tpu.memory_space<vmem>>, %arg6: memref<16x128xbf16, #tpu.memory_space<vmem>>, %arg7: memref<16x128xf32, #tpu.memory_space<vmem>>) attributes {dimension_semantics = [#tpu.dimension_semantics<parallel>, #tpu.dimension_semantics<parallel>, #tpu.dimension_semantics<arbitrary>], iteration_bounds = array<i64: 1, 1, 2>, scalar_prefetch = 0 : i64, scratch_operands = 1 : i64, tpu.core_type = #tpu.core_type<tc>, window_params = [{transform_indices = @transform_0, window_bounds = array<i64: 16, 640>}, {transform_indices = @transform_1, window_bounds = array<i64: 640, 128>}, {transform_indices = @transform_2, window_bounds = array<i64: 1, 128>}, {transform_indices = @transform_3, window_bounds = array<i64: 16, 128>}]} {
    %c0_i32 = arith.constant 0 : i32
    %0 = arith.cmpi eq, %arg2, %c0_i32 : i32
    %1 = arith.extui %0 : i1 to i32
    %c0_i32_0 = arith.constant 0 : i32
    %2 = arith.cmpi ne, %1, %c0_i32_0 : i32
    scf.if %2 {
      %cst_10 = arith.constant 0.000000e+00 : f32
      %14 = vector.broadcast %cst_10 : f32 to vector<16x128xf32>
      %c0_11 = arith.constant 0 : index
      %c0_12 = arith.constant 0 : index
      %15 = vector.load %arg7[%c0_11, %c0_12] : memref<16x128xf32, #tpu.memory_space<vmem>>, vector<16x128xf32>
      tpu.vector_store %arg7[%c0_11, %c0_12], %14 {strides = array<i32>} : memref<16x128xf32, #tpu.memory_space<vmem>>, vector<16x128xf32>,
    } else {
    }
    %c0 = arith.constant 0 : index
    %c0_1 = arith.constant 0 : index
    %3 = vector.load %arg3[%c0, %c0_1] : memref<16x640xbf16, #tpu.memory_space<vmem>>, vector<16x640xbf16>
    %cst = arith.constant 0.000000e+00 : bf16
    %4 = vector.broadcast %cst : bf16 to vector<16x640xbf16>
    %5 = arith.maximumf %3, %4 : vector<16x640xbf16>
    %c0_2 = arith.constant 0 : index
    %c0_3 = arith.constant 0 : index
    %6 = vector.load %arg7[%c0_2, %c0_3] : memref<16x128xf32, #tpu.memory_space<vmem>>, vector<16x128xf32>
    %c0_4 = arith.constant 0 : index
    %c0_5 = arith.constant 0 : index
    %7 = vector.load %arg4[%c0_4, %c0_5] : memref<640x128xbf16, #tpu.memory_space<vmem>>, vector<640x128xbf16>
    %cst_6 = arith.constant dense<0.000000e+00> : vector<16x128xf32>
    %8 = tpu.matmul %5, %7, %cst_6 {dimension_numbers = #tpu.dot_dimension_numbers<[1], [0], [0], [1], [0, 0, 1, 1], [], []>} : vector<16x640xbf16>, vector<640x128xbf16>, vector<16x128xf32> -> vector<16x128xf32>
    %9 = arith.addf %6, %8 : vector<16x128xf32>
    %c0_7 = arith.constant 0 : index
    %c0_8 = arith.constant 0 : index
    %10 = vector.load %arg7[%c0_7, %c0_8] : memref<16x128xf32, #tpu.memory_space<vmem>>, vector<16x128xf32>
    tpu.vector_store %arg7[%c0_7, %c0_8], %9 {strides = array<i32>} : memref<16x128xf32, #tpu.memory_space<vmem>>, vector<16x128xf32>,
    %c1_i32 = arith.constant 1 : i32
    %11 = arith.cmpi eq, %arg2, %c1_i32 : i32
    %12 = arith.extui %11 : i1 to i32
    %c0_i32_9 = arith.constant 0 : i32
    %13 = arith.cmpi ne, %12, %c0_i32_9 : i32
    scf.if %13 {
      %c0_10 = arith.constant 0 : index
      %c0_11 = arith.constant 0 : index
      %14 = vector.load %arg7[%c0_10, %c0_11] : memref<16x128xf32, #tpu.memory_space<vmem>>, vector<16x128xf32>
      %c0_12 = arith.constant 0 : index
      %c0_13 = arith.constant 0 : index
      %15 = vector.load %arg5[%c0_12, %c0_13] : memref<1x128xf32, #tpu.memory_space<vmem>>, vector<1x128xf32>
      %16 = vector.broadcast %15 : vector<1x128xf32> to vector<16x128xf32>
      %17 = arith.addf %14, %16 : vector<16x128xf32>
      %18 = arith.truncf %17 : vector<16x128xf32> to vector<16x128xbf16>
      %c0_14 = arith.constant 0 : index
      %c0_15 = arith.constant 0 : index
      %19 = vector.load %arg6[%c0_14, %c0_15] : memref<16x128xbf16, #tpu.memory_space<vmem>>, vector<16x128xbf16>
      tpu.vector_store %arg6[%c0_14, %c0_15], %18 {strides = array<i32>} : memref<16x128xbf16, #tpu.memory_space<vmem>>, vector<16x128xbf16>,
    } else {
    }
    return
  }
  func.func @transform_0(%arg0: i32, %arg1: i32, %arg2: i32) -> (i32, i32) {
    %c0_i32 = arith.constant 0 : i32
    return %arg0, %arg2 : i32, i32
  }
  func.func @transform_1(%arg0: i32, %arg1: i32, %arg2: i32) -> (i32, i32) {
    %c0_i32 = arith.constant 0 : i32
    return %arg2, %arg1 : i32, i32
  }
  func.func @transform_2(%arg0: i32, %arg1: i32, %arg2: i32) -> (i32, i32) {
    %c0_i32 = arith.constant 0 : i32
    %c0_i32_0 = arith.constant 0 : i32
    return %c0_i32, %arg1 : i32, i32
  }
  func.func @transform_3(%arg0: i32, %arg1: i32, %arg2: i32) -> (i32, i32) {
    %c0_i32 = arith.constant 0 : i32
    return %arg0, %arg1 : i32, i32
  }
}

module attributes {stable_mosaic.version = 11 : i64} {
  func.func @_gemm_kernel_1k(%arg0: i32, %arg1: i32, %arg2: memref<32x640xbf16, #tpu.memory_space<vmem>>, %arg3: memref<640x128xbf16, #tpu.memory_space<vmem>>, %arg4: memref<1x128xf32, #tpu.memory_space<vmem>>, %arg5: memref<32x128xbf16, #tpu.memory_space<vmem>>) attributes {dimension_semantics = [#tpu.dimension_semantics<parallel>, #tpu.dimension_semantics<parallel>], iteration_bounds = array<i64: 1, 1>, scalar_prefetch = 0 : i64, scratch_operands = 0 : i64, tpu.core_type = #tpu.core_type<tc>, window_params = [{transform_indices = @transform_0, window_bounds = array<i64: 32, 640>}, {transform_indices = @transform_1, window_bounds = array<i64: 640, 128>}, {transform_indices = @transform_2, window_bounds = array<i64: 1, 128>}, {transform_indices = @transform_3, window_bounds = array<i64: 32, 128>}]} {
    %c0 = arith.constant 0 : index
    %c0_0 = arith.constant 0 : index
    %0 = vector.load %arg2[%c0, %c0_0] : memref<32x640xbf16, #tpu.memory_space<vmem>>, vector<32x640xbf16>
    %cst = arith.constant 0.000000e+00 : bf16
    %1 = vector.broadcast %cst : bf16 to vector<32x640xbf16>
    %2 = arith.maximumf %0, %1 : vector<32x640xbf16>
    %c0_1 = arith.constant 0 : index
    %c0_2 = arith.constant 0 : index
    %3 = vector.load %arg3[%c0_1, %c0_2] : memref<640x128xbf16, #tpu.memory_space<vmem>>, vector<640x128xbf16>
    %cst_3 = arith.constant dense<0.000000e+00> : vector<32x128xf32>
    %4 = tpu.matmul %2, %3, %cst_3 {dimension_numbers = #tpu.dot_dimension_numbers<[1], [0], [0], [1], [0, 0, 1, 1], [], []>} : vector<32x640xbf16>, vector<640x128xbf16>, vector<32x128xf32> -> vector<32x128xf32>
    %c0_4 = arith.constant 0 : index
    %c0_5 = arith.constant 0 : index
    %5 = vector.load %arg4[%c0_4, %c0_5] : memref<1x128xf32, #tpu.memory_space<vmem>>, vector<1x128xf32>
    %6 = vector.broadcast %5 : vector<1x128xf32> to vector<32x128xf32>
    %7 = arith.addf %4, %6 : vector<32x128xf32>
    %8 = arith.truncf %7 : vector<32x128xf32> to vector<32x128xbf16>
    %c0_6 = arith.constant 0 : index
    %c0_7 = arith.constant 0 : index
    %9 = vector.load %arg5[%c0_6, %c0_7] : memref<32x128xbf16, #tpu.memory_space<vmem>>, vector<32x128xbf16>
    tpu.vector_store %arg5[%c0_6, %c0_7], %8 {strides = array<i32>} : memref<32x128xbf16, #tpu.memory_space<vmem>>, vector<32x128xbf16>,
    return
  }
  func.func @transform_0(%arg0: i32, %arg1: i32) -> (i32, i32) {
    %c0_i32 = arith.constant 0 : i32
    %c0_i32_0 = arith.constant 0 : i32
    return %arg0, %c0_i32 : i32, i32
  }
  func.func @transform_1(%arg0: i32, %arg1: i32) -> (i32, i32) {
    %c0_i32 = arith.constant 0 : i32
    %c0_i32_0 = arith.constant 0 : i32
    return %c0_i32, %arg1 : i32, i32
  }
  func.func @transform_2(%arg0: i32, %arg1: i32) -> (i32, i32) {
    %c0_i32 = arith.constant 0 : i32
    %c0_i32_0 = arith.constant 0 : i32
    return %c0_i32, %arg1 : i32, i32
  }
  func.func @transform_3(%arg0: i32, %arg1: i32) -> (i32, i32) {
    %c0_i32 = arith.constant 0 : i32
    return %arg0, %arg1 : i32, i32
  }
}

module attributes {stable_mosaic.version = 11 : i64} {
  func.func @_gemm_kernel_1k(%arg0: i32, %arg1: i32, %arg2: memref<128x384xbf16, #tpu.memory_space<vmem>>, %arg3: memref<384x128xbf16, #tpu.memory_space<vmem>>, %arg4: memref<1x128xf32, #tpu.memory_space<vmem>>, %arg5: memref<128x128xbf16, #tpu.memory_space<vmem>>) attributes {dimension_semantics = [#tpu.dimension_semantics<parallel>, #tpu.dimension_semantics<parallel>], iteration_bounds = array<i64: 1, 1>, scalar_prefetch = 0 : i64, scratch_operands = 0 : i64, tpu.core_type = #tpu.core_type<tc>, window_params = [{transform_indices = @transform_0, window_bounds = array<i64: 128, 384>}, {transform_indices = @transform_1, window_bounds = array<i64: 384, 128>}, {transform_indices = @transform_2, window_bounds = array<i64: 1, 128>}, {transform_indices = @transform_3, window_bounds = array<i64: 128, 128>}]} {
    %c0 = arith.constant 0 : index
    %c0_0 = arith.constant 0 : index
    %0 = vector.load %arg2[%c0, %c0_0] : memref<128x384xbf16, #tpu.memory_space<vmem>>, vector<128x384xbf16>
    %cst = arith.constant 0.000000e+00 : bf16
    %1 = vector.broadcast %cst : bf16 to vector<128x384xbf16>
    %2 = arith.maximumf %0, %1 : vector<128x384xbf16>
    %c0_1 = arith.constant 0 : index
    %c0_2 = arith.constant 0 : index
    %3 = vector.load %arg3[%c0_1, %c0_2] : memref<384x128xbf16, #tpu.memory_space<vmem>>, vector<384x128xbf16>
    %cst_3 = arith.constant dense<0.000000e+00> : vector<128x128xf32>
    %4 = tpu.matmul %2, %3, %cst_3 {dimension_numbers = #tpu.dot_dimension_numbers<[1], [0], [0], [1], [0, 0, 1, 1], [], []>} : vector<128x384xbf16>, vector<384x128xbf16>, vector<128x128xf32> -> vector<128x128xf32>
    %c0_4 = arith.constant 0 : index
    %c0_5 = arith.constant 0 : index
    %5 = vector.load %arg4[%c0_4, %c0_5] : memref<1x128xf32, #tpu.memory_space<vmem>>, vector<1x128xf32>
    %6 = vector.broadcast %5 : vector<1x128xf32> to vector<128x128xf32>
    %7 = arith.addf %4, %6 : vector<128x128xf32>
    %8 = arith.truncf %7 : vector<128x128xf32> to vector<128x128xbf16>
    %c0_6 = arith.constant 0 : index
    %c0_7 = arith.constant 0 : index
    %9 = vector.load %arg5[%c0_6, %c0_7] : memref<128x128xbf16, #tpu.memory_space<vmem>>, vector<128x128xbf16>
    tpu.vector_store %arg5[%c0_6, %c0_7], %8 {strides = array<i32>} : memref<128x128xbf16, #tpu.memory_space<vmem>>, vector<128x128xbf16>,
    return
  }
  func.func @transform_0(%arg0: i32, %arg1: i32) -> (i32, i32) {
    %c0_i32 = arith.constant 0 : i32
    %c0_i32_0 = arith.constant 0 : i32
    return %arg0, %c0_i32 : i32, i32
  }
  func.func @transform_1(%arg0: i32, %arg1: i32) -> (i32, i32) {
    %c0_i32 = arith.constant 0 : i32
    %c0_i32_0 = arith.constant 0 : i32
    return %c0_i32, %arg1 : i32, i32
  }
  func.func @transform_2(%arg0: i32, %arg1: i32) -> (i32, i32) {
    %c0_i32 = arith.constant 0 : i32
    %c0_i32_0 = arith.constant 0 : i32
    return %c0_i32, %arg1 : i32, i32
  }
  func.func @transform_3(%arg0: i32, %arg1: i32) -> (i32, i32) {
    %c0_i32 = arith.constant 0 : i32
    return %arg0, %arg1 : i32, i32
  }
}

module attributes {stable_mosaic.version = 11 : i64} {
  func.func @_inorm_stats_kernel(%arg0: i32, %arg1: i32, %arg2: i32, %arg3: memref<1x256x8xbf16, #tpu.memory_space<vmem>>, %arg4: memref<1x1x8xf32, #tpu.memory_space<vmem>>, %arg5: memref<1x1x8xf32, #tpu.memory_space<vmem>>, %arg6: memref<1x1x8xf32, #tpu.memory_space<vmem>>, %arg7: memref<1x1x8xf32, #tpu.memory_space<vmem>>) attributes {dimension_semantics = [#tpu.dimension_semantics<parallel>, #tpu.dimension_semantics<parallel>, #tpu.dimension_semantics<arbitrary>], iteration_bounds = array<i64: 2, 1, 1>, scalar_prefetch = 0 : i64, scratch_operands = 2 : i64, tpu.core_type = #tpu.core_type<tc>, window_params = [{transform_indices = @transform_0, window_bounds = array<i64: 1, 256, 8>}, {transform_indices = @transform_1, window_bounds = array<i64: 1, 1, 8>}, {transform_indices = @transform_2, window_bounds = array<i64: 1, 1, 8>}]} {
    %c0_i32 = arith.constant 0 : i32
    %0 = arith.cmpi eq, %arg2, %c0_i32 : i32
    %1 = arith.extui %0 : i1 to i32
    %c0_i32_0 = arith.constant 0 : i32
    %2 = arith.cmpi ne, %1, %c0_i32_0 : i32
    scf.if %2 {
      %cst_18 = arith.constant 0.000000e+00 : f32
      %19 = vector.broadcast %cst_18 : f32 to vector<1x1x8xf32>
      %c0_19 = arith.constant 0 : index
      %c0_20 = arith.constant 0 : index
      %c0_21 = arith.constant 0 : index
      %20 = vector.load %arg6[%c0_19, %c0_20, %c0_21] : memref<1x1x8xf32, #tpu.memory_space<vmem>>, vector<1x1x8xf32>
      tpu.vector_store %arg6[%c0_19, %c0_20, %c0_21], %19 {strides = array<i32>} : memref<1x1x8xf32, #tpu.memory_space<vmem>>, vector<1x1x8xf32>,
      %cst_22 = arith.constant 0.000000e+00 : f32
      %21 = vector.broadcast %cst_22 : f32 to vector<1x1x8xf32>
      %c0_23 = arith.constant 0 : index
      %c0_24 = arith.constant 0 : index
      %c0_25 = arith.constant 0 : index
      %22 = vector.load %arg7[%c0_23, %c0_24, %c0_25] : memref<1x1x8xf32, #tpu.memory_space<vmem>>, vector<1x1x8xf32>
      tpu.vector_store %arg7[%c0_23, %c0_24, %c0_25], %21 {strides = array<i32>} : memref<1x1x8xf32, #tpu.memory_space<vmem>>, vector<1x1x8xf32>,
    } else {
    }
    %c0 = arith.constant 0 : index
    %c0_1 = arith.constant 0 : index
    %c0_2 = arith.constant 0 : index
    %3 = vector.load %arg3[%c0, %c0_1, %c0_2] : memref<1x256x8xbf16, #tpu.memory_space<vmem>>, vector<1x256x8xbf16>
    %4 = arith.extf %3 : vector<1x256x8xbf16> to vector<1x256x8xf32>
    %c0_3 = arith.constant 0 : index
    %c0_4 = arith.constant 0 : index
    %c0_5 = arith.constant 0 : index
    %5 = vector.load %arg6[%c0_3, %c0_4, %c0_5] : memref<1x1x8xf32, #tpu.memory_space<vmem>>, vector<1x1x8xf32>
    %cst = arith.constant dense<0.000000e+00> : vector<1x8xf32>
    %6 = vector.multi_reduction <add>, %4, %cst [1] : vector<1x256x8xf32> to vector<1x8xf32>
    %7 = vector.shape_cast %6 : vector<1x8xf32> to vector<1x1x8xf32>
    %8 = arith.addf %5, %7 : vector<1x1x8xf32>
    %c0_6 = arith.constant 0 : index
    %c0_7 = arith.constant 0 : index
    %c0_8 = arith.constant 0 : index
    %9 = vector.load %arg6[%c0_6, %c0_7, %c0_8] : memref<1x1x8xf32, #tpu.memory_space<vmem>>, vector<1x1x8xf32>
    tpu.vector_store %arg6[%c0_6, %c0_7, %c0_8], %8 {strides = array<i32>} : memref<1x1x8xf32, #tpu.memory_space<vmem>>, vector<1x1x8xf32>,
    %c0_9 = arith.constant 0 : index
    %c0_10 = arith.constant 0 : index
    %c0_11 = arith.constant 0 : index
    %10 = vector.load %arg7[%c0_9, %c0_10, %c0_11] : memref<1x1x8xf32, #tpu.memory_space<vmem>>, vector<1x1x8xf32>
    %11 = arith.mulf %4, %4 : vector<1x256x8xf32>
    %cst_12 = arith.constant dense<0.000000e+00> : vector<1x8xf32>
    %12 = vector.multi_reduction <add>, %11, %cst_12 [1] : vector<1x256x8xf32> to vector<1x8xf32>
    %13 = vector.shape_cast %12 : vector<1x8xf32> to vector<1x1x8xf32>
    %14 = arith.addf %10, %13 : vector<1x1x8xf32>
    %c0_13 = arith.constant 0 : index
    %c0_14 = arith.constant 0 : index
    %c0_15 = arith.constant 0 : index
    %15 = vector.load %arg7[%c0_13, %c0_14, %c0_15] : memref<1x1x8xf32, #tpu.memory_space<vmem>>, vector<1x1x8xf32>
    tpu.vector_store %arg7[%c0_13, %c0_14, %c0_15], %14 {strides = array<i32>} : memref<1x1x8xf32, #tpu.memory_space<vmem>>, vector<1x1x8xf32>,
    %c0_i32_16 = arith.constant 0 : i32
    %16 = arith.cmpi eq, %arg2, %c0_i32_16 : i32
    %17 = arith.extui %16 : i1 to i32
    %c0_i32_17 = arith.constant 0 : i32
    %18 = arith.cmpi ne, %17, %c0_i32_17 : i32
    scf.if %18 {
      %c0_18 = arith.constant 0 : index
      %c0_19 = arith.constant 0 : index
      %c0_20 = arith.constant 0 : index
      %19 = vector.load %arg6[%c0_18, %c0_19, %c0_20] : memref<1x1x8xf32, #tpu.memory_space<vmem>>, vector<1x1x8xf32>
      %cst_21 = arith.constant 3.906250e-03 : f32
      %20 = vector.broadcast %cst_21 : f32 to vector<1x1x8xf32>
      %21 = arith.mulf %19, %20 : vector<1x1x8xf32>
      %c0_22 = arith.constant 0 : index
      %c0_23 = arith.constant 0 : index
      %c0_24 = arith.constant 0 : index
      %22 = vector.load %arg7[%c0_22, %c0_23, %c0_24] : memref<1x1x8xf32, #tpu.memory_space<vmem>>, vector<1x1x8xf32>
      %cst_25 = arith.constant 3.906250e-03 : f32
      %23 = vector.broadcast %cst_25 : f32 to vector<1x1x8xf32>
      %24 = arith.mulf %22, %23 : vector<1x1x8xf32>
      %25 = arith.mulf %21, %21 : vector<1x1x8xf32>
      %26 = arith.subf %24, %25 : vector<1x1x8xf32>
      %c0_26 = arith.constant 0 : index
      %c0_27 = arith.constant 0 : index
      %c0_28 = arith.constant 0 : index
      %27 = vector.load %arg4[%c0_26, %c0_27, %c0_28] : memref<1x1x8xf32, #tpu.memory_space<vmem>>, vector<1x1x8xf32>
      tpu.vector_store %arg4[%c0_26, %c0_27, %c0_28], %21 {strides = array<i32>} : memref<1x1x8xf32, #tpu.memory_space<vmem>>, vector<1x1x8xf32>,
      %cst_29 = arith.constant 9.99999974E-6 : f32
      %28 = vector.broadcast %cst_29 : f32 to vector<1x1x8xf32>
      %29 = arith.addf %26, %28 : vector<1x1x8xf32>
      %30 = math.rsqrt %29 : vector<1x1x8xf32>
      %c0_30 = arith.constant 0 : index
      %c0_31 = arith.constant 0 : index
      %c0_32 = arith.constant 0 : index
      %31 = vector.load %arg5[%c0_30, %c0_31, %c0_32] : memref<1x1x8xf32, #tpu.memory_space<vmem>>, vector<1x1x8xf32>
      tpu.vector_store %arg5[%c0_30, %c0_31, %c0_32], %30 {strides = array<i32>} : memref<1x1x8xf32, #tpu.memory_space<vmem>>, vector<1x1x8xf32>,
    } else {
    }
    return
  }
  func.func @transform_0(%arg0: i32, %arg1: i32, %arg2: i32) -> (i32, i32, i32) {
    %c0_i32 = arith.constant 0 : i32
    return %arg0, %arg2, %arg1 : i32, i32, i32
  }
  func.func @transform_1(%arg0: i32, %arg1: i32, %arg2: i32) -> (i32, i32, i32) {
    %c0_i32 = arith.constant 0 : i32
    %c0_i32_0 = arith.constant 0 : i32
    return %arg0, %c0_i32, %arg1 : i32, i32, i32
  }
  func.func @transform_2(%arg0: i32, %arg1: i32, %arg2: i32) -> (i32, i32, i32) {
    %c0_i32 = arith.constant 0 : i32
    %c0_i32_0 = arith.constant 0 : i32
    return %arg0, %c0_i32, %arg1 : i32, i32, i32
  }
}

module attributes {stable_mosaic.version = 11 : i64} {
  func.func @_inorm_apply_kernel(%arg0: i32, %arg1: i32, %arg2: i32, %arg3: memref<1x256x8xbf16, #tpu.memory_space<vmem>>, %arg4: memref<1x1x8xf32, #tpu.memory_space<vmem>>, %arg5: memref<1x1x8xf32, #tpu.memory_space<vmem>>, %arg6: memref<1x256x8xbf16, #tpu.memory_space<vmem>>) attributes {dimension_semantics = [#tpu.dimension_semantics<parallel>, #tpu.dimension_semantics<parallel>, #tpu.dimension_semantics<parallel>], iteration_bounds = array<i64: 2, 1, 1>, scalar_prefetch = 0 : i64, scratch_operands = 0 : i64, tpu.core_type = #tpu.core_type<tc>, window_params = [{transform_indices = @transform_0, window_bounds = array<i64: 1, 256, 8>}, {transform_indices = @transform_1, window_bounds = array<i64: 1, 1, 8>}, {transform_indices = @transform_2, window_bounds = array<i64: 1, 1, 8>}, {transform_indices = @transform_3, window_bounds = array<i64: 1, 256, 8>}]} {
    %c0 = arith.constant 0 : index
    %c0_0 = arith.constant 0 : index
    %c0_1 = arith.constant 0 : index
    %0 = vector.load %arg3[%c0, %c0_0, %c0_1] : memref<1x256x8xbf16, #tpu.memory_space<vmem>>, vector<1x256x8xbf16>
    %1 = arith.extf %0 : vector<1x256x8xbf16> to vector<1x256x8xf32>
    %c0_2 = arith.constant 0 : index
    %c0_3 = arith.constant 0 : index
    %c0_4 = arith.constant 0 : index
    %2 = vector.load %arg4[%c0_2, %c0_3, %c0_4] : memref<1x1x8xf32, #tpu.memory_space<vmem>>, vector<1x1x8xf32>
    %3 = vector.broadcast %2 : vector<1x1x8xf32> to vector<1x256x8xf32>
    %4 = arith.subf %1, %3 : vector<1x256x8xf32>
    %c0_5 = arith.constant 0 : index
    %c0_6 = arith.constant 0 : index
    %c0_7 = arith.constant 0 : index
    %5 = vector.load %arg5[%c0_5, %c0_6, %c0_7] : memref<1x1x8xf32, #tpu.memory_space<vmem>>, vector<1x1x8xf32>
    %6 = vector.broadcast %5 : vector<1x1x8xf32> to vector<1x256x8xf32>
    %7 = arith.mulf %4, %6 : vector<1x256x8xf32>
    %8 = arith.truncf %7 : vector<1x256x8xf32> to vector<1x256x8xbf16>
    %c0_8 = arith.constant 0 : index
    %c0_9 = arith.constant 0 : index
    %c0_10 = arith.constant 0 : index
    %9 = vector.load %arg6[%c0_8, %c0_9, %c0_10] : memref<1x256x8xbf16, #tpu.memory_space<vmem>>, vector<1x256x8xbf16>
    tpu.vector_store %arg6[%c0_8, %c0_9, %c0_10], %8 {strides = array<i32>} : memref<1x256x8xbf16, #tpu.memory_space<vmem>>, vector<1x256x8xbf16>,
    return
  }
  func.func @transform_0(%arg0: i32, %arg1: i32, %arg2: i32) -> (i32, i32, i32) {
    %c0_i32 = arith.constant 0 : i32
    return %arg0, %arg2, %arg1 : i32, i32, i32
  }
  func.func @transform_1(%arg0: i32, %arg1: i32, %arg2: i32) -> (i32, i32, i32) {
    %c0_i32 = arith.constant 0 : i32
    %c0_i32_0 = arith.constant 0 : i32
    return %arg0, %c0_i32, %arg1 : i32, i32, i32
  }
  func.func @transform_2(%arg0: i32, %arg1: i32, %arg2: i32) -> (i32, i32, i32) {
    %c0_i32 = arith.constant 0 : i32
    %c0_i32_0 = arith.constant 0 : i32
    return %arg0, %c0_i32, %arg1 : i32, i32, i32
  }
  func.func @transform_3(%arg0: i32, %arg1: i32, %arg2: i32) -> (i32, i32, i32) {
    %c0_i32 = arith.constant 0 : i32
    return %arg0, %arg2, %arg1 : i32, i32, i32
  }
}

module attributes {stable_mosaic.version = 11 : i64} {
  func.func @_gemm_kernel_1k(%arg0: i32, %arg1: i32, %arg2: memref<512x256xbf16, #tpu.memory_space<vmem>>, %arg3: memref<256x128xbf16, #tpu.memory_space<vmem>>, %arg4: memref<1x128xf32, #tpu.memory_space<vmem>>, %arg5: memref<512x128xf32, #tpu.memory_space<vmem>>) attributes {dimension_semantics = [#tpu.dimension_semantics<parallel>, #tpu.dimension_semantics<parallel>], iteration_bounds = array<i64: 1, 1>, scalar_prefetch = 0 : i64, scratch_operands = 0 : i64, tpu.core_type = #tpu.core_type<tc>, window_params = [{transform_indices = @transform_0, window_bounds = array<i64: 512, 256>}, {transform_indices = @transform_1, window_bounds = array<i64: 256, 128>}, {transform_indices = @transform_2, window_bounds = array<i64: 1, 128>}, {transform_indices = @transform_3, window_bounds = array<i64: 512, 128>}]} {
    %c0 = arith.constant 0 : index
    %c0_0 = arith.constant 0 : index
    %0 = vector.load %arg2[%c0, %c0_0] : memref<512x256xbf16, #tpu.memory_space<vmem>>, vector<512x256xbf16>
    %cst = arith.constant 0.000000e+00 : bf16
    %1 = vector.broadcast %cst : bf16 to vector<512x256xbf16>
    %2 = arith.maximumf %0, %1 : vector<512x256xbf16>
    %c0_1 = arith.constant 0 : index
    %c0_2 = arith.constant 0 : index
    %3 = vector.load %arg3[%c0_1, %c0_2] : memref<256x128xbf16, #tpu.memory_space<vmem>>, vector<256x128xbf16>
    %cst_3 = arith.constant dense<0.000000e+00> : vector<512x128xf32>
    %4 = tpu.matmul %2, %3, %cst_3 {dimension_numbers = #tpu.dot_dimension_numbers<[1], [0], [0], [1], [0, 0, 1, 1], [], []>} : vector<512x256xbf16>, vector<256x128xbf16>, vector<512x128xf32> -> vector<512x128xf32>
    %c0_4 = arith.constant 0 : index
    %c0_5 = arith.constant 0 : index
    %5 = vector.load %arg4[%c0_4, %c0_5] : memref<1x128xf32, #tpu.memory_space<vmem>>, vector<1x128xf32>
    %6 = vector.broadcast %5 : vector<1x128xf32> to vector<512x128xf32>
    %7 = arith.addf %4, %6 : vector<512x128xf32>
    %8 = math.tanh %7 : vector<512x128xf32>
    %c0_6 = arith.constant 0 : index
    %c0_7 = arith.constant 0 : index
    %9 = vector.load %arg5[%c0_6, %c0_7] : memref<512x128xf32, #tpu.memory_space<vmem>>, vector<512x128xf32>
    tpu.vector_store %arg5[%c0_6, %c0_7], %8 {strides = array<i32>} : memref<512x128xf32, #tpu.memory_space<vmem>>, vector<512x128xf32>,
    return
  }
  func.func @transform_0(%arg0: i32, %arg1: i32) -> (i32, i32) {
    %c0_i32 = arith.constant 0 : i32
    %c0_i32_0 = arith.constant 0 : i32
    return %arg0, %c0_i32 : i32, i32
  }
  func.func @transform_1(%arg0: i32, %arg1: i32) -> (i32, i32) {
    %c0_i32 = arith.constant 0 : i32
    %c0_i32_0 = arith.constant 0 : i32
    return %c0_i32, %arg1 : i32, i32
  }
  func.func @transform_2(%arg0: i32, %arg1: i32) -> (i32, i32) {
    %c0_i32 = arith.constant 0 : i32
    %c0_i32_0 = arith.constant 0 : i32
    return %c0_i32, %arg1 : i32, i32
  }
  func.func @transform_3(%arg0: i32, %arg1: i32) -> (i32, i32) {
    %c0_i32 = arith.constant 0 : i32
    return %arg0, %arg1 : i32, i32
  }
}

</mosaic_0001>

<llo_original>
// kernel: _lambda_.24
$region0: #{_lambda_.24}
  #allocation0 [shape = 'u32[]', space=smem, size = 0x4, offset = 0x4, fixed_abs, tag = 'smem constant byte address 0x4 - core index']
  #allocation1 [shape = 'u32[144,128]{1,0:T(1,128)}', space=vmem, size = 0x12000, scoped, tag = 'internal scratch']
  %s0 = inlined_call_operand.vmem [shape: bf16[512,128], index: 0, kind: input, shape index: {}]
  %s1 = inlined_call_operand.vmem [shape: bf16[128,128], index: 1, kind: input, shape index: {}]
  %s2 = inlined_call_operand.vmem [shape: f32[1,128], index: 2, kind: input, shape index: {}]
  %s3 = inlined_call_operand.vmem [shape: bf16[512,128], index: 3, kind: output, shape index: {}]
  %s4 = sld [smem:[#allocation0]]
  $region22: #{_lambda_.24} parent=0
    _
  %s6 = ssub.s32 1, %s4
  %s7 = scalar_select 0, %s6, %s4
  // Predicated region
  $region2: #{_lambda_.24} parent=0 // pred_check
    _
  $region3: #{_lambda_.24} parent=0 // pred_check_branch
    %9 = sbr.rel (0) target = $region5
  $region4: #{_lambda_.24} parent=0 // pred_region
    _
  $region5: #{_lambda_.24} parent=0 // pred_fallthru
    _
  // Predicated region
  $region6: #{_lambda_.24} parent=0 // pred_check
    _
  $region7: #{_lambda_.24} parent=0 // pred_check_branch
    %11 = sbr.rel (0) target = $region9
  $region8: #{_lambda_.24} parent=0 // pred_region
    _
  $region9: #{_lambda_.24} parent=0 // pred_fallthru
    _
  // Predicated region
  $region10: #{_lambda_.24} parent=0 // pred_check
    _
  $region11: #{_lambda_.24} parent=0 // pred_check_branch
    %13 = sbr.rel (0) target = $region13
  $region12: #{_lambda_.24} parent=0 // pred_region
    _
  $region13: #{_lambda_.24} parent=0 // pred_fallthru
    _
  %v15 = vld [vmem:[%s0] sm:$0xf]
  %v16 = vld [vmem:[%s0 + $0x4] sm:$0xf]
  %v17 = vld [vmem:[%s0 + $0x8] sm:$0xf]
  %v18 = vld [vmem:[%s0 + $0xc] sm:$0xf]
  %v19 = vld [vmem:[%s0 + $0x10] sm:$0xf]
  %v20 = vld [vmem:[%s0 + $0x14] sm:$0xf]
  %v21 = vld [vmem:[%s0 + $0x18] sm:$0xf]
  %v22 = vld [vmem:[%s0 + $0x1c] sm:$0xf]
  %v23 = vld [vmem:[%s0 + $0x20] sm:$0xf]
  %v24 = vld [vmem:[%s0 + $0x24] sm:$0xf]
  %v25 = vld [vmem:[%s0 + $0x28] sm:$0xf]
  %v26 = vld [vmem:[%s0 + $0x2c] sm:$0xf]
  %v27 = vld [vmem:[%s0 + $0x30] sm:$0xf]
  %v28 = vld [vmem:[%s0 + $0x34] sm:$0xf]
  %v29 = vld [vmem:[%s0 + $0x38] sm:$0xf]
  %v30 = vld [vmem:[%s0 + $0x3c] sm:$0xf]
  %v31 = vld [vmem:[%s0 + $0x40] sm:$0xf]
  %v32 = vld [vmem:[%s0 + $0x44] sm:$0xf]
  %v33 = vld [vmem:[%s0 + $0x48] sm:$0xf]
  %v34 = vld [vmem:[%s0 + $0x4c] sm:$0xf]
  %v35 = vld [vmem:[%s0 + $0x50] sm:$0xf]
  %v36 = vld [vmem:[%s0 + $0x54] sm:$0xf]
  %v37 = vld [vmem:[%s0 + $0x58] sm:$0xf]
  %v38 = vld [vmem:[%s0 + $0x5c] sm:$0xf]
  %v39 = vld [vmem:[%s0 + $0x60] sm:$0xf]
  %v40 = vld [vmem:[%s0 + $0x64] sm:$0xf]
  %v41 = vld [vmem:[%s0 + $0x68] sm:$0xf]
  %v42 = vld [vmem:[%s0 + $0x6c] sm:$0xf]
  %v43 = vld [vmem:[%s0 + $0x70] sm:$0xf]
  %v44 = vld [vmem:[%s0 + $0x74] sm:$0xf]
  %v45 = vld [vmem:[%s0 + $0x78] sm:$0xf]
  %v46 = vld [vmem:[%s0 + $0x7c] sm:$0xf]
  %v47 = vld [vmem:[%s0 + $0x80] sm:$0xf]
  %v48 = vld [vmem:[%s0 + $0x84] sm:$0xf]
  %v49 = vld [vmem:[%s0 + $0x88] sm:$0xf]
  %v50 = vld [vmem:[%s0 + $0x8c] sm:$0xf]
  %v51 = vld [vmem:[%s0 + $0x90] sm:$0xf]
  %v52 = vld [vmem:[%s0 + $0x94] sm:$0xf]
  %v53 = vld [vmem:[%s0 + $0x98] sm:$0xf]
  %v54 = vld [vmem:[%s0 + $0x9c] sm:$0xf]
  %v55 = vld [vmem:[%s0 + $0xa0] sm:$0xf]
  %v56 = vld [vmem:[%s0 + $0xa4] sm:$0xf]
  %v57 = vld [vmem:[%s0 + $0xa8] sm:$0xf]
  %v58 = vld [vmem:[%s0 + $0xac] sm:$0xf]
  %v59 = vld [vmem:[%s0 + $0xb0] sm:$0xf]
  %v60 = vld [vmem:[%s0 + $0xb4] sm:$0xf]
  %v61 = vld [vmem:[%s0 + $0xb8] sm:$0xf]
  %v62 = vld [vmem:[%s0 + $0xbc] sm:$0xf]
  %v63 = vld [vmem:[%s0 + $0xc0] sm:$0xf]
  %v64 = vld [vmem:[%s0 + $0xc4] sm:$0xf]
  %v65 = vld [vmem:[%s0 + $0xc8] sm:$0xf]
  %v66 = vld [vmem:[%s0 + $0xcc] sm:$0xf]
  %v67 = vld [vmem:[%s0 + $0xd0] sm:$0xf]
  %v68 = vld [vmem:[%s0 + $0xd4] sm:$0xf]
  %v69 = vld [vmem:[%s0 + $0xd8] sm:$0xf]
  %v70 = vld [vmem:[%s0 + $0xdc] sm:$0xf]
  %v71 = vld [vmem:[%s0 + $0xe0] sm:$0xf]
  %v72 = vld [vmem:[%s0 + $0xe4] sm:$0xf]
  %v73 = vld [vmem:[%s0 + $0xe8] sm:$0xf]
  %v74 = vld [vmem:[%s0 + $0xec] sm:$0xf]
  %v75 = vld [vmem:[%s0 + $0xf0] sm:$0xf]
  %v76 = vld [vmem:[%s0 + $0xf4] sm:$0xf]
  %v77 = vld [vmem:[%s0 + $0xf8] sm:$0xf]
  %v78 = vld [vmem:[%s0 + $0xfc] sm:$0xf]
  %v79 = vld [vmem:[%s1] sm:$0xf]
  %v80 = vld [vmem:[%s1 + $0x4] sm:$0xf]
  %v81 = vld [vmem:[%s1 + $0x8] sm:$0xf]
  %v82 = vld [vmem:[%s1 + $0xc] sm:$0xf]
  %v83 = vld [vmem:[%s1 + $0x10] sm:$0xf]
  %v84 = vld [vmem:[%s1 + $0x14] sm:$0xf]
  %v85 = vld [vmem:[%s1 + $0x18] sm:$0xf]
  %v86 = vld [vmem:[%s1 + $0x1c] sm:$0xf]
  %v87 = vld [vmem:[%s1 + $0x20] sm:$0xf]
  %v88 = vld [vmem:[%s1 + $0x24] sm:$0xf]
  %v89 = vld [vmem:[%s1 + $0x28] sm:$0xf]
  %v90 = vld [vmem:[%s1 + $0x2c] sm:$0xf]
  %v91 = vld [vmem:[%s1 + $0x30] sm:$0xf]
  %v92 = vld [vmem:[%s1 + $0x34] sm:$0xf]
  %v93 = vld [vmem:[%s1 + $0x38] sm:$0xf]
  %v94 = vld [vmem:[%s1 + $0x3c] sm:$0xf]
  %v95 = vld [vmem:[%s2] sm:$0x1]
  %v97 = vlaneseq
  %v98 = vshrl.u32 %v97, 7
  %v99 = vsub.s32 0, %v98
  %v100 = vrot.slane %v95, %v99
  %v166 = vunpack.c.l.b16 %v15
  %v167 = vunpack.c.l.b16 %v16
  %v168 = vunpack.c.l.b16 %v17
  %v169 = vunpack.c.l.b16 %v18
  %v170 = vunpack.c.l.b16 %v19
  %v171 = vunpack.c.l.b16 %v20
  %v172 = vunpack.c.l.b16 %v21
  %v173 = vunpack.c.l.b16 %v22
  %v174 = vunpack.c.l.b16 %v23
  %v175 = vunpack.c.l.b16 %v24
  %v176 = vunpack.c.l.b16 %v25
  %v177 = vunpack.c.l.b16 %v26
  %v178 = vunpack.c.l.b16 %v27
  %v179 = vunpack.c.l.b16 %v28
  %v180 = vunpack.c.l.b16 %v29
  %v181 = vunpack.c.l.b16 %v30
  %v182 = vunpack.c.l.b16 %v31
  %v183 = vunpack.c.l.b16 %v32
  %v184 = vunpack.c.l.b16 %v33
  %v185 = vunpack.c.l.b16 %v34
  %v186 = vunpack.c.l.b16 %v35
  %v187 = vunpack.c.l.b16 %v36
  %v188 = vunpack.c.l.b16 %v37
  %v189 = vunpack.c.l.b16 %v38
  %v190 = vunpack.c.l.b16 %v39
  %v191 = vunpack.c.l.b16 %v40
  %v192 = vunpack.c.l.b16 %v41
  %v193 = vunpack.c.l.b16 %v42
  %v194 = vunpack.c.l.b16 %v43
  %v195 = vunpack.c.l.b16 %v44
  %v196 = vunpack.c.l.b16 %v45
  %v197 = vunpack.c.l.b16 %v46
  %v198 = vunpack.c.l.b16 %v47
  %v199 = vunpack.c.l.b16 %v48
  %v200 = vunpack.c.l.b16 %v49
  %v201 = vunpack.c.l.b16 %v50
  %v202 = vunpack.c.l.b16 %v51
  %v203 = vunpack.c.l.b16 %v52
  %v204 = vunpack.c.l.b16 %v53
  %v205 = vunpack.c.l.b16 %v54
  %v206 = vunpack.c.l.b16 %v55
  %v207 = vunpack.c.l.b16 %v56
  %v208 = vunpack.c.l.b16 %v57
  %v209 = vunpack.c.l.b16 %v58
  %v210 = vunpack.c.l.b16 %v59
  %v211 = vunpack.c.l.b16 %v60
  %v212 = vunpack.c.l.b16 %v61
  %v213 = vunpack.c.l.b16 %v62
  %v214 = vunpack.c.l.b16 %v63
  %v215 = vunpack.c.l.b16 %v64
  %v216 = vunpack.c.l.b16 %v65
  %v217 = vunpack.c.l.b16 %v66
  %v218 = vunpack.c.l.b16 %v67
  %v219 = vunpack.c.l.b16 %v68
  %v220 = vunpack.c.l.b16 %v69
  %v221 = vunpack.c.l.b16 %v70
  %v222 = vunpack.c.l.b16 %v71
  %v223 = vunpack.c.l.b16 %v72
  %v224 = vunpack.c.l.b16 %v73
  %v225 = vunpack.c.l.b16 %v74
  %v226 = vunpack.c.l.b16 %v75
  %v227 = vunpack.c.l.b16 %v76
  %v228 = vunpack.c.l.b16 %v77
  %v229 = vunpack.c.l.b16 %v78
  %v230 = vpack.c.b16 %v167, %v166
  %v231 = vpack.c.b16 %v169, %v168
  %v232 = vpack.c.b16 %v171, %v170
  %v233 = vpack.c.b16 %v173, %v172
  %v234 = vpack.c.b16 %v175, %v174
  %v235 = vpack.c.b16 %v177, %v176
  %v236 = vpack.c.b16 %v179, %v178
  %v237 = vpack.c.b16 %v181, %v180
  %v238 = vpack.c.b16 %v183, %v182
  %v239 = vpack.c.b16 %v185, %v184
  %v240 = vpack.c.b16 %v187, %v186
  %v241 = vpack.c.b16 %v189, %v188
  %v242 = vpack.c.b16 %v191, %v190
  %v243 = vpack.c.b16 %v193, %v192
  %v244 = vpack.c.b16 %v195, %v194
  %v245 = vpack.c.b16 %v197, %v196
  %v246 = vpack.c.b16 %v199, %v198
  %v247 = vpack.c.b16 %v201, %v200
  %v248 = vpack.c.b16 %v203, %v202
  %v249 = vpack.c.b16 %v205, %v204
  %v250 = vpack.c.b16 %v207, %v206
  %v251 = vpack.c.b16 %v209, %v208
  %v252 = vpack.c.b16 %v211, %v210
  %v253 = vpack.c.b16 %v213, %v212
  %v254 = vpack.c.b16 %v215, %v214
  %v255 = vpack.c.b16 %v217, %v216
  %v256 = vpack.c.b16 %v219, %v218
  %v257 = vpack.c.b16 %v221, %v220
  %v258 = vpack.c.b16 %v223, %v222
  %v259 = vpack.c.b16 %v225, %v224
  %v260 = vpack.c.b16 %v227, %v226
  %v261 = vpack.c.b16 %v229, %v228
  %v310 = vunpack.c.l.b16 %v79
  %v311 = vunpack.c.l.b16 %v80
  %v312 = vunpack.c.l.b16 %v81
  %v313 = vunpack.c.l.b16 %v82
  %v314 = vunpack.c.l.b16 %v83
  %v315 = vunpack.c.l.b16 %v84
  %v316 = vunpack.c.l.b16 %v85
  %v317 = vunpack.c.l.b16 %v86
  %v318 = vunpack.c.l.b16 %v87
  %v319 = vunpack.c.l.b16 %v88
  %v320 = vunpack.c.l.b16 %v89
  %v321 = vunpack.c.l.b16 %v90
  %v322 = vunpack.c.l.b16 %v91
  %v323 = vunpack.c.l.b16 %v92
  %v324 = vunpack.c.l.b16 %v93
  %v325 = vunpack.c.l.b16 %v94
  %v326 = vpack.c.b16 %v311, %v310
  %v327 = vpack.c.b16 %v313, %v312
  %v328 = vpack.c.b16 %v315, %v314
  %v329 = vpack.c.b16 %v317, %v316
  %v330 = vpack.c.b16 %v319, %v318
  %v331 = vpack.c.b16 %v321, %v320
  %v332 = vpack.c.b16 %v323, %v322
  %v333 = vpack.c.b16 %v325, %v324
  %342 = vmatprep.subr.bf16.mxu0 0
  %343 = vmatpush1.bf16.msra.mxu0 %v326
  %344 = vmatprep.subr.bf16.mxu0 0
  %345 = vmatpush1.bf16.msra.mxu0 %v327
  %346 = vmatprep.subr.bf16.mxu0 0
  %347 = vmatpush1.bf16.msra.mxu0 %v328
  %348 = vmatprep.subr.bf16.mxu0 0
  %349 = vmatpush1.bf16.msra.mxu0 %v329
  %350 = vmatprep.subr.bf16.mxu0 0
  %351 = vmatpush1.bf16.msra.mxu0 %v330
  %352 = vmatprep.subr.bf16.mxu0 0
  %353 = vmatpush1.bf16.msra.mxu0 %v331
  %354 = vmatprep.subr.bf16.mxu0 0
  %355 = vmatpush1.bf16.msra.mxu0 %v332
  %356 = vmatprep.subr.bf16.mxu0 0
  %357 = vmatpush1.bf16.msra.mxu0 %v333
  %358 = vmatprep.subr.bf16.mxu0 0
  %359 = vmatpush1.bf16.msra.mxu0 0
  %360 = vmatprep.subr.bf16.mxu0 0
  %361 = vmatpush1.bf16.msra.mxu0 0
  %362 = vmatprep.subr.bf16.mxu0 0
  %363 = vmatpush1.bf16.msra.mxu0 0
  %364 = vmatprep.subr.bf16.mxu0 0
  %365 = vmatpush1.bf16.msra.mxu0 0
  %366 = vmatprep.subr.bf16.mxu0 0
  %367 = vmatpush1.bf16.msra.mxu0 0
  %368 = vmatprep.subr.bf16.mxu0 0
  %369 = vmatpush1.bf16.msra.mxu0 0
  %370 = vmatprep.subr.bf16.mxu0 0
  %371 = vmatpush1.bf16.msra.mxu0 0
  %372 = vmatprep.subr.bf16.mxu0 0
  %373 = vmatpush1.bf16.msra.mxu0 0
  %374 = vmatprep.mubr.bf16.mxu0 0
  %375 = vmatmul.mubr.bf16.gmra.mrb[0].mxu0 %v230
  %v376 = vpop.f32.mrb[0].mxu0
  %v377 = vadd.f32 %v100, %v376
  %v378 = vpop.f32.mrb[0].mxu0
  %v379 = vpop.f32.mrb[0].mxu0
  %v380 = vadd.f32 %v100, %v379
  %v381 = vpop.f32.mrb[0].mxu0
  %382 = vmatprep.mubr.bf16.mxu0 0
  %383 = vmatmul.mubr.bf16.gmra.mrb[0].mxu0 %v231
  %v384 = vpop.f32.mrb[0].mxu0
  %v385 = vadd.f32 %v100, %v384
  %v386 = vpop.f32.mrb[0].mxu0
  %v387 = vpop.f32.mrb[0].mxu0
  %v388 = vadd.f32 %v100, %v387
  %v389 = vpop.f32.mrb[0].mxu0
  %390 = vmatprep.mubr.bf16.mxu0 0
  %391 = vmatmul.mubr.bf16.gmra.mrb[0].mxu0 %v232
  %v392 = vpop.f32.mrb[0].mxu0
  %v393 = vadd.f32 %v100, %v392
  %v394 = vpop.f32.mrb[0].mxu0
  %v395 = vpop.f32.mrb[0].mxu0
  %v396 = vadd.f32 %v100, %v395
  %v397 = vpop.f32.mrb[0].mxu0
  %398 = vmatprep.mubr.bf16.mxu0 0
  %399 = vmatmul.mubr.bf16.gmra.mrb[0].mxu0 %v233
  %v400 = vpop.f32.mrb[0].mxu0
  %v401 = vadd.f32 %v100, %v400
  %v402 = vpop.f32.mrb[0].mxu0
  %v403 = vpop.f32.mrb[0].mxu0
  %v404 = vadd.f32 %v100, %v403
  %v405 = vpop.f32.mrb[0].mxu0
  %406 = vmatprep.mubr.bf16.mxu0 0
  %407 = vmatmul.mubr.bf16.gmra.mrb[0].mxu0 %v234
  %v408 = vpop.f32.mrb[0].mxu0
  %v409 = vadd.f32 %v100, %v408
  %v410 = vpop.f32.mrb[0].mxu0
  %v411 = vpop.f32.mrb[0].mxu0
  %v412 = vadd.f32 %v100, %v411
  %v413 = vpop.f32.mrb[0].mxu0
  %414 = vmatprep.mubr.bf16.mxu0 0
  %415 = vmatmul.mubr.bf16.gmra.mrb[0].mxu0 %v235
  %v416 = vpop.f32.mrb[0].mxu0
  %v417 = vadd.f32 %v100, %v416
  %v418 = vpop.f32.mrb[0].mxu0
  %v419 = vpop.f32.mrb[0].mxu0
  %v420 = vadd.f32 %v100, %v419
  %v421 = vpop.f32.mrb[0].mxu0
  %422 = vmatprep.mubr.bf16.mxu0 0
  %423 = vmatmul.mubr.bf16.gmra.mrb[0].mxu0 %v236
  %v424 = vpop.f32.mrb[0].mxu0
  %v425 = vadd.f32 %v100, %v424
  %v426 = vpop.f32.mrb[0].mxu0
  %v427 = vpop.f32.mrb[0].mxu0
  %v428 = vadd.f32 %v100, %v427
  %v429 = vpop.f32.mrb[0].mxu0
  %430 = vmatprep.mubr.bf16.mxu0 0
  %431 = vmatmul.mubr.bf16.gmra.mrb[0].mxu0 %v237
  %v432 = vpop.f32.mrb[0].mxu0
  %v433 = vadd.f32 %v100, %v432
  %v434 = vpop.f32.mrb[0].mxu0
  %v435 = vpop.f32.mrb[0].mxu0
  %v436 = vadd.f32 %v100, %v435
  %v437 = vpop.f32.mrb[0].mxu0
  %438 = vmatprep.mubr.bf16.mxu0 0
  %439 = vmatmul.mubr.bf16.gmra.mrb[0].mxu0 %v238
  %v440 = vpop.f32.mrb[0].mxu0
  %v441 = vadd.f32 %v100, %v440
  %v442 = vpop.f32.mrb[0].mxu0
  %v443 = vpop.f32.mrb[0].mxu0
  %v444 = vadd.f32 %v100, %v443
  %v445 = vpop.f32.mrb[0].mxu0
  %446 = vmatprep.mubr.bf16.mxu0 0
  %447 = vmatmul.mubr.bf16.gmra.mrb[0].mxu0 %v239
  %v448 = vpop.f32.mrb[0].mxu0
  %v449 = vadd.f32 %v100, %v448
  %v450 = vpop.f32.mrb[0].mxu0
  %v451 = vpop.f32.mrb[0].mxu0
  %v452 = vadd.f32 %v100, %v451
  %v453 = vpop.f32.mrb[0].mxu0
  %454 = vmatprep.mubr.bf16.mxu0 0
  %455 = vmatmul.mubr.bf16.gmra.mrb[0].mxu0 %v240
  %v456 = vpop.f32.mrb[0].mxu0
  %v457 = vadd.f32 %v100, %v456
  %v458 = vpop.f32.mrb[0].mxu0
  %v459 = vpop.f32.mrb[0].mxu0
  %v460 = vadd.f32 %v100, %v459
  %v461 = vpop.f32.mrb[0].mxu0
  %462 = vmatprep.mubr.bf16.mxu0 0
  %463 = vmatmul.mubr.bf16.gmra.mrb[0].mxu0 %v241
  %v464 = vpop.f32.mrb[0].mxu0
  %v465 = vadd.f32 %v100, %v464
  %v466 = vpop.f32.mrb[0].mxu0
  %v467 = vpop.f32.mrb[0].mxu0
  %v468 = vadd.f32 %v100, %v467
  %v469 = vpop.f32.mrb[0].mxu0
  %470 = vmatprep.mubr.bf16.mxu0 0
  %471 = vmatmul.mubr.bf16.gmra.mrb[0].mxu0 %v242
  %v472 = vpop.f32.mrb[0].mxu0
  %v473 = vadd.f32 %v100, %v472
  %v474 = vpop.f32.mrb[0].mxu0
  %v475 = vpop.f32.mrb[0].mxu0
  %v476 = vadd.f32 %v100, %v475
  %v477 = vpop.f32.mrb[0].mxu0
  %478 = vmatprep.mubr.bf16.mxu0 0
  %479 = vmatmul.mubr.bf16.gmra.mrb[0].mxu0 %v243
  %v480 = vpop.f32.mrb[0].mxu0
  %v481 = vadd.f32 %v100, %v480
  %v482 = vpop.f32.mrb[0].mxu0
  %v483 = vpop.f32.mrb[0].mxu0
  %v484 = vadd.f32 %v100, %v483
  %v485 = vpop.f32.mrb[0].mxu0
  %486 = vmatprep.mubr.bf16.mxu0 0
  %487 = vmatmul.mubr.bf16.gmra.mrb[0].mxu0 %v244
  %v488 = vpop.f32.mrb[0].mxu0
  %v489 = vadd.f32 %v100, %v488
  %v490 = vpop.f32.mrb[0].mxu0
  %v491 = vpop.f32.mrb[0].mxu0
  %v492 = vadd.f32 %v100, %v491
  %v493 = vpop.f32.mrb[0].mxu0
  %494 = vmatprep.mubr.bf16.mxu0 0
  %495 = vmatmul.mubr.bf16.gmra.mrb[0].mxu0 %v245
  %v496 = vpop.f32.mrb[0].mxu0
  %v497 = vadd.f32 %v100, %v496
  %v498 = vpop.f32.mrb[0].mxu0
  %v499 = vpop.f32.mrb[0].mxu0
  %v500 = vadd.f32 %v100, %v499
  %v501 = vpop.f32.mrb[0].mxu0
  %502 = vmatprep.mubr.bf16.mxu0 0
  %503 = vmatmul.mubr.bf16.gmra.mrb[0].mxu0 %v246
  %v504 = vpop.f32.mrb[0].mxu0
  %v505 = vadd.f32 %v100, %v504
  %v506 = vpop.f32.mrb[0].mxu0
  %v507 = vpop.f32.mrb[0].mxu0
  %v508 = vadd.f32 %v100, %v507
  %v509 = vpop.f32.mrb[0].mxu0
  %510 = vmatprep.mubr.bf16.mxu0 0
  %511 = vmatmul.mubr.bf16.gmra.mrb[0].mxu0 %v247
  %v512 = vpop.f32.mrb[0].mxu0
  %v513 = vadd.f32 %v100, %v512
  %v514 = vpop.f32.mrb[0].mxu0
  %v515 = vpop.f32.mrb[0].mxu0
  %v516 = vadd.f32 %v100, %v515
  %v517 = vpop.f32.mrb[0].mxu0
  %518 = vmatprep.mubr.bf16.mxu0 0
  %519 = vmatmul.mubr.bf16.gmra.mrb[0].mxu0 %v248
  %v520 = vpop.f32.mrb[0].mxu0
  %v521 = vadd.f32 %v100, %v520
  %v522 = vpop.f32.mrb[0].mxu0
  %v523 = vpop.f32.mrb[0].mxu0
  %v524 = vadd.f32 %v100, %v523
  %v525 = vpop.f32.mrb[0].mxu0
  %526 = vmatprep.mubr.bf16.mxu0 0
  %527 = vmatmul.mubr.bf16.gmra.mrb[0].mxu0 %v249
  %v528 = vpop.f32.mrb[0].mxu0
  %v529 = vadd.f32 %v100, %v528
  %v530 = vpop.f32.mrb[0].mxu0
  %v531 = vpop.f32.mrb[0].mxu0
  %v532 = vadd.f32 %v100, %v531
  %v533 = vpop.f32.mrb[0].mxu0
  %534 = vmatprep.mubr.bf16.mxu0 0
  %535 = vmatmul.mubr.bf16.gmra.mrb[0].mxu0 %v250
  %v536 = vpop.f32.mrb[0].mxu0
  %v537 = vadd.f32 %v100, %v536
  %v538 = vpop.f32.mrb[0].mxu0
  %v539 = vpop.f32.mrb[0].mxu0
  %v540 = vadd.f32 %v100, %v539
  %v541 = vpop.f32.mrb[0].mxu0
  %542 = vmatprep.mubr.bf16.mxu0 0
  %543 = vmatmul.mubr.bf16.gmra.mrb[0].mxu0 %v251
  %v544 = vpop.f32.mrb[0].mxu0
  %v545 = vadd.f32 %v100, %v544
  %v546 = vpop.f32.mrb[0].mxu0
  %v547 = vpop.f32.mrb[0].mxu0
  %v548 = vadd.f32 %v100, %v547
  %v549 = vpop.f32.mrb[0].mxu0
  %550 = vmatprep.mubr.bf16.mxu0 0
  %551 = vmatmul.mubr.bf16.gmra.mrb[0].mxu0 %v252
  %v552 = vpop.f32.mrb[0].mxu0
  %v553 = vadd.f32 %v100, %v552
  %v554 = vpop.f32.mrb[0].mxu0
  %v555 = vpop.f32.mrb[0].mxu0
  %v556 = vadd.f32 %v100, %v555
  %v557 = vpop.f32.mrb[0].mxu0
  %558 = vmatprep.mubr.bf16.mxu0 0
  %559 = vmatmul.mubr.bf16.gmra.mrb[0].mxu0 %v253
  %v560 = vpop.f32.mrb[0].mxu0
  %v561 = vadd.f32 %v100, %v560
  %v562 = vpop.f32.mrb[0].mxu0
  %v563 = vpop.f32.mrb[0].mxu0
  %v564 = vadd.f32 %v100, %v563
  %v565 = vpop.f32.mrb[0].mxu0
  %566 = vmatprep.mubr.bf16.mxu0 0
  %567 = vmatmul.mubr.bf16.gmra.mrb[0].mxu0 %v254
  %v568 = vpop.f32.mrb[0].mxu0
  %v569 = vadd.f32 %v100, %v568
  %v570 = vpop.f32.mrb[0].mxu0
  %v571 = vpop.f32.mrb[0].mxu0
  %v572 = vadd.f32 %v100, %v571
  %v573 = vpop.f32.mrb[0].mxu0
  %574 = vmatprep.mubr.bf16.mxu0 0
  %575 = vmatmul.mubr.bf16.gmra.mrb[0].mxu0 %v255
  %v576 = vpop.f32.mrb[0].mxu0
  %v577 = vadd.f32 %v100, %v576
  %v578 = vpop.f32.mrb[0].mxu0
  %v579 = vpop.f32.mrb[0].mxu0
  %v580 = vadd.f32 %v100, %v579
  %v581 = vpop.f32.mrb[0].mxu0
  %582 = vmatprep.mubr.bf16.mxu0 0
  %583 = vmatmul.mubr.bf16.gmra.mrb[0].mxu0 %v256
  %v584 = vpop.f32.mrb[0].mxu0
  %v585 = vadd.f32 %v100, %v584
  %v586 = vpop.f32.mrb[0].mxu0
  %v587 = vpop.f32.mrb[0].mxu0
  %v588 = vadd.f32 %v100, %v587
  %v589 = vpop.f32.mrb[0].mxu0
  %590 = vmatprep.mubr.bf16.mxu0 0
  %591 = vmatmul.mubr.bf16.gmra.mrb[0].mxu0 %v257
  %v592 = vpop.f32.mrb[0].mxu0
  %v593 = vadd.f32 %v100, %v592
  %v594 = vpop.f32.mrb[0].mxu0
  %v595 = vpop.f32.mrb[0].mxu0
  %v596 = vadd.f32 %v100, %v595
  %v597 = vpop.f32.mrb[0].mxu0
  %598 = vmatprep.mubr.bf16.mxu0 0
  %599 = vmatmul.mubr.bf16.gmra.mrb[0].mxu0 %v258
  %v600 = vpop.f32.mrb[0].mxu0
  %v601 = vadd.f32 %v100, %v600
  %v602 = vpop.f32.mrb[0].mxu0
  %v603 = vpop.f32.mrb[0].mxu0
  %v604 = vadd.f32 %v100, %v603
  %v605 = vpop.f32.mrb[0].mxu0
  %606 = vmatprep.mubr.bf16.mxu0 0
  %607 = vmatmul.mubr.bf16.gmra.mrb[0].mxu0 %v259
  %v608 = vpop.f32.mrb[0].mxu0
  %v609 = vadd.f32 %v100, %v608
  %v610 = vpop.f32.mrb[0].mxu0
  %v611 = vpop.f32.mrb[0].mxu0
  %v612 = vadd.f32 %v100, %v611
  %v613 = vpop.f32.mrb[0].mxu0
  %614 = vmatprep.mubr.bf16.mxu0 0
  %615 = vmatmul.mubr.bf16.gmra.mrb[0].mxu0 %v260
  %v616 = vpop.f32.mrb[0].mxu0
  %v617 = vadd.f32 %v100, %v616
  %v618 = vpop.f32.mrb[0].mxu0
  %v619 = vpop.f32.mrb[0].mxu0
  %v620 = vadd.f32 %v100, %v619
  %v621 = vpop.f32.mrb[0].mxu0
  %622 = vmatprep.mubr.bf16.mxu0 0
  %623 = vmatmul.mubr.bf16.gmra.mrb[0].mxu0 %v261
  %v624 = vpop.f32.mrb[0].mxu0
  %v625 = vadd.f32 %v100, %v624
  %v626 = vpop.f32.mrb[0].mxu0
  %v627 = vpop.f32.mrb[0].mxu0
  %v628 = vadd.f32 %v100, %v627
  %v629 = vpop.f32.mrb[0].mxu0
  %630 = vdwg.mxu0
  %v631 = vpack.c.bf16 %v380, %v377
  %v632 = vpack.c.bf16 %v388, %v385
  %v633 = vpack.c.bf16 %v396, %v393
  %v634 = vpack.c.bf16 %v404, %v401
  %v635 = vpack.c.bf16 %v412, %v409
  %v636 = vpack.c.bf16 %v420, %v417
  %v637 = vpack.c.bf16 %v428, %v425
  %v638 = vpack.c.bf16 %v436, %v433
  %v639 = vpack.c.bf16 %v444, %v441
  %v640 = vpack.c.bf16 %v452, %v449
  %v641 = vpack.c.bf16 %v460, %v457
  %v642 = vpack.c.bf16 %v468, %v465
  %v643 = vpack.c.bf16 %v476, %v473
  %v644 = vpack.c.bf16 %v484, %v481
  %v645 = vpack.c.bf16 %v492, %v489
  %v646 = vpack.c.bf16 %v500, %v497
  %v647 = vpack.c.bf16 %v508, %v505
  %v648 = vpack.c.bf16 %v516, %v513
  %v649 = vpack.c.bf16 %v524, %v521
  %v650 = vpack.c.bf16 %v532, %v529
  %v651 = vpack.c.bf16 %v540, %v537
  %v652 = vpack.c.bf16 %v548, %v545
  %v653 = vpack.c.bf16 %v556, %v553
  %v654 = vpack.c.bf16 %v564, %v561
  %v655 = vpack.c.bf16 %v572, %v569
  %v656 = vpack.c.bf16 %v580, %v577
  %v657 = vpack.c.bf16 %v588, %v585
  %v658 = vpack.c.bf16 %v596, %v593
  %v659 = vpack.c.bf16 %v604, %v601
  %v660 = vpack.c.bf16 %v612, %v609
  %v661 = vpack.c.bf16 %v620, %v617
  %v662 = vpack.c.bf16 %v628, %v625
  %v695 = vunpack.c.l.b16 %v631
  %v696 = vunpack.c.h.b16 %v631
  %v697 = vunpack.c.l.b16 %v632
  %v698 = vunpack.c.h.b16 %v632
  %v699 = vunpack.c.l.b16 %v633
  %v700 = vunpack.c.h.b16 %v633
  %v701 = vunpack.c.l.b16 %v634
  %v702 = vunpack.c.h.b16 %v634
  %v703 = vunpack.c.l.b16 %v635
  %v704 = vunpack.c.h.b16 %v635
  %v705 = vunpack.c.l.b16 %v636
  %v706 = vunpack.c.h.b16 %v636
  %v707 = vunpack.c.l.b16 %v637
  %v708 = vunpack.c.h.b16 %v637
  %v709 = vunpack.c.l.b16 %v638
  %v710 = vunpack.c.h.b16 %v638
  %v711 = vunpack.c.l.b16 %v639
  %v712 = vunpack.c.h.b16 %v639
  %v713 = vunpack.c.l.b16 %v640
  %v714 = vunpack.c.h.b16 %v640
  %v715 = vunpack.c.l.b16 %v641
  %v716 = vunpack.c.h.b16 %v641
  %v717 = vunpack.c.l.b16 %v642
  %v718 = vunpack.c.h.b16 %v642
  %v719 = vunpack.c.l.b16 %v643
  %v720 = vunpack.c.h.b16 %v643
  %v721 = vunpack.c.l.b16 %v644
  %v722 = vunpack.c.h.b16 %v644
  %v723 = vunpack.c.l.b16 %v645
  %v724 = vunpack.c.h.b16 %v645
  %v725 = vunpack.c.l.b16 %v646
  %v726 = vunpack.c.h.b16 %v646
  %v727 = vunpack.c.l.b16 %v647
  %v728 = vunpack.c.h.b16 %v647
  %v729 = vunpack.c.l.b16 %v648
  %v730 = vunpack.c.h.b16 %v648
  %v731 = vunpack.c.l.b16 %v649
  %v732 = vunpack.c.h.b16 %v649
  %v733 = vunpack.c.l.b16 %v650
  %v734 = vunpack.c.h.b16 %v650
  %v735 = vunpack.c.l.b16 %v651
  %v736 = vunpack.c.h.b16 %v651
  %v737 = vunpack.c.l.b16 %v652
  %v738 = vunpack.c.h.b16 %v652
  %v739 = vunpack.c.l.b16 %v653
  %v740 = vunpack.c.h.b16 %v653
  %v741 = vunpack.c.l.b16 %v654
  %v742 = vunpack.c.h.b16 %v654
  %v743 = vunpack.c.l.b16 %v655
  %v744 = vunpack.c.h.b16 %v655
  %v745 = vunpack.c.l.b16 %v656
  %v746 = vunpack.c.h.b16 %v656
  %v747 = vunpack.c.l.b16 %v657
  %v748 = vunpack.c.h.b16 %v657
  %v749 = vunpack.c.l.b16 %v658
  %v750 = vunpack.c.h.b16 %v658
  %v751 = vunpack.c.l.b16 %v659
  %v752 = vunpack.c.h.b16 %v659
  %v753 = vunpack.c.l.b16 %v660
  %v754 = vunpack.c.h.b16 %v660
  %v755 = vunpack.c.l.b16 %v661
  %v756 = vunpack.c.h.b16 %v661
  %v757 = vunpack.c.l.b16 %v662
  %v758 = vunpack.c.h.b16 %v662
  %v759 = vpack.c.b16 %v695, %v695
  %v760 = vpack.c.b16 %v696, %v696
  %v761 = vpack.c.b16 %v697, %v697
  %v762 = vpack.c.b16 %v698, %v698
  %v763 = vpack.c.b16 %v699, %v699
  %v764 = vpack.c.b16 %v700, %v700
  %v765 = vpack.c.b16 %v701, %v701
  %v766 = vpack.c.b16 %v702, %v702
  %v767 = vpack.c.b16 %v703, %v703
  %v768 = vpack.c.b16 %v704, %v704
  %v769 = vpack.c.b16 %v705, %v705
  %v770 = vpack.c.b16 %v706, %v706
  %v771 = vpack.c.b16 %v707, %v707
  %v772 = vpack.c.b16 %v708, %v708
  %v773 = vpack.c.b16 %v709, %v709
  %v774 = vpack.c.b16 %v710, %v710
  %v775 = vpack.c.b16 %v711, %v711
  %v776 = vpack.c.b16 %v712, %v712
  %v777 = vpack.c.b16 %v713, %v713
  %v778 = vpack.c.b16 %v714, %v714
  %v779 = vpack.c.b16 %v715, %v715
  %v780 = vpack.c.b16 %v716, %v716
  %v781 = vpack.c.b16 %v717, %v717
  %v782 = vpack.c.b16 %v718, %v718
  %v783 = vpack.c.b16 %v719, %v719
  %v784 = vpack.c.b16 %v720, %v720
  %v785 = vpack.c.b16 %v721, %v721
  %v786 = vpack.c.b16 %v722, %v722
  %v787 = vpack.c.b16 %v723, %v723
  %v788 = vpack.c.b16 %v724, %v724
  %v789 = vpack.c.b16 %v725, %v725
  %v790 = vpack.c.b16 %v726, %v726
  %v791 = vpack.c.b16 %v727, %v727
  %v792 = vpack.c.b16 %v728, %v728
  %v793 = vpack.c.b16 %v729, %v729
  %v794 = vpack.c.b16 %v730, %v730
  %v795 = vpack.c.b16 %v731, %v731
  %v796 = vpack.c.b16 %v732, %v732
  %v797 = vpack.c.b16 %v733, %v733
  %v798 = vpack.c.b16 %v734, %v734
  %v799 = vpack.c.b16 %v735, %v735
  %v800 = vpack.c.b16 %v736, %v736
  %v801 = vpack.c.b16 %v737, %v737
  %v802 = vpack.c.b16 %v738, %v738
  %v803 = vpack.c.b16 %v739, %v739
  %v804 = vpack.c.b16 %v740, %v740
  %v805 = vpack.c.b16 %v741, %v741
  %v806 = vpack.c.b16 %v742, %v742
  %v807 = vpack.c.b16 %v743, %v743
  %v808 = vpack.c.b16 %v744, %v744
  %v809 = vpack.c.b16 %v745, %v745
  %v810 = vpack.c.b16 %v746, %v746
  %v811 = vpack.c.b16 %v747, %v747
  %v812 = vpack.c.b16 %v748, %v748
  %v813 = vpack.c.b16 %v749, %v749
  %v814 = vpack.c.b16 %v750, %v750
  %v815 = vpack.c.b16 %v751, %v751
  %v816 = vpack.c.b16 %v752, %v752
  %v817 = vpack.c.b16 %v753, %v753
  %v818 = vpack.c.b16 %v754, %v754
  %v819 = vpack.c.b16 %v755, %v755
  %v820 = vpack.c.b16 %v756, %v756
  %v821 = vpack.c.b16 %v757, %v757
  %v822 = vpack.c.b16 %v758, %v758
  %887 = vst [vmem:[%s3] sm:$0xf] %v759
  %888 = vst [vmem:[%s3 + $0x4] sm:$0xf] %v760
  %889 = vst [vmem:[%s3 + $0x8] sm:$0xf] %v761
  %890 = vst [vmem:[%s3 + $0xc] sm:$0xf] %v762
  %891 = vst [vmem:[%s3 + $0x10] sm:$0xf] %v763
  %892 = vst [vmem:[%s3 + $0x14] sm:$0xf] %v764
  %893 = vst [vmem:[%s3 + $0x18] sm:$0xf] %v765
  %894 = vst [vmem:[%s3 + $0x1c] sm:$0xf] %v766
  %895 = vst [vmem:[%s3 + $0x20] sm:$0xf] %v767
  %896 = vst [vmem:[%s3 + $0x24] sm:$0xf] %v768
  %897 = vst [vmem:[%s3 + $0x28] sm:$0xf] %v769
  %898 = vst [vmem:[%s3 + $0x2c] sm:$0xf] %v770
  %899 = vst [vmem:[%s3 + $0x30] sm:$0xf] %v771
  %900 = vst [vmem:[%s3 + $0x34] sm:$0xf] %v772
  %901 = vst [vmem:[%s3 + $0x38] sm:$0xf] %v773
  %902 = vst [vmem:[%s3 + $0x3c] sm:$0xf] %v774
  %903 = vst [vmem:[%s3 + $0x40] sm:$0xf] %v775
  %904 = vst [vmem:[%s3 + $0x44] sm:$0xf] %v776
  %905 = vst [vmem:[%s3 + $0x48] sm:$0xf] %v777
  %906 = vst [vmem:[%s3 + $0x4c] sm:$0xf] %v778
  %907 = vst [vmem:[%s3 + $0x50] sm:$0xf] %v779
  %908 = vst [vmem:[%s3 + $0x54] sm:$0xf] %v780
  %909 = vst [vmem:[%s3 + $0x58] sm:$0xf] %v781
  %910 = vst [vmem:[%s3 + $0x5c] sm:$0xf] %v782
  %911 = vst [vmem:[%s3 + $0x60] sm:$0xf] %v783
  %912 = vst [vmem:[%s3 + $0x64] sm:$0xf] %v784
  %913 = vst [vmem:[%s3 + $0x68] sm:$0xf] %v785
  %914 = vst [vmem:[%s3 + $0x6c] sm:$0xf] %v786
  %915 = vst [vmem:[%s3 + $0x70] sm:$0xf] %v787
  %916 = vst [vmem:[%s3 + $0x74] sm:$0xf] %v788
  %917 = vst [vmem:[%s3 + $0x78] sm:$0xf] %v789
  %918 = vst [vmem:[%s3 + $0x7c] sm:$0xf] %v790
  %919 = vst [vmem:[%s3 + $0x80] sm:$0xf] %v791
  %920 = vst [vmem:[%s3 + $0x84] sm:$0xf] %v792
  %921 = vst [vmem:[%s3 + $0x88] sm:$0xf] %v793
  %922 = vst [vmem:[%s3 + $0x8c] sm:$0xf] %v794
  %923 = vst [vmem:[%s3 + $0x90] sm:$0xf] %v795
  %924 = vst [vmem:[%s3 + $0x94] sm:$0xf] %v796
  %925 = vst [vmem:[%s3 + $0x98] sm:$0xf] %v797
  %926 = vst [vmem:[%s3 + $0x9c] sm:$0xf] %v798
  %927 = vst [vmem:[%s3 + $0xa0] sm:$0xf] %v799
  %928 = vst [vmem:[%s3 + $0xa4] sm:$0xf] %v800
  %929 = vst [vmem:[%s3 + $0xa8] sm:$0xf] %v801
  %930 = vst [vmem:[%s3 + $0xac] sm:$0xf] %v802
  %931 = vst [vmem:[%s3 + $0xb0] sm:$0xf] %v803
  %932 = vst [vmem:[%s3 + $0xb4] sm:$0xf] %v804
  %933 = vst [vmem:[%s3 + $0xb8] sm:$0xf] %v805
  %934 = vst [vmem:[%s3 + $0xbc] sm:$0xf] %v806
  %935 = vst [vmem:[%s3 + $0xc0] sm:$0xf] %v807
  %936 = vst [vmem:[%s3 + $0xc4] sm:$0xf] %v808
  %937 = vst [vmem:[%s3 + $0xc8] sm:$0xf] %v809
  %938 = vst [vmem:[%s3 + $0xcc] sm:$0xf] %v810
  %939 = vst [vmem:[%s3 + $0xd0] sm:$0xf] %v811
  %940 = vst [vmem:[%s3 + $0xd4] sm:$0xf] %v812
  %941 = vst [vmem:[%s3 + $0xd8] sm:$0xf] %v813
  %942 = vst [vmem:[%s3 + $0xdc] sm:$0xf] %v814
  %943 = vst [vmem:[%s3 + $0xe0] sm:$0xf] %v815
  %944 = vst [vmem:[%s3 + $0xe4] sm:$0xf] %v816
  %945 = vst [vmem:[%s3 + $0xe8] sm:$0xf] %v817
  %946 = vst [vmem:[%s3 + $0xec] sm:$0xf] %v818
  %947 = vst [vmem:[%s3 + $0xf0] sm:$0xf] %v819
  %948 = vst [vmem:[%s3 + $0xf4] sm:$0xf] %v820
  %949 = vst [vmem:[%s3 + $0xf8] sm:$0xf] %v821
  %950 = vst [vmem:[%s3 + $0xfc] sm:$0xf] %v822
  // Predicated region
  $region14: #{_lambda_.24} parent=0 // pred_check
    _
  $region15: #{_lambda_.24} parent=0 // pred_check_branch
    %952 = sbr.rel (0) target = $region17
  $region16: #{_lambda_.24} parent=0 // pred_region
    _
  $region17: #{_lambda_.24} parent=0 // pred_fallthru
    _
  // Predicated region
  $region18: #{_lambda_.24} parent=0 // pred_check
    _
  $region19: #{_lambda_.24} parent=0 // pred_check_branch
    %954 = sbr.rel (0) target = $region21
  $region20: #{_lambda_.24} parent=0 // pred_region
    _
  $region21: #{_lambda_.24} parent=0 // pred_fallthru
    _

// kernel: _lambda_.25
$region0: #{_lambda_.25}
  #allocation0 [shape = 'u32[]', space=smem, size = 0x4, offset = 0x4, fixed_abs, tag = 'smem constant byte address 0x4 - core index']
  #allocation1 [shape = 'u32[144,128]{1,0:T(1,128)}', space=vmem, size = 0x12000, scoped, tag = 'internal scratch']
  %s0 = inlined_call_operand.vmem [shape: bf16[128,128], index: 0, kind: input, shape index: {}]
  %s1 = inlined_call_operand.vmem [shape: bf16[128,128], index: 1, kind: input, shape index: {}]
  %s2 = inlined_call_operand.vmem [shape: f32[1,128], index: 2, kind: input, shape index: {}]
  %s3 = inlined_call_operand.vmem [shape: bf16[128,128], index: 3, kind: output, shape index: {}]
  %s4 = sld [smem:[#allocation0]]
  $region22: #{_lambda_.25} parent=0
    _
  %s6 = ssub.s32 1, %s4
  %s7 = scalar_select 0, %s6, %s4
  // Predicated region
  $region2: #{_lambda_.25} parent=0 // pred_check
    _
  $region3: #{_lambda_.25} parent=0 // pred_check_branch
    %9 = sbr.rel (0) target = $region5
  $region4: #{_lambda_.25} parent=0 // pred_region
    _
  $region5: #{_lambda_.25} parent=0 // pred_fallthru
    _
  // Predicated region
  $region6: #{_lambda_.25} parent=0 // pred_check
    _
  $region7: #{_lambda_.25} parent=0 // pred_check_branch
    %11 = sbr.rel (0) target = $region9
  $region8: #{_lambda_.25} parent=0 // pred_region
    _
  $region9: #{_lambda_.25} parent=0 // pred_fallthru
    _
  // Predicated region
  $region10: #{_lambda_.25} parent=0 // pred_check
    _
  $region11: #{_lambda_.25} parent=0 // pred_check_branch
    %13 = sbr.rel (0) target = $region13
  $region12: #{_lambda_.25} parent=0 // pred_region
    _
  $region13: #{_lambda_.25} parent=0 // pred_fallthru
    _
  %v16 = vld [vmem:[%s0] sm:$0xf]
  %v17 = vld [vmem:[%s0 + $0x4] sm:$0xf]
  %v18 = vld [vmem:[%s0 + $0x8] sm:$0xf]
  %v19 = vld [vmem:[%s0 + $0xc] sm:$0xf]
  %v20 = vld [vmem:[%s0 + $0x10] sm:$0xf]
  %v21 = vld [vmem:[%s0 + $0x14] sm:$0xf]
  %v22 = vld [vmem:[%s0 + $0x18] sm:$0xf]
  %v23 = vld [vmem:[%s0 + $0x1c] sm:$0xf]
  %v24 = vld [vmem:[%s0 + $0x20] sm:$0xf]
  %v25 = vld [vmem:[%s0 + $0x24] sm:$0xf]
  %v26 = vld [vmem:[%s0 + $0x28] sm:$0xf]
  %v27 = vld [vmem:[%s0 + $0x2c] sm:$0xf]
  %v28 = vld [vmem:[%s0 + $0x30] sm:$0xf]
  %v29 = vld [vmem:[%s0 + $0x34] sm:$0xf]
  %v30 = vld [vmem:[%s0 + $0x38] sm:$0xf]
  %v31 = vld [vmem:[%s0 + $0x3c] sm:$0xf]
  %vm32 = vcmp.ge.bf16.partialorder %v16, 0
  %vm33 = vcmp.ge.bf16.partialorder %v17, 0
  %vm34 = vcmp.ge.bf16.partialorder %v18, 0
  %vm35 = vcmp.ge.bf16.partialorder %v19, 0
  %vm36 = vcmp.ge.bf16.partialorder %v20, 0
  %vm37 = vcmp.ge.bf16.partialorder %v21, 0
  %vm38 = vcmp.ge.bf16.partialorder %v22, 0
  %vm39 = vcmp.ge.bf16.partialorder %v23, 0
  %vm40 = vcmp.ge.bf16.partialorder %v24, 0
  %vm41 = vcmp.ge.bf16.partialorder %v25, 0
  %vm42 = vcmp.ge.bf16.partialorder %v26, 0
  %vm43 = vcmp.ge.bf16.partialorder %v27, 0
  %vm44 = vcmp.ge.bf16.partialorder %v28, 0
  %vm45 = vcmp.ge.bf16.partialorder %v29, 0
  %vm46 = vcmp.ge.bf16.partialorder %v30, 0
  %vm47 = vcmp.ge.bf16.partialorder %v31, 0
  %v48 = vmul.bf16 %v16, 1045249613
  %v49 = vmul.bf16 %v17, 1045249613
  %v50 = vmul.bf16 %v18, 1045249613
  %v51 = vmul.bf16 %v19, 1045249613
  %v52 = vmul.bf16 %v20, 1045249613
  %v53 = vmul.bf16 %v21, 1045249613
  %v54 = vmul.bf16 %v22, 1045249613
  %v55 = vmul.bf16 %v23, 1045249613
  %v56 = vmul.bf16 %v24, 1045249613
  %v57 = vmul.bf16 %v25, 1045249613
  %v58 = vmul.bf16 %v26, 1045249613
  %v59 = vmul.bf16 %v27, 1045249613
  %v60 = vmul.bf16 %v28, 1045249613
  %v61 = vmul.bf16 %v29, 1045249613
  %v62 = vmul.bf16 %v30, 1045249613
  %v63 = vmul.bf16 %v31, 1045249613
  %v64 = vsel %vm32, %v16, %v48
  %v65 = vsel %vm33, %v17, %v49
  %v66 = vsel %vm34, %v18, %v50
  %v67 = vsel %vm35, %v19, %v51
  %v68 = vsel %vm36, %v20, %v52
  %v69 = vsel %vm37, %v21, %v53
  %v70 = vsel %vm38, %v22, %v54
  %v71 = vsel %vm39, %v23, %v55
  %v72 = vsel %vm40, %v24, %v56
  %v73 = vsel %vm41, %v25, %v57
  %v74 = vsel %vm42, %v26, %v58
  %v75 = vsel %vm43, %v27, %v59
  %v76 = vsel %vm44, %v28, %v60
  %v77 = vsel %vm45, %v29, %v61
  %v78 = vsel %vm46, %v30, %v62
  %v79 = vsel %vm47, %v31, %v63
  %v80 = vld [vmem:[%s1] sm:$0xf]
  %v81 = vld [vmem:[%s1 + $0x4] sm:$0xf]
  %v82 = vld [vmem:[%s1 + $0x8] sm:$0xf]
  %v83 = vld [vmem:[%s1 + $0xc] sm:$0xf]
  %v84 = vld [vmem:[%s1 + $0x10] sm:$0xf]
  %v85 = vld [vmem:[%s1 + $0x14] sm:$0xf]
  %v86 = vld [vmem:[%s1 + $0x18] sm:$0xf]
  %v87 = vld [vmem:[%s1 + $0x1c] sm:$0xf]
  %v88 = vld [vmem:[%s1 + $0x20] sm:$0xf]
  %v89 = vld [vmem:[%s1 + $0x24] sm:$0xf]
  %v90 = vld [vmem:[%s1 + $0x28] sm:$0xf]
  %v91 = vld [vmem:[%s1 + $0x2c] sm:$0xf]
  %v92 = vld [vmem:[%s1 + $0x30] sm:$0xf]
  %v93 = vld [vmem:[%s1 + $0x34] sm:$0xf]
  %v94 = vld [vmem:[%s1 + $0x38] sm:$0xf]
  %v95 = vld [vmem:[%s1 + $0x3c] sm:$0xf]
  %v96 = vld [vmem:[%s2] sm:$0x1]
  %v98 = vlaneseq
  %v99 = vshrl.u32 %v98, 7
  %v100 = vsub.s32 0, %v99
  %v101 = vrot.slane %v96, %v100
  %v119 = vunpack.c.l.b16 %v64
  %v120 = vunpack.c.l.b16 %v65
  %v121 = vunpack.c.l.b16 %v66
  %v122 = vunpack.c.l.b16 %v67
  %v123 = vunpack.c.l.b16 %v68
  %v124 = vunpack.c.l.b16 %v69
  %v125 = vunpack.c.l.b16 %v70
  %v126 = vunpack.c.l.b16 %v71
  %v127 = vunpack.c.l.b16 %v72
  %v128 = vunpack.c.l.b16 %v73
  %v129 = vunpack.c.l.b16 %v74
  %v130 = vunpack.c.l.b16 %v75
  %v131 = vunpack.c.l.b16 %v76
  %v132 = vunpack.c.l.b16 %v77
  %v133 = vunpack.c.l.b16 %v78
  %v134 = vunpack.c.l.b16 %v79
  %v135 = vpack.c.b16 %v120, %v119
  %v136 = vpack.c.b16 %v122, %v121
  %v137 = vpack.c.b16 %v124, %v123
  %v138 = vpack.c.b16 %v126, %v125
  %v139 = vpack.c.b16 %v128, %v127
  %v140 = vpack.c.b16 %v130, %v129
  %v141 = vpack.c.b16 %v132, %v131
  %v142 = vpack.c.b16 %v134, %v133
  %v167 = vunpack.c.l.b16 %v80
  %v168 = vunpack.c.l.b16 %v81
  %v169 = vunpack.c.l.b16 %v82
  %v170 = vunpack.c.l.b16 %v83
  %v171 = vunpack.c.l.b16 %v84
  %v172 = vunpack.c.l.b16 %v85
  %v173 = vunpack.c.l.b16 %v86
  %v174 = vunpack.c.l.b16 %v87
  %v175 = vunpack.c.l.b16 %v88
  %v176 = vunpack.c.l.b16 %v89
  %v177 = vunpack.c.l.b16 %v90
  %v178 = vunpack.c.l.b16 %v91
  %v179 = vunpack.c.l.b16 %v92
  %v180 = vunpack.c.l.b16 %v93
  %v181 = vunpack.c.l.b16 %v94
  %v182 = vunpack.c.l.b16 %v95
  %v183 = vpack.c.b16 %v168, %v167
  %v184 = vpack.c.b16 %v170, %v169
  %v185 = vpack.c.b16 %v172, %v171
  %v186 = vpack.c.b16 %v174, %v173
  %v187 = vpack.c.b16 %v176, %v175
  %v188 = vpack.c.b16 %v178, %v177
  %v189 = vpack.c.b16 %v180, %v179
  %v190 = vpack.c.b16 %v182, %v181
  %199 = vmatprep.subr.bf16.mxu0 0
  %200 = vmatpush1.bf16.msra.mxu0 %v183
  %201 = vmatprep.subr.bf16.mxu0 0
  %202 = vmatpush1.bf16.msra.mxu0 %v184
  %203 = vmatprep.subr.bf16.mxu0 0
  %204 = vmatpush1.bf16.msra.mxu0 %v185
  %205 = vmatprep.subr.bf16.mxu0 0
  %206 = vmatpush1.bf16.msra.mxu0 %v186
  %207 = vmatprep.subr.bf16.mxu0 0
  %208 = vmatpush1.bf16.msra.mxu0 %v187
  %209 = vmatprep.subr.bf16.mxu0 0
  %210 = vmatpush1.bf16.msra.mxu0 %v188
  %211 = vmatprep.subr.bf16.mxu0 0
  %212 = vmatpush1.bf16.msra.mxu0 %v189
  %213 = vmatprep.subr.bf16.mxu0 0
  %214 = vmatpush1.bf16.msra.mxu0 %v190
  %215 = vmatprep.subr.bf16.mxu0 0
  %216 = vmatpush1.bf16.msra.mxu0 0
  %217 = vmatprep.subr.bf16.mxu0 0
  %218 = vmatpush1.bf16.msra.mxu0 0
  %219 = vmatprep.subr.bf16.mxu0 0
  %220 = vmatpush1.bf16.msra.mxu0 0
  %221 = vmatprep.subr.bf16.mxu0 0
  %222 = vmatpush1.bf16.msra.mxu0 0
  %223 = vmatprep.subr.bf16.mxu0 0
  %224 = vmatpush1.bf16.msra.mxu0 0
  %225 = vmatprep.subr.bf16.mxu0 0
  %226 = vmatpush1.bf16.msra.mxu0 0
  %227 = vmatprep.subr.bf16.mxu0 0
  %228 = vmatpush1.bf16.msra.mxu0 0
  %229 = vmatprep.subr.bf16.mxu0 0
  %230 = vmatpush1.bf16.msra.mxu0 0
  %231 = vmatprep.mubr.bf16.mxu0 0
  %232 = vmatmul.mubr.bf16.gmra.mrb[0].mxu0 %v135
  %v233 = vpop.f32.mrb[0].mxu0
  %v234 = vadd.f32 %v101, %v233
  %v235 = vpop.f32.mrb[0].mxu0
  %v236 = vpop.f32.mrb[0].mxu0
  %v237 = vadd.f32 %v101, %v236
  %v238 = vpop.f32.mrb[0].mxu0
  %239 = vmatprep.mubr.bf16.mxu0 0
  %240 = vmatmul.mubr.bf16.gmra.mrb[0].mxu0 %v136
  %v241 = vpop.f32.mrb[0].mxu0
  %v242 = vadd.f32 %v101, %v241
  %v243 = vpop.f32.mrb[0].mxu0
  %v244 = vpop.f32.mrb[0].mxu0
  %v245 = vadd.f32 %v101, %v244
  %v246 = vpop.f32.mrb[0].mxu0
  %247 = vmatprep.mubr.bf16.mxu0 0
  %248 = vmatmul.mubr.bf16.gmra.mrb[0].mxu0 %v137
  %v249 = vpop.f32.mrb[0].mxu0
  %v250 = vadd.f32 %v101, %v249
  %v251 = vpop.f32.mrb[0].mxu0
  %v252 = vpop.f32.mrb[0].mxu0
  %v253 = vadd.f32 %v101, %v252
  %v254 = vpop.f32.mrb[0].mxu0
  %255 = vmatprep.mubr.bf16.mxu0 0
  %256 = vmatmul.mubr.bf16.gmra.mrb[0].mxu0 %v138
  %v257 = vpop.f32.mrb[0].mxu0
  %v258 = vadd.f32 %v101, %v257
  %v259 = vpop.f32.mrb[0].mxu0
  %v260 = vpop.f32.mrb[0].mxu0
  %v261 = vadd.f32 %v101, %v260
  %v262 = vpop.f32.mrb[0].mxu0
  %263 = vmatprep.mubr.bf16.mxu0 0
  %264 = vmatmul.mubr.bf16.gmra.mrb[0].mxu0 %v139
  %v265 = vpop.f32.mrb[0].mxu0
  %v266 = vadd.f32 %v101, %v265
  %v267 = vpop.f32.mrb[0].mxu0
  %v268 = vpop.f32.mrb[0].mxu0
  %v269 = vadd.f32 %v101, %v268
  %v270 = vpop.f32.mrb[0].mxu0
  %271 = vmatprep.mubr.bf16.mxu0 0
  %272 = vmatmul.mubr.bf16.gmra.mrb[0].mxu0 %v140
  %v273 = vpop.f32.mrb[0].mxu0
  %v274 = vadd.f32 %v101, %v273
  %v275 = vpop.f32.mrb[0].mxu0
  %v276 = vpop.f32.mrb[0].mxu0
  %v277 = vadd.f32 %v101, %v276
  %v278 = vpop.f32.mrb[0].mxu0
  %279 = vmatprep.mubr.bf16.mxu0 0
  %280 = vmatmul.mubr.bf16.gmra.mrb[0].mxu0 %v141
  %v281 = vpop.f32.mrb[0].mxu0
  %v282 = vadd.f32 %v101, %v281
  %v283 = vpop.f32.mrb[0].mxu0
  %v284 = vpop.f32.mrb[0].mxu0
  %v285 = vadd.f32 %v101, %v284
  %v286 = vpop.f32.mrb[0].mxu0
  %287 = vmatprep.mubr.bf16.mxu0 0
  %288 = vmatmul.mubr.bf16.gmra.mrb[0].mxu0 %v142
  %v289 = vpop.f32.mrb[0].mxu0
  %v290 = vadd.f32 %v101, %v289
  %v291 = vpop.f32.mrb[0].mxu0
  %v292 = vpop.f32.mrb[0].mxu0
  %v293 = vadd.f32 %v101, %v292
  %v294 = vpop.f32.mrb[0].mxu0
  %295 = vdwg.mxu0
  %v296 = vpack.c.bf16 %v237, %v234
  %v297 = vpack.c.bf16 %v245, %v242
  %v298 = vpack.c.bf16 %v253, %v250
  %v299 = vpack.c.bf16 %v261, %v258
  %v300 = vpack.c.bf16 %v269, %v266
  %v301 = vpack.c.bf16 %v277, %v274
  %v302 = vpack.c.bf16 %v285, %v282
  %v303 = vpack.c.bf16 %v293, %v290
  %v312 = vunpack.c.l.b16 %v296
  %v313 = vunpack.c.h.b16 %v296
  %v314 = vunpack.c.l.b16 %v297
  %v315 = vunpack.c.h.b16 %v297
  %v316 = vunpack.c.l.b16 %v298
  %v317 = vunpack.c.h.b16 %v298
  %v318 = vunpack.c.l.b16 %v299
  %v319 = vunpack.c.h.b16 %v299
  %v320 = vunpack.c.l.b16 %v300
  %v321 = vunpack.c.h.b16 %v300
  %v322 = vunpack.c.l.b16 %v301
  %v323 = vunpack.c.h.b16 %v301
  %v324 = vunpack.c.l.b16 %v302
  %v325 = vunpack.c.h.b16 %v302
  %v326 = vunpack.c.l.b16 %v303
  %v327 = vunpack.c.h.b16 %v303
  %v328 = vpack.c.b16 %v312, %v312
  %v329 = vpack.c.b16 %v313, %v313
  %v330 = vpack.c.b16 %v314, %v314
  %v331 = vpack.c.b16 %v315, %v315
  %v332 = vpack.c.b16 %v316, %v316
  %v333 = vpack.c.b16 %v317, %v317
  %v334 = vpack.c.b16 %v318, %v318
  %v335 = vpack.c.b16 %v319, %v319
  %v336 = vpack.c.b16 %v320, %v320
  %v337 = vpack.c.b16 %v321, %v321
  %v338 = vpack.c.b16 %v322, %v322
  %v339 = vpack.c.b16 %v323, %v323
  %v340 = vpack.c.b16 %v324, %v324
  %v341 = vpack.c.b16 %v325, %v325
  %v342 = vpack.c.b16 %v326, %v326
  %v343 = vpack.c.b16 %v327, %v327
  %360 = vst [vmem:[%s3] sm:$0xf] %v328
  %361 = vst [vmem:[%s3 + $0x4] sm:$0xf] %v329
  %362 = vst [vmem:[%s3 + $0x8] sm:$0xf] %v330
  %363 = vst [vmem:[%s3 + $0xc] sm:$0xf] %v331
  %364 = vst [vmem:[%s3 + $0x10] sm:$0xf] %v332
  %365 = vst [vmem:[%s3 + $0x14] sm:$0xf] %v333
  %366 = vst [vmem:[%s3 + $0x18] sm:$0xf] %v334
  %367 = vst [vmem:[%s3 + $0x1c] sm:$0xf] %v335
  %368 = vst [vmem:[%s3 + $0x20] sm:$0xf] %v336
  %369 = vst [vmem:[%s3 + $0x24] sm:$0xf] %v337
  %370 = vst [vmem:[%s3 + $0x28] sm:$0xf] %v338
  %371 = vst [vmem:[%s3 + $0x2c] sm:$0xf] %v339
  %372 = vst [vmem:[%s3 + $0x30] sm:$0xf] %v340
  %373 = vst [vmem:[%s3 + $0x34] sm:$0xf] %v341
  %374 = vst [vmem:[%s3 + $0x38] sm:$0xf] %v342
  %375 = vst [vmem:[%s3 + $0x3c] sm:$0xf] %v343
  // Predicated region
  $region14: #{_lambda_.25} parent=0 // pred_check
    _
  $region15: #{_lambda_.25} parent=0 // pred_check_branch
    %377 = sbr.rel (0) target = $region17
  $region16: #{_lambda_.25} parent=0 // pred_region
    _
  $region17: #{_lambda_.25} parent=0 // pred_fallthru
    _
  // Predicated region
  $region18: #{_lambda_.25} parent=0 // pred_check
    _
  $region19: #{_lambda_.25} parent=0 // pred_check_branch
    %379 = sbr.rel (0) target = $region21
  $region20: #{_lambda_.25} parent=0 // pred_region
    _
  $region21: #{_lambda_.25} parent=0 // pred_fallthru
    _

// kernel: _lambda_.26
$region0: #{_lambda_.26}
  #allocation0 [shape = 'u32[]', space=smem, size = 0x4, offset = 0x4, fixed_abs, tag = 'smem constant byte address 0x4 - core index']
  #allocation1 [shape = 'u32[144,128]{1,0:T(1,128)}', space=vmem, size = 0x12000, scoped, tag = 'internal scratch']
  #allocation2 [shape = 'f32[1,1,16]{2,1,0:T(1,128)}', space=vmem, size = 0x200, scoped, tag = 'scratch operand']
  #allocation3 [shape = 'f32[1,1,16]{2,1,0:T(1,128)}', space=vmem, size = 0x200, scoped, tag = 'scratch operand']
  %s0 = inlined_call_operand.vmem [shape: bf16[2,64,16], index: 0, kind: input, shape index: {}]
  %s1 = inlined_call_operand.vmem [shape: f32[2,1,16], index: 1, kind: output, shape index: {0}]
  %s2 = inlined_call_operand.vmem [shape: f32[2,1,16], index: 2, kind: output, shape index: {1}]
  %3 = xla_tuple %s1, %s2
  %s4 = sld [smem:[#allocation0]]
  $region53: #{_lambda_.26} parent=0
    _
  %s6 = ssub.s32 1, %s4
  %s7 = scalar_select 0, %s6, %s4
  loop: start=0, step=1, limit=4
  $region2: #{_lambda_.26} parent=0 // loop_pre_header
    _
  $region3: #{_lambda_.26} parent=0 // loop_header
    %s9 = sphi 0, %s13
    %p10 = scmp.ge.s32.totalorder %s9, 4
    %s16 = sphi 0, %s35
    %s17 = sphi 0, %s31
    %s18 = sphi 0, %s27
    %s19 = sphi 0, %s16
    %s20 = sphi 0, %s17
    %s21 = sphi 0, %s18
    %s22 = sphi 0, %s19
    %s23 = sphi 0, %s20
    %s24 = sphi 0, %s21
    %s42 = sphi 0, %s44
    %s45 = sphi 0, %s42
    %s46 = sphi 0, %s45
    %s62 = sphi 0, %s46
    %s70 = sphi 0, %s72
    %s73 = sphi 0, %s70
    %s74 = sphi 0, %s73
    %s90 = sphi 0, %s74
    %s98 = sphi 0, %s100
    %s101 = sphi 0, %s98
    %s102 = sphi 0, %s101
    %s118 = sphi 0, %s102
  $region4: #{_lambda_.26} parent=0 // loop_header_branch
    %12 = sbr.rel (%p10) target = $region8
  $region5: #{_lambda_.26} parent=0 // loop_body
    %s14 = ssub.s32 %s9, 1
    %s15 = ssub.s32 %s9, 2
    %s25 = sadd.s32 1, %s18
    %p26 = scmp.ge.s32.totalorder %s25, 1
    %s27 = scalar_select %p26, 0, %s25
    %s28 = sadd.s32 1, %s17
    %s29 = scalar_select %p26, %s28, %s17
    %p30 = scmp.ge.s32.totalorder %s29, 1
    %s31 = scalar_select %p30, 0, %s29
    %s32 = sadd.s32 1, %s16
    %s33 = scalar_select %p30, %s32, %s16
    %p34 = scmp.ge.s32.totalorder %s33, 2
    %s35 = scalar_select %p34, 0, %s33
    %s36 = ssub.s32 %s16, %s35
    %s37 = ssub.s32 %s18, %s27
    %s38 = sor.u32 %s36, %s37
    %s39 = ssub.s32 %s17, %s31
    %s40 = sor.u32 %s38, %s39
    %p41 = scmp.eq.s32.totalorder %s40, 0
    %s43 = sadd.s32 %s42, 1
    %s44 = scalar_select %p41, %s42, %s43
    %p47 = pneg %p41
    %p48 = scmp.eq.s32.totalorder %s9, 1
    %p49 = por %p47, %p48
    %p50 = scmp.ne.s32.totalorder %s42, %s45
    %p51 = scmp.eq.s32.totalorder %s9, 0
    %p52 = por %p50, %p51
    %p53 = scmp.ne.s32.totalorder %s42, %s45
    %p54 = scmp.eq.s32.totalorder %s14, 1
    %p55 = por %p53, %p54
    %p56 = scmp.ne.s32.totalorder %s45, %s46
    %p57 = scmp.eq.s32.totalorder %s14, 0
    %p58 = por %p56, %p57
    %p59 = scmp.ne.s32.totalorder %s45, %s46
    %p60 = scmp.eq.s32.totalorder %s15, 1
    %p61 = por %p59, %p60
    %p63 = scmp.ne.s32.totalorder %s46, %s62
    %p64 = scmp.eq.s32.totalorder %s15, 0
    %p65 = por %p63, %p64
    %s66 = ssub.s32 %s16, %s35
    %s67 = ssub.s32 %s17, %s31
    %s68 = sor.u32 %s66, %s67
    %p69 = scmp.eq.s32.totalorder %s68, 0
    %s71 = sadd.s32 %s70, 1
    %s72 = scalar_select %p69, %s70, %s71
    %p75 = pneg %p69
    %p76 = scmp.eq.s32.totalorder %s9, 1
    %p77 = por %p75, %p76
    %p78 = scmp.ne.s32.totalorder %s70, %s73
    %p79 = scmp.eq.s32.totalorder %s9, 0
    %p80 = por %p78, %p79
    %p81 = scmp.ne.s32.totalorder %s70, %s73
    %p82 = scmp.eq.s32.totalorder %s14, 1
    %p83 = por %p81, %p82
    %p84 = scmp.ne.s32.totalorder %s73, %s74
    %p85 = scmp.eq.s32.totalorder %s14, 0
    %p86 = por %p84, %p85
    %p87 = scmp.ne.s32.totalorder %s73, %s74
    %p88 = scmp.eq.s32.totalorder %s15, 1
    %p89 = por %p87, %p88
    %p91 = scmp.ne.s32.totalorder %s74, %s90
    %p92 = scmp.eq.s32.totalorder %s15, 0
    %p93 = por %p91, %p92
    %s94 = ssub.s32 %s16, %s35
    %s95 = ssub.s32 %s17, %s31
    %s96 = sor.u32 %s94, %s95
    %p97 = scmp.eq.s32.totalorder %s96, 0
    %s99 = sadd.s32 %s98, 1
    %s100 = scalar_select %p97, %s98, %s99
    %p103 = pneg %p97
    %p104 = scmp.eq.s32.totalorder %s9, 1
    %p105 = por %p103, %p104
    %p106 = scmp.ne.s32.totalorder %s98, %s101
    %p107 = scmp.eq.s32.totalorder %s9, 0
    %p108 = por %p106, %p107
    %p109 = scmp.ne.s32.totalorder %s98, %s101
    %p110 = scmp.eq.s32.totalorder %s14, 1
    %p111 = por %p109, %p110
    %p112 = scmp.ne.s32.totalorder %s101, %s102
    %p113 = scmp.eq.s32.totalorder %s14, 0
    %p114 = por %p112, %p113
    %p115 = scmp.ne.s32.totalorder %s101, %s102
    %p116 = scmp.eq.s32.totalorder %s15, 1
    %p117 = por %p115, %p116
    %p119 = scmp.ne.s32.totalorder %s102, %s118
    %p120 = scmp.eq.s32.totalorder %s15, 0
    %p121 = por %p119, %p120
    %p122 = scmp.le.s32.totalorder 1, %s9
    %p123 = scmp.lt.s32.totalorder %s9, 3
    %p124 = pnand %p122, %p123
    %p125 = pneg %p124
    // Predicated region
    $region9: #{_lambda_.26} parent=5 // pred_check
      _
    $region10: #{_lambda_.26} parent=5 // pred_check_branch
      %127 = sbr.rel (%p124) target = $region12
    $region11: #{_lambda_.26} parent=5 // pred_region
      %s128 = ssub.s32 %s9, 1
    $region12: #{_lambda_.26} parent=5 // pred_fallthru
      _
    %p129 = scmp.lt.s32.totalorder %s9, 2
    // Predicated region
    $region13: #{_lambda_.26} parent=5 // pred_check
      %p130 = pneg %p129
    $region14: #{_lambda_.26} parent=5 // pred_check_branch
      %132 = sbr.rel (%p130) target = $region16
    $region15: #{_lambda_.26} parent=5 // pred_region
      // Predicated region
      $region17: #{_lambda_.26} parent=15 // pred_check
        %p133 = pneg %p52
      $region18: #{_lambda_.26} parent=15 // pred_check_branch
        %135 = sbr.rel (%p133) target = $region20
      $region19: #{_lambda_.26} parent=15 // pred_region
        %s136 = smul.u32 8, %s18
        %p137 = scmp.lt.s32.totalorder %s16, 1
        %s138 = scalar_select %p137, %s16, 1
        %p139 = scmp.lt.s32.totalorder %s136, 7
        %s140 = scalar_select %p139, %s136, 7
        %p141 = scmp.lt.s32.totalorder %s17, 0
        %s142 = scalar_select %p141, %s17, 0
        %s143 = sadd.s32 %s142, %s140
        %s144 = smul.addr %s138, 8
        %s145 = sadd.s32 %s143, %s144
        %s146 = smul.addr %s145, 4
        %s147 = scalar_lea.vmem %s0, %s146
        %s148 = smul.u32 8, %s18
      $region20: #{_lambda_.26} parent=15 // pred_fallthru
        _
    $region16: #{_lambda_.26} parent=5 // pred_fallthru
      _
    %p149 = scmp.le.s32.totalorder 1, %s9
    %p150 = scmp.lt.s32.totalorder %s9, 3
    %p151 = pnand %p149, %p150
    %p152 = pneg %p151
    // Predicated region
    $region21: #{_lambda_.26} parent=5 // pred_check
      _
    $region22: #{_lambda_.26} parent=5 // pred_check_branch
      %154 = sbr.rel (%p151) target = $region24
    $region23: #{_lambda_.26} parent=5 // pred_region
      %s155 = ssub.s32 %s9, 1
      %s156 = smul.u32 8, %s21
      %p157 = scmp.lt.s32.totalorder %s19, 1
      %s158 = scalar_select %p157, %s19, 1
      %p159 = scmp.lt.s32.totalorder %s156, 7
      %s160 = scalar_select %p159, %s156, 7
      %p161 = scmp.lt.s32.totalorder %s20, 0
      %s162 = scalar_select %p161, %s20, 0
      %s163 = sadd.s32 %s162, %s160
      %s164 = smul.addr %s158, 8
      %s165 = sadd.s32 %s163, %s164
      %s166 = smul.addr %s165, 4
      %s167 = scalar_lea.vmem %s0, %s166
      %p168 = pneg %p58
      %p169 = pneg %p55
      %p170 = pneg %p86
      %p171 = pneg %p83
      %p172 = scmp.lt.s32.totalorder %s19, 1
      %s173 = scalar_select %p172, %s19, 1
      %p174 = scmp.lt.s32.totalorder %s20, 0
      %s175 = scalar_select %p174, %s20, 0
      %s176 = sadd.s32 %s175, %s173
      %s177 = scalar_lea.vmem %s1, %s176
      %p178 = pneg %p114
      %p179 = pneg %p111
      %p180 = scmp.lt.s32.totalorder %s19, 1
      %s181 = scalar_select %p180, %s19, 1
      %p182 = scmp.lt.s32.totalorder %s20, 0
      %s183 = scalar_select %p182, %s20, 0
      %s184 = sadd.s32 %s183, %s181
      %s185 = scalar_lea.vmem %s2, %s184
      %s186 = smul.u32 8, %s21
      %p187 = scmp.lt.s32.totalorder %s19, 1
      %s188 = scalar_select %p187, %s19, 1
      %p189 = scmp.lt.s32.totalorder %s186, 7
      %s190 = scalar_select %p189, %s186, 7
      %p191 = scmp.lt.s32.totalorder %s20, 0
      %s192 = scalar_select %p191, %s20, 0
      %s193 = sadd.s32 %s192, %s190
      %s194 = smul.addr %s188, 8
      %s195 = sadd.s32 %s193, %s194
      %s196 = smul.addr %s195, 4
      %s197 = scalar_lea.vmem %s0, %s196
      %s198 = smul.u32 8, %s21
      %p199 = scmp.lt.s32.totalorder %s19, 1
      %s200 = scalar_select %p199, %s19, 1
      %p201 = scmp.lt.s32.totalorder %s20, 0
      %s202 = scalar_select %p201, %s20, 0
      %s203 = sadd.s32 %s202, %s200
      %s204 = scalar_lea.vmem %s1, %s203
      %p205 = scmp.lt.s32.totalorder %s19, 1
      %s206 = scalar_select %p205, %s19, 1
      %p207 = scmp.lt.s32.totalorder %s20, 0
      %s208 = scalar_select %p207, %s20, 0
      %s209 = sadd.s32 %s208, %s206
      %s210 = scalar_lea.vmem %s2, %s209
      %p211 = scmp.eq.s32.totalorder %s21, 0
      // Predicated region
      $region25: #{_lambda_.26} parent=23 // pred_check
        %p212 = pneg %p211
      $region26: #{_lambda_.26} parent=23 // pred_check_branch
        %214 = sbr.rel (%p212) target = $region28
      $region27: #{_lambda_.26} parent=23 // pred_region
        %vm215 = vcmask 122880
        %216 = vst.msk [vmem:[#allocation2] sm:$0x1] %vm215, 0.0
        %217 = vst.msk [vmem:[#allocation3] sm:$0x1] %vm215, 0.0
      $region28: #{_lambda_.26} parent=23 // pred_fallthru
        _
      %v218 = vld [vmem:[%s197] sm:$0xf]
      %v219 = vld [vmem:[%s197 + $0x4] sm:$0xf]
      %v220 = vld [vmem:[%s197 + $0x8] sm:$0xf]
      %v221 = vld [vmem:[%s197 + $0xc] sm:$0xf]
      %v222 = vld [vmem:[%s197 + $0x10] sm:$0xf]
      %v223 = vld [vmem:[%s197 + $0x14] sm:$0xf]
      %v224 = vld [vmem:[%s197 + $0x18] sm:$0xf]
      %v225 = vld [vmem:[%s197 + $0x1c] sm:$0xf]
      %v226 = vunpack.c.l.bf16 %v218
      %v227 = vunpack.c.l.bf16 %v219
      %v228 = vunpack.c.l.bf16 %v220
      %v229 = vunpack.c.l.bf16 %v221
      %v230 = vunpack.c.l.bf16 %v222
      %v231 = vunpack.c.l.bf16 %v223
      %v232 = vunpack.c.l.bf16 %v224
      %v233 = vunpack.c.l.bf16 %v225
      %v234 = vld [vmem:[#allocation2] sm:$0x1]
      %vm235 = vcmask 130048
      %v236 = vsel %vm235, %v226, 0.0
      %v237 = vsel %vm235, %v227, 0.0
      %v238 = vadd.f32 %v236, %v237
      %v239 = vsel %vm235, %v228, 0.0
      %v240 = vadd.f32 %v238, %v239
      %v241 = vsel %vm235, %v229, 0.0
      %v242 = vadd.f32 %v240, %v241
      %v243 = vsel %vm235, %v230, 0.0
      %v244 = vadd.f32 %v242, %v243
      %v245 = vsel %vm235, %v231, 0.0
      %v246 = vadd.f32 %v244, %v245
      %v247 = vsel %vm235, %v232, 0.0
      %v248 = vadd.f32 %v246, %v247
      %v249 = vsel %vm235, %v233, 0.0
      %v250 = vadd.f32 %v248, %v249
      %v251 = vrot.slane %v250, 4
      %v252 = vadd.f32 %v250, %v251
      %v253 = vrot.slane %v252, 2
      %v254 = vadd.f32 %v252, %v253
      %v255 = vrot.slane %v254, 1
      %v256 = vadd.f32 %v254, %v255
      %v257 = vadd.f32 %v234, %v256
      %vm258 = vcmask 122880
      %259 = vst.msk [vmem:[#allocation2] sm:$0x1] %vm258, %v257
      %v260 = vld [vmem:[#allocation3] sm:$0x1]
      %v261 = vmul.f32 %v226, %v226
      %v262 = vmul.f32 %v227, %v227
      %v263 = vmul.f32 %v228, %v228
      %v264 = vmul.f32 %v229, %v229
      %v265 = vmul.f32 %v230, %v230
      %v266 = vmul.f32 %v231, %v231
      %v267 = vmul.f32 %v232, %v232
      %v268 = vmul.f32 %v233, %v233
      %v269 = vsel %vm235, %v261, 0.0
      %v270 = vsel %vm235, %v262, 0.0
      %v271 = vadd.f32 %v269, %v270
      %v272 = vsel %vm235, %v263, 0.0
      %v273 = vadd.f32 %v271, %v272
      %v274 = vsel %vm235, %v264, 0.0
      %v275 = vadd.f32 %v273, %v274
      %v276 = vsel %vm235, %v265, 0.0
      %v277 = vadd.f32 %v275, %v276
      %v278 = vsel %vm235, %v266, 0.0
      %v279 = vadd.f32 %v277, %v278
      %v280 = vsel %vm235, %v267, 0.0
      %v281 = vadd.f32 %v279, %v280
      %v282 = vsel %vm235, %v268, 0.0
      %v283 = vadd.f32 %v281, %v282
      %v284 = vrot.slane %v283, 4
      %v285 = vadd.f32 %v283, %v284
      %v286 = vrot.slane %v285, 2
      %v287 = vadd.f32 %v285, %v286
      %v288 = vrot.slane %v287, 1
      %v289 = vadd.f32 %v287, %v288
      %v290 = vadd.f32 %v260, %v289
      %291 = vst.msk [vmem:[#allocation3] sm:$0x1] %vm258, %v290
      // Predicated region
      $region29: #{_lambda_.26} parent=23 // pred_check
        %p292 = pneg %p211
      $region30: #{_lambda_.26} parent=23 // pred_check_branch
        %294 = sbr.rel (%p292) target = $region32
      $region31: #{_lambda_.26} parent=23 // pred_region
        %v295 = vld [vmem:[#allocation2] sm:$0x1]
        %v296 = vmul.f32 %v295, 0.015625
        %v297 = vld [vmem:[#allocation3] sm:$0x1]
        %v298 = vmul.f32 %v297, 0.015625
        %v299 = vmul.f32 %v296, %v296
        %v300 = vsub.f32 %v298, %v299
        %301 = vst.msk [vmem:[%s204] sm:$0x1] %vm258, %v296
        %v302 = vadd.f32 %v300, 1e-05
        %v303 = vrsqrt.pop %v302
        %304 = vst.msk [vmem:[%s210] sm:$0x1] %vm258, %v303
      $region32: #{_lambda_.26} parent=23 // pred_fallthru
        _
      %p305 = scmp.lt.s32.totalorder %s19, 1
      %s306 = scalar_select %p305, %s19, 1
      %p307 = scmp.lt.s32.totalorder %s20, 0
      %s308 = scalar_select %p307, %s20, 0
      %s309 = sadd.s32 %s308, %s306
      %s310 = scalar_lea.vmem %s1, %s309
      %p311 = scmp.lt.s32.totalorder %s19, 1
      %s312 = scalar_select %p311, %s19, 1
      %p313 = scmp.lt.s32.totalorder %s20, 0
      %s314 = scalar_select %p313, %s20, 0
      %s315 = sadd.s32 %s314, %s312
      %s316 = scalar_lea.vmem %s2, %s315
      // Predicated region
      $region33: #{_lambda_.26} parent=23 // pred_check
        %p317 = pneg %p83
      $region34: #{_lambda_.26} parent=23 // pred_check_branch
        %319 = sbr.rel (%p317) target = $region36
      $region35: #{_lambda_.26} parent=23 // pred_region
        _
      $region36: #{_lambda_.26} parent=23 // pred_fallthru
        _
      // Predicated region
      $region37: #{_lambda_.26} parent=23 // pred_check
        %p320 = pneg %p111
      $region38: #{_lambda_.26} parent=23 // pred_check_branch
        %322 = sbr.rel (%p320) target = $region40
      $region39: #{_lambda_.26} parent=23 // pred_region
        _
      $region40: #{_lambda_.26} parent=23 // pred_fallthru
        _
    $region24: #{_lambda_.26} parent=5 // pred_fallthru
      _
    %p323 = scmp.le.s32.totalorder 2, %s9
    // Predicated region
    $region41: #{_lambda_.26} parent=5 // pred_check
      %p324 = pneg %p323
    $region42: #{_lambda_.26} parent=5 // pred_check_branch
      %326 = sbr.rel (%p324) target = $region44
    $region43: #{_lambda_.26} parent=5 // pred_region
      %s327 = ssub.s32 %s9, 2
      // Predicated region
      $region45: #{_lambda_.26} parent=43 // pred_check
        %p328 = pneg %p89
      $region46: #{_lambda_.26} parent=43 // pred_check_branch
        %330 = sbr.rel (%p328) target = $region48
      $region47: #{_lambda_.26} parent=43 // pred_region
        %p331 = scmp.lt.s32.totalorder %s22, 1
        %s332 = scalar_select %p331, %s22, 1
        %p333 = scmp.lt.s32.totalorder %s23, 0
        %s334 = scalar_select %p333, %s23, 0
        %s335 = sadd.s32 %s334, %s332
        %s336 = scalar_lea.vmem %s1, %s335
      $region48: #{_lambda_.26} parent=43 // pred_fallthru
        _
      // Predicated region
      $region49: #{_lambda_.26} parent=43 // pred_check
        %p337 = pneg %p117
      $region50: #{_lambda_.26} parent=43 // pred_check_branch
        %339 = sbr.rel (%p337) target = $region52
      $region51: #{_lambda_.26} parent=43 // pred_region
        %p340 = scmp.lt.s32.totalorder %s22, 1
        %s341 = scalar_select %p340, %s22, 1
        %p342 = scmp.lt.s32.totalorder %s23, 0
        %s343 = scalar_select %p342, %s23, 0
        %s344 = sadd.s32 %s343, %s341
        %s345 = scalar_lea.vmem %s2, %s344
      $region52: #{_lambda_.26} parent=43 // pred_fallthru
        _
    $region44: #{_lambda_.26} parent=5 // pred_fallthru
      _
  $region6: #{_lambda_.26} parent=0 // loop_footer
    %s13 = sadd.s32 1, %s9
  $region7: #{_lambda_.26} parent=0 // loop_footer_branch
    %8 = sbr.rel target = $region3
  $region8: #{_lambda_.26} parent=0 // loop_exit
    _

// kernel: _lambda_.27
$region0: #{_lambda_.27}
  #allocation0 [shape = 'u32[]', space=smem, size = 0x4, offset = 0x4, fixed_abs, tag = 'smem constant byte address 0x4 - core index']
  #allocation1 [shape = 'u32[144,128]{1,0:T(1,128)}', space=vmem, size = 0x12000, scoped, tag = 'internal scratch']
  %s0 = inlined_call_operand.vmem [shape: bf16[2,64,16], index: 0, kind: input, shape index: {}]
  %s1 = inlined_call_operand.vmem [shape: f32[2,1,16], index: 1, kind: input, shape index: {}]
  %s2 = inlined_call_operand.vmem [shape: f32[2,1,16], index: 2, kind: input, shape index: {}]
  %s3 = inlined_call_operand.vmem [shape: bf16[2,64,16], index: 3, kind: output, shape index: {}]
  %s4 = sld [smem:[#allocation0]]
  $region45: #{_lambda_.27} parent=0
    _
  %s6 = ssub.s32 1, %s4
  %s7 = scalar_select 0, %s6, %s4
  loop: start=0, step=1, limit=4
  $region2: #{_lambda_.27} parent=0 // loop_pre_header
    _
  $region3: #{_lambda_.27} parent=0 // loop_header
    %s9 = sphi 0, %s13
    %p10 = scmp.ge.s32.totalorder %s9, 4
    %s16 = sphi 0, %s35
    %s17 = sphi 0, %s31
    %s18 = sphi 0, %s27
    %s19 = sphi 0, %s16
    %s20 = sphi 0, %s17
    %s21 = sphi 0, %s18
    %s22 = sphi 0, %s19
    %s23 = sphi 0, %s20
    %s24 = sphi 0, %s21
    %s42 = sphi 0, %s44
    %s45 = sphi 0, %s42
    %s46 = sphi 0, %s45
    %s62 = sphi 0, %s46
    %s70 = sphi 0, %s72
    %s73 = sphi 0, %s70
    %s74 = sphi 0, %s73
    %s90 = sphi 0, %s74
    %s98 = sphi 0, %s100
    %s101 = sphi 0, %s98
    %s102 = sphi 0, %s101
    %s118 = sphi 0, %s102
    %s128 = sphi 0, %s130
    %s131 = sphi 0, %s128
    %s132 = sphi 0, %s131
    %s148 = sphi 0, %s132
  $region4: #{_lambda_.27} parent=0 // loop_header_branch
    %12 = sbr.rel (%p10) target = $region8
  $region5: #{_lambda_.27} parent=0 // loop_body
    %s14 = ssub.s32 %s9, 1
    %s15 = ssub.s32 %s9, 2
    %s25 = sadd.s32 1, %s18
    %p26 = scmp.ge.s32.totalorder %s25, 1
    %s27 = scalar_select %p26, 0, %s25
    %s28 = sadd.s32 1, %s17
    %s29 = scalar_select %p26, %s28, %s17
    %p30 = scmp.ge.s32.totalorder %s29, 1
    %s31 = scalar_select %p30, 0, %s29
    %s32 = sadd.s32 1, %s16
    %s33 = scalar_select %p30, %s32, %s16
    %p34 = scmp.ge.s32.totalorder %s33, 2
    %s35 = scalar_select %p34, 0, %s33
    %s36 = ssub.s32 %s16, %s35
    %s37 = ssub.s32 %s18, %s27
    %s38 = sor.u32 %s36, %s37
    %s39 = ssub.s32 %s17, %s31
    %s40 = sor.u32 %s38, %s39
    %p41 = scmp.eq.s32.totalorder %s40, 0
    %s43 = sadd.s32 %s42, 1
    %s44 = scalar_select %p41, %s42, %s43
    %p47 = pneg %p41
    %p48 = scmp.eq.s32.totalorder %s9, 1
    %p49 = por %p47, %p48
    %p50 = scmp.ne.s32.totalorder %s42, %s45
    %p51 = scmp.eq.s32.totalorder %s9, 0
    %p52 = por %p50, %p51
    %p53 = scmp.ne.s32.totalorder %s42, %s45
    %p54 = scmp.eq.s32.totalorder %s14, 1
    %p55 = por %p53, %p54
    %p56 = scmp.ne.s32.totalorder %s45, %s46
    %p57 = scmp.eq.s32.totalorder %s14, 0
    %p58 = por %p56, %p57
    %p59 = scmp.ne.s32.totalorder %s45, %s46
    %p60 = scmp.eq.s32.totalorder %s15, 1
    %p61 = por %p59, %p60
    %p63 = scmp.ne.s32.totalorder %s46, %s62
    %p64 = scmp.eq.s32.totalorder %s15, 0
    %p65 = por %p63, %p64
    %s66 = ssub.s32 %s16, %s35
    %s67 = ssub.s32 %s17, %s31
    %s68 = sor.u32 %s66, %s67
    %p69 = scmp.eq.s32.totalorder %s68, 0
    %s71 = sadd.s32 %s70, 1
    %s72 = scalar_select %p69, %s70, %s71
    %p75 = pneg %p69
    %p76 = scmp.eq.s32.totalorder %s9, 1
    %p77 = por %p75, %p76
    %p78 = scmp.ne.s32.totalorder %s70, %s73
    %p79 = scmp.eq.s32.totalorder %s9, 0
    %p80 = por %p78, %p79
    %p81 = scmp.ne.s32.totalorder %s70, %s73
    %p82 = scmp.eq.s32.totalorder %s14, 1
    %p83 = por %p81, %p82
    %p84 = scmp.ne.s32.totalorder %s73, %s74
    %p85 = scmp.eq.s32.totalorder %s14, 0
    %p86 = por %p84, %p85
    %p87 = scmp.ne.s32.totalorder %s73, %s74
    %p88 = scmp.eq.s32.totalorder %s15, 1
    %p89 = por %p87, %p88
    %p91 = scmp.ne.s32.totalorder %s74, %s90
    %p92 = scmp.eq.s32.totalorder %s15, 0
    %p93 = por %p91, %p92
    %s94 = ssub.s32 %s16, %s35
    %s95 = ssub.s32 %s17, %s31
    %s96 = sor.u32 %s94, %s95
    %p97 = scmp.eq.s32.totalorder %s96, 0
    %s99 = sadd.s32 %s98, 1
    %s100 = scalar_select %p97, %s98, %s99
    %p103 = pneg %p97
    %p104 = scmp.eq.s32.totalorder %s9, 1
    %p105 = por %p103, %p104
    %p106 = scmp.ne.s32.totalorder %s98, %s101
    %p107 = scmp.eq.s32.totalorder %s9, 0
    %p108 = por %p106, %p107
    %p109 = scmp.ne.s32.totalorder %s98, %s101
    %p110 = scmp.eq.s32.totalorder %s14, 1
    %p111 = por %p109, %p110
    %p112 = scmp.ne.s32.totalorder %s101, %s102
    %p113 = scmp.eq.s32.totalorder %s14, 0
    %p114 = por %p112, %p113
    %p115 = scmp.ne.s32.totalorder %s101, %s102
    %p116 = scmp.eq.s32.totalorder %s15, 1
    %p117 = por %p115, %p116
    %p119 = scmp.ne.s32.totalorder %s102, %s118
    %p120 = scmp.eq.s32.totalorder %s15, 0
    %p121 = por %p119, %p120
    %s122 = ssub.s32 %s16, %s35
    %s123 = ssub.s32 %s18, %s27
    %s124 = sor.u32 %s122, %s123
    %s125 = ssub.s32 %s17, %s31
    %s126 = sor.u32 %s124, %s125
    %p127 = scmp.eq.s32.totalorder %s126, 0
    %s129 = sadd.s32 %s128, 1
    %s130 = scalar_select %p127, %s128, %s129
    %p133 = pneg %p127
    %p134 = scmp.eq.s32.totalorder %s9, 1
    %p135 = por %p133, %p134
    %p136 = scmp.ne.s32.totalorder %s128, %s131
    %p137 = scmp.eq.s32.totalorder %s9, 0
    %p138 = por %p136, %p137
    %p139 = scmp.ne.s32.totalorder %s128, %s131
    %p140 = scmp.eq.s32.totalorder %s14, 1
    %p141 = por %p139, %p140
    %p142 = scmp.ne.s32.totalorder %s131, %s132
    %p143 = scmp.eq.s32.totalorder %s14, 0
    %p144 = por %p142, %p143
    %p145 = scmp.ne.s32.totalorder %s131, %s132
    %p146 = scmp.eq.s32.totalorder %s15, 1
    %p147 = por %p145, %p146
    %p149 = scmp.ne.s32.totalorder %s132, %s148
    %p150 = scmp.eq.s32.totalorder %s15, 0
    %p151 = por %p149, %p150
    %p152 = scmp.le.s32.totalorder 1, %s9
    %p153 = scmp.lt.s32.totalorder %s9, 3
    %p154 = pnand %p152, %p153
    %p155 = pneg %p154
    // Predicated region
    $region9: #{_lambda_.27} parent=5 // pred_check
      _
    $region10: #{_lambda_.27} parent=5 // pred_check_branch
      %157 = sbr.rel (%p154) target = $region12
    $region11: #{_lambda_.27} parent=5 // pred_region
      %s158 = ssub.s32 %s9, 1
    $region12: #{_lambda_.27} parent=5 // pred_fallthru
      _
    %p159 = scmp.lt.s32.totalorder %s9, 2
    // Predicated region
    $region13: #{_lambda_.27} parent=5 // pred_check
      %p160 = pneg %p159
    $region14: #{_lambda_.27} parent=5 // pred_check_branch
      %162 = sbr.rel (%p160) target = $region16
    $region15: #{_lambda_.27} parent=5 // pred_region
      // Predicated region
      $region17: #{_lambda_.27} parent=15 // pred_check
        %p163 = pneg %p52
      $region18: #{_lambda_.27} parent=15 // pred_check_branch
        %165 = sbr.rel (%p163) target = $region20
      $region19: #{_lambda_.27} parent=15 // pred_region
        %s166 = smul.u32 8, %s18
        %p167 = scmp.lt.s32.totalorder %s16, 1
        %s168 = scalar_select %p167, %s16, 1
        %p169 = scmp.lt.s32.totalorder %s166, 7
        %s170 = scalar_select %p169, %s166, 7
        %p171 = scmp.lt.s32.totalorder %s17, 0
        %s172 = scalar_select %p171, %s17, 0
        %s173 = sadd.s32 %s172, %s170
        %s174 = smul.addr %s168, 8
        %s175 = sadd.s32 %s173, %s174
        %s176 = smul.addr %s175, 4
        %s177 = scalar_lea.vmem %s0, %s176
        %s178 = smul.u32 8, %s18
      $region20: #{_lambda_.27} parent=15 // pred_fallthru
        _
      // Predicated region
      $region21: #{_lambda_.27} parent=15 // pred_check
        %p179 = pneg %p80
      $region22: #{_lambda_.27} parent=15 // pred_check_branch
        %181 = sbr.rel (%p179) target = $region24
      $region23: #{_lambda_.27} parent=15 // pred_region
        %p182 = scmp.lt.s32.totalorder %s16, 1
        %s183 = scalar_select %p182, %s16, 1
        %p184 = scmp.lt.s32.totalorder %s17, 0
        %s185 = scalar_select %p184, %s17, 0
        %s186 = sadd.s32 %s185, %s183
        %s187 = scalar_lea.vmem %s1, %s186
      $region24: #{_lambda_.27} parent=15 // pred_fallthru
        _
      // Predicated region
      $region25: #{_lambda_.27} parent=15 // pred_check
        %p188 = pneg %p108
      $region26: #{_lambda_.27} parent=15 // pred_check_branch
        %190 = sbr.rel (%p188) target = $region28
      $region27: #{_lambda_.27} parent=15 // pred_region
        %p191 = scmp.lt.s32.totalorder %s16, 1
        %s192 = scalar_select %p191, %s16, 1
        %p193 = scmp.lt.s32.totalorder %s17, 0
        %s194 = scalar_select %p193, %s17, 0
        %s195 = sadd.s32 %s194, %s192
        %s196 = scalar_lea.vmem %s2, %s195
      $region28: #{_lambda_.27} parent=15 // pred_fallthru
        _
    $region16: #{_lambda_.27} parent=5 // pred_fallthru
      _
    %p197 = scmp.le.s32.totalorder 1, %s9
    %p198 = scmp.lt.s32.totalorder %s9, 3
    %p199 = pnand %p197, %p198
    %p200 = pneg %p199
    // Predicated region
    $region29: #{_lambda_.27} parent=5 // pred_check
      _
    $region30: #{_lambda_.27} parent=5 // pred_check_branch
      %202 = sbr.rel (%p199) target = $region32
    $region31: #{_lambda_.27} parent=5 // pred_region
      %s203 = ssub.s32 %s9, 1
      %s204 = smul.u32 8, %s21
      %p205 = scmp.lt.s32.totalorder %s19, 1
      %s206 = scalar_select %p205, %s19, 1
      %p207 = scmp.lt.s32.totalorder %s204, 7
      %s208 = scalar_select %p207, %s204, 7
      %p209 = scmp.lt.s32.totalorder %s20, 0
      %s210 = scalar_select %p209, %s20, 0
      %s211 = sadd.s32 %s210, %s208
      %s212 = smul.addr %s206, 8
      %s213 = sadd.s32 %s211, %s212
      %s214 = smul.addr %s213, 4
      %s215 = scalar_lea.vmem %s0, %s214
      %p216 = pneg %p58
      %p217 = pneg %p55
      %p218 = scmp.lt.s32.totalorder %s19, 1
      %s219 = scalar_select %p218, %s19, 1
      %p220 = scmp.lt.s32.totalorder %s20, 0
      %s221 = scalar_select %p220, %s20, 0
      %s222 = sadd.s32 %s221, %s219
      %s223 = scalar_lea.vmem %s1, %s222
      %p224 = pneg %p86
      %p225 = pneg %p83
      %p226 = scmp.lt.s32.totalorder %s19, 1
      %s227 = scalar_select %p226, %s19, 1
      %p228 = scmp.lt.s32.totalorder %s20, 0
      %s229 = scalar_select %p228, %s20, 0
      %s230 = sadd.s32 %s229, %s227
      %s231 = scalar_lea.vmem %s2, %s230
      %p232 = pneg %p114
      %p233 = pneg %p111
      %p234 = pneg %p144
      %p235 = pneg %p141
      %s236 = smul.u32 8, %s21
      %p237 = scmp.lt.s32.totalorder %s19, 1
      %s238 = scalar_select %p237, %s19, 1
      %p239 = scmp.lt.s32.totalorder %s236, 7
      %s240 = scalar_select %p239, %s236, 7
      %p241 = scmp.lt.s32.totalorder %s20, 0
      %s242 = scalar_select %p241, %s20, 0
      %s243 = sadd.s32 %s242, %s240
      %s244 = smul.addr %s238, 8
      %s245 = sadd.s32 %s243, %s244
      %s246 = smul.addr %s245, 4
      %s247 = scalar_lea.vmem %s3, %s246
      %s248 = smul.u32 8, %s21
      %p249 = scmp.lt.s32.totalorder %s19, 1
      %s250 = scalar_select %p249, %s19, 1
      %p251 = scmp.lt.s32.totalorder %s248, 7
      %s252 = scalar_select %p251, %s248, 7
      %p253 = scmp.lt.s32.totalorder %s20, 0
      %s254 = scalar_select %p253, %s20, 0
      %s255 = sadd.s32 %s254, %s252
      %s256 = smul.addr %s250, 8
      %s257 = sadd.s32 %s255, %s256
      %s258 = smul.addr %s257, 4
      %s259 = scalar_lea.vmem %s0, %s258
      %s260 = smul.u32 8, %s21
      %p261 = scmp.lt.s32.totalorder %s19, 1
      %s262 = scalar_select %p261, %s19, 1
      %p263 = scmp.lt.s32.totalorder %s20, 0
      %s264 = scalar_select %p263, %s20, 0
      %s265 = sadd.s32 %s264, %s262
      %s266 = scalar_lea.vmem %s1, %s265
      %p267 = scmp.lt.s32.totalorder %s19, 1
      %s268 = scalar_select %p267, %s19, 1
      %p269 = scmp.lt.s32.totalorder %s20, 0
      %s270 = scalar_select %p269, %s20, 0
      %s271 = sadd.s32 %s270, %s268
      %s272 = scalar_lea.vmem %s2, %s271
      %s273 = smul.u32 8, %s21
      %p274 = scmp.lt.s32.totalorder %s19, 1
      %s275 = scalar_select %p274, %s19, 1
      %p276 = scmp.lt.s32.totalorder %s273, 7
      %s277 = scalar_select %p276, %s273, 7
      %p278 = scmp.lt.s32.totalorder %s20, 0
      %s279 = scalar_select %p278, %s20, 0
      %s280 = sadd.s32 %s279, %s277
      %s281 = smul.addr %s275, 8
      %s282 = sadd.s32 %s280, %s281
      %s283 = smul.addr %s282, 4
      %s284 = scalar_lea.vmem %s3, %s283
      %s285 = smul.u32 8, %s21
      %v286 = vld [vmem:[%s259] sm:$0xf]
      %v287 = vld [vmem:[%s259 + $0x4] sm:$0xf]
      %v288 = vld [vmem:[%s259 + $0x8] sm:$0xf]
      %v289 = vld [vmem:[%s259 + $0xc] sm:$0xf]
      %v290 = vld [vmem:[%s259 + $0x10] sm:$0xf]
      %v291 = vld [vmem:[%s259 + $0x14] sm:$0xf]
      %v292 = vld [vmem:[%s259 + $0x18] sm:$0xf]
      %v293 = vld [vmem:[%s259 + $0x1c] sm:$0xf]
      %v294 = vunpack.c.l.bf16 %v286
      %v295 = vunpack.c.l.bf16 %v287
      %v296 = vunpack.c.l.bf16 %v288
      %v297 = vunpack.c.l.bf16 %v289
      %v298 = vunpack.c.l.bf16 %v290
      %v299 = vunpack.c.l.bf16 %v291
      %v300 = vunpack.c.l.bf16 %v292
      %v301 = vunpack.c.l.bf16 %v293
      %v302 = vld [vmem:[%s266] sm:$0x1]
      %v304 = vlaneseq
      %v305 = vshrl.u32 %v304, 7
      %v306 = vsub.s32 0, %v305
      %v307 = vrot.slane %v302, %v306
      %v309 = vsub.f32 %v294, %v307
      %v310 = vsub.f32 %v295, %v307
      %v311 = vsub.f32 %v296, %v307
      %v312 = vsub.f32 %v297, %v307
      %v313 = vsub.f32 %v298, %v307
      %v314 = vsub.f32 %v299, %v307
      %v315 = vsub.f32 %v300, %v307
      %v316 = vsub.f32 %v301, %v307
      %v317 = vld [vmem:[%s272] sm:$0x1]
      %v319 = vlaneseq
      %v320 = vshrl.u32 %v319, 7
      %v321 = vsub.s32 0, %v320
      %v322 = vrot.slane %v317, %v321
      %v324 = vmul.f32 %v309, %v322
      %v325 = vmul.f32 %v310, %v322
      %v326 = vmul.f32 %v311, %v322
      %v327 = vmul.f32 %v312, %v322
      %v328 = vmul.f32 %v313, %v322
      %v329 = vmul.f32 %v314, %v322
      %v330 = vmul.f32 %v315, %v322
      %v331 = vmul.f32 %v316, %v322
      %v332 = vpack.c.bf16 %v325, %v324
      %v333 = vpack.c.bf16 %v327, %v326
      %v334 = vpack.c.bf16 %v329, %v328
      %v335 = vpack.c.bf16 %v331, %v330
      %v340 = vunpack.c.l.b16 %v332
      %v341 = vunpack.c.h.b16 %v332
      %v342 = vunpack.c.l.b16 %v333
      %v343 = vunpack.c.h.b16 %v333
      %v344 = vunpack.c.l.b16 %v334
      %v345 = vunpack.c.h.b16 %v334
      %v346 = vunpack.c.l.b16 %v335
      %v347 = vunpack.c.h.b16 %v335
      %v348 = vpack.c.b16 %v340, %v340
      %v349 = vpack.c.b16 %v341, %v341
      %v350 = vpack.c.b16 %v342, %v342
      %v351 = vpack.c.b16 %v343, %v343
      %v352 = vpack.c.b16 %v344, %v344
      %v353 = vpack.c.b16 %v345, %v345
      %v354 = vpack.c.b16 %v346, %v346
      %v355 = vpack.c.b16 %v347, %v347
      %vm364 = vcmask 125952
      %365 = vst.msk [vmem:[%s284] sm:$0xf] %vm364, %v348
      %366 = vst.msk [vmem:[%s284 + $0x4] sm:$0xf] %vm364, %v349
      %367 = vst.msk [vmem:[%s284 + $0x8] sm:$0xf] %vm364, %v350
      %368 = vst.msk [vmem:[%s284 + $0xc] sm:$0xf] %vm364, %v351
      %369 = vst.msk [vmem:[%s284 + $0x10] sm:$0xf] %vm364, %v352
      %370 = vst.msk [vmem:[%s284 + $0x14] sm:$0xf] %vm364, %v353
      %371 = vst.msk [vmem:[%s284 + $0x18] sm:$0xf] %vm364, %v354
      %372 = vst.msk [vmem:[%s284 + $0x1c] sm:$0xf] %vm364, %v355
      %s373 = smul.u32 8, %s21
      %p374 = scmp.lt.s32.totalorder %s19, 1
      %s375 = scalar_select %p374, %s19, 1
      %p376 = scmp.lt.s32.totalorder %s373, 7
      %s377 = scalar_select %p376, %s373, 7
      %p378 = scmp.lt.s32.totalorder %s20, 0
      %s379 = scalar_select %p378, %s20, 0
      %s380 = sadd.s32 %s379, %s377
      %s381 = smul.addr %s375, 8
      %s382 = sadd.s32 %s380, %s381
      %s383 = smul.addr %s382, 4
      %s384 = scalar_lea.vmem %s3, %s383
      // Predicated region
      $region33: #{_lambda_.27} parent=31 // pred_check
        %p385 = pneg %p141
      $region34: #{_lambda_.27} parent=31 // pred_check_branch
        %387 = sbr.rel (%p385) target = $region36
      $region35: #{_lambda_.27} parent=31 // pred_region
        %s388 = smul.u32 8, %s21
      $region36: #{_lambda_.27} parent=31 // pred_fallthru
        _
    $region32: #{_lambda_.27} parent=5 // pred_fallthru
      _
    %p389 = scmp.le.s32.totalorder 2, %s9
    // Predicated region
    $region37: #{_lambda_.27} parent=5 // pred_check
      %p390 = pneg %p389
    $region38: #{_lambda_.27} parent=5 // pred_check_branch
      %392 = sbr.rel (%p390) target = $region40
    $region39: #{_lambda_.27} parent=5 // pred_region
      %s393 = ssub.s32 %s9, 2
      // Predicated region
      $region41: #{_lambda_.27} parent=39 // pred_check
        %p394 = pneg %p147
      $region42: #{_lambda_.27} parent=39 // pred_check_branch
        %396 = sbr.rel (%p394) target = $region44
      $region43: #{_lambda_.27} parent=39 // pred_region
        %s397 = smul.u32 8, %s24
        %p398 = scmp.lt.s32.totalorder %s22, 1
        %s399 = scalar_select %p398, %s22, 1
        %p400 = scmp.lt.s32.totalorder %s397, 7
        %s401 = scalar_select %p400, %s397, 7
        %p402 = scmp.lt.s32.totalorder %s23, 0
        %s403 = scalar_select %p402, %s23, 0
        %s404 = sadd.s32 %s403, %s401
        %s405 = smul.addr %s399, 8
        %s406 = sadd.s32 %s404, %s405
        %s407 = smul.addr %s406, 4
        %s408 = scalar_lea.vmem %s3, %s407
      $region44: #{_lambda_.27} parent=39 // pred_fallthru
        _
    $region40: #{_lambda_.27} parent=5 // pred_fallthru
      _
  $region6: #{_lambda_.27} parent=0 // loop_footer
    %s13 = sadd.s32 1, %s9
  $region7: #{_lambda_.27} parent=0 // loop_footer_branch
    %8 = sbr.rel target = $region3
  $region8: #{_lambda_.27} parent=0 // loop_exit
    _

// kernel: _lambda_.28
$region0: #{_lambda_.28}
  #allocation0 [shape = 'u32[]', space=smem, size = 0x4, offset = 0x4, fixed_abs, tag = 'smem constant byte address 0x4 - core index']
  #allocation1 [shape = 'u32[144,128]{1,0:T(1,128)}', space=vmem, size = 0x12000, scoped, tag = 'internal scratch']
  %s0 = inlined_call_operand.vmem [shape: bf16[32,256], index: 0, kind: input, shape index: {}]
  %s1 = inlined_call_operand.vmem [shape: bf16[256,128], index: 1, kind: input, shape index: {}]
  %s2 = inlined_call_operand.vmem [shape: f32[1,128], index: 2, kind: input, shape index: {}]
  %s3 = inlined_call_operand.vmem [shape: bf16[32,128], index: 3, kind: output, shape index: {}]
  %s4 = sld [smem:[#allocation0]]
  $region22: #{_lambda_.28} parent=0
    _
  %s6 = ssub.s32 1, %s4
  %s7 = scalar_select 0, %s6, %s4
  // Predicated region
  $region2: #{_lambda_.28} parent=0 // pred_check
    _
  $region3: #{_lambda_.28} parent=0 // pred_check_branch
    %9 = sbr.rel (0) target = $region5
  $region4: #{_lambda_.28} parent=0 // pred_region
    _
  $region5: #{_lambda_.28} parent=0 // pred_fallthru
    _
  // Predicated region
  $region6: #{_lambda_.28} parent=0 // pred_check
    _
  $region7: #{_lambda_.28} parent=0 // pred_check_branch
    %11 = sbr.rel (0) target = $region9
  $region8: #{_lambda_.28} parent=0 // pred_region
    _
  $region9: #{_lambda_.28} parent=0 // pred_fallthru
    _
  // Predicated region
  $region10: #{_lambda_.28} parent=0 // pred_check
    _
  $region11: #{_lambda_.28} parent=0 // pred_check_branch
    %13 = sbr.rel (0) target = $region13
  $region12: #{_lambda_.28} parent=0 // pred_region
    _
  $region13: #{_lambda_.28} parent=0 // pred_fallthru
    _
  %v16 = vld [vmem:[%s0] sm:$0xff]
  %v17 = vld [vmem:[%s0 + $0x8] sm:$0xff]
  %v18 = vld [vmem:[%s0 + $0x10] sm:$0xff]
  %v19 = vld [vmem:[%s0 + $0x18] sm:$0xff]
  %vm20 = vcmp.ge.bf16.partialorder %v16, 0
  %vm21 = vcmp.ge.bf16.partialorder %v17, 0
  %vm22 = vcmp.ge.bf16.partialorder %v18, 0
  %vm23 = vcmp.ge.bf16.partialorder %v19, 0
  %v24 = vmul.bf16 %v16, 1045249613
  %v25 = vmul.bf16 %v17, 1045249613
  %v26 = vmul.bf16 %v18, 1045249613
  %v27 = vmul.bf16 %v19, 1045249613
  %v28 = vsel %vm20, %v16, %v24
  %v29 = vsel %vm21, %v17, %v25
  %v30 = vsel %vm22, %v18, %v26
  %v31 = vsel %vm23, %v19, %v27
  %v32 = vld [vmem:[%s1] sm:$0xf]
  %v33 = vld [vmem:[%s1 + $0x4] sm:$0xf]
  %v34 = vld [vmem:[%s1 + $0x8] sm:$0xf]
  %v35 = vld [vmem:[%s1 + $0xc] sm:$0xf]
  %v36 = vld [vmem:[%s1 + $0x10] sm:$0xf]
  %v37 = vld [vmem:[%s1 + $0x14] sm:$0xf]
  %v38 = vld [vmem:[%s1 + $0x18] sm:$0xf]
  %v39 = vld [vmem:[%s1 + $0x1c] sm:$0xf]
  %v40 = vld [vmem:[%s1 + $0x20] sm:$0xf]
  %v41 = vld [vmem:[%s1 + $0x24] sm:$0xf]
  %v42 = vld [vmem:[%s1 + $0x28] sm:$0xf]
  %v43 = vld [vmem:[%s1 + $0x2c] sm:$0xf]
  %v44 = vld [vmem:[%s1 + $0x30] sm:$0xf]
  %v45 = vld [vmem:[%s1 + $0x34] sm:$0xf]
  %v46 = vld [vmem:[%s1 + $0x38] sm:$0xf]
  %v47 = vld [vmem:[%s1 + $0x3c] sm:$0xf]
  %v48 = vld [vmem:[%s1 + $0x40] sm:$0xf]
  %v49 = vld [vmem:[%s1 + $0x44] sm:$0xf]
  %v50 = vld [vmem:[%s1 + $0x48] sm:$0xf]
  %v51 = vld [vmem:[%s1 + $0x4c] sm:$0xf]
  %v52 = vld [vmem:[%s1 + $0x50] sm:$0xf]
  %v53 = vld [vmem:[%s1 + $0x54] sm:$0xf]
  %v54 = vld [vmem:[%s1 + $0x58] sm:$0xf]
  %v55 = vld [vmem:[%s1 + $0x5c] sm:$0xf]
  %v56 = vld [vmem:[%s1 + $0x60] sm:$0xf]
  %v57 = vld [vmem:[%s1 + $0x64] sm:$0xf]
  %v58 = vld [vmem:[%s1 + $0x68] sm:$0xf]
  %v59 = vld [vmem:[%s1 + $0x6c] sm:$0xf]
  %v60 = vld [vmem:[%s1 + $0x70] sm:$0xf]
  %v61 = vld [vmem:[%s1 + $0x74] sm:$0xf]
  %v62 = vld [vmem:[%s1 + $0x78] sm:$0xf]
  %v63 = vld [vmem:[%s1 + $0x7c] sm:$0xf]
  %v64 = vld [vmem:[%s2] sm:$0x1]
  %v66 = vlaneseq
  %v67 = vshrl.u32 %v66, 7
  %v68 = vsub.s32 0, %v67
  %v69 = vrot.slane %v64, %v68
  %v75 = vunpack.c.l.b16 %v28
  %v76 = vunpack.c.h.b16 %v28
  %v77 = vunpack.c.l.b16 %v29
  %v78 = vunpack.c.h.b16 %v29
  %v79 = vunpack.c.l.b16 %v30
  %v80 = vunpack.c.h.b16 %v30
  %v81 = vunpack.c.l.b16 %v31
  %v82 = vunpack.c.h.b16 %v31
  %v83 = vpack.c.b16 %v77, %v75
  %v84 = vpack.c.b16 %v78, %v76
  %v85 = vpack.c.b16 %v81, %v79
  %v86 = vpack.c.b16 %v82, %v80
  %v123 = vunpack.c.l.b16 %v32
  %v124 = vunpack.c.l.b16 %v33
  %v125 = vunpack.c.l.b16 %v34
  %v126 = vunpack.c.l.b16 %v35
  %v127 = vunpack.c.l.b16 %v36
  %v128 = vunpack.c.l.b16 %v37
  %v129 = vunpack.c.l.b16 %v38
  %v130 = vunpack.c.l.b16 %v39
  %v131 = vunpack.c.l.b16 %v40
  %v132 = vunpack.c.l.b16 %v41
  %v133 = vunpack.c.l.b16 %v42
  %v134 = vunpack.c.l.b16 %v43
  %v135 = vunpack.c.l.b16 %v44
  %v136 = vunpack.c.l.b16 %v45
  %v137 = vunpack.c.l.b16 %v46
  %v138 = vunpack.c.l.b16 %v47
  %v139 = vunpack.c.l.b16 %v48
  %v140 = vunpack.c.l.b16 %v49
  %v141 = vunpack.c.l.b16 %v50
  %v142 = vunpack.c.l.b16 %v51
  %v143 = vunpack.c.l.b16 %v52
  %v144 = vunpack.c.l.b16 %v53
  %v145 = vunpack.c.l.b16 %v54
  %v146 = vunpack.c.l.b16 %v55
  %v147 = vunpack.c.l.b16 %v56
  %v148 = vunpack.c.l.b16 %v57
  %v149 = vunpack.c.l.b16 %v58
  %v150 = vunpack.c.l.b16 %v59
  %v151 = vunpack.c.l.b16 %v60
  %v152 = vunpack.c.l.b16 %v61
  %v153 = vunpack.c.l.b16 %v62
  %v154 = vunpack.c.l.b16 %v63
  %v155 = vpack.c.b16 %v124, %v123
  %v156 = vpack.c.b16 %v126, %v125
  %v157 = vpack.c.b16 %v128, %v127
  %v158 = vpack.c.b16 %v130, %v129
  %v159 = vpack.c.b16 %v132, %v131
  %v160 = vpack.c.b16 %v134, %v133
  %v161 = vpack.c.b16 %v136, %v135
  %v162 = vpack.c.b16 %v138, %v137
  %v163 = vpack.c.b16 %v140, %v139
  %v164 = vpack.c.b16 %v142, %v141
  %v165 = vpack.c.b16 %v144, %v143
  %v166 = vpack.c.b16 %v146, %v145
  %v167 = vpack.c.b16 %v148, %v147
  %v168 = vpack.c.b16 %v150, %v149
  %v169 = vpack.c.b16 %v152, %v151
  %v170 = vpack.c.b16 %v154, %v153
  %187 = vmatprep.subr.bf16.mxu0 0
  %188 = vmatpush1.bf16.msra.mxu0 %v155
  %189 = vmatprep.subr.bf16.mxu0 0
  %190 = vmatpush1.bf16.msra.mxu0 %v156
  %191 = vmatprep.subr.bf16.mxu0 0
  %192 = vmatpush1.bf16.msra.mxu0 %v157
  %193 = vmatprep.subr.bf16.mxu0 0
  %194 = vmatpush1.bf16.msra.mxu0 %v158
  %195 = vmatprep.subr.bf16.mxu0 0
  %196 = vmatpush1.bf16.msra.mxu0 %v159
  %197 = vmatprep.subr.bf16.mxu0 0
  %198 = vmatpush1.bf16.msra.mxu0 %v160
  %199 = vmatprep.subr.bf16.mxu0 0
  %200 = vmatpush1.bf16.msra.mxu0 %v161
  %201 = vmatprep.subr.bf16.mxu0 0
  %202 = vmatpush1.bf16.msra.mxu0 %v162
  %203 = vmatprep.subr.bf16.mxu0 0
  %204 = vmatpush1.bf16.msra.mxu0 %v163
  %205 = vmatprep.subr.bf16.mxu0 0
  %206 = vmatpush1.bf16.msra.mxu0 %v164
  %207 = vmatprep.subr.bf16.mxu0 0
  %208 = vmatpush1.bf16.msra.mxu0 %v165
  %209 = vmatprep.subr.bf16.mxu0 0
  %210 = vmatpush1.bf16.msra.mxu0 %v166
  %211 = vmatprep.subr.bf16.mxu0 0
  %212 = vmatpush1.bf16.msra.mxu0 %v167
  %213 = vmatprep.subr.bf16.mxu0 0
  %214 = vmatpush1.bf16.msra.mxu0 %v168
  %215 = vmatprep.subr.bf16.mxu0 0
  %216 = vmatpush1.bf16.msra.mxu0 %v169
  %217 = vmatprep.subr.bf16.mxu0 0
  %218 = vmatpush1.bf16.msra.mxu0 %v170
  %219 = vmatprep.mubr.bf16.mxu0 %v84
  %220 = vmatmul.mubr.bf16.gmra.mrb[0].mxu0 %v83
  %v221 = vpop.f32.mrb[0].mxu0
  %v222 = vadd.f32 %v69, %v221
  %v223 = vpop.f32.mrb[0].mxu0
  %v224 = vpop.f32.mrb[0].mxu0
  %v225 = vadd.f32 %v69, %v224
  %v226 = vpop.f32.mrb[0].mxu0
  %227 = vmatprep.mubr.bf16.mxu0 %v86
  %228 = vmatmul.mubr.bf16.gmra.mrb[0].mxu0 %v85
  %v229 = vpop.f32.mrb[0].mxu0
  %v230 = vadd.f32 %v69, %v229
  %v231 = vpop.f32.mrb[0].mxu0
  %v232 = vpop.f32.mrb[0].mxu0
  %v233 = vadd.f32 %v69, %v232
  %v234 = vpop.f32.mrb[0].mxu0
  %235 = vdwg.mxu0
  %v236 = vpack.c.bf16 %v225, %v222
  %v237 = vpack.c.bf16 %v233, %v230
  %v240 = vunpack.c.l.b16 %v236
  %v241 = vunpack.c.h.b16 %v236
  %v242 = vunpack.c.l.b16 %v237
  %v243 = vunpack.c.h.b16 %v237
  %v244 = vpack.c.b16 %v240, %v240
  %v245 = vpack.c.b16 %v241, %v241
  %v246 = vpack.c.b16 %v242, %v242
  %v247 = vpack.c.b16 %v243, %v243
  %252 = vst [vmem:[%s3] sm:$0xf] %v244
  %253 = vst [vmem:[%s3 + $0x4] sm:$0xf] %v245
  %254 = vst [vmem:[%s3 + $0x8] sm:$0xf] %v246
  %255 = vst [vmem:[%s3 + $0xc] sm:$0xf] %v247
  // Predicated region
  $region14: #{_lambda_.28} parent=0 // pred_check
    _
  $region15: #{_lambda_.28} parent=0 // pred_check_branch
    %257 = sbr.rel (0) target = $region17
  $region16: #{_lambda_.28} parent=0 // pred_region
    _
  $region17: #{_lambda_.28} parent=0 // pred_fallthru
    _
  // Predicated region
  $region18: #{_lambda_.28} parent=0 // pred_check
    _
  $region19: #{_lambda_.28} parent=0 // pred_check_branch
    %259 = sbr.rel (0) target = $region21
  $region20: #{_lambda_.28} parent=0 // pred_region
    _
  $region21: #{_lambda_.28} parent=0 // pred_fallthru
    _

// kernel: _lambda_.29
$region0: #{_lambda_.29}
  #allocation0 [shape = 'u32[]', space=smem, size = 0x4, offset = 0x4, fixed_abs, tag = 'smem constant byte address 0x4 - core index']
  #allocation1 [shape = 'u32[144,128]{1,0:T(1,128)}', space=vmem, size = 0x12000, scoped, tag = 'internal scratch']
  #allocation2 [shape = 'f32[1,1,32]{2,1,0:T(1,128)}', space=vmem, size = 0x200, scoped, tag = 'scratch operand']
  #allocation3 [shape = 'f32[1,1,32]{2,1,0:T(1,128)}', space=vmem, size = 0x200, scoped, tag = 'scratch operand']
  %s0 = inlined_call_operand.vmem [shape: bf16[2,16,32], index: 0, kind: input, shape index: {}]
  %s1 = inlined_call_operand.vmem [shape: f32[2,1,32], index: 1, kind: output, shape index: {0}]
  %s2 = inlined_call_operand.vmem [shape: f32[2,1,32], index: 2, kind: output, shape index: {1}]
  %3 = xla_tuple %s1, %s2
  %s4 = sld [smem:[#allocation0]]
  $region53: #{_lambda_.29} parent=0
    _
  %s6 = ssub.s32 1, %s4
  %s7 = scalar_select 0, %s6, %s4
  loop: start=0, step=1, limit=4
  $region2: #{_lambda_.29} parent=0 // loop_pre_header
    _
  $region3: #{_lambda_.29} parent=0 // loop_header
    %s9 = sphi 0, %s13
    %p10 = scmp.ge.s32.totalorder %s9, 4
    %s16 = sphi 0, %s35
    %s17 = sphi 0, %s31
    %s18 = sphi 0, %s27
    %s19 = sphi 0, %s16
    %s20 = sphi 0, %s17
    %s21 = sphi 0, %s18
    %s22 = sphi 0, %s19
    %s23 = sphi 0, %s20
    %s24 = sphi 0, %s21
    %s42 = sphi 0, %s44
    %s45 = sphi 0, %s42
    %s46 = sphi 0, %s45
    %s62 = sphi 0, %s46
    %s70 = sphi 0, %s72
    %s73 = sphi 0, %s70
    %s74 = sphi 0, %s73
    %s90 = sphi 0, %s74
    %s98 = sphi 0, %s100
    %s101 = sphi 0, %s98
    %s102 = sphi 0, %s101
    %s118 = sphi 0, %s102
  $region4: #{_lambda_.29} parent=0 // loop_header_branch
    %12 = sbr.rel (%p10) target = $region8
  $region5: #{_lambda_.29} parent=0 // loop_body
    %s14 = ssub.s32 %s9, 1
    %s15 = ssub.s32 %s9, 2
    %s25 = sadd.s32 1, %s18
    %p26 = scmp.ge.s32.totalorder %s25, 1
    %s27 = scalar_select %p26, 0, %s25
    %s28 = sadd.s32 1, %s17
    %s29 = scalar_select %p26, %s28, %s17
    %p30 = scmp.ge.s32.totalorder %s29, 1
    %s31 = scalar_select %p30, 0, %s29
    %s32 = sadd.s32 1, %s16
    %s33 = scalar_select %p30, %s32, %s16
    %p34 = scmp.ge.s32.totalorder %s33, 2
    %s35 = scalar_select %p34, 0, %s33
    %s36 = ssub.s32 %s16, %s35
    %s37 = ssub.s32 %s18, %s27
    %s38 = sor.u32 %s36, %s37
    %s39 = ssub.s32 %s17, %s31
    %s40 = sor.u32 %s38, %s39
    %p41 = scmp.eq.s32.totalorder %s40, 0
    %s43 = sadd.s32 %s42, 1
    %s44 = scalar_select %p41, %s42, %s43
    %p47 = pneg %p41
    %p48 = scmp.eq.s32.totalorder %s9, 1
    %p49 = por %p47, %p48
    %p50 = scmp.ne.s32.totalorder %s42, %s45
    %p51 = scmp.eq.s32.totalorder %s9, 0
    %p52 = por %p50, %p51
    %p53 = scmp.ne.s32.totalorder %s42, %s45
    %p54 = scmp.eq.s32.totalorder %s14, 1
    %p55 = por %p53, %p54
    %p56 = scmp.ne.s32.totalorder %s45, %s46
    %p57 = scmp.eq.s32.totalorder %s14, 0
    %p58 = por %p56, %p57
    %p59 = scmp.ne.s32.totalorder %s45, %s46
    %p60 = scmp.eq.s32.totalorder %s15, 1
    %p61 = por %p59, %p60
    %p63 = scmp.ne.s32.totalorder %s46, %s62
    %p64 = scmp.eq.s32.totalorder %s15, 0
    %p65 = por %p63, %p64
    %s66 = ssub.s32 %s16, %s35
    %s67 = ssub.s32 %s17, %s31
    %s68 = sor.u32 %s66, %s67
    %p69 = scmp.eq.s32.totalorder %s68, 0
    %s71 = sadd.s32 %s70, 1
    %s72 = scalar_select %p69, %s70, %s71
    %p75 = pneg %p69
    %p76 = scmp.eq.s32.totalorder %s9, 1
    %p77 = por %p75, %p76
    %p78 = scmp.ne.s32.totalorder %s70, %s73
    %p79 = scmp.eq.s32.totalorder %s9, 0
    %p80 = por %p78, %p79
    %p81 = scmp.ne.s32.totalorder %s70, %s73
    %p82 = scmp.eq.s32.totalorder %s14, 1
    %p83 = por %p81, %p82
    %p84 = scmp.ne.s32.totalorder %s73, %s74
    %p85 = scmp.eq.s32.totalorder %s14, 0
    %p86 = por %p84, %p85
    %p87 = scmp.ne.s32.totalorder %s73, %s74
    %p88 = scmp.eq.s32.totalorder %s15, 1
    %p89 = por %p87, %p88
    %p91 = scmp.ne.s32.totalorder %s74, %s90
    %p92 = scmp.eq.s32.totalorder %s15, 0
    %p93 = por %p91, %p92
    %s94 = ssub.s32 %s16, %s35
    %s95 = ssub.s32 %s17, %s31
    %s96 = sor.u32 %s94, %s95
    %p97 = scmp.eq.s32.totalorder %s96, 0
    %s99 = sadd.s32 %s98, 1
    %s100 = scalar_select %p97, %s98, %s99
    %p103 = pneg %p97
    %p104 = scmp.eq.s32.totalorder %s9, 1
    %p105 = por %p103, %p104
    %p106 = scmp.ne.s32.totalorder %s98, %s101
    %p107 = scmp.eq.s32.totalorder %s9, 0
    %p108 = por %p106, %p107
    %p109 = scmp.ne.s32.totalorder %s98, %s101
    %p110 = scmp.eq.s32.totalorder %s14, 1
    %p111 = por %p109, %p110
    %p112 = scmp.ne.s32.totalorder %s101, %s102
    %p113 = scmp.eq.s32.totalorder %s14, 0
    %p114 = por %p112, %p113
    %p115 = scmp.ne.s32.totalorder %s101, %s102
    %p116 = scmp.eq.s32.totalorder %s15, 1
    %p117 = por %p115, %p116
    %p119 = scmp.ne.s32.totalorder %s102, %s118
    %p120 = scmp.eq.s32.totalorder %s15, 0
    %p121 = por %p119, %p120
    %p122 = scmp.le.s32.totalorder 1, %s9
    %p123 = scmp.lt.s32.totalorder %s9, 3
    %p124 = pnand %p122, %p123
    %p125 = pneg %p124
    // Predicated region
    $region9: #{_lambda_.29} parent=5 // pred_check
      _
    $region10: #{_lambda_.29} parent=5 // pred_check_branch
      %127 = sbr.rel (%p124) target = $region12
    $region11: #{_lambda_.29} parent=5 // pred_region
      %s128 = ssub.s32 %s9, 1
    $region12: #{_lambda_.29} parent=5 // pred_fallthru
      _
    %p129 = scmp.lt.s32.totalorder %s9, 2
    // Predicated region
    $region13: #{_lambda_.29} parent=5 // pred_check
      %p130 = pneg %p129
    $region14: #{_lambda_.29} parent=5 // pred_check_branch
      %132 = sbr.rel (%p130) target = $region16
    $region15: #{_lambda_.29} parent=5 // pred_region
      // Predicated region
      $region17: #{_lambda_.29} parent=15 // pred_check
        %p133 = pneg %p52
      $region18: #{_lambda_.29} parent=15 // pred_check_branch
        %135 = sbr.rel (%p133) target = $region20
      $region19: #{_lambda_.29} parent=15 // pred_region
        %s136 = smul.u32 2, %s18
        %p137 = scmp.lt.s32.totalorder %s16, 1
        %s138 = scalar_select %p137, %s16, 1
        %p139 = scmp.lt.s32.totalorder %s136, 1
        %s140 = scalar_select %p139, %s136, 1
        %p141 = scmp.lt.s32.totalorder %s17, 0
        %s142 = scalar_select %p141, %s17, 0
        %s143 = sadd.s32 %s142, %s140
        %s144 = smul.addr %s138, 2
        %s145 = sadd.s32 %s143, %s144
        %s146 = smul.addr %s145, 4
        %s147 = scalar_lea.vmem %s0, %s146
        %s148 = smul.u32 2, %s18
      $region20: #{_lambda_.29} parent=15 // pred_fallthru
        _
    $region16: #{_lambda_.29} parent=5 // pred_fallthru
      _
    %p149 = scmp.le.s32.totalorder 1, %s9
    %p150 = scmp.lt.s32.totalorder %s9, 3
    %p151 = pnand %p149, %p150
    %p152 = pneg %p151
    // Predicated region
    $region21: #{_lambda_.29} parent=5 // pred_check
      _
    $region22: #{_lambda_.29} parent=5 // pred_check_branch
      %154 = sbr.rel (%p151) target = $region24
    $region23: #{_lambda_.29} parent=5 // pred_region
      %s155 = ssub.s32 %s9, 1
      %s156 = smul.u32 2, %s21
      %p157 = scmp.lt.s32.totalorder %s19, 1
      %s158 = scalar_select %p157, %s19, 1
      %p159 = scmp.lt.s32.totalorder %s156, 1
      %s160 = scalar_select %p159, %s156, 1
      %p161 = scmp.lt.s32.totalorder %s20, 0
      %s162 = scalar_select %p161, %s20, 0
      %s163 = sadd.s32 %s162, %s160
      %s164 = smul.addr %s158, 2
      %s165 = sadd.s32 %s163, %s164
      %s166 = smul.addr %s165, 4
      %s167 = scalar_lea.vmem %s0, %s166
      %p168 = pneg %p58
      %p169 = pneg %p55
      %p170 = pneg %p86
      %p171 = pneg %p83
      %p172 = scmp.lt.s32.totalorder %s19, 1
      %s173 = scalar_select %p172, %s19, 1
      %p174 = scmp.lt.s32.totalorder %s20, 0
      %s175 = scalar_select %p174, %s20, 0
      %s176 = sadd.s32 %s175, %s173
      %s177 = scalar_lea.vmem %s1, %s176
      %p178 = pneg %p114
      %p179 = pneg %p111
      %p180 = scmp.lt.s32.totalorder %s19, 1
      %s181 = scalar_select %p180, %s19, 1
      %p182 = scmp.lt.s32.totalorder %s20, 0
      %s183 = scalar_select %p182, %s20, 0
      %s184 = sadd.s32 %s183, %s181
      %s185 = scalar_lea.vmem %s2, %s184
      %s186 = smul.u32 2, %s21
      %p187 = scmp.lt.s32.totalorder %s19, 1
      %s188 = scalar_select %p187, %s19, 1
      %p189 = scmp.lt.s32.totalorder %s186, 1
      %s190 = scalar_select %p189, %s186, 1
      %p191 = scmp.lt.s32.totalorder %s20, 0
      %s192 = scalar_select %p191, %s20, 0
      %s193 = sadd.s32 %s192, %s190
      %s194 = smul.addr %s188, 2
      %s195 = sadd.s32 %s193, %s194
      %s196 = smul.addr %s195, 4
      %s197 = scalar_lea.vmem %s0, %s196
      %s198 = smul.u32 2, %s21
      %p199 = scmp.lt.s32.totalorder %s19, 1
      %s200 = scalar_select %p199, %s19, 1
      %p201 = scmp.lt.s32.totalorder %s20, 0
      %s202 = scalar_select %p201, %s20, 0
      %s203 = sadd.s32 %s202, %s200
      %s204 = scalar_lea.vmem %s1, %s203
      %p205 = scmp.lt.s32.totalorder %s19, 1
      %s206 = scalar_select %p205, %s19, 1
      %p207 = scmp.lt.s32.totalorder %s20, 0
      %s208 = scalar_select %p207, %s20, 0
      %s209 = sadd.s32 %s208, %s206
      %s210 = scalar_lea.vmem %s2, %s209
      %p211 = scmp.eq.s32.totalorder %s21, 0
      // Predicated region
      $region25: #{_lambda_.29} parent=23 // pred_check
        %p212 = pneg %p211
      $region26: #{_lambda_.29} parent=23 // pred_check_branch
        %214 = sbr.rel (%p212) target = $region28
      $region27: #{_lambda_.29} parent=23 // pred_region
        %vm215 = vcmask 253952
        %216 = vst.msk [vmem:[#allocation2] sm:$0x1] %vm215, 0.0
        %217 = vst.msk [vmem:[#allocation3] sm:$0x1] %vm215, 0.0
      $region28: #{_lambda_.29} parent=23 // pred_fallthru
        _
      %v218 = vld [vmem:[%s197] sm:$0xf]
      %v219 = vld [vmem:[%s197 + $0x4] sm:$0xf]
      %v220 = vunpack.c.l.bf16 %v218
      %v221 = vunpack.c.l.bf16 %v219
      %v222 = vld [vmem:[#allocation2] sm:$0x1]
      %vm223 = vcmask 261120
      %v224 = vsel %vm223, %v220, 0.0
      %v225 = vsel %vm223, %v221, 0.0
      %v226 = vadd.f32 %v224, %v225
      %v227 = vrot.slane %v226, 4
      %v228 = vadd.f32 %v226, %v227
      %v229 = vrot.slane %v228, 2
      %v230 = vadd.f32 %v228, %v229
      %v231 = vrot.slane %v230, 1
      %v232 = vadd.f32 %v230, %v231
      %v233 = vadd.f32 %v222, %v232
      %vm234 = vcmask 253952
      %235 = vst.msk [vmem:[#allocation2] sm:$0x1] %vm234, %v233
      %v236 = vld [vmem:[#allocation3] sm:$0x1]
      %v237 = vmul.f32 %v220, %v220
      %v238 = vmul.f32 %v221, %v221
      %v239 = vsel %vm223, %v237, 0.0
      %v240 = vsel %vm223, %v238, 0.0
      %v241 = vadd.f32 %v239, %v240
      %v242 = vrot.slane %v241, 4
      %v243 = vadd.f32 %v241, %v242
      %v244 = vrot.slane %v243, 2
      %v245 = vadd.f32 %v243, %v244
      %v246 = vrot.slane %v245, 1
      %v247 = vadd.f32 %v245, %v246
      %v248 = vadd.f32 %v236, %v247
      %249 = vst.msk [vmem:[#allocation3] sm:$0x1] %vm234, %v248
      // Predicated region
      $region29: #{_lambda_.29} parent=23 // pred_check
        %p250 = pneg %p211
      $region30: #{_lambda_.29} parent=23 // pred_check_branch
        %252 = sbr.rel (%p250) target = $region32
      $region31: #{_lambda_.29} parent=23 // pred_region
        %v253 = vld [vmem:[#allocation2] sm:$0x1]
        %v254 = vmul.f32 %v253, 0.0625
        %v255 = vld [vmem:[#allocation3] sm:$0x1]
        %v256 = vmul.f32 %v255, 0.0625
        %v257 = vmul.f32 %v254, %v254
        %v258 = vsub.f32 %v256, %v257
        %259 = vst.msk [vmem:[%s204] sm:$0x1] %vm234, %v254
        %v260 = vadd.f32 %v258, 1e-05
        %v261 = vrsqrt.pop %v260
        %262 = vst.msk [vmem:[%s210] sm:$0x1] %vm234, %v261
      $region32: #{_lambda_.29} parent=23 // pred_fallthru
        _
      %p263 = scmp.lt.s32.totalorder %s19, 1
      %s264 = scalar_select %p263, %s19, 1
      %p265 = scmp.lt.s32.totalorder %s20, 0
      %s266 = scalar_select %p265, %s20, 0
      %s267 = sadd.s32 %s266, %s264
      %s268 = scalar_lea.vmem %s1, %s267
      %p269 = scmp.lt.s32.totalorder %s19, 1
      %s270 = scalar_select %p269, %s19, 1
      %p271 = scmp.lt.s32.totalorder %s20, 0
      %s272 = scalar_select %p271, %s20, 0
      %s273 = sadd.s32 %s272, %s270
      %s274 = scalar_lea.vmem %s2, %s273
      // Predicated region
      $region33: #{_lambda_.29} parent=23 // pred_check
        %p275 = pneg %p83
      $region34: #{_lambda_.29} parent=23 // pred_check_branch
        %277 = sbr.rel (%p275) target = $region36
      $region35: #{_lambda_.29} parent=23 // pred_region
        _
      $region36: #{_lambda_.29} parent=23 // pred_fallthru
        _
      // Predicated region
      $region37: #{_lambda_.29} parent=23 // pred_check
        %p278 = pneg %p111
      $region38: #{_lambda_.29} parent=23 // pred_check_branch
        %280 = sbr.rel (%p278) target = $region40
      $region39: #{_lambda_.29} parent=23 // pred_region
        _
      $region40: #{_lambda_.29} parent=23 // pred_fallthru
        _
    $region24: #{_lambda_.29} parent=5 // pred_fallthru
      _
    %p281 = scmp.le.s32.totalorder 2, %s9
    // Predicated region
    $region41: #{_lambda_.29} parent=5 // pred_check
      %p282 = pneg %p281
    $region42: #{_lambda_.29} parent=5 // pred_check_branch
      %284 = sbr.rel (%p282) target = $region44
    $region43: #{_lambda_.29} parent=5 // pred_region
      %s285 = ssub.s32 %s9, 2
      // Predicated region
      $region45: #{_lambda_.29} parent=43 // pred_check
        %p286 = pneg %p89
      $region46: #{_lambda_.29} parent=43 // pred_check_branch
        %288 = sbr.rel (%p286) target = $region48
      $region47: #{_lambda_.29} parent=43 // pred_region
        %p289 = scmp.lt.s32.totalorder %s22, 1
        %s290 = scalar_select %p289, %s22, 1
        %p291 = scmp.lt.s32.totalorder %s23, 0
        %s292 = scalar_select %p291, %s23, 0
        %s293 = sadd.s32 %s292, %s290
        %s294 = scalar_lea.vmem %s1, %s293
      $region48: #{_lambda_.29} parent=43 // pred_fallthru
        _
      // Predicated region
      $region49: #{_lambda_.29} parent=43 // pred_check
        %p295 = pneg %p117
      $region50: #{_lambda_.29} parent=43 // pred_check_branch
        %297 = sbr.rel (%p295) target = $region52
      $region51: #{_lambda_.29} parent=43 // pred_region
        %p298 = scmp.lt.s32.totalorder %s22, 1
        %s299 = scalar_select %p298, %s22, 1
        %p300 = scmp.lt.s32.totalorder %s23, 0
        %s301 = scalar_select %p300, %s23, 0
        %s302 = sadd.s32 %s301, %s299
        %s303 = scalar_lea.vmem %s2, %s302
      $region52: #{_lambda_.29} parent=43 // pred_fallthru
        _
    $region44: #{_lambda_.29} parent=5 // pred_fallthru
      _
  $region6: #{_lambda_.29} parent=0 // loop_footer
    %s13 = sadd.s32 1, %s9
  $region7: #{_lambda_.29} parent=0 // loop_footer_branch
    %8 = sbr.rel target = $region3
  $region8: #{_lambda_.29} parent=0 // loop_exit
    _

// kernel: _lambda_.30
$region0: #{_lambda_.30}
  #allocation0 [shape = 'u32[]', space=smem, size = 0x4, offset = 0x4, fixed_abs, tag = 'smem constant byte address 0x4 - core index']
  #allocation1 [shape = 'u32[144,128]{1,0:T(1,128)}', space=vmem, size = 0x12000, scoped, tag = 'internal scratch']
  %s0 = inlined_call_operand.vmem [shape: bf16[2,16,32], index: 0, kind: input, shape index: {}]
  %s1 = inlined_call_operand.vmem [shape: f32[2,1,32], index: 1, kind: input, shape index: {}]
  %s2 = inlined_call_operand.vmem [shape: f32[2,1,32], index: 2, kind: input, shape index: {}]
  %s3 = inlined_call_operand.vmem [shape: bf16[2,16,32], index: 3, kind: output, shape index: {}]
  %s4 = sld [smem:[#allocation0]]
  $region45: #{_lambda_.30} parent=0
    _
  %s6 = ssub.s32 1, %s4
  %s7 = scalar_select 0, %s6, %s4
  loop: start=0, step=1, limit=4
  $region2: #{_lambda_.30} parent=0 // loop_pre_header
    _
  $region3: #{_lambda_.30} parent=0 // loop_header
    %s9 = sphi 0, %s13
    %p10 = scmp.ge.s32.totalorder %s9, 4
    %s16 = sphi 0, %s35
    %s17 = sphi 0, %s31
    %s18 = sphi 0, %s27
    %s19 = sphi 0, %s16
    %s20 = sphi 0, %s17
    %s21 = sphi 0, %s18
    %s22 = sphi 0, %s19
    %s23 = sphi 0, %s20
    %s24 = sphi 0, %s21
    %s42 = sphi 0, %s44
    %s45 = sphi 0, %s42
    %s46 = sphi 0, %s45
    %s62 = sphi 0, %s46
    %s70 = sphi 0, %s72
    %s73 = sphi 0, %s70
    %s74 = sphi 0, %s73
    %s90 = sphi 0, %s74
    %s98 = sphi 0, %s100
    %s101 = sphi 0, %s98
    %s102 = sphi 0, %s101
    %s118 = sphi 0, %s102
    %s128 = sphi 0, %s130
    %s131 = sphi 0, %s128
    %s132 = sphi 0, %s131
    %s148 = sphi 0, %s132
  $region4: #{_lambda_.30} parent=0 // loop_header_branch
    %12 = sbr.rel (%p10) target = $region8
  $region5: #{_lambda_.30} parent=0 // loop_body
    %s14 = ssub.s32 %s9, 1
    %s15 = ssub.s32 %s9, 2
    %s25 = sadd.s32 1, %s18
    %p26 = scmp.ge.s32.totalorder %s25, 1
    %s27 = scalar_select %p26, 0, %s25
    %s28 = sadd.s32 1, %s17
    %s29 = scalar_select %p26, %s28, %s17
    %p30 = scmp.ge.s32.totalorder %s29, 1
    %s31 = scalar_select %p30, 0, %s29
    %s32 = sadd.s32 1, %s16
    %s33 = scalar_select %p30, %s32, %s16
    %p34 = scmp.ge.s32.totalorder %s33, 2
    %s35 = scalar_select %p34, 0, %s33
    %s36 = ssub.s32 %s16, %s35
    %s37 = ssub.s32 %s18, %s27
    %s38 = sor.u32 %s36, %s37
    %s39 = ssub.s32 %s17, %s31
    %s40 = sor.u32 %s38, %s39
    %p41 = scmp.eq.s32.totalorder %s40, 0
    %s43 = sadd.s32 %s42, 1
    %s44 = scalar_select %p41, %s42, %s43
    %p47 = pneg %p41
    %p48 = scmp.eq.s32.totalorder %s9, 1
    %p49 = por %p47, %p48
    %p50 = scmp.ne.s32.totalorder %s42, %s45
    %p51 = scmp.eq.s32.totalorder %s9, 0
    %p52 = por %p50, %p51
    %p53 = scmp.ne.s32.totalorder %s42, %s45
    %p54 = scmp.eq.s32.totalorder %s14, 1
    %p55 = por %p53, %p54
    %p56 = scmp.ne.s32.totalorder %s45, %s46
    %p57 = scmp.eq.s32.totalorder %s14, 0
    %p58 = por %p56, %p57
    %p59 = scmp.ne.s32.totalorder %s45, %s46
    %p60 = scmp.eq.s32.totalorder %s15, 1
    %p61 = por %p59, %p60
    %p63 = scmp.ne.s32.totalorder %s46, %s62
    %p64 = scmp.eq.s32.totalorder %s15, 0
    %p65 = por %p63, %p64
    %s66 = ssub.s32 %s16, %s35
    %s67 = ssub.s32 %s17, %s31
    %s68 = sor.u32 %s66, %s67
    %p69 = scmp.eq.s32.totalorder %s68, 0
    %s71 = sadd.s32 %s70, 1
    %s72 = scalar_select %p69, %s70, %s71
    %p75 = pneg %p69
    %p76 = scmp.eq.s32.totalorder %s9, 1
    %p77 = por %p75, %p76
    %p78 = scmp.ne.s32.totalorder %s70, %s73
    %p79 = scmp.eq.s32.totalorder %s9, 0
    %p80 = por %p78, %p79
    %p81 = scmp.ne.s32.totalorder %s70, %s73
    %p82 = scmp.eq.s32.totalorder %s14, 1
    %p83 = por %p81, %p82
    %p84 = scmp.ne.s32.totalorder %s73, %s74
    %p85 = scmp.eq.s32.totalorder %s14, 0
    %p86 = por %p84, %p85
    %p87 = scmp.ne.s32.totalorder %s73, %s74
    %p88 = scmp.eq.s32.totalorder %s15, 1
    %p89 = por %p87, %p88
    %p91 = scmp.ne.s32.totalorder %s74, %s90
    %p92 = scmp.eq.s32.totalorder %s15, 0
    %p93 = por %p91, %p92
    %s94 = ssub.s32 %s16, %s35
    %s95 = ssub.s32 %s17, %s31
    %s96 = sor.u32 %s94, %s95
    %p97 = scmp.eq.s32.totalorder %s96, 0
    %s99 = sadd.s32 %s98, 1
    %s100 = scalar_select %p97, %s98, %s99
    %p103 = pneg %p97
    %p104 = scmp.eq.s32.totalorder %s9, 1
    %p105 = por %p103, %p104
    %p106 = scmp.ne.s32.totalorder %s98, %s101
    %p107 = scmp.eq.s32.totalorder %s9, 0
    %p108 = por %p106, %p107
    %p109 = scmp.ne.s32.totalorder %s98, %s101
    %p110 = scmp.eq.s32.totalorder %s14, 1
    %p111 = por %p109, %p110
    %p112 = scmp.ne.s32.totalorder %s101, %s102
    %p113 = scmp.eq.s32.totalorder %s14, 0
    %p114 = por %p112, %p113
    %p115 = scmp.ne.s32.totalorder %s101, %s102
    %p116 = scmp.eq.s32.totalorder %s15, 1
    %p117 = por %p115, %p116
    %p119 = scmp.ne.s32.totalorder %s102, %s118
    %p120 = scmp.eq.s32.totalorder %s15, 0
    %p121 = por %p119, %p120
    %s122 = ssub.s32 %s16, %s35
    %s123 = ssub.s32 %s18, %s27
    %s124 = sor.u32 %s122, %s123
    %s125 = ssub.s32 %s17, %s31
    %s126 = sor.u32 %s124, %s125
    %p127 = scmp.eq.s32.totalorder %s126, 0
    %s129 = sadd.s32 %s128, 1
    %s130 = scalar_select %p127, %s128, %s129
    %p133 = pneg %p127
    %p134 = scmp.eq.s32.totalorder %s9, 1
    %p135 = por %p133, %p134
    %p136 = scmp.ne.s32.totalorder %s128, %s131
    %p137 = scmp.eq.s32.totalorder %s9, 0
    %p138 = por %p136, %p137
    %p139 = scmp.ne.s32.totalorder %s128, %s131
    %p140 = scmp.eq.s32.totalorder %s14, 1
    %p141 = por %p139, %p140
    %p142 = scmp.ne.s32.totalorder %s131, %s132
    %p143 = scmp.eq.s32.totalorder %s14, 0
    %p144 = por %p142, %p143
    %p145 = scmp.ne.s32.totalorder %s131, %s132
    %p146 = scmp.eq.s32.totalorder %s15, 1
    %p147 = por %p145, %p146
    %p149 = scmp.ne.s32.totalorder %s132, %s148
    %p150 = scmp.eq.s32.totalorder %s15, 0
    %p151 = por %p149, %p150
    %p152 = scmp.le.s32.totalorder 1, %s9
    %p153 = scmp.lt.s32.totalorder %s9, 3
    %p154 = pnand %p152, %p153
    %p155 = pneg %p154
    // Predicated region
    $region9: #{_lambda_.30} parent=5 // pred_check
      _
    $region10: #{_lambda_.30} parent=5 // pred_check_branch
      %157 = sbr.rel (%p154) target = $region12
    $region11: #{_lambda_.30} parent=5 // pred_region
      %s158 = ssub.s32 %s9, 1
    $region12: #{_lambda_.30} parent=5 // pred_fallthru
      _
    %p159 = scmp.lt.s32.totalorder %s9, 2
    // Predicated region
    $region13: #{_lambda_.30} parent=5 // pred_check
      %p160 = pneg %p159
    $region14: #{_lambda_.30} parent=5 // pred_check_branch
      %162 = sbr.rel (%p160) target = $region16
    $region15: #{_lambda_.30} parent=5 // pred_region
      // Predicated region
      $region17: #{_lambda_.30} parent=15 // pred_check
        %p163 = pneg %p52
      $region18: #{_lambda_.30} parent=15 // pred_check_branch
        %165 = sbr.rel (%p163) target = $region20
      $region19: #{_lambda_.30} parent=15 // pred_region
        %s166 = smul.u32 2, %s18
        %p167 = scmp.lt.s32.totalorder %s16, 1
        %s168 = scalar_select %p167, %s16, 1
        %p169 = scmp.lt.s32.totalorder %s166, 1
        %s170 = scalar_select %p169, %s166, 1
        %p171 = scmp.lt.s32.totalorder %s17, 0
        %s172 = scalar_select %p171, %s17, 0
        %s173 = sadd.s32 %s172, %s170
        %s174 = smul.addr %s168, 2
        %s175 = sadd.s32 %s173, %s174
        %s176 = smul.addr %s175, 4
        %s177 = scalar_lea.vmem %s0, %s176
        %s178 = smul.u32 2, %s18
      $region20: #{_lambda_.30} parent=15 // pred_fallthru
        _
      // Predicated region
      $region21: #{_lambda_.30} parent=15 // pred_check
        %p179 = pneg %p80
      $region22: #{_lambda_.30} parent=15 // pred_check_branch
        %181 = sbr.rel (%p179) target = $region24
      $region23: #{_lambda_.30} parent=15 // pred_region
        %p182 = scmp.lt.s32.totalorder %s16, 1
        %s183 = scalar_select %p182, %s16, 1
        %p184 = scmp.lt.s32.totalorder %s17, 0
        %s185 = scalar_select %p184, %s17, 0
        %s186 = sadd.s32 %s185, %s183
        %s187 = scalar_lea.vmem %s1, %s186
      $region24: #{_lambda_.30} parent=15 // pred_fallthru
        _
      // Predicated region
      $region25: #{_lambda_.30} parent=15 // pred_check
        %p188 = pneg %p108
      $region26: #{_lambda_.30} parent=15 // pred_check_branch
        %190 = sbr.rel (%p188) target = $region28
      $region27: #{_lambda_.30} parent=15 // pred_region
        %p191 = scmp.lt.s32.totalorder %s16, 1
        %s192 = scalar_select %p191, %s16, 1
        %p193 = scmp.lt.s32.totalorder %s17, 0
        %s194 = scalar_select %p193, %s17, 0
        %s195 = sadd.s32 %s194, %s192
        %s196 = scalar_lea.vmem %s2, %s195
      $region28: #{_lambda_.30} parent=15 // pred_fallthru
        _
    $region16: #{_lambda_.30} parent=5 // pred_fallthru
      _
    %p197 = scmp.le.s32.totalorder 1, %s9
    %p198 = scmp.lt.s32.totalorder %s9, 3
    %p199 = pnand %p197, %p198
    %p200 = pneg %p199
    // Predicated region
    $region29: #{_lambda_.30} parent=5 // pred_check
      _
    $region30: #{_lambda_.30} parent=5 // pred_check_branch
      %202 = sbr.rel (%p199) target = $region32
    $region31: #{_lambda_.30} parent=5 // pred_region
      %s203 = ssub.s32 %s9, 1
      %s204 = smul.u32 2, %s21
      %p205 = scmp.lt.s32.totalorder %s19, 1
      %s206 = scalar_select %p205, %s19, 1
      %p207 = scmp.lt.s32.totalorder %s204, 1
      %s208 = scalar_select %p207, %s204, 1
      %p209 = scmp.lt.s32.totalorder %s20, 0
      %s210 = scalar_select %p209, %s20, 0
      %s211 = sadd.s32 %s210, %s208
      %s212 = smul.addr %s206, 2
      %s213 = sadd.s32 %s211, %s212
      %s214 = smul.addr %s213, 4
      %s215 = scalar_lea.vmem %s0, %s214
      %p216 = pneg %p58
      %p217 = pneg %p55
      %p218 = scmp.lt.s32.totalorder %s19, 1
      %s219 = scalar_select %p218, %s19, 1
      %p220 = scmp.lt.s32.totalorder %s20, 0
      %s221 = scalar_select %p220, %s20, 0
      %s222 = sadd.s32 %s221, %s219
      %s223 = scalar_lea.vmem %s1, %s222
      %p224 = pneg %p86
      %p225 = pneg %p83
      %p226 = scmp.lt.s32.totalorder %s19, 1
      %s227 = scalar_select %p226, %s19, 1
      %p228 = scmp.lt.s32.totalorder %s20, 0
      %s229 = scalar_select %p228, %s20, 0
      %s230 = sadd.s32 %s229, %s227
      %s231 = scalar_lea.vmem %s2, %s230
      %p232 = pneg %p114
      %p233 = pneg %p111
      %p234 = pneg %p144
      %p235 = pneg %p141
      %s236 = smul.u32 2, %s21
      %p237 = scmp.lt.s32.totalorder %s19, 1
      %s238 = scalar_select %p237, %s19, 1
      %p239 = scmp.lt.s32.totalorder %s236, 1
      %s240 = scalar_select %p239, %s236, 1
      %p241 = scmp.lt.s32.totalorder %s20, 0
      %s242 = scalar_select %p241, %s20, 0
      %s243 = sadd.s32 %s242, %s240
      %s244 = smul.addr %s238, 2
      %s245 = sadd.s32 %s243, %s244
      %s246 = smul.addr %s245, 4
      %s247 = scalar_lea.vmem %s3, %s246
      %s248 = smul.u32 2, %s21
      %p249 = scmp.lt.s32.totalorder %s19, 1
      %s250 = scalar_select %p249, %s19, 1
      %p251 = scmp.lt.s32.totalorder %s248, 1
      %s252 = scalar_select %p251, %s248, 1
      %p253 = scmp.lt.s32.totalorder %s20, 0
      %s254 = scalar_select %p253, %s20, 0
      %s255 = sadd.s32 %s254, %s252
      %s256 = smul.addr %s250, 2
      %s257 = sadd.s32 %s255, %s256
      %s258 = smul.addr %s257, 4
      %s259 = scalar_lea.vmem %s0, %s258
      %s260 = smul.u32 2, %s21
      %p261 = scmp.lt.s32.totalorder %s19, 1
      %s262 = scalar_select %p261, %s19, 1
      %p263 = scmp.lt.s32.totalorder %s20, 0
      %s264 = scalar_select %p263, %s20, 0
      %s265 = sadd.s32 %s264, %s262
      %s266 = scalar_lea.vmem %s1, %s265
      %p267 = scmp.lt.s32.totalorder %s19, 1
      %s268 = scalar_select %p267, %s19, 1
      %p269 = scmp.lt.s32.totalorder %s20, 0
      %s270 = scalar_select %p269, %s20, 0
      %s271 = sadd.s32 %s270, %s268
      %s272 = scalar_lea.vmem %s2, %s271
      %s273 = smul.u32 2, %s21
      %p274 = scmp.lt.s32.totalorder %s19, 1
      %s275 = scalar_select %p274, %s19, 1
      %p276 = scmp.lt.s32.totalorder %s273, 1
      %s277 = scalar_select %p276, %s273, 1
      %p278 = scmp.lt.s32.totalorder %s20, 0
      %s279 = scalar_select %p278, %s20, 0
      %s280 = sadd.s32 %s279, %s277
      %s281 = smul.addr %s275, 2
      %s282 = sadd.s32 %s280, %s281
      %s283 = smul.addr %s282, 4
      %s284 = scalar_lea.vmem %s3, %s283
      %s285 = smul.u32 2, %s21
      %v286 = vld [vmem:[%s259] sm:$0xf]
      %v287 = vld [vmem:[%s259 + $0x4] sm:$0xf]
      %v288 = vunpack.c.l.bf16 %v286
      %v289 = vunpack.c.l.bf16 %v287
      %v290 = vld [vmem:[%s266] sm:$0x1]
      %v292 = vlaneseq
      %v293 = vshrl.u32 %v292, 7
      %v294 = vsub.s32 0, %v293
      %v295 = vrot.slane %v290, %v294
      %v297 = vsub.f32 %v288, %v295
      %v298 = vsub.f32 %v289, %v295
      %v299 = vld [vmem:[%s272] sm:$0x1]
      %v301 = vlaneseq
      %v302 = vshrl.u32 %v301, 7
      %v303 = vsub.s32 0, %v302
      %v304 = vrot.slane %v299, %v303
      %v306 = vmul.f32 %v297, %v304
      %v307 = vmul.f32 %v298, %v304
      %v308 = vpack.c.bf16 %v307, %v306
      %v310 = vunpack.c.l.b16 %v308
      %v311 = vunpack.c.h.b16 %v308
      %v312 = vpack.c.b16 %v310, %v310
      %v313 = vpack.c.b16 %v311, %v311
      %vm316 = vcmask 257024
      %317 = vst.msk [vmem:[%s284] sm:$0xf] %vm316, %v312
      %318 = vst.msk [vmem:[%s284 + $0x4] sm:$0xf] %vm316, %v313
      %s319 = smul.u32 2, %s21
      %p320 = scmp.lt.s32.totalorder %s19, 1
      %s321 = scalar_select %p320, %s19, 1
      %p322 = scmp.lt.s32.totalorder %s319, 1
      %s323 = scalar_select %p322, %s319, 1
      %p324 = scmp.lt.s32.totalorder %s20, 0
      %s325 = scalar_select %p324, %s20, 0
      %s326 = sadd.s32 %s325, %s323
      %s327 = smul.addr %s321, 2
      %s328 = sadd.s32 %s326, %s327
      %s329 = smul.addr %s328, 4
      %s330 = scalar_lea.vmem %s3, %s329
      // Predicated region
      $region33: #{_lambda_.30} parent=31 // pred_check
        %p331 = pneg %p141
      $region34: #{_lambda_.30} parent=31 // pred_check_branch
        %333 = sbr.rel (%p331) target = $region36
      $region35: #{_lambda_.30} parent=31 // pred_region
        %s334 = smul.u32 2, %s21
      $region36: #{_lambda_.30} parent=31 // pred_fallthru
        _
    $region32: #{_lambda_.30} parent=5 // pred_fallthru
      _
    %p335 = scmp.le.s32.totalorder 2, %s9
    // Predicated region
    $region37: #{_lambda_.30} parent=5 // pred_check
      %p336 = pneg %p335
    $region38: #{_lambda_.30} parent=5 // pred_check_branch
      %338 = sbr.rel (%p336) target = $region40
    $region39: #{_lambda_.30} parent=5 // pred_region
      %s339 = ssub.s32 %s9, 2
      // Predicated region
      $region41: #{_lambda_.30} parent=39 // pred_check
        %p340 = pneg %p147
      $region42: #{_lambda_.30} parent=39 // pred_check_branch
        %342 = sbr.rel (%p340) target = $region44
      $region43: #{_lambda_.30} parent=39 // pred_region
        %s343 = smul.u32 2, %s24
        %p344 = scmp.lt.s32.totalorder %s22, 1
        %s345 = scalar_select %p344, %s22, 1
        %p346 = scmp.lt.s32.totalorder %s343, 1
        %s347 = scalar_select %p346, %s343, 1
        %p348 = scmp.lt.s32.totalorder %s23, 0
        %s349 = scalar_select %p348, %s23, 0
        %s350 = sadd.s32 %s349, %s347
        %s351 = smul.addr %s345, 2
        %s352 = sadd.s32 %s350, %s351
        %s353 = smul.addr %s352, 4
        %s354 = scalar_lea.vmem %s3, %s353
      $region44: #{_lambda_.30} parent=39 // pred_fallthru
        _
    $region40: #{_lambda_.30} parent=5 // pred_fallthru
      _
  $region6: #{_lambda_.30} parent=0 // loop_footer
    %s13 = sadd.s32 1, %s9
  $region7: #{_lambda_.30} parent=0 // loop_footer_branch
    %8 = sbr.rel target = $region3
  $region8: #{_lambda_.30} parent=0 // loop_exit
    _

// kernel: _lambda_.33
$region0: #{_lambda_.33}
  #allocation0 [shape = 'u32[]', space=smem, size = 0x4, offset = 0x4, fixed_abs, tag = 'smem constant byte address 0x4 - core index']
  #allocation1 [shape = 'u32[144,128]{1,0:T(1,128)}', space=vmem, size = 0x12000, scoped, tag = 'internal scratch']
  %s0 = inlined_call_operand.vmem [shape: bf16[2,8,64], index: 0, kind: input, shape index: {}]
  %s1 = inlined_call_operand.vmem [shape: f32[2,1,64], index: 1, kind: input, shape index: {}]
  %s2 = inlined_call_operand.vmem [shape: f32[2,1,64], index: 2, kind: input, shape index: {}]
  %s3 = inlined_call_operand.vmem [shape: bf16[2,8,64], index: 3, kind: output, shape index: {}]
  %s4 = sld [smem:[#allocation0]]
  $region45: #{_lambda_.33} parent=0
    _
  %s6 = ssub.s32 1, %s4
  %s7 = scalar_select 0, %s6, %s4
  loop: start=0, step=1, limit=4
  $region2: #{_lambda_.33} parent=0 // loop_pre_header
    _
  $region3: #{_lambda_.33} parent=0 // loop_header
    %s9 = sphi 0, %s13
    %p10 = scmp.ge.s32.totalorder %s9, 4
    %s16 = sphi 0, %s35
    %s17 = sphi 0, %s31
    %s18 = sphi 0, %s27
    %s19 = sphi 0, %s16
    %s20 = sphi 0, %s17
    %s21 = sphi 0, %s18
    %s22 = sphi 0, %s19
    %s23 = sphi 0, %s20
    %s24 = sphi 0, %s21
    %s42 = sphi 0, %s44
    %s45 = sphi 0, %s42
    %s46 = sphi 0, %s45
    %s62 = sphi 0, %s46
    %s70 = sphi 0, %s72
    %s73 = sphi 0, %s70
    %s74 = sphi 0, %s73
    %s90 = sphi 0, %s74
    %s98 = sphi 0, %s100
    %s101 = sphi 0, %s98
    %s102 = sphi 0, %s101
    %s118 = sphi 0, %s102
    %s128 = sphi 0, %s130
    %s131 = sphi 0, %s128
    %s132 = sphi 0, %s131
    %s148 = sphi 0, %s132
  $region4: #{_lambda_.33} parent=0 // loop_header_branch
    %12 = sbr.rel (%p10) target = $region8
  $region5: #{_lambda_.33} parent=0 // loop_body
    %s14 = ssub.s32 %s9, 1
    %s15 = ssub.s32 %s9, 2
    %s25 = sadd.s32 1, %s18
    %p26 = scmp.ge.s32.totalorder %s25, 1
    %s27 = scalar_select %p26, 0, %s25
    %s28 = sadd.s32 1, %s17
    %s29 = scalar_select %p26, %s28, %s17
    %p30 = scmp.ge.s32.totalorder %s29, 1
    %s31 = scalar_select %p30, 0, %s29
    %s32 = sadd.s32 1, %s16
    %s33 = scalar_select %p30, %s32, %s16
    %p34 = scmp.ge.s32.totalorder %s33, 2
    %s35 = scalar_select %p34, 0, %s33
    %s36 = ssub.s32 %s16, %s35
    %s37 = ssub.s32 %s18, %s27
    %s38 = sor.u32 %s36, %s37
    %s39 = ssub.s32 %s17, %s31
    %s40 = sor.u32 %s38, %s39
    %p41 = scmp.eq.s32.totalorder %s40, 0
    %s43 = sadd.s32 %s42, 1
    %s44 = scalar_select %p41, %s42, %s43
    %p47 = pneg %p41
    %p48 = scmp.eq.s32.totalorder %s9, 1
    %p49 = por %p47, %p48
    %p50 = scmp.ne.s32.totalorder %s42, %s45
    %p51 = scmp.eq.s32.totalorder %s9, 0
    %p52 = por %p50, %p51
    %p53 = scmp.ne.s32.totalorder %s42, %s45
    %p54 = scmp.eq.s32.totalorder %s14, 1
    %p55 = por %p53, %p54
    %p56 = scmp.ne.s32.totalorder %s45, %s46
    %p57 = scmp.eq.s32.totalorder %s14, 0
    %p58 = por %p56, %p57
    %p59 = scmp.ne.s32.totalorder %s45, %s46
    %p60 = scmp.eq.s32.totalorder %s15, 1
    %p61 = por %p59, %p60
    %p63 = scmp.ne.s32.totalorder %s46, %s62
    %p64 = scmp.eq.s32.totalorder %s15, 0
    %p65 = por %p63, %p64
    %s66 = ssub.s32 %s16, %s35
    %s67 = ssub.s32 %s17, %s31
    %s68 = sor.u32 %s66, %s67
    %p69 = scmp.eq.s32.totalorder %s68, 0
    %s71 = sadd.s32 %s70, 1
    %s72 = scalar_select %p69, %s70, %s71
    %p75 = pneg %p69
    %p76 = scmp.eq.s32.totalorder %s9, 1
    %p77 = por %p75, %p76
    %p78 = scmp.ne.s32.totalorder %s70, %s73
    %p79 = scmp.eq.s32.totalorder %s9, 0
    %p80 = por %p78, %p79
    %p81 = scmp.ne.s32.totalorder %s70, %s73
    %p82 = scmp.eq.s32.totalorder %s14, 1
    %p83 = por %p81, %p82
    %p84 = scmp.ne.s32.totalorder %s73, %s74
    %p85 = scmp.eq.s32.totalorder %s14, 0
    %p86 = por %p84, %p85
    %p87 = scmp.ne.s32.totalorder %s73, %s74
    %p88 = scmp.eq.s32.totalorder %s15, 1
    %p89 = por %p87, %p88
    %p91 = scmp.ne.s32.totalorder %s74, %s90
    %p92 = scmp.eq.s32.totalorder %s15, 0
    %p93 = por %p91, %p92
    %s94 = ssub.s32 %s16, %s35
    %s95 = ssub.s32 %s17, %s31
    %s96 = sor.u32 %s94, %s95
    %p97 = scmp.eq.s32.totalorder %s96, 0
    %s99 = sadd.s32 %s98, 1
    %s100 = scalar_select %p97, %s98, %s99
    %p103 = pneg %p97
    %p104 = scmp.eq.s32.totalorder %s9, 1
    %p105 = por %p103, %p104
    %p106 = scmp.ne.s32.totalorder %s98, %s101
    %p107 = scmp.eq.s32.totalorder %s9, 0
    %p108 = por %p106, %p107
    %p109 = scmp.ne.s32.totalorder %s98, %s101
    %p110 = scmp.eq.s32.totalorder %s14, 1
    %p111 = por %p109, %p110
    %p112 = scmp.ne.s32.totalorder %s101, %s102
    %p113 = scmp.eq.s32.totalorder %s14, 0
    %p114 = por %p112, %p113
    %p115 = scmp.ne.s32.totalorder %s101, %s102
    %p116 = scmp.eq.s32.totalorder %s15, 1
    %p117 = por %p115, %p116
    %p119 = scmp.ne.s32.totalorder %s102, %s118
    %p120 = scmp.eq.s32.totalorder %s15, 0
    %p121 = por %p119, %p120
    %s122 = ssub.s32 %s16, %s35
    %s123 = ssub.s32 %s18, %s27
    %s124 = sor.u32 %s122, %s123
    %s125 = ssub.s32 %s17, %s31
    %s126 = sor.u32 %s124, %s125
    %p127 = scmp.eq.s32.totalorder %s126, 0
    %s129 = sadd.s32 %s128, 1
    %s130 = scalar_select %p127, %s128, %s129
    %p133 = pneg %p127
    %p134 = scmp.eq.s32.totalorder %s9, 1
    %p135 = por %p133, %p134
    %p136 = scmp.ne.s32.totalorder %s128, %s131
    %p137 = scmp.eq.s32.totalorder %s9, 0
    %p138 = por %p136, %p137
    %p139 = scmp.ne.s32.totalorder %s128, %s131
    %p140 = scmp.eq.s32.totalorder %s14, 1
    %p141 = por %p139, %p140
    %p142 = scmp.ne.s32.totalorder %s131, %s132
    %p143 = scmp.eq.s32.totalorder %s14, 0
    %p144 = por %p142, %p143
    %p145 = scmp.ne.s32.totalorder %s131, %s132
    %p146 = scmp.eq.s32.totalorder %s15, 1
    %p147 = por %p145, %p146
    %p149 = scmp.ne.s32.totalorder %s132, %s148
    %p150 = scmp.eq.s32.totalorder %s15, 0
    %p151 = por %p149, %p150
    %p152 = scmp.le.s32.totalorder 1, %s9
    %p153 = scmp.lt.s32.totalorder %s9, 3
    %p154 = pnand %p152, %p153
    %p155 = pneg %p154
    // Predicated region
    $region9: #{_lambda_.33} parent=5 // pred_check
      _
    $region10: #{_lambda_.33} parent=5 // pred_check_branch
      %157 = sbr.rel (%p154) target = $region12
    $region11: #{_lambda_.33} parent=5 // pred_region
      %s158 = ssub.s32 %s9, 1
    $region12: #{_lambda_.33} parent=5 // pred_fallthru
      _
    %p159 = scmp.lt.s32.totalorder %s9, 2
    // Predicated region
    $region13: #{_lambda_.33} parent=5 // pred_check
      %p160 = pneg %p159
    $region14: #{_lambda_.33} parent=5 // pred_check_branch
      %162 = sbr.rel (%p160) target = $region16
    $region15: #{_lambda_.33} parent=5 // pred_region
      // Predicated region
      $region17: #{_lambda_.33} parent=15 // pred_check
        %p163 = pneg %p52
      $region18: #{_lambda_.33} parent=15 // pred_check_branch
        %165 = sbr.rel (%p163) target = $region20
      $region19: #{_lambda_.33} parent=15 // pred_region
        %p166 = scmp.lt.s32.totalorder %s16, 1
        %s167 = scalar_select %p166, %s16, 1
        %p168 = scmp.lt.s32.totalorder %s18, 0
        %s169 = scalar_select %p168, %s18, 0
        %p170 = scmp.lt.s32.totalorder %s17, 0
        %s171 = scalar_select %p170, %s17, 0
        %s172 = sadd.s32 %s171, %s169
        %s173 = sadd.s32 %s172, %s167
        %s174 = smul.addr %s173, 4
        %s175 = scalar_lea.vmem %s0, %s174
      $region20: #{_lambda_.33} parent=15 // pred_fallthru
        _
      // Predicated region
      $region21: #{_lambda_.33} parent=15 // pred_check
        %p176 = pneg %p80
      $region22: #{_lambda_.33} parent=15 // pred_check_branch
        %178 = sbr.rel (%p176) target = $region24
      $region23: #{_lambda_.33} parent=15 // pred_region
        %p179 = scmp.lt.s32.totalorder %s16, 1
        %s180 = scalar_select %p179, %s16, 1
        %p181 = scmp.lt.s32.totalorder %s17, 0
        %s182 = scalar_select %p181, %s17, 0
        %s183 = sadd.s32 %s182, %s180
        %s184 = scalar_lea.vmem %s1, %s183
      $region24: #{_lambda_.33} parent=15 // pred_fallthru
        _
      // Predicated region
      $region25: #{_lambda_.33} parent=15 // pred_check
        %p185 = pneg %p108
      $region26: #{_lambda_.33} parent=15 // pred_check_branch
        %187 = sbr.rel (%p185) target = $region28
      $region27: #{_lambda_.33} parent=15 // pred_region
        %p188 = scmp.lt.s32.totalorder %s16, 1
        %s189 = scalar_select %p188, %s16, 1
        %p190 = scmp.lt.s32.totalorder %s17, 0
        %s191 = scalar_select %p190, %s17, 0
        %s192 = sadd.s32 %s191, %s189
        %s193 = scalar_lea.vmem %s2, %s192
      $region28: #{_lambda_.33} parent=15 // pred_fallthru
        _
    $region16: #{_lambda_.33} parent=5 // pred_fallthru
      _
    %p194 = scmp.le.s32.totalorder 1, %s9
    %p195 = scmp.lt.s32.totalorder %s9, 3
    %p196 = pnand %p194, %p195
    %p197 = pneg %p196
    // Predicated region
    $region29: #{_lambda_.33} parent=5 // pred_check
      _
    $region30: #{_lambda_.33} parent=5 // pred_check_branch
      %199 = sbr.rel (%p196) target = $region32
    $region31: #{_lambda_.33} parent=5 // pred_region
      %s200 = ssub.s32 %s9, 1
      %p201 = scmp.lt.s32.totalorder %s19, 1
      %s202 = scalar_select %p201, %s19, 1
      %p203 = scmp.lt.s32.totalorder %s21, 0
      %s204 = scalar_select %p203, %s21, 0
      %p205 = scmp.lt.s32.totalorder %s20, 0
      %s206 = scalar_select %p205, %s20, 0
      %s207 = sadd.s32 %s206, %s204
      %s208 = sadd.s32 %s207, %s202
      %s209 = smul.addr %s208, 4
      %s210 = scalar_lea.vmem %s0, %s209
      %p211 = pneg %p58
      %p212 = pneg %p55
      %p213 = scmp.lt.s32.totalorder %s19, 1
      %s214 = scalar_select %p213, %s19, 1
      %p215 = scmp.lt.s32.totalorder %s20, 0
      %s216 = scalar_select %p215, %s20, 0
      %s217 = sadd.s32 %s216, %s214
      %s218 = scalar_lea.vmem %s1, %s217
      %p219 = pneg %p86
      %p220 = pneg %p83
      %p221 = scmp.lt.s32.totalorder %s19, 1
      %s222 = scalar_select %p221, %s19, 1
      %p223 = scmp.lt.s32.totalorder %s20, 0
      %s224 = scalar_select %p223, %s20, 0
      %s225 = sadd.s32 %s224, %s222
      %s226 = scalar_lea.vmem %s2, %s225
      %p227 = pneg %p114
      %p228 = pneg %p111
      %p229 = pneg %p144
      %p230 = pneg %p141
      %p231 = scmp.lt.s32.totalorder %s19, 1
      %s232 = scalar_select %p231, %s19, 1
      %p233 = scmp.lt.s32.totalorder %s21, 0
      %s234 = scalar_select %p233, %s21, 0
      %p235 = scmp.lt.s32.totalorder %s20, 0
      %s236 = scalar_select %p235, %s20, 0
      %s237 = sadd.s32 %s236, %s234
      %s238 = sadd.s32 %s237, %s232
      %s239 = smul.addr %s238, 4
      %s240 = scalar_lea.vmem %s3, %s239
      %p241 = scmp.lt.s32.totalorder %s19, 1
      %s242 = scalar_select %p241, %s19, 1
      %p243 = scmp.lt.s32.totalorder %s21, 0
      %s244 = scalar_select %p243, %s21, 0
      %p245 = scmp.lt.s32.totalorder %s20, 0
      %s246 = scalar_select %p245, %s20, 0
      %s247 = sadd.s32 %s246, %s244
      %s248 = sadd.s32 %s247, %s242
      %s249 = smul.addr %s248, 4
      %s250 = scalar_lea.vmem %s0, %s249
      %p251 = scmp.lt.s32.totalorder %s19, 1
      %s252 = scalar_select %p251, %s19, 1
      %p253 = scmp.lt.s32.totalorder %s20, 0
      %s254 = scalar_select %p253, %s20, 0
      %s255 = sadd.s32 %s254, %s252
      %s256 = scalar_lea.vmem %s1, %s255
      %p257 = scmp.lt.s32.totalorder %s19, 1
      %s258 = scalar_select %p257, %s19, 1
      %p259 = scmp.lt.s32.totalorder %s20, 0
      %s260 = scalar_select %p259, %s20, 0
      %s261 = sadd.s32 %s260, %s258
      %s262 = scalar_lea.vmem %s2, %s261
      %p263 = scmp.lt.s32.totalorder %s19, 1
      %s264 = scalar_select %p263, %s19, 1
      %p265 = scmp.lt.s32.totalorder %s21, 0
      %s266 = scalar_select %p265, %s21, 0
      %p267 = scmp.lt.s32.totalorder %s20, 0
      %s268 = scalar_select %p267, %s20, 0
      %s269 = sadd.s32 %s268, %s266
      %s270 = sadd.s32 %s269, %s264
      %s271 = smul.addr %s270, 4
      %s272 = scalar_lea.vmem %s3, %s271
      %v273 = vld [vmem:[%s250] sm:$0xf]
      %v274 = vunpack.c.l.bf16 %v273
      %v275 = vld [vmem:[%s256] sm:$0x1]
      %v277 = vlaneseq
      %v278 = vshrl.u32 %v277, 7
      %v279 = vsub.s32 0, %v278
      %v280 = vrot.slane %v275, %v279
      %v282 = vsub.f32 %v274, %v280
      %v283 = vld [vmem:[%s262] sm:$0x1]
      %v285 = vlaneseq
      %v286 = vshrl.u32 %v285, 7
      %v287 = vsub.s32 0, %v286
      %v288 = vrot.slane %v283, %v287
      %v290 = vmul.f32 %v282, %v288
      %v291 = vpack.c.bf16 %v290, %v290
      %vm292 = vcmask 519168
      %293 = vst.msk [vmem:[%s272] sm:$0xf] %vm292, %v291
      %p294 = scmp.lt.s32.totalorder %s19, 1
      %s295 = scalar_select %p294, %s19, 1
      %p296 = scmp.lt.s32.totalorder %s21, 0
      %s297 = scalar_select %p296, %s21, 0
      %p298 = scmp.lt.s32.totalorder %s20, 0
      %s299 = scalar_select %p298, %s20, 0
      %s300 = sadd.s32 %s299, %s297
      %s301 = sadd.s32 %s300, %s295
      %s302 = smul.addr %s301, 4
      %s303 = scalar_lea.vmem %s3, %s302
      // Predicated region
      $region33: #{_lambda_.33} parent=31 // pred_check
        %p304 = pneg %p141
      $region34: #{_lambda_.33} parent=31 // pred_check_branch
        %306 = sbr.rel (%p304) target = $region36
      $region35: #{_lambda_.33} parent=31 // pred_region
        _
      $region36: #{_lambda_.33} parent=31 // pred_fallthru
        _
    $region32: #{_lambda_.33} parent=5 // pred_fallthru
      _
    %p307 = scmp.le.s32.totalorder 2, %s9
    // Predicated region
    $region37: #{_lambda_.33} parent=5 // pred_check
      %p308 = pneg %p307
    $region38: #{_lambda_.33} parent=5 // pred_check_branch
      %310 = sbr.rel (%p308) target = $region40
    $region39: #{_lambda_.33} parent=5 // pred_region
      %s311 = ssub.s32 %s9, 2
      // Predicated region
      $region41: #{_lambda_.33} parent=39 // pred_check
        %p312 = pneg %p147
      $region42: #{_lambda_.33} parent=39 // pred_check_branch
        %314 = sbr.rel (%p312) target = $region44
      $region43: #{_lambda_.33} parent=39 // pred_region
        %p315 = scmp.lt.s32.totalorder %s22, 1
        %s316 = scalar_select %p315, %s22, 1
        %p317 = scmp.lt.s32.totalorder %s24, 0
        %s318 = scalar_select %p317, %s24, 0
        %p319 = scmp.lt.s32.totalorder %s23, 0
        %s320 = scalar_select %p319, %s23, 0
        %s321 = sadd.s32 %s320, %s318
        %s322 = sadd.s32 %s321, %s316
        %s323 = smul.addr %s322, 4
        %s324 = scalar_lea.vmem %s3, %s323
      $region44: #{_lambda_.33} parent=39 // pred_fallthru
        _
    $region40: #{_lambda_.33} parent=5 // pred_fallthru
      _
  $region6: #{_lambda_.33} parent=0 // loop_footer
    %s13 = sadd.s32 1, %s9
  $region7: #{_lambda_.33} parent=0 // loop_footer_branch
    %8 = sbr.rel target = $region3
  $region8: #{_lambda_.33} parent=0 // loop_exit
    _

// kernel: _lambda_.32
$region0: #{_lambda_.32}
  #allocation0 [shape = 'u32[]', space=smem, size = 0x4, offset = 0x4, fixed_abs, tag = 'smem constant byte address 0x4 - core index']
  #allocation1 [shape = 'u32[144,128]{1,0:T(1,128)}', space=vmem, size = 0x12000, scoped, tag = 'internal scratch']
  #allocation2 [shape = 'f32[1,1,64]{2,1,0:T(1,128)}', space=vmem, size = 0x200, scoped, tag = 'scratch operand']
  #allocation3 [shape = 'f32[1,1,64]{2,1,0:T(1,128)}', space=vmem, size = 0x200, scoped, tag = 'scratch operand']
  %s0 = inlined_call_operand.vmem [shape: bf16[2,8,64], index: 0, kind: input, shape index: {}]
  %s1 = inlined_call_operand.vmem [shape: f32[2,1,64], index: 1, kind: output, shape index: {0}]
  %s2 = inlined_call_operand.vmem [shape: f32[2,1,64], index: 2, kind: output, shape index: {1}]
  %3 = xla_tuple %s1, %s2
  %s4 = sld [smem:[#allocation0]]
  $region53: #{_lambda_.32} parent=0
    _
  %s6 = ssub.s32 1, %s4
  %s7 = scalar_select 0, %s6, %s4
  loop: start=0, step=1, limit=4
  $region2: #{_lambda_.32} parent=0 // loop_pre_header
    _
  $region3: #{_lambda_.32} parent=0 // loop_header
    %s9 = sphi 0, %s13
    %p10 = scmp.ge.s32.totalorder %s9, 4
    %s16 = sphi 0, %s35
    %s17 = sphi 0, %s31
    %s18 = sphi 0, %s27
    %s19 = sphi 0, %s16
    %s20 = sphi 0, %s17
    %s21 = sphi 0, %s18
    %s22 = sphi 0, %s19
    %s23 = sphi 0, %s20
    %s24 = sphi 0, %s21
    %s42 = sphi 0, %s44
    %s45 = sphi 0, %s42
    %s46 = sphi 0, %s45
    %s62 = sphi 0, %s46
    %s70 = sphi 0, %s72
    %s73 = sphi 0, %s70
    %s74 = sphi 0, %s73
    %s90 = sphi 0, %s74
    %s98 = sphi 0, %s100
    %s101 = sphi 0, %s98
    %s102 = sphi 0, %s101
    %s118 = sphi 0, %s102
  $region4: #{_lambda_.32} parent=0 // loop_header_branch
    %12 = sbr.rel (%p10) target = $region8
  $region5: #{_lambda_.32} parent=0 // loop_body
    %s14 = ssub.s32 %s9, 1
    %s15 = ssub.s32 %s9, 2
    %s25 = sadd.s32 1, %s18
    %p26 = scmp.ge.s32.totalorder %s25, 1
    %s27 = scalar_select %p26, 0, %s25
    %s28 = sadd.s32 1, %s17
    %s29 = scalar_select %p26, %s28, %s17
    %p30 = scmp.ge.s32.totalorder %s29, 1
    %s31 = scalar_select %p30, 0, %s29
    %s32 = sadd.s32 1, %s16
    %s33 = scalar_select %p30, %s32, %s16
    %p34 = scmp.ge.s32.totalorder %s33, 2
    %s35 = scalar_select %p34, 0, %s33
    %s36 = ssub.s32 %s16, %s35
    %s37 = ssub.s32 %s18, %s27
    %s38 = sor.u32 %s36, %s37
    %s39 = ssub.s32 %s17, %s31
    %s40 = sor.u32 %s38, %s39
    %p41 = scmp.eq.s32.totalorder %s40, 0
    %s43 = sadd.s32 %s42, 1
    %s44 = scalar_select %p41, %s42, %s43
    %p47 = pneg %p41
    %p48 = scmp.eq.s32.totalorder %s9, 1
    %p49 = por %p47, %p48
    %p50 = scmp.ne.s32.totalorder %s42, %s45
    %p51 = scmp.eq.s32.totalorder %s9, 0
    %p52 = por %p50, %p51
    %p53 = scmp.ne.s32.totalorder %s42, %s45
    %p54 = scmp.eq.s32.totalorder %s14, 1
    %p55 = por %p53, %p54
    %p56 = scmp.ne.s32.totalorder %s45, %s46
    %p57 = scmp.eq.s32.totalorder %s14, 0
    %p58 = por %p56, %p57
    %p59 = scmp.ne.s32.totalorder %s45, %s46
    %p60 = scmp.eq.s32.totalorder %s15, 1
    %p61 = por %p59, %p60
    %p63 = scmp.ne.s32.totalorder %s46, %s62
    %p64 = scmp.eq.s32.totalorder %s15, 0
    %p65 = por %p63, %p64
    %s66 = ssub.s32 %s16, %s35
    %s67 = ssub.s32 %s17, %s31
    %s68 = sor.u32 %s66, %s67
    %p69 = scmp.eq.s32.totalorder %s68, 0
    %s71 = sadd.s32 %s70, 1
    %s72 = scalar_select %p69, %s70, %s71
    %p75 = pneg %p69
    %p76 = scmp.eq.s32.totalorder %s9, 1
    %p77 = por %p75, %p76
    %p78 = scmp.ne.s32.totalorder %s70, %s73
    %p79 = scmp.eq.s32.totalorder %s9, 0
    %p80 = por %p78, %p79
    %p81 = scmp.ne.s32.totalorder %s70, %s73
    %p82 = scmp.eq.s32.totalorder %s14, 1
    %p83 = por %p81, %p82
    %p84 = scmp.ne.s32.totalorder %s73, %s74
    %p85 = scmp.eq.s32.totalorder %s14, 0
    %p86 = por %p84, %p85
    %p87 = scmp.ne.s32.totalorder %s73, %s74
    %p88 = scmp.eq.s32.totalorder %s15, 1
    %p89 = por %p87, %p88
    %p91 = scmp.ne.s32.totalorder %s74, %s90
    %p92 = scmp.eq.s32.totalorder %s15, 0
    %p93 = por %p91, %p92
    %s94 = ssub.s32 %s16, %s35
    %s95 = ssub.s32 %s17, %s31
    %s96 = sor.u32 %s94, %s95
    %p97 = scmp.eq.s32.totalorder %s96, 0
    %s99 = sadd.s32 %s98, 1
    %s100 = scalar_select %p97, %s98, %s99
    %p103 = pneg %p97
    %p104 = scmp.eq.s32.totalorder %s9, 1
    %p105 = por %p103, %p104
    %p106 = scmp.ne.s32.totalorder %s98, %s101
    %p107 = scmp.eq.s32.totalorder %s9, 0
    %p108 = por %p106, %p107
    %p109 = scmp.ne.s32.totalorder %s98, %s101
    %p110 = scmp.eq.s32.totalorder %s14, 1
    %p111 = por %p109, %p110
    %p112 = scmp.ne.s32.totalorder %s101, %s102
    %p113 = scmp.eq.s32.totalorder %s14, 0
    %p114 = por %p112, %p113
    %p115 = scmp.ne.s32.totalorder %s101, %s102
    %p116 = scmp.eq.s32.totalorder %s15, 1
    %p117 = por %p115, %p116
    %p119 = scmp.ne.s32.totalorder %s102, %s118
    %p120 = scmp.eq.s32.totalorder %s15, 0
    %p121 = por %p119, %p120
    %p122 = scmp.le.s32.totalorder 1, %s9
    %p123 = scmp.lt.s32.totalorder %s9, 3
    %p124 = pnand %p122, %p123
    %p125 = pneg %p124
    // Predicated region
    $region9: #{_lambda_.32} parent=5 // pred_check
      _
    $region10: #{_lambda_.32} parent=5 // pred_check_branch
      %127 = sbr.rel (%p124) target = $region12
    $region11: #{_lambda_.32} parent=5 // pred_region
      %s128 = ssub.s32 %s9, 1
    $region12: #{_lambda_.32} parent=5 // pred_fallthru
      _
    %p129 = scmp.lt.s32.totalorder %s9, 2
    // Predicated region
    $region13: #{_lambda_.32} parent=5 // pred_check
      %p130 = pneg %p129
    $region14: #{_lambda_.32} parent=5 // pred_check_branch
      %132 = sbr.rel (%p130) target = $region16
    $region15: #{_lambda_.32} parent=5 // pred_region
      // Predicated region
      $region17: #{_lambda_.32} parent=15 // pred_check
        %p133 = pneg %p52
      $region18: #{_lambda_.32} parent=15 // pred_check_branch
        %135 = sbr.rel (%p133) target = $region20
      $region19: #{_lambda_.32} parent=15 // pred_region
        %p136 = scmp.lt.s32.totalorder %s16, 1
        %s137 = scalar_select %p136, %s16, 1
        %p138 = scmp.lt.s32.totalorder %s18, 0
        %s139 = scalar_select %p138, %s18, 0
        %p140 = scmp.lt.s32.totalorder %s17, 0
        %s141 = scalar_select %p140, %s17, 0
        %s142 = sadd.s32 %s141, %s139
        %s143 = sadd.s32 %s142, %s137
        %s144 = smul.addr %s143, 4
        %s145 = scalar_lea.vmem %s0, %s144
      $region20: #{_lambda_.32} parent=15 // pred_fallthru
        _
    $region16: #{_lambda_.32} parent=5 // pred_fallthru
      _
    %p146 = scmp.le.s32.totalorder 1, %s9
    %p147 = scmp.lt.s32.totalorder %s9, 3
    %p148 = pnand %p146, %p147
    %p149 = pneg %p148
    // Predicated region
    $region21: #{_lambda_.32} parent=5 // pred_check
      _
    $region22: #{_lambda_.32} parent=5 // pred_check_branch
      %151 = sbr.rel (%p148) target = $region24
    $region23: #{_lambda_.32} parent=5 // pred_region
      %s152 = ssub.s32 %s9, 1
      %p153 = scmp.lt.s32.totalorder %s19, 1
      %s154 = scalar_select %p153, %s19, 1
      %p155 = scmp.lt.s32.totalorder %s21, 0
      %s156 = scalar_select %p155, %s21, 0
      %p157 = scmp.lt.s32.totalorder %s20, 0
      %s158 = scalar_select %p157, %s20, 0
      %s159 = sadd.s32 %s158, %s156
      %s160 = sadd.s32 %s159, %s154
      %s161 = smul.addr %s160, 4
      %s162 = scalar_lea.vmem %s0, %s161
      %p163 = pneg %p58
      %p164 = pneg %p55
      %p165 = pneg %p86
      %p166 = pneg %p83
      %p167 = scmp.lt.s32.totalorder %s19, 1
      %s168 = scalar_select %p167, %s19, 1
      %p169 = scmp.lt.s32.totalorder %s20, 0
      %s170 = scalar_select %p169, %s20, 0
      %s171 = sadd.s32 %s170, %s168
      %s172 = scalar_lea.vmem %s1, %s171
      %p173 = pneg %p114
      %p174 = pneg %p111
      %p175 = scmp.lt.s32.totalorder %s19, 1
      %s176 = scalar_select %p175, %s19, 1
      %p177 = scmp.lt.s32.totalorder %s20, 0
      %s178 = scalar_select %p177, %s20, 0
      %s179 = sadd.s32 %s178, %s176
      %s180 = scalar_lea.vmem %s2, %s179
      %p181 = scmp.lt.s32.totalorder %s19, 1
      %s182 = scalar_select %p181, %s19, 1
      %p183 = scmp.lt.s32.totalorder %s21, 0
      %s184 = scalar_select %p183, %s21, 0
      %p185 = scmp.lt.s32.totalorder %s20, 0
      %s186 = scalar_select %p185, %s20, 0
      %s187 = sadd.s32 %s186, %s184
      %s188 = sadd.s32 %s187, %s182
      %s189 = smul.addr %s188, 4
      %s190 = scalar_lea.vmem %s0, %s189
      %p191 = scmp.lt.s32.totalorder %s19, 1
      %s192 = scalar_select %p191, %s19, 1
      %p193 = scmp.lt.s32.totalorder %s20, 0
      %s194 = scalar_select %p193, %s20, 0
      %s195 = sadd.s32 %s194, %s192
      %s196 = scalar_lea.vmem %s1, %s195
      %p197 = scmp.lt.s32.totalorder %s19, 1
      %s198 = scalar_select %p197, %s19, 1
      %p199 = scmp.lt.s32.totalorder %s20, 0
      %s200 = scalar_select %p199, %s20, 0
      %s201 = sadd.s32 %s200, %s198
      %s202 = scalar_lea.vmem %s2, %s201
      %p203 = scmp.eq.s32.totalorder %s21, 0
      // Predicated region
      $region25: #{_lambda_.32} parent=23 // pred_check
        %p204 = pneg %p203
      $region26: #{_lambda_.32} parent=23 // pred_check_branch
        %206 = sbr.rel (%p204) target = $region28
      $region27: #{_lambda_.32} parent=23 // pred_region
        %vm207 = vcmask 516096
        %208 = vst.msk [vmem:[#allocation2] sm:$0x1] %vm207, 0.0
        %209 = vst.msk [vmem:[#allocation3] sm:$0x1] %vm207, 0.0
      $region28: #{_lambda_.32} parent=23 // pred_fallthru
        _
      %v210 = vld [vmem:[%s190] sm:$0xf]
      %v211 = vunpack.c.l.bf16 %v210
      %v212 = vld [vmem:[#allocation2] sm:$0x1]
      %vm213 = vcmask 523264
      %v214 = vsel %vm213, %v211, 0.0
      %v215 = vrot.slane %v214, 4
      %v216 = vadd.f32 %v214, %v215
      %v217 = vrot.slane %v216, 2
      %v218 = vadd.f32 %v216, %v217
      %v219 = vrot.slane %v218, 1
      %v220 = vadd.f32 %v218, %v219
      %v221 = vadd.f32 %v212, %v220
      %vm222 = vcmask 516096
      %223 = vst.msk [vmem:[#allocation2] sm:$0x1] %vm222, %v221
      %v224 = vld [vmem:[#allocation3] sm:$0x1]
      %v225 = vmul.f32 %v211, %v211
      %v226 = vsel %vm213, %v225, 0.0
      %v227 = vrot.slane %v226, 4
      %v228 = vadd.f32 %v226, %v227
      %v229 = vrot.slane %v228, 2
      %v230 = vadd.f32 %v228, %v229
      %v231 = vrot.slane %v230, 1
      %v232 = vadd.f32 %v230, %v231
      %v233 = vadd.f32 %v224, %v232
      %234 = vst.msk [vmem:[#allocation3] sm:$0x1] %vm222, %v233
      // Predicated region
      $region29: #{_lambda_.32} parent=23 // pred_check
        %p235 = pneg %p203
      $region30: #{_lambda_.32} parent=23 // pred_check_branch
        %237 = sbr.rel (%p235) target = $region32
      $region31: #{_lambda_.32} parent=23 // pred_region
        %v238 = vld [vmem:[#allocation2] sm:$0x1]
        %v239 = vmul.f32 %v238, 0.25
        %v240 = vld [vmem:[#allocation3] sm:$0x1]
        %v241 = vmul.f32 %v240, 0.25
        %v242 = vmul.f32 %v239, %v239
        %v243 = vsub.f32 %v241, %v242
        %244 = vst.msk [vmem:[%s196] sm:$0x1] %vm222, %v239
        %v245 = vadd.f32 %v243, 1e-05
        %v246 = vrsqrt.pop %v245
        %247 = vst.msk [vmem:[%s202] sm:$0x1] %vm222, %v246
      $region32: #{_lambda_.32} parent=23 // pred_fallthru
        _
      %p248 = scmp.lt.s32.totalorder %s19, 1
      %s249 = scalar_select %p248, %s19, 1
      %p250 = scmp.lt.s32.totalorder %s20, 0
      %s251 = scalar_select %p250, %s20, 0
      %s252 = sadd.s32 %s251, %s249
      %s253 = scalar_lea.vmem %s1, %s252
      %p254 = scmp.lt.s32.totalorder %s19, 1
      %s255 = scalar_select %p254, %s19, 1
      %p256 = scmp.lt.s32.totalorder %s20, 0
      %s257 = scalar_select %p256, %s20, 0
      %s258 = sadd.s32 %s257, %s255
      %s259 = scalar_lea.vmem %s2, %s258
      // Predicated region
      $region33: #{_lambda_.32} parent=23 // pred_check
        %p260 = pneg %p83
      $region34: #{_lambda_.32} parent=23 // pred_check_branch
        %262 = sbr.rel (%p260) target = $region36
      $region35: #{_lambda_.32} parent=23 // pred_region
        _
      $region36: #{_lambda_.32} parent=23 // pred_fallthru
        _
      // Predicated region
      $region37: #{_lambda_.32} parent=23 // pred_check
        %p263 = pneg %p111
      $region38: #{_lambda_.32} parent=23 // pred_check_branch
        %265 = sbr.rel (%p263) target = $region40
      $region39: #{_lambda_.32} parent=23 // pred_region
        _
      $region40: #{_lambda_.32} parent=23 // pred_fallthru
        _
    $region24: #{_lambda_.32} parent=5 // pred_fallthru
      _
    %p266 = scmp.le.s32.totalorder 2, %s9
    // Predicated region
    $region41: #{_lambda_.32} parent=5 // pred_check
      %p267 = pneg %p266
    $region42: #{_lambda_.32} parent=5 // pred_check_branch
      %269 = sbr.rel (%p267) target = $region44
    $region43: #{_lambda_.32} parent=5 // pred_region
      %s270 = ssub.s32 %s9, 2
      // Predicated region
      $region45: #{_lambda_.32} parent=43 // pred_check
        %p271 = pneg %p89
      $region46: #{_lambda_.32} parent=43 // pred_check_branch
        %273 = sbr.rel (%p271) target = $region48
      $region47: #{_lambda_.32} parent=43 // pred_region
        %p274 = scmp.lt.s32.totalorder %s22, 1
        %s275 = scalar_select %p274, %s22, 1
        %p276 = scmp.lt.s32.totalorder %s23, 0
        %s277 = scalar_select %p276, %s23, 0
        %s278 = sadd.s32 %s277, %s275
        %s279 = scalar_lea.vmem %s1, %s278
      $region48: #{_lambda_.32} parent=43 // pred_fallthru
        _
      // Predicated region
      $region49: #{_lambda_.32} parent=43 // pred_check
        %p280 = pneg %p117
      $region50: #{_lambda_.32} parent=43 // pred_check_branch
        %282 = sbr.rel (%p280) target = $region52
      $region51: #{_lambda_.32} parent=43 // pred_region
        %p283 = scmp.lt.s32.totalorder %s22, 1
        %s284 = scalar_select %p283, %s22, 1
        %p285 = scmp.lt.s32.totalorder %s23, 0
        %s286 = scalar_select %p285, %s23, 0
        %s287 = sadd.s32 %s286, %s284
        %s288 = scalar_lea.vmem %s2, %s287
      $region52: #{_lambda_.32} parent=43 // pred_fallthru
        _
    $region44: #{_lambda_.32} parent=5 // pred_fallthru
      _
  $region6: #{_lambda_.32} parent=0 // loop_footer
    %s13 = sadd.s32 1, %s9
  $region7: #{_lambda_.32} parent=0 // loop_footer_branch
    %8 = sbr.rel target = $region3
  $region8: #{_lambda_.32} parent=0 // loop_exit
    _

// kernel: _lambda_.31
$region0: #{_lambda_.31}
  #allocation0 [shape = 'u32[]', space=smem, size = 0x4, offset = 0x4, fixed_abs, tag = 'smem constant byte address 0x4 - core index']
  #allocation1 [shape = 'u32[144,128]{1,0:T(1,128)}', space=vmem, size = 0x12000, scoped, tag = 'internal scratch']
  %s0 = inlined_call_operand.vmem [shape: bf16[16,512], index: 0, kind: input, shape index: {}]
  %s1 = inlined_call_operand.vmem [shape: bf16[512,128], index: 1, kind: input, shape index: {}]
  %s2 = inlined_call_operand.vmem [shape: f32[1,128], index: 2, kind: input, shape index: {}]
  %s3 = inlined_call_operand.vmem [shape: bf16[16,128], index: 3, kind: output, shape index: {}]
  %s4 = sld [smem:[#allocation0]]
  $region22: #{_lambda_.31} parent=0
    _
  %s6 = ssub.s32 1, %s4
  %s7 = scalar_select 0, %s6, %s4
  // Predicated region
  $region2: #{_lambda_.31} parent=0 // pred_check
    _
  $region3: #{_lambda_.31} parent=0 // pred_check_branch
    %9 = sbr.rel (0) target = $region5
  $region4: #{_lambda_.31} parent=0 // pred_region
    _
  $region5: #{_lambda_.31} parent=0 // pred_fallthru
    _
  // Predicated region
  $region6: #{_lambda_.31} parent=0 // pred_check
    _
  $region7: #{_lambda_.31} parent=0 // pred_check_branch
    %11 = sbr.rel (0) target = $region9
  $region8: #{_lambda_.31} parent=0 // pred_region
    _
  $region9: #{_lambda_.31} parent=0 // pred_fallthru
    _
  // Predicated region
  $region10: #{_lambda_.31} parent=0 // pred_check
    _
  $region11: #{_lambda_.31} parent=0 // pred_check_branch
    %13 = sbr.rel (0) target = $region13
  $region12: #{_lambda_.31} parent=0 // pred_region
    _
  $region13: #{_lambda_.31} parent=0 // pred_fallthru
    _
  %v16 = vld [vmem:[%s0] sm:$0xff]
  %v17 = vld [vmem:[%s0 + $0x8] sm:$0xff]
  %v18 = vld [vmem:[%s0 + $0x10] sm:$0xff]
  %v19 = vld [vmem:[%s0 + $0x18] sm:$0xff]
  %vm20 = vcmp.ge.bf16.partialorder %v16, 0
  %vm21 = vcmp.ge.bf16.partialorder %v17, 0
  %vm22 = vcmp.ge.bf16.partialorder %v18, 0
  %vm23 = vcmp.ge.bf16.partialorder %v19, 0
  %v24 = vmul.bf16 %v16, 1045249613
  %v25 = vmul.bf16 %v17, 1045249613
  %v26 = vmul.bf16 %v18, 1045249613
  %v27 = vmul.bf16 %v19, 1045249613
  %v28 = vsel %vm20, %v16, %v24
  %v29 = vsel %vm21, %v17, %v25
  %v30 = vsel %vm22, %v18, %v26
  %v31 = vsel %vm23, %v19, %v27
  %v32 = vld [vmem:[%s1] sm:$0xf]
  %v33 = vld [vmem:[%s1 + $0x4] sm:$0xf]
  %v34 = vld [vmem:[%s1 + $0x8] sm:$0xf]
  %v35 = vld [vmem:[%s1 + $0xc] sm:$0xf]
  %v36 = vld [vmem:[%s1 + $0x10] sm:$0xf]
  %v37 = vld [vmem:[%s1 + $0x14] sm:$0xf]
  %v38 = vld [vmem:[%s1 + $0x18] sm:$0xf]
  %v39 = vld [vmem:[%s1 + $0x1c] sm:$0xf]
  %v40 = vld [vmem:[%s1 + $0x20] sm:$0xf]
  %v41 = vld [vmem:[%s1 + $0x24] sm:$0xf]
  %v42 = vld [vmem:[%s1 + $0x28] sm:$0xf]
  %v43 = vld [vmem:[%s1 + $0x2c] sm:$0xf]
  %v44 = vld [vmem:[%s1 + $0x30] sm:$0xf]
  %v45 = vld [vmem:[%s1 + $0x34] sm:$0xf]
  %v46 = vld [vmem:[%s1 + $0x38] sm:$0xf]
  %v47 = vld [vmem:[%s1 + $0x3c] sm:$0xf]
  %v48 = vld [vmem:[%s1 + $0x40] sm:$0xf]
  %v49 = vld [vmem:[%s1 + $0x44] sm:$0xf]
  %v50 = vld [vmem:[%s1 + $0x48] sm:$0xf]
  %v51 = vld [vmem:[%s1 + $0x4c] sm:$0xf]
  %v52 = vld [vmem:[%s1 + $0x50] sm:$0xf]
  %v53 = vld [vmem:[%s1 + $0x54] sm:$0xf]
  %v54 = vld [vmem:[%s1 + $0x58] sm:$0xf]
  %v55 = vld [vmem:[%s1 + $0x5c] sm:$0xf]
  %v56 = vld [vmem:[%s1 + $0x60] sm:$0xf]
  %v57 = vld [vmem:[%s1 + $0x64] sm:$0xf]
  %v58 = vld [vmem:[%s1 + $0x68] sm:$0xf]
  %v59 = vld [vmem:[%s1 + $0x6c] sm:$0xf]
  %v60 = vld [vmem:[%s1 + $0x70] sm:$0xf]
  %v61 = vld [vmem:[%s1 + $0x74] sm:$0xf]
  %v62 = vld [vmem:[%s1 + $0x78] sm:$0xf]
  %v63 = vld [vmem:[%s1 + $0x7c] sm:$0xf]
  %v64 = vld [vmem:[%s1 + $0x80] sm:$0xf]
  %v65 = vld [vmem:[%s1 + $0x84] sm:$0xf]
  %v66 = vld [vmem:[%s1 + $0x88] sm:$0xf]
  %v67 = vld [vmem:[%s1 + $0x8c] sm:$0xf]
  %v68 = vld [vmem:[%s1 + $0x90] sm:$0xf]
  %v69 = vld [vmem:[%s1 + $0x94] sm:$0xf]
  %v70 = vld [vmem:[%s1 + $0x98] sm:$0xf]
  %v71 = vld [vmem:[%s1 + $0x9c] sm:$0xf]
  %v72 = vld [vmem:[%s1 + $0xa0] sm:$0xf]
  %v73 = vld [vmem:[%s1 + $0xa4] sm:$0xf]
  %v74 = vld [vmem:[%s1 + $0xa8] sm:$0xf]
  %v75 = vld [vmem:[%s1 + $0xac] sm:$0xf]
  %v76 = vld [vmem:[%s1 + $0xb0] sm:$0xf]
  %v77 = vld [vmem:[%s1 + $0xb4] sm:$0xf]
  %v78 = vld [vmem:[%s1 + $0xb8] sm:$0xf]
  %v79 = vld [vmem:[%s1 + $0xbc] sm:$0xf]
  %v80 = vld [vmem:[%s1 + $0xc0] sm:$0xf]
  %v81 = vld [vmem:[%s1 + $0xc4] sm:$0xf]
  %v82 = vld [vmem:[%s1 + $0xc8] sm:$0xf]
  %v83 = vld [vmem:[%s1 + $0xcc] sm:$0xf]
  %v84 = vld [vmem:[%s1 + $0xd0] sm:$0xf]
  %v85 = vld [vmem:[%s1 + $0xd4] sm:$0xf]
  %v86 = vld [vmem:[%s1 + $0xd8] sm:$0xf]
  %v87 = vld [vmem:[%s1 + $0xdc] sm:$0xf]
  %v88 = vld [vmem:[%s1 + $0xe0] sm:$0xf]
  %v89 = vld [vmem:[%s1 + $0xe4] sm:$0xf]
  %v90 = vld [vmem:[%s1 + $0xe8] sm:$0xf]
  %v91 = vld [vmem:[%s1 + $0xec] sm:$0xf]
  %v92 = vld [vmem:[%s1 + $0xf0] sm:$0xf]
  %v93 = vld [vmem:[%s1 + $0xf4] sm:$0xf]
  %v94 = vld [vmem:[%s1 + $0xf8] sm:$0xf]
  %v95 = vld [vmem:[%s1 + $0xfc] sm:$0xf]
  %v96 = vld [vmem:[%s2] sm:$0x1]
  %v98 = vlaneseq
  %v99 = vshrl.u32 %v98, 7
  %v100 = vsub.s32 0, %v99
  %v101 = vrot.slane %v96, %v100
  %v107 = vunpack.c.l.b16 %v28
  %v108 = vunpack.c.h.b16 %v28
  %v109 = vunpack.c.l.b16 %v29
  %v110 = vunpack.c.h.b16 %v29
  %v111 = vunpack.c.l.b16 %v30
  %v112 = vunpack.c.h.b16 %v30
  %v113 = vunpack.c.l.b16 %v31
  %v114 = vunpack.c.h.b16 %v31
  %v115 = vpack.c.b16 %v111, %v107
  %v116 = vpack.c.b16 %v112, %v108
  %v117 = vpack.c.b16 %v113, %v109
  %v118 = vpack.c.b16 %v114, %v110
  %v187 = vunpack.c.l.b16 %v32
  %v188 = vunpack.c.l.b16 %v33
  %v189 = vunpack.c.l.b16 %v34
  %v190 = vunpack.c.l.b16 %v35
  %v191 = vunpack.c.l.b16 %v36
  %v192 = vunpack.c.l.b16 %v37
  %v193 = vunpack.c.l.b16 %v38
  %v194 = vunpack.c.l.b16 %v39
  %v195 = vunpack.c.l.b16 %v40
  %v196 = vunpack.c.l.b16 %v41
  %v197 = vunpack.c.l.b16 %v42
  %v198 = vunpack.c.l.b16 %v43
  %v199 = vunpack.c.l.b16 %v44
  %v200 = vunpack.c.l.b16 %v45
  %v201 = vunpack.c.l.b16 %v46
  %v202 = vunpack.c.l.b16 %v47
  %v203 = vunpack.c.l.b16 %v48
  %v204 = vunpack.c.l.b16 %v49
  %v205 = vunpack.c.l.b16 %v50
  %v206 = vunpack.c.l.b16 %v51
  %v207 = vunpack.c.l.b16 %v52
  %v208 = vunpack.c.l.b16 %v53
  %v209 = vunpack.c.l.b16 %v54
  %v210 = vunpack.c.l.b16 %v55
  %v211 = vunpack.c.l.b16 %v56
  %v212 = vunpack.c.l.b16 %v57
  %v213 = vunpack.c.l.b16 %v58
  %v214 = vunpack.c.l.b16 %v59
  %v215 = vunpack.c.l.b16 %v60
  %v216 = vunpack.c.l.b16 %v61
  %v217 = vunpack.c.l.b16 %v62
  %v218 = vunpack.c.l.b16 %v63
  %v219 = vunpack.c.l.b16 %v64
  %v220 = vunpack.c.l.b16 %v65
  %v221 = vunpack.c.l.b16 %v66
  %v222 = vunpack.c.l.b16 %v67
  %v223 = vunpack.c.l.b16 %v68
  %v224 = vunpack.c.l.b16 %v69
  %v225 = vunpack.c.l.b16 %v70
  %v226 = vunpack.c.l.b16 %v71
  %v227 = vunpack.c.l.b16 %v72
  %v228 = vunpack.c.l.b16 %v73
  %v229 = vunpack.c.l.b16 %v74
  %v230 = vunpack.c.l.b16 %v75
  %v231 = vunpack.c.l.b16 %v76
  %v232 = vunpack.c.l.b16 %v77
  %v233 = vunpack.c.l.b16 %v78
  %v234 = vunpack.c.l.b16 %v79
  %v235 = vunpack.c.l.b16 %v80
  %v236 = vunpack.c.l.b16 %v81
  %v237 = vunpack.c.l.b16 %v82
  %v238 = vunpack.c.l.b16 %v83
  %v239 = vunpack.c.l.b16 %v84
  %v240 = vunpack.c.l.b16 %v85
  %v241 = vunpack.c.l.b16 %v86
  %v242 = vunpack.c.l.b16 %v87
  %v243 = vunpack.c.l.b16 %v88
  %v244 = vunpack.c.l.b16 %v89
  %v245 = vunpack.c.l.b16 %v90
  %v246 = vunpack.c.l.b16 %v91
  %v247 = vunpack.c.l.b16 %v92
  %v248 = vunpack.c.l.b16 %v93
  %v249 = vunpack.c.l.b16 %v94
  %v250 = vunpack.c.l.b16 %v95
  %v251 = vpack.c.b16 %v188, %v187
  %v252 = vpack.c.b16 %v190, %v189
  %v253 = vpack.c.b16 %v192, %v191
  %v254 = vpack.c.b16 %v194, %v193
  %v255 = vpack.c.b16 %v196, %v195
  %v256 = vpack.c.b16 %v198, %v197
  %v257 = vpack.c.b16 %v200, %v199
  %v258 = vpack.c.b16 %v202, %v201
  %v259 = vpack.c.b16 %v204, %v203
  %v260 = vpack.c.b16 %v206, %v205
  %v261 = vpack.c.b16 %v208, %v207
  %v262 = vpack.c.b16 %v210, %v209
  %v263 = vpack.c.b16 %v212, %v211
  %v264 = vpack.c.b16 %v214, %v213
  %v265 = vpack.c.b16 %v216, %v215
  %v266 = vpack.c.b16 %v218, %v217
  %v267 = vpack.c.b16 %v220, %v219
  %v268 = vpack.c.b16 %v222, %v221
  %v269 = vpack.c.b16 %v224, %v223
  %v270 = vpack.c.b16 %v226, %v225
  %v271 = vpack.c.b16 %v228, %v227
  %v272 = vpack.c.b16 %v230, %v229
  %v273 = vpack.c.b16 %v232, %v231
  %v274 = vpack.c.b16 %v234, %v233
  %v275 = vpack.c.b16 %v236, %v235
  %v276 = vpack.c.b16 %v238, %v237
  %v277 = vpack.c.b16 %v240, %v239
  %v278 = vpack.c.b16 %v242, %v241
  %v279 = vpack.c.b16 %v244, %v243
  %v280 = vpack.c.b16 %v246, %v245
  %v281 = vpack.c.b16 %v248, %v247
  %v282 = vpack.c.b16 %v250, %v249
  %315 = vmatprep.subr.bf16.mxu0 0
  %316 = vmatpush1.bf16.msra.mxu0 %v251
  %317 = vmatprep.subr.bf16.mxu0 0
  %318 = vmatpush1.bf16.msra.mxu0 %v252
  %319 = vmatprep.subr.bf16.mxu0 0
  %320 = vmatpush1.bf16.msra.mxu0 %v253
  %321 = vmatprep.subr.bf16.mxu0 0
  %322 = vmatpush1.bf16.msra.mxu0 %v254
  %323 = vmatprep.subr.bf16.mxu0 0
  %324 = vmatpush1.bf16.msra.mxu0 %v255
  %325 = vmatprep.subr.bf16.mxu0 0
  %326 = vmatpush1.bf16.msra.mxu0 %v256
  %327 = vmatprep.subr.bf16.mxu0 0
  %328 = vmatpush1.bf16.msra.mxu0 %v257
  %329 = vmatprep.subr.bf16.mxu0 0
  %330 = vmatpush1.bf16.msra.mxu0 %v258
  %331 = vmatprep.subr.bf16.mxu0 0
  %332 = vmatpush1.bf16.msra.mxu0 %v259
  %333 = vmatprep.subr.bf16.mxu0 0
  %334 = vmatpush1.bf16.msra.mxu0 %v260
  %335 = vmatprep.subr.bf16.mxu0 0
  %336 = vmatpush1.bf16.msra.mxu0 %v261
  %337 = vmatprep.subr.bf16.mxu0 0
  %338 = vmatpush1.bf16.msra.mxu0 %v262
  %339 = vmatprep.subr.bf16.mxu0 0
  %340 = vmatpush1.bf16.msra.mxu0 %v263
  %341 = vmatprep.subr.bf16.mxu0 0
  %342 = vmatpush1.bf16.msra.mxu0 %v264
  %343 = vmatprep.subr.bf16.mxu0 0
  %344 = vmatpush1.bf16.msra.mxu0 %v265
  %345 = vmatprep.subr.bf16.mxu0 0
  %346 = vmatpush1.bf16.msra.mxu0 %v266
  %347 = vmatprep.mubr.bf16.mxu0 %v116
  %348 = vmatmul.mubr.bf16.gmra.mrb[0].mxu0 %v115
  %v349 = vpop.f32.mrb[0].mxu0
  %v350 = vadd.f32 %v101, %v349
  %v351 = vpop.f32.mrb[0].mxu0
  %v352 = vpop.f32.mrb[0].mxu0
  %v353 = vadd.f32 %v101, %v352
  %v354 = vpop.f32.mrb[0].mxu0
  %355 = vdwg.mxu0
  %356 = vmatprep.subr.bf16.mxu0 0
  %357 = vmatpush1.bf16.msra.mxu0 %v267
  %358 = vmatprep.subr.bf16.mxu0 0
  %359 = vmatpush1.bf16.msra.mxu0 %v268
  %360 = vmatprep.subr.bf16.mxu0 0
  %361 = vmatpush1.bf16.msra.mxu0 %v269
  %362 = vmatprep.subr.bf16.mxu0 0
  %363 = vmatpush1.bf16.msra.mxu0 %v270
  %364 = vmatprep.subr.bf16.mxu0 0
  %365 = vmatpush1.bf16.msra.mxu0 %v271
  %366 = vmatprep.subr.bf16.mxu0 0
  %367 = vmatpush1.bf16.msra.mxu0 %v272
  %368 = vmatprep.subr.bf16.mxu0 0
  %369 = vmatpush1.bf16.msra.mxu0 %v273
  %370 = vmatprep.subr.bf16.mxu0 0
  %371 = vmatpush1.bf16.msra.mxu0 %v274
  %372 = vmatprep.subr.bf16.mxu0 0
  %373 = vmatpush1.bf16.msra.mxu0 %v275
  %374 = vmatprep.subr.bf16.mxu0 0
  %375 = vmatpush1.bf16.msra.mxu0 %v276
  %376 = vmatprep.subr.bf16.mxu0 0
  %377 = vmatpush1.bf16.msra.mxu0 %v277
  %378 = vmatprep.subr.bf16.mxu0 0
  %379 = vmatpush1.bf16.msra.mxu0 %v278
  %380 = vmatprep.subr.bf16.mxu0 0
  %381 = vmatpush1.bf16.msra.mxu0 %v279
  %382 = vmatprep.subr.bf16.mxu0 0
  %383 = vmatpush1.bf16.msra.mxu0 %v280
  %384 = vmatprep.subr.bf16.mxu0 0
  %385 = vmatpush1.bf16.msra.mxu0 %v281
  %386 = vmatprep.subr.bf16.mxu0 0
  %387 = vmatpush1.bf16.msra.mxu0 %v282
  %388 = vmatprep.mubr.bf16.mxu0 %v118
  %389 = vmatmul.mubr.bf16.gmra.mrb[0].mxu0 %v117
  %v390 = vpop.f32.mrb[0].mxu0
  %v391 = vadd.f32 %v350, %v390
  %v392 = vpop.f32.mrb[0].mxu0
  %v393 = vpop.f32.mrb[0].mxu0
  %v394 = vadd.f32 %v353, %v393
  %v395 = vpop.f32.mrb[0].mxu0
  %396 = vdwg.mxu0
  %v397 = vpack.c.bf16 %v394, %v391
  %v399 = vunpack.c.l.b16 %v397
  %v400 = vunpack.c.h.b16 %v397
  %v401 = vpack.c.b16 %v399, %v399
  %v402 = vpack.c.b16 %v400, %v400
  %405 = vst [vmem:[%s3] sm:$0xf] %v401
  %406 = vst [vmem:[%s3 + $0x4] sm:$0xf] %v402
  // Predicated region
  $region14: #{_lambda_.31} parent=0 // pred_check
    _
  $region15: #{_lambda_.31} parent=0 // pred_check_branch
    %408 = sbr.rel (0) target = $region17
  $region16: #{_lambda_.31} parent=0 // pred_region
    _
  $region17: #{_lambda_.31} parent=0 // pred_fallthru
    _
  // Predicated region
  $region18: #{_lambda_.31} parent=0 // pred_check
    _
  $region19: #{_lambda_.31} parent=0 // pred_check_branch
    %410 = sbr.rel (0) target = $region21
  $region20: #{_lambda_.31} parent=0 // pred_region
    _
  $region21: #{_lambda_.31} parent=0 // pred_fallthru
    _

// kernel: _lambda_.34
$region0: #{_lambda_.34}
  #allocation0 [shape = 'u32[]', space=smem, size = 0x4, offset = 0x4, fixed_abs, tag = 'smem constant byte address 0x4 - core index']
  #allocation1 [shape = 'u32[144,128]{1,0:T(1,128)}', space=vmem, size = 0x12000, scoped, tag = 'internal scratch']
  %s0 = inlined_call_operand.vmem [shape: bf16[16,1024], index: 0, kind: input, shape index: {}]
  %s1 = inlined_call_operand.vmem [shape: bf16[1024,128], index: 1, kind: input, shape index: {}]
  %s2 = inlined_call_operand.vmem [shape: f32[1,128], index: 2, kind: input, shape index: {}]
  %s3 = inlined_call_operand.vmem [shape: bf16[16,128], index: 3, kind: output, shape index: {}]
  %s4 = sld [smem:[#allocation0]]
  $region22: #{_lambda_.34} parent=0
    _
  %s6 = ssub.s32 1, %s4
  %s7 = scalar_select 0, %s6, %s4
  // Predicated region
  $region2: #{_lambda_.34} parent=0 // pred_check
    _
  $region3: #{_lambda_.34} parent=0 // pred_check_branch
    %9 = sbr.rel (0) target = $region5
  $region4: #{_lambda_.34} parent=0 // pred_region
    _
  $region5: #{_lambda_.34} parent=0 // pred_fallthru
    _
  // Predicated region
  $region6: #{_lambda_.34} parent=0 // pred_check
    _
  $region7: #{_lambda_.34} parent=0 // pred_check_branch
    %11 = sbr.rel (0) target = $region9
  $region8: #{_lambda_.34} parent=0 // pred_region
    _
  $region9: #{_lambda_.34} parent=0 // pred_fallthru
    _
  // Predicated region
  $region10: #{_lambda_.34} parent=0 // pred_check
    _
  $region11: #{_lambda_.34} parent=0 // pred_check_branch
    %13 = sbr.rel (0) target = $region13
  $region12: #{_lambda_.34} parent=0 // pred_region
    _
  $region13: #{_lambda_.34} parent=0 // pred_fallthru
    _
  %v16 = vld [vmem:[%s0] sm:$0xff]
  %v17 = vld [vmem:[%s0 + $0x8] sm:$0xff]
  %v18 = vld [vmem:[%s0 + $0x10] sm:$0xff]
  %v19 = vld [vmem:[%s0 + $0x18] sm:$0xff]
  %v20 = vld [vmem:[%s0 + $0x20] sm:$0xff]
  %v21 = vld [vmem:[%s0 + $0x28] sm:$0xff]
  %v22 = vld [vmem:[%s0 + $0x30] sm:$0xff]
  %v23 = vld [vmem:[%s0 + $0x38] sm:$0xff]
  %vm24 = vcmp.ge.bf16.partialorder %v16, 0
  %vm25 = vcmp.ge.bf16.partialorder %v17, 0
  %vm26 = vcmp.ge.bf16.partialorder %v18, 0
  %vm27 = vcmp.ge.bf16.partialorder %v19, 0
  %vm28 = vcmp.ge.bf16.partialorder %v20, 0
  %vm29 = vcmp.ge.bf16.partialorder %v21, 0
  %vm30 = vcmp.ge.bf16.partialorder %v22, 0
  %vm31 = vcmp.ge.bf16.partialorder %v23, 0
  %v32 = vmul.bf16 %v16, 1045249613
  %v33 = vmul.bf16 %v17, 1045249613
  %v34 = vmul.bf16 %v18, 1045249613
  %v35 = vmul.bf16 %v19, 1045249613
  %v36 = vmul.bf16 %v20, 1045249613
  %v37 = vmul.bf16 %v21, 1045249613
  %v38 = vmul.bf16 %v22, 1045249613
  %v39 = vmul.bf16 %v23, 1045249613
  %v40 = vsel %vm24, %v16, %v32
  %v41 = vsel %vm25, %v17, %v33
  %v42 = vsel %vm26, %v18, %v34
  %v43 = vsel %vm27, %v19, %v35
  %v44 = vsel %vm28, %v20, %v36
  %v45 = vsel %vm29, %v21, %v37
  %v46 = vsel %vm30, %v22, %v38
  %v47 = vsel %vm31, %v23, %v39
  %v48 = vld [vmem:[%s1] sm:$0xf]
  %v49 = vld [vmem:[%s1 + $0x4] sm:$0xf]
  %v50 = vld [vmem:[%s1 + $0x8] sm:$0xf]
  %v51 = vld [vmem:[%s1 + $0xc] sm:$0xf]
  %v52 = vld [vmem:[%s1 + $0x10] sm:$0xf]
  %v53 = vld [vmem:[%s1 + $0x14] sm:$0xf]
  %v54 = vld [vmem:[%s1 + $0x18] sm:$0xf]
  %v55 = vld [vmem:[%s1 + $0x1c] sm:$0xf]
  %v56 = vld [vmem:[%s1 + $0x20] sm:$0xf]
  %v57 = vld [vmem:[%s1 + $0x24] sm:$0xf]
  %v58 = vld [vmem:[%s1 + $0x28] sm:$0xf]
  %v59 = vld [vmem:[%s1 + $0x2c] sm:$0xf]
  %v60 = vld [vmem:[%s1 + $0x30] sm:$0xf]
  %v61 = vld [vmem:[%s1 + $0x34] sm:$0xf]
  %v62 = vld [vmem:[%s1 + $0x38] sm:$0xf]
  %v63 = vld [vmem:[%s1 + $0x3c] sm:$0xf]
  %v64 = vld [vmem:[%s1 + $0x40] sm:$0xf]
  %v65 = vld [vmem:[%s1 + $0x44] sm:$0xf]
  %v66 = vld [vmem:[%s1 + $0x48] sm:$0xf]
  %v67 = vld [vmem:[%s1 + $0x4c] sm:$0xf]
  %v68 = vld [vmem:[%s1 + $0x50] sm:$0xf]
  %v69 = vld [vmem:[%s1 + $0x54] sm:$0xf]
  %v70 = vld [vmem:[%s1 + $0x58] sm:$0xf]
  %v71 = vld [vmem:[%s1 + $0x5c] sm:$0xf]
  %v72 = vld [vmem:[%s1 + $0x60] sm:$0xf]
  %v73 = vld [vmem:[%s1 + $0x64] sm:$0xf]
  %v74 = vld [vmem:[%s1 + $0x68] sm:$0xf]
  %v75 = vld [vmem:[%s1 + $0x6c] sm:$0xf]
  %v76 = vld [vmem:[%s1 + $0x70] sm:$0xf]
  %v77 = vld [vmem:[%s1 + $0x74] sm:$0xf]
  %v78 = vld [vmem:[%s1 + $0x78] sm:$0xf]
  %v79 = vld [vmem:[%s1 + $0x7c] sm:$0xf]
  %v80 = vld [vmem:[%s1 + $0x80] sm:$0xf]
  %v81 = vld [vmem:[%s1 + $0x84] sm:$0xf]
  %v82 = vld [vmem:[%s1 + $0x88] sm:$0xf]
  %v83 = vld [vmem:[%s1 + $0x8c] sm:$0xf]
  %v84 = vld [vmem:[%s1 + $0x90] sm:$0xf]
  %v85 = vld [vmem:[%s1 + $0x94] sm:$0xf]
  %v86 = vld [vmem:[%s1 + $0x98] sm:$0xf]
  %v87 = vld [vmem:[%s1 + $0x9c] sm:$0xf]
  %v88 = vld [vmem:[%s1 + $0xa0] sm:$0xf]
  %v89 = vld [vmem:[%s1 + $0xa4] sm:$0xf]
  %v90 = vld [vmem:[%s1 + $0xa8] sm:$0xf]
  %v91 = vld [vmem:[%s1 + $0xac] sm:$0xf]
  %v92 = vld [vmem:[%s1 + $0xb0] sm:$0xf]
  %v93 = vld [vmem:[%s1 + $0xb4] sm:$0xf]
  %v94 = vld [vmem:[%s1 + $0xb8] sm:$0xf]
  %v95 = vld [vmem:[%s1 + $0xbc] sm:$0xf]
  %v96 = vld [vmem:[%s1 + $0xc0] sm:$0xf]
  %v97 = vld [vmem:[%s1 + $0xc4] sm:$0xf]
  %v98 = vld [vmem:[%s1 + $0xc8] sm:$0xf]
  %v99 = vld [vmem:[%s1 + $0xcc] sm:$0xf]
  %v100 = vld [vmem:[%s1 + $0xd0] sm:$0xf]
  %v101 = vld [vmem:[%s1 + $0xd4] sm:$0xf]
  %v102 = vld [vmem:[%s1 + $0xd8] sm:$0xf]
  %v103 = vld [vmem:[%s1 + $0xdc] sm:$0xf]
  %v104 = vld [vmem:[%s1 + $0xe0] sm:$0xf]
  %v105 = vld [vmem:[%s1 + $0xe4] sm:$0xf]
  %v106 = vld [vmem:[%s1 + $0xe8] sm:$0xf]
  %v107 = vld [vmem:[%s1 + $0xec] sm:$0xf]
  %v108 = vld [vmem:[%s1 + $0xf0] sm:$0xf]
  %v109 = vld [vmem:[%s1 + $0xf4] sm:$0xf]
  %v110 = vld [vmem:[%s1 + $0xf8] sm:$0xf]
  %v111 = vld [vmem:[%s1 + $0xfc] sm:$0xf]
  %v112 = vld [vmem:[%s1 + $0x100] sm:$0xf]
  %v113 = vld [vmem:[%s1 + $0x104] sm:$0xf]
  %v114 = vld [vmem:[%s1 + $0x108] sm:$0xf]
  %v115 = vld [vmem:[%s1 + $0x10c] sm:$0xf]
  %v116 = vld [vmem:[%s1 + $0x110] sm:$0xf]
  %v117 = vld [vmem:[%s1 + $0x114] sm:$0xf]
  %v118 = vld [vmem:[%s1 + $0x118] sm:$0xf]
  %v119 = vld [vmem:[%s1 + $0x11c] sm:$0xf]
  %v120 = vld [vmem:[%s1 + $0x120] sm:$0xf]
  %v121 = vld [vmem:[%s1 + $0x124] sm:$0xf]
  %v122 = vld [vmem:[%s1 + $0x128] sm:$0xf]
  %v123 = vld [vmem:[%s1 + $0x12c] sm:$0xf]
  %v124 = vld [vmem:[%s1 + $0x130] sm:$0xf]
  %v125 = vld [vmem:[%s1 + $0x134] sm:$0xf]
  %v126 = vld [vmem:[%s1 + $0x138] sm:$0xf]
  %v127 = vld [vmem:[%s1 + $0x13c] sm:$0xf]
  %v128 = vld [vmem:[%s1 + $0x140] sm:$0xf]
  %v129 = vld [vmem:[%s1 + $0x144] sm:$0xf]
  %v130 = vld [vmem:[%s1 + $0x148] sm:$0xf]
  %v131 = vld [vmem:[%s1 + $0x14c] sm:$0xf]
  %v132 = vld [vmem:[%s1 + $0x150] sm:$0xf]
  %v133 = vld [vmem:[%s1 + $0x154] sm:$0xf]
  %v134 = vld [vmem:[%s1 + $0x158] sm:$0xf]
  %v135 = vld [vmem:[%s1 + $0x15c] sm:$0xf]
  %v136 = vld [vmem:[%s1 + $0x160] sm:$0xf]
  %v137 = vld [vmem:[%s1 + $0x164] sm:$0xf]
  %v138 = vld [vmem:[%s1 + $0x168] sm:$0xf]
  %v139 = vld [vmem:[%s1 + $0x16c] sm:$0xf]
  %v140 = vld [vmem:[%s1 + $0x170] sm:$0xf]
  %v141 = vld [vmem:[%s1 + $0x174] sm:$0xf]
  %v142 = vld [vmem:[%s1 + $0x178] sm:$0xf]
  %v143 = vld [vmem:[%s1 + $0x17c] sm:$0xf]
  %v144 = vld [vmem:[%s1 + $0x180] sm:$0xf]
  %v145 = vld [vmem:[%s1 + $0x184] sm:$0xf]
  %v146 = vld [vmem:[%s1 + $0x188] sm:$0xf]
  %v147 = vld [vmem:[%s1 + $0x18c] sm:$0xf]
  %v148 = vld [vmem:[%s1 + $0x190] sm:$0xf]
  %v149 = vld [vmem:[%s1 + $0x194] sm:$0xf]
  %v150 = vld [vmem:[%s1 + $0x198] sm:$0xf]
  %v151 = vld [vmem:[%s1 + $0x19c] sm:$0xf]
  %v152 = vld [vmem:[%s1 + $0x1a0] sm:$0xf]
  %v153 = vld [vmem:[%s1 + $0x1a4] sm:$0xf]
  %v154 = vld [vmem:[%s1 + $0x1a8] sm:$0xf]
  %v155 = vld [vmem:[%s1 + $0x1ac] sm:$0xf]
  %v156 = vld [vmem:[%s1 + $0x1b0] sm:$0xf]
  %v157 = vld [vmem:[%s1 + $0x1b4] sm:$0xf]
  %v158 = vld [vmem:[%s1 + $0x1b8] sm:$0xf]
  %v159 = vld [vmem:[%s1 + $0x1bc] sm:$0xf]
  %v160 = vld [vmem:[%s1 + $0x1c0] sm:$0xf]
  %v161 = vld [vmem:[%s1 + $0x1c4] sm:$0xf]
  %v162 = vld [vmem:[%s1 + $0x1c8] sm:$0xf]
  %v163 = vld [vmem:[%s1 + $0x1cc] sm:$0xf]
  %v164 = vld [vmem:[%s1 + $0x1d0] sm:$0xf]
  %v165 = vld [vmem:[%s1 + $0x1d4] sm:$0xf]
  %v166 = vld [vmem:[%s1 + $0x1d8] sm:$0xf]
  %v167 = vld [vmem:[%s1 + $0x1dc] sm:$0xf]
  %v168 = vld [vmem:[%s1 + $0x1e0] sm:$0xf]
  %v169 = vld [vmem:[%s1 + $0x1e4] sm:$0xf]
  %v170 = vld [vmem:[%s1 + $0x1e8] sm:$0xf]
  %v171 = vld [vmem:[%s1 + $0x1ec] sm:$0xf]
  %v172 = vld [vmem:[%s1 + $0x1f0] sm:$0xf]
  %v173 = vld [vmem:[%s1 + $0x1f4] sm:$0xf]
  %v174 = vld [vmem:[%s1 + $0x1f8] sm:$0xf]
  %v175 = vld [vmem:[%s1 + $0x1fc] sm:$0xf]
  %v176 = vld [vmem:[%s2] sm:$0x1]
  %v178 = vlaneseq
  %v179 = vshrl.u32 %v178, 7
  %v180 = vsub.s32 0, %v179
  %v181 = vrot.slane %v176, %v180
  %v191 = vunpack.c.l.b16 %v40
  %v192 = vunpack.c.h.b16 %v40
  %v193 = vunpack.c.l.b16 %v41
  %v194 = vunpack.c.h.b16 %v41
  %v195 = vunpack.c.l.b16 %v42
  %v196 = vunpack.c.h.b16 %v42
  %v197 = vunpack.c.l.b16 %v43
  %v198 = vunpack.c.h.b16 %v43
  %v199 = vunpack.c.l.b16 %v44
  %v200 = vunpack.c.h.b16 %v44
  %v201 = vunpack.c.l.b16 %v45
  %v202 = vunpack.c.h.b16 %v45
  %v203 = vunpack.c.l.b16 %v46
  %v204 = vunpack.c.h.b16 %v46
  %v205 = vunpack.c.l.b16 %v47
  %v206 = vunpack.c.h.b16 %v47
  %v207 = vpack.c.b16 %v199, %v191
  %v208 = vpack.c.b16 %v200, %v192
  %v209 = vpack.c.b16 %v201, %v193
  %v210 = vpack.c.b16 %v202, %v194
  %v211 = vpack.c.b16 %v203, %v195
  %v212 = vpack.c.b16 %v204, %v196
  %v213 = vpack.c.b16 %v205, %v197
  %v214 = vpack.c.b16 %v206, %v198
  %v351 = vunpack.c.l.b16 %v48
  %v352 = vunpack.c.l.b16 %v49
  %v353 = vunpack.c.l.b16 %v50
  %v354 = vunpack.c.l.b16 %v51
  %v355 = vunpack.c.l.b16 %v52
  %v356 = vunpack.c.l.b16 %v53
  %v357 = vunpack.c.l.b16 %v54
  %v358 = vunpack.c.l.b16 %v55
  %v359 = vunpack.c.l.b16 %v56
  %v360 = vunpack.c.l.b16 %v57
  %v361 = vunpack.c.l.b16 %v58
  %v362 = vunpack.c.l.b16 %v59
  %v363 = vunpack.c.l.b16 %v60
  %v364 = vunpack.c.l.b16 %v61
  %v365 = vunpack.c.l.b16 %v62
  %v366 = vunpack.c.l.b16 %v63
  %v367 = vunpack.c.l.b16 %v64
  %v368 = vunpack.c.l.b16 %v65
  %v369 = vunpack.c.l.b16 %v66
  %v370 = vunpack.c.l.b16 %v67
  %v371 = vunpack.c.l.b16 %v68
  %v372 = vunpack.c.l.b16 %v69
  %v373 = vunpack.c.l.b16 %v70
  %v374 = vunpack.c.l.b16 %v71
  %v375 = vunpack.c.l.b16 %v72
  %v376 = vunpack.c.l.b16 %v73
  %v377 = vunpack.c.l.b16 %v74
  %v378 = vunpack.c.l.b16 %v75
  %v379 = vunpack.c.l.b16 %v76
  %v380 = vunpack.c.l.b16 %v77
  %v381 = vunpack.c.l.b16 %v78
  %v382 = vunpack.c.l.b16 %v79
  %v383 = vunpack.c.l.b16 %v80
  %v384 = vunpack.c.l.b16 %v81
  %v385 = vunpack.c.l.b16 %v82
  %v386 = vunpack.c.l.b16 %v83
  %v387 = vunpack.c.l.b16 %v84
  %v388 = vunpack.c.l.b16 %v85
  %v389 = vunpack.c.l.b16 %v86
  %v390 = vunpack.c.l.b16 %v87
  %v391 = vunpack.c.l.b16 %v88
  %v392 = vunpack.c.l.b16 %v89
  %v393 = vunpack.c.l.b16 %v90
  %v394 = vunpack.c.l.b16 %v91
  %v395 = vunpack.c.l.b16 %v92
  %v396 = vunpack.c.l.b16 %v93
  %v397 = vunpack.c.l.b16 %v94
  %v398 = vunpack.c.l.b16 %v95
  %v399 = vunpack.c.l.b16 %v96
  %v400 = vunpack.c.l.b16 %v97
  %v401 = vunpack.c.l.b16 %v98
  %v402 = vunpack.c.l.b16 %v99
  %v403 = vunpack.c.l.b16 %v100
  %v404 = vunpack.c.l.b16 %v101
  %v405 = vunpack.c.l.b16 %v102
  %v406 = vunpack.c.l.b16 %v103
  %v407 = vunpack.c.l.b16 %v104
  %v408 = vunpack.c.l.b16 %v105
  %v409 = vunpack.c.l.b16 %v106
  %v410 = vunpack.c.l.b16 %v107
  %v411 = vunpack.c.l.b16 %v108
  %v412 = vunpack.c.l.b16 %v109
  %v413 = vunpack.c.l.b16 %v110
  %v414 = vunpack.c.l.b16 %v111
  %v415 = vunpack.c.l.b16 %v112
  %v416 = vunpack.c.l.b16 %v113
  %v417 = vunpack.c.l.b16 %v114
  %v418 = vunpack.c.l.b16 %v115
  %v419 = vunpack.c.l.b16 %v116
  %v420 = vunpack.c.l.b16 %v117
  %v421 = vunpack.c.l.b16 %v118
  %v422 = vunpack.c.l.b16 %v119
  %v423 = vunpack.c.l.b16 %v120
  %v424 = vunpack.c.l.b16 %v121
  %v425 = vunpack.c.l.b16 %v122
  %v426 = vunpack.c.l.b16 %v123
  %v427 = vunpack.c.l.b16 %v124
  %v428 = vunpack.c.l.b16 %v125
  %v429 = vunpack.c.l.b16 %v126
  %v430 = vunpack.c.l.b16 %v127
  %v431 = vunpack.c.l.b16 %v128
  %v432 = vunpack.c.l.b16 %v129
  %v433 = vunpack.c.l.b16 %v130
  %v434 = vunpack.c.l.b16 %v131
  %v435 = vunpack.c.l.b16 %v132
  %v436 = vunpack.c.l.b16 %v133
  %v437 = vunpack.c.l.b16 %v134
  %v438 = vunpack.c.l.b16 %v135
  %v439 = vunpack.c.l.b16 %v136
  %v440 = vunpack.c.l.b16 %v137
  %v441 = vunpack.c.l.b16 %v138
  %v442 = vunpack.c.l.b16 %v139
  %v443 = vunpack.c.l.b16 %v140
  %v444 = vunpack.c.l.b16 %v141
  %v445 = vunpack.c.l.b16 %v142
  %v446 = vunpack.c.l.b16 %v143
  %v447 = vunpack.c.l.b16 %v144
  %v448 = vunpack.c.l.b16 %v145
  %v449 = vunpack.c.l.b16 %v146
  %v450 = vunpack.c.l.b16 %v147
  %v451 = vunpack.c.l.b16 %v148
  %v452 = vunpack.c.l.b16 %v149
  %v453 = vunpack.c.l.b16 %v150
  %v454 = vunpack.c.l.b16 %v151
  %v455 = vunpack.c.l.b16 %v152
  %v456 = vunpack.c.l.b16 %v153
  %v457 = vunpack.c.l.b16 %v154
  %v458 = vunpack.c.l.b16 %v155
  %v459 = vunpack.c.l.b16 %v156
  %v460 = vunpack.c.l.b16 %v157
  %v461 = vunpack.c.l.b16 %v158
  %v462 = vunpack.c.l.b16 %v159
  %v463 = vunpack.c.l.b16 %v160
  %v464 = vunpack.c.l.b16 %v161
  %v465 = vunpack.c.l.b16 %v162
  %v466 = vunpack.c.l.b16 %v163
  %v467 = vunpack.c.l.b16 %v164
  %v468 = vunpack.c.l.b16 %v165
  %v469 = vunpack.c.l.b16 %v166
  %v470 = vunpack.c.l.b16 %v167
  %v471 = vunpack.c.l.b16 %v168
  %v472 = vunpack.c.l.b16 %v169
  %v473 = vunpack.c.l.b16 %v170
  %v474 = vunpack.c.l.b16 %v171
  %v475 = vunpack.c.l.b16 %v172
  %v476 = vunpack.c.l.b16 %v173
  %v477 = vunpack.c.l.b16 %v174
  %v478 = vunpack.c.l.b16 %v175
  %v479 = vpack.c.b16 %v352, %v351
  %v480 = vpack.c.b16 %v354, %v353
  %v481 = vpack.c.b16 %v356, %v355
  %v482 = vpack.c.b16 %v358, %v357
  %v483 = vpack.c.b16 %v360, %v359
  %v484 = vpack.c.b16 %v362, %v361
  %v485 = vpack.c.b16 %v364, %v363
  %v486 = vpack.c.b16 %v366, %v365
  %v487 = vpack.c.b16 %v368, %v367
  %v488 = vpack.c.b16 %v370, %v369
  %v489 = vpack.c.b16 %v372, %v371
  %v490 = vpack.c.b16 %v374, %v373
  %v491 = vpack.c.b16 %v376, %v375
  %v492 = vpack.c.b16 %v378, %v377
  %v493 = vpack.c.b16 %v380, %v379
  %v494 = vpack.c.b16 %v382, %v381
  %v495 = vpack.c.b16 %v384, %v383
  %v496 = vpack.c.b16 %v386, %v385
  %v497 = vpack.c.b16 %v388, %v387
  %v498 = vpack.c.b16 %v390, %v389
  %v499 = vpack.c.b16 %v392, %v391
  %v500 = vpack.c.b16 %v394, %v393
  %v501 = vpack.c.b16 %v396, %v395
  %v502 = vpack.c.b16 %v398, %v397
  %v503 = vpack.c.b16 %v400, %v399
  %v504 = vpack.c.b16 %v402, %v401
  %v505 = vpack.c.b16 %v404, %v403
  %v506 = vpack.c.b16 %v406, %v405
  %v507 = vpack.c.b16 %v408, %v407
  %v508 = vpack.c.b16 %v410, %v409
  %v509 = vpack.c.b16 %v412, %v411
  %v510 = vpack.c.b16 %v414, %v413
  %v511 = vpack.c.b16 %v416, %v415
  %v512 = vpack.c.b16 %v418, %v417
  %v513 = vpack.c.b16 %v420, %v419
  %v514 = vpack.c.b16 %v422, %v421
  %v515 = vpack.c.b16 %v424, %v423
  %v516 = vpack.c.b16 %v426, %v425
  %v517 = vpack.c.b16 %v428, %v427
  %v518 = vpack.c.b16 %v430, %v429
  %v519 = vpack.c.b16 %v432, %v431
  %v520 = vpack.c.b16 %v434, %v433
  %v521 = vpack.c.b16 %v436, %v435
  %v522 = vpack.c.b16 %v438, %v437
  %v523 = vpack.c.b16 %v440, %v439
  %v524 = vpack.c.b16 %v442, %v441
  %v525 = vpack.c.b16 %v444, %v443
  %v526 = vpack.c.b16 %v446, %v445
  %v527 = vpack.c.b16 %v448, %v447
  %v528 = vpack.c.b16 %v450, %v449
  %v529 = vpack.c.b16 %v452, %v451
  %v530 = vpack.c.b16 %v454, %v453
  %v531 = vpack.c.b16 %v456, %v455
  %v532 = vpack.c.b16 %v458, %v457
  %v533 = vpack.c.b16 %v460, %v459
  %v534 = vpack.c.b16 %v462, %v461
  %v535 = vpack.c.b16 %v464, %v463
  %v536 = vpack.c.b16 %v466, %v465
  %v537 = vpack.c.b16 %v468, %v467
  %v538 = vpack.c.b16 %v470, %v469
  %v539 = vpack.c.b16 %v472, %v471
  %v540 = vpack.c.b16 %v474, %v473
  %v541 = vpack.c.b16 %v476, %v475
  %v542 = vpack.c.b16 %v478, %v477
  %607 = vmatprep.subr.bf16.mxu0 0
  %608 = vmatpush1.bf16.msra.mxu0 %v479
  %609 = vmatprep.subr.bf16.mxu0 0
  %610 = vmatpush1.bf16.msra.mxu0 %v480
  %611 = vmatprep.subr.bf16.mxu0 0
  %612 = vmatpush1.bf16.msra.mxu0 %v481
  %613 = vmatprep.subr.bf16.mxu0 0
  %614 = vmatpush1.bf16.msra.mxu0 %v482
  %615 = vmatprep.subr.bf16.mxu0 0
  %616 = vmatpush1.bf16.msra.mxu0 %v483
  %617 = vmatprep.subr.bf16.mxu0 0
  %618 = vmatpush1.bf16.msra.mxu0 %v484
  %619 = vmatprep.subr.bf16.mxu0 0
  %620 = vmatpush1.bf16.msra.mxu0 %v485
  %621 = vmatprep.subr.bf16.mxu0 0
  %622 = vmatpush1.bf16.msra.mxu0 %v486
  %623 = vmatprep.subr.bf16.mxu0 0
  %624 = vmatpush1.bf16.msra.mxu0 %v487
  %625 = vmatprep.subr.bf16.mxu0 0
  %626 = vmatpush1.bf16.msra.mxu0 %v488
  %627 = vmatprep.subr.bf16.mxu0 0
  %628 = vmatpush1.bf16.msra.mxu0 %v489
  %629 = vmatprep.subr.bf16.mxu0 0
  %630 = vmatpush1.bf16.msra.mxu0 %v490
  %631 = vmatprep.subr.bf16.mxu0 0
  %632 = vmatpush1.bf16.msra.mxu0 %v491
  %633 = vmatprep.subr.bf16.mxu0 0
  %634 = vmatpush1.bf16.msra.mxu0 %v492
  %635 = vmatprep.subr.bf16.mxu0 0
  %636 = vmatpush1.bf16.msra.mxu0 %v493
  %637 = vmatprep.subr.bf16.mxu0 0
  %638 = vmatpush1.bf16.msra.mxu0 %v494
  %639 = vmatprep.mubr.bf16.mxu0 %v208
  %640 = vmatmul.mubr.bf16.gmra.mrb[0].mxu0 %v207
  %v641 = vpop.f32.mrb[0].mxu0
  %v642 = vadd.f32 %v181, %v641
  %v643 = vpop.f32.mrb[0].mxu0
  %v644 = vpop.f32.mrb[0].mxu0
  %v645 = vadd.f32 %v181, %v644
  %v646 = vpop.f32.mrb[0].mxu0
  %647 = vdwg.mxu0
  %648 = vmatprep.subr.bf16.mxu0 0
  %649 = vmatpush1.bf16.msra.mxu0 %v495
  %650 = vmatprep.subr.bf16.mxu0 0
  %651 = vmatpush1.bf16.msra.mxu0 %v496
  %652 = vmatprep.subr.bf16.mxu0 0
  %653 = vmatpush1.bf16.msra.mxu0 %v497
  %654 = vmatprep.subr.bf16.mxu0 0
  %655 = vmatpush1.bf16.msra.mxu0 %v498
  %656 = vmatprep.subr.bf16.mxu0 0
  %657 = vmatpush1.bf16.msra.mxu0 %v499
  %658 = vmatprep.subr.bf16.mxu0 0
  %659 = vmatpush1.bf16.msra.mxu0 %v500
  %660 = vmatprep.subr.bf16.mxu0 0
  %661 = vmatpush1.bf16.msra.mxu0 %v501
  %662 = vmatprep.subr.bf16.mxu0 0
  %663 = vmatpush1.bf16.msra.mxu0 %v502
  %664 = vmatprep.subr.bf16.mxu0 0
  %665 = vmatpush1.bf16.msra.mxu0 %v503
  %666 = vmatprep.subr.bf16.mxu0 0
  %667 = vmatpush1.bf16.msra.mxu0 %v504
  %668 = vmatprep.subr.bf16.mxu0 0
  %669 = vmatpush1.bf16.msra.mxu0 %v505
  %670 = vmatprep.subr.bf16.mxu0 0
  %671 = vmatpush1.bf16.msra.mxu0 %v506
  %672 = vmatprep.subr.bf16.mxu0 0
  %673 = vmatpush1.bf16.msra.mxu0 %v507
  %674 = vmatprep.subr.bf16.mxu0 0
  %675 = vmatpush1.bf16.msra.mxu0 %v508
  %676 = vmatprep.subr.bf16.mxu0 0
  %677 = vmatpush1.bf16.msra.mxu0 %v509
  %678 = vmatprep.subr.bf16.mxu0 0
  %679 = vmatpush1.bf16.msra.mxu0 %v510
  %680 = vmatprep.mubr.bf16.mxu0 %v210
  %681 = vmatmul.mubr.bf16.gmra.mrb[0].mxu0 %v209
  %v682 = vpop.f32.mrb[0].mxu0
  %v683 = vadd.f32 %v642, %v682
  %v684 = vpop.f32.mrb[0].mxu0
  %v685 = vpop.f32.mrb[0].mxu0
  %v686 = vadd.f32 %v645, %v685
  %v687 = vpop.f32.mrb[0].mxu0
  %688 = vdwg.mxu0
  %689 = vmatprep.subr.bf16.mxu0 0
  %690 = vmatpush1.bf16.msra.mxu0 %v511
  %691 = vmatprep.subr.bf16.mxu0 0
  %692 = vmatpush1.bf16.msra.mxu0 %v512
  %693 = vmatprep.subr.bf16.mxu0 0
  %694 = vmatpush1.bf16.msra.mxu0 %v513
  %695 = vmatprep.subr.bf16.mxu0 0
  %696 = vmatpush1.bf16.msra.mxu0 %v514
  %697 = vmatprep.subr.bf16.mxu0 0
  %698 = vmatpush1.bf16.msra.mxu0 %v515
  %699 = vmatprep.subr.bf16.mxu0 0
  %700 = vmatpush1.bf16.msra.mxu0 %v516
  %701 = vmatprep.subr.bf16.mxu0 0
  %702 = vmatpush1.bf16.msra.mxu0 %v517
  %703 = vmatprep.subr.bf16.mxu0 0
  %704 = vmatpush1.bf16.msra.mxu0 %v518
  %705 = vmatprep.subr.bf16.mxu0 0
  %706 = vmatpush1.bf16.msra.mxu0 %v519
  %707 = vmatprep.subr.bf16.mxu0 0
  %708 = vmatpush1.bf16.msra.mxu0 %v520
  %709 = vmatprep.subr.bf16.mxu0 0
  %710 = vmatpush1.bf16.msra.mxu0 %v521
  %711 = vmatprep.subr.bf16.mxu0 0
  %712 = vmatpush1.bf16.msra.mxu0 %v522
  %713 = vmatprep.subr.bf16.mxu0 0
  %714 = vmatpush1.bf16.msra.mxu0 %v523
  %715 = vmatprep.subr.bf16.mxu0 0
  %716 = vmatpush1.bf16.msra.mxu0 %v524
  %717 = vmatprep.subr.bf16.mxu0 0
  %718 = vmatpush1.bf16.msra.mxu0 %v525
  %719 = vmatprep.subr.bf16.mxu0 0
  %720 = vmatpush1.bf16.msra.mxu0 %v526
  %721 = vmatprep.mubr.bf16.mxu0 %v212
  %722 = vmatmul.mubr.bf16.gmra.mrb[0].mxu0 %v211
  %v723 = vpop.f32.mrb[0].mxu0
  %v724 = vadd.f32 %v683, %v723
  %v725 = vpop.f32.mrb[0].mxu0
  %v726 = vpop.f32.mrb[0].mxu0
  %v727 = vadd.f32 %v686, %v726
  %v728 = vpop.f32.mrb[0].mxu0
  %729 = vdwg.mxu0
  %730 = vmatprep.subr.bf16.mxu0 0
  %731 = vmatpush1.bf16.msra.mxu0 %v527
  %732 = vmatprep.subr.bf16.mxu0 0
  %733 = vmatpush1.bf16.msra.mxu0 %v528
  %734 = vmatprep.subr.bf16.mxu0 0
  %735 = vmatpush1.bf16.msra.mxu0 %v529
  %736 = vmatprep.subr.bf16.mxu0 0
  %737 = vmatpush1.bf16.msra.mxu0 %v530
  %738 = vmatprep.subr.bf16.mxu0 0
  %739 = vmatpush1.bf16.msra.mxu0 %v531
  %740 = vmatprep.subr.bf16.mxu0 0
  %741 = vmatpush1.bf16.msra.mxu0 %v532
  %742 = vmatprep.subr.bf16.mxu0 0
  %743 = vmatpush1.bf16.msra.mxu0 %v533
  %744 = vmatprep.subr.bf16.mxu0 0
  %745 = vmatpush1.bf16.msra.mxu0 %v534
  %746 = vmatprep.subr.bf16.mxu0 0
  %747 = vmatpush1.bf16.msra.mxu0 %v535
  %748 = vmatprep.subr.bf16.mxu0 0
  %749 = vmatpush1.bf16.msra.mxu0 %v536
  %750 = vmatprep.subr.bf16.mxu0 0
  %751 = vmatpush1.bf16.msra.mxu0 %v537
  %752 = vmatprep.subr.bf16.mxu0 0
  %753 = vmatpush1.bf16.msra.mxu0 %v538
  %754 = vmatprep.subr.bf16.mxu0 0
  %755 = vmatpush1.bf16.msra.mxu0 %v539
  %756 = vmatprep.subr.bf16.mxu0 0
  %757 = vmatpush1.bf16.msra.mxu0 %v540
  %758 = vmatprep.subr.bf16.mxu0 0
  %759 = vmatpush1.bf16.msra.mxu0 %v541
  %760 = vmatprep.subr.bf16.mxu0 0
  %761 = vmatpush1.bf16.msra.mxu0 %v542
  %762 = vmatprep.mubr.bf16.mxu0 %v214
  %763 = vmatmul.mubr.bf16.gmra.mrb[0].mxu0 %v213
  %v764 = vpop.f32.mrb[0].mxu0
  %v765 = vadd.f32 %v724, %v764
  %v766 = vpop.f32.mrb[0].mxu0
  %v767 = vpop.f32.mrb[0].mxu0
  %v768 = vadd.f32 %v727, %v767
  %v769 = vpop.f32.mrb[0].mxu0
  %770 = vdwg.mxu0
  %v771 = vpack.c.bf16 %v768, %v765
  %v773 = vunpack.c.l.b16 %v771
  %v774 = vunpack.c.h.b16 %v771
  %v775 = vpack.c.b16 %v773, %v773
  %v776 = vpack.c.b16 %v774, %v774
  %779 = vst [vmem:[%s3] sm:$0xf] %v775
  %780 = vst [vmem:[%s3 + $0x4] sm:$0xf] %v776
  // Predicated region
  $region14: #{_lambda_.34} parent=0 // pred_check
    _
  $region15: #{_lambda_.34} parent=0 // pred_check_branch
    %782 = sbr.rel (0) target = $region17
  $region16: #{_lambda_.34} parent=0 // pred_region
    _
  $region17: #{_lambda_.34} parent=0 // pred_fallthru
    _
  // Predicated region
  $region18: #{_lambda_.34} parent=0 // pred_check
    _
  $region19: #{_lambda_.34} parent=0 // pred_check_branch
    %784 = sbr.rel (0) target = $region21
  $region20: #{_lambda_.34} parent=0 // pred_region
    _
  $region21: #{_lambda_.34} parent=0 // pred_fallthru
    _

// kernel: _lambda_.35
$region0: #{_lambda_.35}
  #allocation0 [shape = 'u32[]', space=smem, size = 0x4, offset = 0x4, fixed_abs, tag = 'smem constant byte address 0x4 - core index']
  #allocation1 [shape = 'u32[144,128]{1,0:T(1,128)}', space=vmem, size = 0x12000, scoped, tag = 'internal scratch']
  %s0 = inlined_call_operand.vmem [shape: bf16[16,640], index: 0, kind: input, shape index: {}]
  %s1 = inlined_call_operand.vmem [shape: bf16[640,256], index: 1, kind: input, shape index: {}]
  %s2 = inlined_call_operand.vmem [shape: f32[1,256], index: 2, kind: input, shape index: {}]
  %s3 = inlined_call_operand.vmem [shape: bf16[16,256], index: 3, kind: output, shape index: {}]
  %s4 = sld [smem:[#allocation0]]
  $region22: #{_lambda_.35} parent=0
    _
  %s6 = ssub.s32 1, %s4
  %s7 = scalar_select 0, %s6, %s4
  // Predicated region
  $region2: #{_lambda_.35} parent=0 // pred_check
    _
  $region3: #{_lambda_.35} parent=0 // pred_check_branch
    %9 = sbr.rel (0) target = $region5
  $region4: #{_lambda_.35} parent=0 // pred_region
    _
  $region5: #{_lambda_.35} parent=0 // pred_fallthru
    _
  // Predicated region
  $region6: #{_lambda_.35} parent=0 // pred_check
    _
  $region7: #{_lambda_.35} parent=0 // pred_check_branch
    %11 = sbr.rel (0) target = $region9
  $region8: #{_lambda_.35} parent=0 // pred_region
    _
  $region9: #{_lambda_.35} parent=0 // pred_fallthru
    _
  // Predicated region
  $region10: #{_lambda_.35} parent=0 // pred_check
    _
  $region11: #{_lambda_.35} parent=0 // pred_check_branch
    %13 = sbr.rel (0) target = $region13
  $region12: #{_lambda_.35} parent=0 // pred_region
    _
  $region13: #{_lambda_.35} parent=0 // pred_fallthru
    _
  %v15 = vld [vmem:[%s0] sm:$0xff]
  %v16 = vld [vmem:[%s0 + $0x8] sm:$0xff]
  %v17 = vld [vmem:[%s0 + $0x10] sm:$0xf]
  %v18 = vld [vmem:[%s0 + $0x14] sm:$0xff]
  %v19 = vld [vmem:[%s0 + $0x1c] sm:$0xff]
  %v20 = vld [vmem:[%s0 + $0x24] sm:$0xf]
  %v21 = vmax.bf16 %v15, 0
  %v22 = vmax.bf16 %v16, 0
  %v23 = vmax.bf16 %v17, 0
  %v24 = vmax.bf16 %v18, 0
  %v25 = vmax.bf16 %v19, 0
  %v26 = vmax.bf16 %v20, 0
  %v27 = vld [vmem:[%s1] sm:$0xff]
  %v28 = vld [vmem:[%s1 + $0x8] sm:$0xff]
  %v29 = vld [vmem:[%s1 + $0x10] sm:$0xff]
  %v30 = vld [vmem:[%s1 + $0x18] sm:$0xff]
  %v31 = vld [vmem:[%s1 + $0x20] sm:$0xff]
  %v32 = vld [vmem:[%s1 + $0x28] sm:$0xff]
  %v33 = vld [vmem:[%s1 + $0x30] sm:$0xff]
  %v34 = vld [vmem:[%s1 + $0x38] sm:$0xff]
  %v35 = vld [vmem:[%s1 + $0x40] sm:$0xff]
  %v36 = vld [vmem:[%s1 + $0x48] sm:$0xff]
  %v37 = vld [vmem:[%s1 + $0x50] sm:$0xff]
  %v38 = vld [vmem:[%s1 + $0x58] sm:$0xff]
  %v39 = vld [vmem:[%s1 + $0x60] sm:$0xff]
  %v40 = vld [vmem:[%s1 + $0x68] sm:$0xff]
  %v41 = vld [vmem:[%s1 + $0x70] sm:$0xff]
  %v42 = vld [vmem:[%s1 + $0x78] sm:$0xff]
  %v43 = vld [vmem:[%s1 + $0x80] sm:$0xff]
  %v44 = vld [vmem:[%s1 + $0x88] sm:$0xff]
  %v45 = vld [vmem:[%s1 + $0x90] sm:$0xff]
  %v46 = vld [vmem:[%s1 + $0x98] sm:$0xff]
  %v47 = vld [vmem:[%s1 + $0xa0] sm:$0xff]
  %v48 = vld [vmem:[%s1 + $0xa8] sm:$0xff]
  %v49 = vld [vmem:[%s1 + $0xb0] sm:$0xff]
  %v50 = vld [vmem:[%s1 + $0xb8] sm:$0xff]
  %v51 = vld [vmem:[%s1 + $0xc0] sm:$0xff]
  %v52 = vld [vmem:[%s1 + $0xc8] sm:$0xff]
  %v53 = vld [vmem:[%s1 + $0xd0] sm:$0xff]
  %v54 = vld [vmem:[%s1 + $0xd8] sm:$0xff]
  %v55 = vld [vmem:[%s1 + $0xe0] sm:$0xff]
  %v56 = vld [vmem:[%s1 + $0xe8] sm:$0xff]
  %v57 = vld [vmem:[%s1 + $0xf0] sm:$0xff]
  %v58 = vld [vmem:[%s1 + $0xf8] sm:$0xff]
  %v59 = vld [vmem:[%s1 + $0x100] sm:$0xff]
  %v60 = vld [vmem:[%s1 + $0x108] sm:$0xff]
  %v61 = vld [vmem:[%s1 + $0x110] sm:$0xff]
  %v62 = vld [vmem:[%s1 + $0x118] sm:$0xff]
  %v63 = vld [vmem:[%s1 + $0x120] sm:$0xff]
  %v64 = vld [vmem:[%s1 + $0x128] sm:$0xff]
  %v65 = vld [vmem:[%s1 + $0x130] sm:$0xff]
  %v66 = vld [vmem:[%s1 + $0x138] sm:$0xff]
  %v67 = vld [vmem:[%s1 + $0x140] sm:$0xff]
  %v68 = vld [vmem:[%s1 + $0x148] sm:$0xff]
  %v69 = vld [vmem:[%s1 + $0x150] sm:$0xff]
  %v70 = vld [vmem:[%s1 + $0x158] sm:$0xff]
  %v71 = vld [vmem:[%s1 + $0x160] sm:$0xff]
  %v72 = vld [vmem:[%s1 + $0x168] sm:$0xff]
  %v73 = vld [vmem:[%s1 + $0x170] sm:$0xff]
  %v74 = vld [vmem:[%s1 + $0x178] sm:$0xff]
  %v75 = vld [vmem:[%s1 + $0x180] sm:$0xff]
  %v76 = vld [vmem:[%s1 + $0x188] sm:$0xff]
  %v77 = vld [vmem:[%s1 + $0x190] sm:$0xff]
  %v78 = vld [vmem:[%s1 + $0x198] sm:$0xff]
  %v79 = vld [vmem:[%s1 + $0x1a0] sm:$0xff]
  %v80 = vld [vmem:[%s1 + $0x1a8] sm:$0xff]
  %v81 = vld [vmem:[%s1 + $0x1b0] sm:$0xff]
  %v82 = vld [vmem:[%s1 + $0x1b8] sm:$0xff]
  %v83 = vld [vmem:[%s1 + $0x1c0] sm:$0xff]
  %v84 = vld [vmem:[%s1 + $0x1c8] sm:$0xff]
  %v85 = vld [vmem:[%s1 + $0x1d0] sm:$0xff]
  %v86 = vld [vmem:[%s1 + $0x1d8] sm:$0xff]
  %v87 = vld [vmem:[%s1 + $0x1e0] sm:$0xff]
  %v88 = vld [vmem:[%s1 + $0x1e8] sm:$0xff]
  %v89 = vld [vmem:[%s1 + $0x1f0] sm:$0xff]
  %v90 = vld [vmem:[%s1 + $0x1f8] sm:$0xff]
  %v91 = vld [vmem:[%s1 + $0x200] sm:$0xff]
  %v92 = vld [vmem:[%s1 + $0x208] sm:$0xff]
  %v93 = vld [vmem:[%s1 + $0x210] sm:$0xff]
  %v94 = vld [vmem:[%s1 + $0x218] sm:$0xff]
  %v95 = vld [vmem:[%s1 + $0x220] sm:$0xff]
  %v96 = vld [vmem:[%s1 + $0x228] sm:$0xff]
  %v97 = vld [vmem:[%s1 + $0x230] sm:$0xff]
  %v98 = vld [vmem:[%s1 + $0x238] sm:$0xff]
  %v99 = vld [vmem:[%s1 + $0x240] sm:$0xff]
  %v100 = vld [vmem:[%s1 + $0x248] sm:$0xff]
  %v101 = vld [vmem:[%s1 + $0x250] sm:$0xff]
  %v102 = vld [vmem:[%s1 + $0x258] sm:$0xff]
  %v103 = vld [vmem:[%s1 + $0x260] sm:$0xff]
  %v104 = vld [vmem:[%s1 + $0x268] sm:$0xff]
  %v105 = vld [vmem:[%s1 + $0x270] sm:$0xff]
  %v106 = vld [vmem:[%s1 + $0x278] sm:$0xff]
  %v107 = vld [vmem:[%s2] sm:$0x3]
  %v109 = vlaneseq
  %v110 = vshrl.u32 %v109, 7
  %v111 = vsub.s32 0, %v110
  %v112 = vrot.slane %v107, %v111
  %v113 = vlaneseq
  %v114 = vshrl.u32 %v113, 7
  %v115 = vsub.s32 1, %v114
  %v116 = vrot.slane %v107, %v115
  %v125 = vunpack.c.l.b16 %v21
  %v126 = vunpack.c.h.b16 %v21
  %v127 = vunpack.c.l.b16 %v22
  %v128 = vunpack.c.h.b16 %v22
  %v129 = vunpack.c.l.b16 %v23
  %v130 = vunpack.c.l.b16 %v24
  %v131 = vunpack.c.h.b16 %v24
  %v132 = vunpack.c.l.b16 %v25
  %v133 = vunpack.c.h.b16 %v25
  %v134 = vunpack.c.l.b16 %v26
  %v135 = vpack.c.b16 %v130, %v125
  %v136 = vpack.c.b16 %v131, %v126
  %v137 = vpack.c.b16 %v132, %v127
  %v138 = vpack.c.b16 %v133, %v128
  %v139 = vpack.c.b16 %v134, %v129
  %v225 = vunpack.c.l.b16 %v27
  %v226 = vunpack.c.h.b16 %v27
  %v227 = vunpack.c.l.b16 %v28
  %v228 = vunpack.c.h.b16 %v28
  %v229 = vunpack.c.l.b16 %v29
  %v230 = vunpack.c.h.b16 %v29
  %v231 = vunpack.c.l.b16 %v30
  %v232 = vunpack.c.h.b16 %v30
  %v233 = vunpack.c.l.b16 %v31
  %v234 = vunpack.c.h.b16 %v31
  %v235 = vunpack.c.l.b16 %v32
  %v236 = vunpack.c.h.b16 %v32
  %v237 = vunpack.c.l.b16 %v33
  %v238 = vunpack.c.h.b16 %v33
  %v239 = vunpack.c.l.b16 %v34
  %v240 = vunpack.c.h.b16 %v34
  %v241 = vunpack.c.l.b16 %v35
  %v242 = vunpack.c.h.b16 %v35
  %v243 = vunpack.c.l.b16 %v36
  %v244 = vunpack.c.h.b16 %v36
  %v245 = vunpack.c.l.b16 %v37
  %v246 = vunpack.c.h.b16 %v37
  %v247 = vunpack.c.l.b16 %v38
  %v248 = vunpack.c.h.b16 %v38
  %v249 = vunpack.c.l.b16 %v39
  %v250 = vunpack.c.h.b16 %v39
  %v251 = vunpack.c.l.b16 %v40
  %v252 = vunpack.c.h.b16 %v40
  %v253 = vunpack.c.l.b16 %v41
  %v254 = vunpack.c.h.b16 %v41
  %v255 = vunpack.c.l.b16 %v42
  %v256 = vunpack.c.h.b16 %v42
  %v257 = vunpack.c.l.b16 %v43
  %v258 = vunpack.c.h.b16 %v43
  %v259 = vunpack.c.l.b16 %v44
  %v260 = vunpack.c.h.b16 %v44
  %v261 = vunpack.c.l.b16 %v45
  %v262 = vunpack.c.h.b16 %v45
  %v263 = vunpack.c.l.b16 %v46
  %v264 = vunpack.c.h.b16 %v46
  %v265 = vunpack.c.l.b16 %v47
  %v266 = vunpack.c.h.b16 %v47
  %v267 = vunpack.c.l.b16 %v48
  %v268 = vunpack.c.h.b16 %v48
  %v269 = vunpack.c.l.b16 %v49
  %v270 = vunpack.c.h.b16 %v49
  %v271 = vunpack.c.l.b16 %v50
  %v272 = vunpack.c.h.b16 %v50
  %v273 = vunpack.c.l.b16 %v51
  %v274 = vunpack.c.h.b16 %v51
  %v275 = vunpack.c.l.b16 %v52
  %v276 = vunpack.c.h.b16 %v52
  %v277 = vunpack.c.l.b16 %v53
  %v278 = vunpack.c.h.b16 %v53
  %v279 = vunpack.c.l.b16 %v54
  %v280 = vunpack.c.h.b16 %v54
  %v281 = vunpack.c.l.b16 %v55
  %v282 = vunpack.c.h.b16 %v55
  %v283 = vunpack.c.l.b16 %v56
  %v284 = vunpack.c.h.b16 %v56
  %v285 = vunpack.c.l.b16 %v57
  %v286 = vunpack.c.h.b16 %v57
  %v287 = vunpack.c.l.b16 %v58
  %v288 = vunpack.c.h.b16 %v58
  %v289 = vunpack.c.l.b16 %v59
  %v290 = vunpack.c.h.b16 %v59
  %v291 = vunpack.c.l.b16 %v60
  %v292 = vunpack.c.h.b16 %v60
  %v293 = vunpack.c.l.b16 %v61
  %v294 = vunpack.c.h.b16 %v61
  %v295 = vunpack.c.l.b16 %v62
  %v296 = vunpack.c.h.b16 %v62
  %v297 = vunpack.c.l.b16 %v63
  %v298 = vunpack.c.h.b16 %v63
  %v299 = vunpack.c.l.b16 %v64
  %v300 = vunpack.c.h.b16 %v64
  %v301 = vunpack.c.l.b16 %v65
  %v302 = vunpack.c.h.b16 %v65
  %v303 = vunpack.c.l.b16 %v66
  %v304 = vunpack.c.h.b16 %v66
  %v305 = vunpack.c.l.b16 %v67
  %v306 = vunpack.c.h.b16 %v67
  %v307 = vunpack.c.l.b16 %v68
  %v308 = vunpack.c.h.b16 %v68
  %v309 = vunpack.c.l.b16 %v69
  %v310 = vunpack.c.h.b16 %v69
  %v311 = vunpack.c.l.b16 %v70
  %v312 = vunpack.c.h.b16 %v70
  %v313 = vunpack.c.l.b16 %v71
  %v314 = vunpack.c.h.b16 %v71
  %v315 = vunpack.c.l.b16 %v72
  %v316 = vunpack.c.h.b16 %v72
  %v317 = vunpack.c.l.b16 %v73
  %v318 = vunpack.c.h.b16 %v73
  %v319 = vunpack.c.l.b16 %v74
  %v320 = vunpack.c.h.b16 %v74
  %v321 = vunpack.c.l.b16 %v75
  %v322 = vunpack.c.h.b16 %v75
  %v323 = vunpack.c.l.b16 %v76
  %v324 = vunpack.c.h.b16 %v76
  %v325 = vunpack.c.l.b16 %v77
  %v326 = vunpack.c.h.b16 %v77
  %v327 = vunpack.c.l.b16 %v78
  %v328 = vunpack.c.h.b16 %v78
  %v329 = vunpack.c.l.b16 %v79
  %v330 = vunpack.c.h.b16 %v79
  %v331 = vunpack.c.l.b16 %v80
  %v332 = vunpack.c.h.b16 %v80
  %v333 = vunpack.c.l.b16 %v81
  %v334 = vunpack.c.h.b16 %v81
  %v335 = vunpack.c.l.b16 %v82
  %v336 = vunpack.c.h.b16 %v82
  %v337 = vunpack.c.l.b16 %v83
  %v338 = vunpack.c.h.b16 %v83
  %v339 = vunpack.c.l.b16 %v84
  %v340 = vunpack.c.h.b16 %v84
  %v341 = vunpack.c.l.b16 %v85
  %v342 = vunpack.c.h.b16 %v85
  %v343 = vunpack.c.l.b16 %v86
  %v344 = vunpack.c.h.b16 %v86
  %v345 = vunpack.c.l.b16 %v87
  %v346 = vunpack.c.h.b16 %v87
  %v347 = vunpack.c.l.b16 %v88
  %v348 = vunpack.c.h.b16 %v88
  %v349 = vunpack.c.l.b16 %v89
  %v350 = vunpack.c.h.b16 %v89
  %v351 = vunpack.c.l.b16 %v90
  %v352 = vunpack.c.h.b16 %v90
  %v353 = vunpack.c.l.b16 %v91
  %v354 = vunpack.c.h.b16 %v91
  %v355 = vunpack.c.l.b16 %v92
  %v356 = vunpack.c.h.b16 %v92
  %v357 = vunpack.c.l.b16 %v93
  %v358 = vunpack.c.h.b16 %v93
  %v359 = vunpack.c.l.b16 %v94
  %v360 = vunpack.c.h.b16 %v94
  %v361 = vunpack.c.l.b16 %v95
  %v362 = vunpack.c.h.b16 %v95
  %v363 = vunpack.c.l.b16 %v96
  %v364 = vunpack.c.h.b16 %v96
  %v365 = vunpack.c.l.b16 %v97
  %v366 = vunpack.c.h.b16 %v97
  %v367 = vunpack.c.l.b16 %v98
  %v368 = vunpack.c.h.b16 %v98
  %v369 = vunpack.c.l.b16 %v99
  %v370 = vunpack.c.h.b16 %v99
  %v371 = vunpack.c.l.b16 %v100
  %v372 = vunpack.c.h.b16 %v100
  %v373 = vunpack.c.l.b16 %v101
  %v374 = vunpack.c.h.b16 %v101
  %v375 = vunpack.c.l.b16 %v102
  %v376 = vunpack.c.h.b16 %v102
  %v377 = vunpack.c.l.b16 %v103
  %v378 = vunpack.c.h.b16 %v103
  %v379 = vunpack.c.l.b16 %v104
  %v380 = vunpack.c.h.b16 %v104
  %v381 = vunpack.c.l.b16 %v105
  %v382 = vunpack.c.h.b16 %v105
  %v383 = vunpack.c.l.b16 %v106
  %v384 = vunpack.c.h.b16 %v106
  %v385 = vpack.c.b16 %v227, %v225
  %v386 = vpack.c.b16 %v228, %v226
  %v387 = vpack.c.b16 %v231, %v229
  %v388 = vpack.c.b16 %v232, %v230
  %v389 = vpack.c.b16 %v235, %v233
  %v390 = vpack.c.b16 %v236, %v234
  %v391 = vpack.c.b16 %v239, %v237
  %v392 = vpack.c.b16 %v240, %v238
  %v393 = vpack.c.b16 %v243, %v241
  %v394 = vpack.c.b16 %v244, %v242
  %v395 = vpack.c.b16 %v247, %v245
  %v396 = vpack.c.b16 %v248, %v246
  %v397 = vpack.c.b16 %v251, %v249
  %v398 = vpack.c.b16 %v252, %v250
  %v399 = vpack.c.b16 %v255, %v253
  %v400 = vpack.c.b16 %v256, %v254
  %v401 = vpack.c.b16 %v259, %v257
  %v402 = vpack.c.b16 %v260, %v258
  %v403 = vpack.c.b16 %v263, %v261
  %v404 = vpack.c.b16 %v264, %v262
  %v405 = vpack.c.b16 %v267, %v265
  %v406 = vpack.c.b16 %v268, %v266
  %v407 = vpack.c.b16 %v271, %v269
  %v408 = vpack.c.b16 %v272, %v270
  %v409 = vpack.c.b16 %v275, %v273
  %v410 = vpack.c.b16 %v276, %v274
  %v411 = vpack.c.b16 %v279, %v277
  %v412 = vpack.c.b16 %v280, %v278
  %v413 = vpack.c.b16 %v283, %v281
  %v414 = vpack.c.b16 %v284, %v282
  %v415 = vpack.c.b16 %v287, %v285
  %v416 = vpack.c.b16 %v288, %v286
  %v417 = vpack.c.b16 %v291, %v289
  %v418 = vpack.c.b16 %v292, %v290
  %v419 = vpack.c.b16 %v295, %v293
  %v420 = vpack.c.b16 %v296, %v294
  %v421 = vpack.c.b16 %v299, %v297
  %v422 = vpack.c.b16 %v300, %v298
  %v423 = vpack.c.b16 %v303, %v301
  %v424 = vpack.c.b16 %v304, %v302
  %v425 = vpack.c.b16 %v307, %v305
  %v426 = vpack.c.b16 %v308, %v306
  %v427 = vpack.c.b16 %v311, %v309
  %v428 = vpack.c.b16 %v312, %v310
  %v429 = vpack.c.b16 %v315, %v313
  %v430 = vpack.c.b16 %v316, %v314
  %v431 = vpack.c.b16 %v319, %v317
  %v432 = vpack.c.b16 %v320, %v318
  %v433 = vpack.c.b16 %v323, %v321
  %v434 = vpack.c.b16 %v324, %v322
  %v435 = vpack.c.b16 %v327, %v325
  %v436 = vpack.c.b16 %v328, %v326
  %v437 = vpack.c.b16 %v331, %v329
  %v438 = vpack.c.b16 %v332, %v330
  %v439 = vpack.c.b16 %v335, %v333
  %v440 = vpack.c.b16 %v336, %v334
  %v441 = vpack.c.b16 %v339, %v337
  %v442 = vpack.c.b16 %v340, %v338
  %v443 = vpack.c.b16 %v343, %v341
  %v444 = vpack.c.b16 %v344, %v342
  %v445 = vpack.c.b16 %v347, %v345
  %v446 = vpack.c.b16 %v348, %v346
  %v447 = vpack.c.b16 %v351, %v349
  %v448 = vpack.c.b16 %v352, %v350
  %v449 = vpack.c.b16 %v355, %v353
  %v450 = vpack.c.b16 %v356, %v354
  %v451 = vpack.c.b16 %v359, %v357
  %v452 = vpack.c.b16 %v360, %v358
  %v453 = vpack.c.b16 %v363, %v361
  %v454 = vpack.c.b16 %v364, %v362
  %v455 = vpack.c.b16 %v367, %v365
  %v456 = vpack.c.b16 %v368, %v366
  %v457 = vpack.c.b16 %v371, %v369
  %v458 = vpack.c.b16 %v372, %v370
  %v459 = vpack.c.b16 %v375, %v373
  %v460 = vpack.c.b16 %v376, %v374
  %v461 = vpack.c.b16 %v379, %v377
  %v462 = vpack.c.b16 %v380, %v378
  %v463 = vpack.c.b16 %v383, %v381
  %v464 = vpack.c.b16 %v384, %v382
  %545 = vmatprep.subr.bf16.mxu0 %v386
  %546 = vmatpush1.bf16.msra.mxu0 %v385
  %547 = vmatprep.subr.bf16.mxu0 %v388
  %548 = vmatpush1.bf16.msra.mxu0 %v387
  %549 = vmatprep.subr.bf16.mxu0 %v390
  %550 = vmatpush1.bf16.msra.mxu0 %v389
  %551 = vmatprep.subr.bf16.mxu0 %v392
  %552 = vmatpush1.bf16.msra.mxu0 %v391
  %553 = vmatprep.subr.bf16.mxu0 %v394
  %554 = vmatpush1.bf16.msra.mxu0 %v393
  %555 = vmatprep.subr.bf16.mxu0 %v396
  %556 = vmatpush1.bf16.msra.mxu0 %v395
  %557 = vmatprep.subr.bf16.mxu0 %v398
  %558 = vmatpush1.bf16.msra.mxu0 %v397
  %559 = vmatprep.subr.bf16.mxu0 %v400
  %560 = vmatpush1.bf16.msra.mxu0 %v399
  %561 = vmatprep.subr.bf16.mxu0 %v402
  %562 = vmatpush1.bf16.msra.mxu0 %v401
  %563 = vmatprep.subr.bf16.mxu0 %v404
  %564 = vmatpush1.bf16.msra.mxu0 %v403
  %565 = vmatprep.subr.bf16.mxu0 %v406
  %566 = vmatpush1.bf16.msra.mxu0 %v405
  %567 = vmatprep.subr.bf16.mxu0 %v408
  %568 = vmatpush1.bf16.msra.mxu0 %v407
  %569 = vmatprep.subr.bf16.mxu0 %v410
  %570 = vmatpush1.bf16.msra.mxu0 %v409
  %571 = vmatprep.subr.bf16.mxu0 %v412
  %572 = vmatpush1.bf16.msra.mxu0 %v411
  %573 = vmatprep.subr.bf16.mxu0 %v414
  %574 = vmatpush1.bf16.msra.mxu0 %v413
  %575 = vmatprep.subr.bf16.mxu0 %v416
  %576 = vmatpush1.bf16.msra.mxu0 %v415
  %577 = vmatprep.mubr.bf16.mxu0 %v136
  %578 = vmatmul.mubr.bf16.gmra.mrb[0].mxu0 %v135
  %v579 = vpop.f32.mrb[0].mxu0
  %v580 = vadd.f32 %v112, %v579
  %v581 = vpop.f32.mrb[0].mxu0
  %v582 = vadd.f32 %v116, %v581
  %v583 = vpop.f32.mrb[0].mxu0
  %v584 = vadd.f32 %v112, %v583
  %v585 = vpop.f32.mrb[0].mxu0
  %v586 = vadd.f32 %v116, %v585
  %587 = vdwg.mxu0
  %588 = vmatprep.subr.bf16.mxu0 %v418
  %589 = vmatpush1.bf16.msra.mxu0 %v417
  %590 = vmatprep.subr.bf16.mxu0 %v420
  %591 = vmatpush1.bf16.msra.mxu0 %v419
  %592 = vmatprep.subr.bf16.mxu0 %v422
  %593 = vmatpush1.bf16.msra.mxu0 %v421
  %594 = vmatprep.subr.bf16.mxu0 %v424
  %595 = vmatpush1.bf16.msra.mxu0 %v423
  %596 = vmatprep.subr.bf16.mxu0 %v426
  %597 = vmatpush1.bf16.msra.mxu0 %v425
  %598 = vmatprep.subr.bf16.mxu0 %v428
  %599 = vmatpush1.bf16.msra.mxu0 %v427
  %600 = vmatprep.subr.bf16.mxu0 %v430
  %601 = vmatpush1.bf16.msra.mxu0 %v429
  %602 = vmatprep.subr.bf16.mxu0 %v432
  %603 = vmatpush1.bf16.msra.mxu0 %v431
  %604 = vmatprep.subr.bf16.mxu0 %v434
  %605 = vmatpush1.bf16.msra.mxu0 %v433
  %606 = vmatprep.subr.bf16.mxu0 %v436
  %607 = vmatpush1.bf16.msra.mxu0 %v435
  %608 = vmatprep.subr.bf16.mxu0 %v438
  %609 = vmatpush1.bf16.msra.mxu0 %v437
  %610 = vmatprep.subr.bf16.mxu0 %v440
  %611 = vmatpush1.bf16.msra.mxu0 %v439
  %612 = vmatprep.subr.bf16.mxu0 %v442
  %613 = vmatpush1.bf16.msra.mxu0 %v441
  %614 = vmatprep.subr.bf16.mxu0 %v444
  %615 = vmatpush1.bf16.msra.mxu0 %v443
  %616 = vmatprep.subr.bf16.mxu0 %v446
  %617 = vmatpush1.bf16.msra.mxu0 %v445
  %618 = vmatprep.subr.bf16.mxu0 %v448
  %619 = vmatpush1.bf16.msra.mxu0 %v447
  %620 = vmatprep.mubr.bf16.mxu0 %v138
  %621 = vmatmul.mubr.bf16.gmra.mrb[0].mxu0 %v137
  %v622 = vpop.f32.mrb[0].mxu0
  %v623 = vadd.f32 %v580, %v622
  %v624 = vpop.f32.mrb[0].mxu0
  %v625 = vadd.f32 %v582, %v624
  %v626 = vpop.f32.mrb[0].mxu0
  %v627 = vadd.f32 %v584, %v626
  %v628 = vpop.f32.mrb[0].mxu0
  %v629 = vadd.f32 %v586, %v628
  %630 = vdwg.mxu0
  %631 = vmatprep.subr.bf16.mxu0 %v450
  %632 = vmatpush1.bf16.msra.mxu0 %v449
  %633 = vmatprep.subr.bf16.mxu0 %v452
  %634 = vmatpush1.bf16.msra.mxu0 %v451
  %635 = vmatprep.subr.bf16.mxu0 %v454
  %636 = vmatpush1.bf16.msra.mxu0 %v453
  %637 = vmatprep.subr.bf16.mxu0 %v456
  %638 = vmatpush1.bf16.msra.mxu0 %v455
  %639 = vmatprep.subr.bf16.mxu0 %v458
  %640 = vmatpush1.bf16.msra.mxu0 %v457
  %641 = vmatprep.subr.bf16.mxu0 %v460
  %642 = vmatpush1.bf16.msra.mxu0 %v459
  %643 = vmatprep.subr.bf16.mxu0 %v462
  %644 = vmatpush1.bf16.msra.mxu0 %v461
  %645 = vmatprep.subr.bf16.mxu0 %v464
  %646 = vmatpush1.bf16.msra.mxu0 %v463
  %647 = vmatprep.subr.bf16.mxu0 0
  %648 = vmatpush1.bf16.msra.mxu0 0
  %649 = vmatprep.subr.bf16.mxu0 0
  %650 = vmatpush1.bf16.msra.mxu0 0
  %651 = vmatprep.subr.bf16.mxu0 0
  %652 = vmatpush1.bf16.msra.mxu0 0
  %653 = vmatprep.subr.bf16.mxu0 0
  %654 = vmatpush1.bf16.msra.mxu0 0
  %655 = vmatprep.subr.bf16.mxu0 0
  %656 = vmatpush1.bf16.msra.mxu0 0
  %657 = vmatprep.subr.bf16.mxu0 0
  %658 = vmatpush1.bf16.msra.mxu0 0
  %659 = vmatprep.subr.bf16.mxu0 0
  %660 = vmatpush1.bf16.msra.mxu0 0
  %661 = vmatprep.subr.bf16.mxu0 0
  %662 = vmatpush1.bf16.msra.mxu0 0
  %663 = vmatprep.mubr.bf16.mxu0 0
  %664 = vmatmul.mubr.bf16.gmra.mrb[0].mxu0 %v139
  %v665 = vpop.f32.mrb[0].mxu0
  %v666 = vadd.f32 %v623, %v665
  %v667 = vpop.f32.mrb[0].mxu0
  %v668 = vadd.f32 %v625, %v667
  %v669 = vpop.f32.mrb[0].mxu0
  %v670 = vadd.f32 %v627, %v669
  %v671 = vpop.f32.mrb[0].mxu0
  %v672 = vadd.f32 %v629, %v671
  %673 = vdwg.mxu0
  %v674 = vpack.c.bf16 %v670, %v666
  %v675 = vpack.c.bf16 %v672, %v668
  %v678 = vunpack.c.l.b16 %v674
  %v679 = vunpack.c.l.b16 %v675
  %v680 = vunpack.c.h.b16 %v674
  %v681 = vunpack.c.h.b16 %v675
  %v682 = vpack.c.b16 %v679, %v678
  %v683 = vpack.c.b16 %v681, %v680
  %686 = vst [vmem:[%s3] sm:$0xff] %v682
  %687 = vst [vmem:[%s3 + $0x8] sm:$0xff] %v683
  // Predicated region
  $region14: #{_lambda_.35} parent=0 // pred_check
    _
  $region15: #{_lambda_.35} parent=0 // pred_check_branch
    %689 = sbr.rel (0) target = $region17
  $region16: #{_lambda_.35} parent=0 // pred_region
    _
  $region17: #{_lambda_.35} parent=0 // pred_fallthru
    _
  // Predicated region
  $region18: #{_lambda_.35} parent=0 // pred_check
    _
  $region19: #{_lambda_.35} parent=0 // pred_check_branch
    %691 = sbr.rel (0) target = $region21
  $region20: #{_lambda_.35} parent=0 // pred_region
    _
  $region21: #{_lambda_.35} parent=0 // pred_fallthru
    _

// kernel: _lambda_.38
$region0: #{_lambda_.38}
  #allocation0 [shape = 'u32[]', space=smem, size = 0x4, offset = 0x4, fixed_abs, tag = 'smem constant byte address 0x4 - core index']
  #allocation1 [shape = 'u32[144,128]{1,0:T(1,128)}', space=vmem, size = 0x12000, scoped, tag = 'internal scratch']
  #allocation2 [shape = 'f32[16,128]{1,0:T(8,128)}', space=vmem, size = 0x2000, scoped, tag = 'scratch operand']
  %s0 = inlined_call_operand.vmem [shape: bf16[16,1280], index: 0, kind: input, shape index: {}]
  %s1 = inlined_call_operand.vmem [shape: bf16[1280,128], index: 1, kind: input, shape index: {}]
  %s2 = inlined_call_operand.vmem [shape: f32[1,128], index: 2, kind: input, shape index: {}]
  %s3 = inlined_call_operand.vmem [shape: bf16[16,128], index: 3, kind: output, shape index: {}]
  %s4 = sld [smem:[#allocation0]]
  $region79: #{_lambda_.38} parent=0
    _
  %s6 = ssub.s32 1, %s4
  %s7 = scalar_select 0, %s6, %s4
  $region1: #{_lambda_.38} parent=0
    #allocation3 [shape = 'u8[40960]{0}', space=vmem, size = 0xa000, scoped, tag = 'input window, operand 0']
    loop: start=0, step=1, limit=4
    $region2: #{_lambda_.38} parent=1 // loop_pre_header
      _
    $region3: #{_lambda_.38} parent=1 // loop_header
      %s9 = sphi 0, %s13
      %p10 = scmp.ge.s32.totalorder %s9, 4
      %s16 = sphi 0, %s35
      %s17 = sphi 0, %s31
      %s18 = sphi 0, %s27
      %s19 = sphi 0, %s16
      %s20 = sphi 0, %s17
      %s21 = sphi 0, %s18
      %s22 = sphi 0, %s19
      %s23 = sphi 0, %s20
      %s24 = sphi 0, %s21
      %s40 = sphi 0, %s42
      %s43 = sphi 0, %s40
      %s44 = sphi 0, %s43
      %s60 = sphi 0, %s44
      %s68 = sphi 0, %s70
      %s71 = sphi 0, %s68
      %s72 = sphi 0, %s71
      %s88 = sphi 0, %s72
      %s94 = sphi 0, %s96
      %s97 = sphi 0, %s94
      %s98 = sphi 0, %s97
      %s114 = sphi 0, %s98
      %s122 = sphi 0, %s124
      %s125 = sphi 0, %s122
      %s126 = sphi 0, %s125
      %s142 = sphi 0, %s126
    $region4: #{_lambda_.38} parent=1 // loop_header_branch
      %12 = sbr.rel (%p10) target = $region8
    $region5: #{_lambda_.38} parent=1 // loop_body
      %s14 = ssub.s32 %s9, 1
      %s15 = ssub.s32 %s9, 2
      %s25 = sadd.s32 1, %s18
      %p26 = scmp.ge.s32.totalorder %s25, 2
      %s27 = scalar_select %p26, 0, %s25
      %s28 = sadd.s32 1, %s17
      %s29 = scalar_select %p26, %s28, %s17
      %p30 = scmp.ge.s32.totalorder %s29, 1
      %s31 = scalar_select %p30, 0, %s29
      %s32 = sadd.s32 1, %s16
      %s33 = scalar_select %p30, %s32, %s16
      %p34 = scmp.ge.s32.totalorder %s33, 1
      %s35 = scalar_select %p34, 0, %s33
      %s36 = ssub.s32 %s16, %s35
      %s37 = ssub.s32 %s18, %s27
      %s38 = sor.u32 %s36, %s37
      %p39 = scmp.eq.s32.totalorder %s38, 0
      %s41 = sadd.s32 %s40, 1
      %s42 = scalar_select %p39, %s40, %s41
      %p45 = pneg %p39
      %p46 = scmp.eq.s32.totalorder %s9, 1
      %p47 = por %p45, %p46
      %p48 = scmp.ne.s32.totalorder %s40, %s43
      %p49 = scmp.eq.s32.totalorder %s9, 0
      %p50 = por %p48, %p49
      %p51 = scmp.ne.s32.totalorder %s40, %s43
      %p52 = scmp.eq.s32.totalorder %s14, 1
      %p53 = por %p51, %p52
      %p54 = scmp.ne.s32.totalorder %s43, %s44
      %p55 = scmp.eq.s32.totalorder %s14, 0
      %p56 = por %p54, %p55
      %p57 = scmp.ne.s32.totalorder %s43, %s44
      %p58 = scmp.eq.s32.totalorder %s15, 1
      %p59 = por %p57, %p58
      %p61 = scmp.ne.s32.totalorder %s44, %s60
      %p62 = scmp.eq.s32.totalorder %s15, 0
      %p63 = por %p61, %p62
      %s64 = ssub.s32 %s18, %s27
      %s65 = ssub.s32 %s17, %s31
      %s66 = sor.u32 %s64, %s65
      %p67 = scmp.eq.s32.totalorder %s66, 0
      %s69 = sadd.s32 %s68, 1
      %s70 = scalar_select %p67, %s68, %s69
      %p73 = pneg %p67
      %p74 = scmp.eq.s32.totalorder %s9, 1
      %p75 = por %p73, %p74
      %p76 = scmp.ne.s32.totalorder %s68, %s71
      %p77 = scmp.eq.s32.totalorder %s9, 0
      %p78 = por %p76, %p77
      %p79 = scmp.ne.s32.totalorder %s68, %s71
      %p80 = scmp.eq.s32.totalorder %s14, 1
      %p81 = por %p79, %p80
      %p82 = scmp.ne.s32.totalorder %s71, %s72
      %p83 = scmp.eq.s32.totalorder %s14, 0
      %p84 = por %p82, %p83
      %p85 = scmp.ne.s32.totalorder %s71, %s72
      %p86 = scmp.eq.s32.totalorder %s15, 1
      %p87 = por %p85, %p86
      %p89 = scmp.ne.s32.totalorder %s72, %s88
      %p90 = scmp.eq.s32.totalorder %s15, 0
      %p91 = por %p89, %p90
      %s92 = ssub.s32 %s17, %s31
      %p93 = scmp.eq.s32.totalorder %s92, 0
      %s95 = sadd.s32 %s94, 1
      %s96 = scalar_select %p93, %s94, %s95
      %p99 = pneg %p93
      %p100 = scmp.eq.s32.totalorder %s9, 1
      %p101 = por %p99, %p100
      %p102 = scmp.ne.s32.totalorder %s94, %s97
      %p103 = scmp.eq.s32.totalorder %s9, 0
      %p104 = por %p102, %p103
      %p105 = scmp.ne.s32.totalorder %s94, %s97
      %p106 = scmp.eq.s32.totalorder %s14, 1
      %p107 = por %p105, %p106
      %p108 = scmp.ne.s32.totalorder %s97, %s98
      %p109 = scmp.eq.s32.totalorder %s14, 0
      %p110 = por %p108, %p109
      %p111 = scmp.ne.s32.totalorder %s97, %s98
      %p112 = scmp.eq.s32.totalorder %s15, 1
      %p113 = por %p111, %p112
      %p115 = scmp.ne.s32.totalorder %s98, %s114
      %p116 = scmp.eq.s32.totalorder %s15, 0
      %p117 = por %p115, %p116
      %s118 = ssub.s32 %s16, %s35
      %s119 = ssub.s32 %s17, %s31
      %s120 = sor.u32 %s118, %s119
      %p121 = scmp.eq.s32.totalorder %s120, 0
      %s123 = sadd.s32 %s122, 1
      %s124 = scalar_select %p121, %s122, %s123
      %p127 = pneg %p121
      %p128 = scmp.eq.s32.totalorder %s9, 1
      %p129 = por %p127, %p128
      %p130 = scmp.ne.s32.totalorder %s122, %s125
      %p131 = scmp.eq.s32.totalorder %s9, 0
      %p132 = por %p130, %p131
      %p133 = scmp.ne.s32.totalorder %s122, %s125
      %p134 = scmp.eq.s32.totalorder %s14, 1
      %p135 = por %p133, %p134
      %p136 = scmp.ne.s32.totalorder %s125, %s126
      %p137 = scmp.eq.s32.totalorder %s14, 0
      %p138 = por %p136, %p137
      %p139 = scmp.ne.s32.totalorder %s125, %s126
      %p140 = scmp.eq.s32.totalorder %s15, 1
      %p141 = por %p139, %p140
      %p143 = scmp.ne.s32.totalorder %s126, %s142
      %p144 = scmp.eq.s32.totalorder %s15, 0
      %p145 = por %p143, %p144
      %p146 = scmp.le.s32.totalorder 1, %s9
      %p147 = scmp.lt.s32.totalorder %s9, 3
      %p148 = pnand %p146, %p147
      %p149 = pneg %p148
      // Predicated region
      $region9: #{_lambda_.38} parent=5 // pred_check
        _
      $region10: #{_lambda_.38} parent=5 // pred_check_branch
        %151 = sbr.rel (%p148) target = $region12
      $region11: #{_lambda_.38} parent=5 // pred_region
        %s152 = ssub.s32 %s9, 1
        // Predicated region
        $region13: #{_lambda_.38} parent=11 // pred_check
          %p153 = pneg %p110
        $region14: #{_lambda_.38} parent=11 // pred_check_branch
          %155 = sbr.rel (%p153) target = $region16
        $region15: #{_lambda_.38} parent=11 // pred_region
          %p156 = scmp.lt.s32.totalorder %s20, 0
          %s157 = scalar_select %p156, %s20, 0
          %s158 = scalar_lea.vmem %s2, %s157
        $region16: #{_lambda_.38} parent=11 // pred_fallthru
          _
      $region12: #{_lambda_.38} parent=5 // pred_fallthru
        _
      %p159 = scmp.lt.s32.totalorder %s9, 2
      // Predicated region
      $region17: #{_lambda_.38} parent=5 // pred_check
        %p160 = pneg %p159
      $region18: #{_lambda_.38} parent=5 // pred_check_branch
        %162 = sbr.rel (%p160) target = $region20
      $region19: #{_lambda_.38} parent=5 // pred_region
        // Predicated region
        $region21: #{_lambda_.38} parent=19 // pred_check
          %p163 = pneg %p50
        $region22: #{_lambda_.38} parent=19 // pred_check_branch
          %165 = sbr.rel (%p163) target = $region24
        $region23: #{_lambda_.38} parent=19 // pred_region
          %s166 = sand.u32 %s40, 1
          %s167 = sand.u32 %s40, 1
          %s168 = smul.addr %s167, 40
          %s169 = scalar_lea.vmem [#allocation3], %s168
          %s170 = smul.u32 2, %s16
          %s171 = smul.u32 5, %s18
          %s172 = smul.addr %s170, 10
          %s173 = sadd.s32 %s171, %s172
          %s174 = smul.addr %s173, 4
          %s175 = scalar_lea.vmem %s0, %s174
          // Predicated region
          $region25: #{_lambda_.38} parent=23 // pred_check
            _
          $region26: #{_lambda_.38} parent=23 // pred_check_branch
            %177 = sbr.rel (0) target = $region28
          $region27: #{_lambda_.38} parent=23 // pred_region
            // Predicated region
            $region29: #{_lambda_.38} parent=27 // pred_check
              _
            $region30: #{_lambda_.38} parent=27 // pred_check_branch
              %179 = sbr.rel (0) target = $region32
            $region31: #{_lambda_.38} parent=27 // pred_region
              %s180 = scalar_lea.vmem %s175, 16
              %s181 = scalar_lea.vmem %s169, 16 [#allocation3]
              loop: start=0, step=1, limit=1
              $region33: #{_lambda_.38} parent=31 // loop_pre_header
                _
              $region34: #{_lambda_.38} parent=31 // loop_header
                %s183 = sphi 0, %s187
                %p184 = scmp.ge.s32.totalorder %s183, 1
                %s188 = sphi %s175, %s175
                %s189 = sphi %s169, %s169
              $region35: #{_lambda_.38} parent=31 // loop_header_branch
                %186 = sbr.rel (%p184) target = $region39
              $region36: #{_lambda_.38} parent=31 // loop_body
                %v190 = vld [vmem:[%s188] sm:$0xff]
                %191 = vst [vmem:[%s189] sm:$0xff] %v190
                %v192 = vld [vmem:[%s188 + $0x8] sm:$0xff]
                %193 = vst [vmem:[%s189 + $0x8] sm:$0xff] %v192
                %v194 = vld [vmem:[%s188 + $0x28] sm:$0xff]
                %195 = vst [vmem:[%s189 + $0x14] sm:$0xff] %v194
                %v196 = vld [vmem:[%s188 + $0x30] sm:$0xff]
                %197 = vst [vmem:[%s189 + $0x1c] sm:$0xff] %v196
              $region37: #{_lambda_.38} parent=31 // loop_footer
                %s187 = sadd.s32 1, %s183
              $region38: #{_lambda_.38} parent=31 // loop_footer_branch
                %182 = sbr.rel target = $region34
              $region39: #{_lambda_.38} parent=31 // loop_exit
                _
              loop: start=0, step=1, limit=1
              $region40: #{_lambda_.38} parent=31 // loop_pre_header
                _
              $region41: #{_lambda_.38} parent=31 // loop_header
                %s200 = sphi 0, %s204
                %p201 = scmp.ge.s32.totalorder %s200, 1
                %s205 = sphi %s180, %s180
                %s206 = sphi %s181, %s181
              $region42: #{_lambda_.38} parent=31 // loop_header_branch
                %203 = sbr.rel (%p201) target = $region46
              $region43: #{_lambda_.38} parent=31 // loop_body
                %v207 = vld [vmem:[%s205] sm:$0xf]
                %208 = vst [vmem:[%s206] sm:$0xf] %v207
                %v209 = vld [vmem:[%s205 + $0x28] sm:$0xf]
                %210 = vst [vmem:[%s206 + $0x14] sm:$0xf] %v209
              $region44: #{_lambda_.38} parent=31 // loop_footer
                %s204 = sadd.s32 1, %s200
              $region45: #{_lambda_.38} parent=31 // loop_footer_branch
                %199 = sbr.rel target = $region41
              $region46: #{_lambda_.38} parent=31 // loop_exit
                _
            $region32: #{_lambda_.38} parent=27 // pred_fallthru
              _
          $region28: #{_lambda_.38} parent=23 // pred_fallthru
            _
          %211 = vnop
        $region24: #{_lambda_.38} parent=19 // pred_fallthru
          _
        // Predicated region
        $region47: #{_lambda_.38} parent=19 // pred_check
          %p212 = pneg %p78
        $region48: #{_lambda_.38} parent=19 // pred_check_branch
          %214 = sbr.rel (%p212) target = $region50
        $region49: #{_lambda_.38} parent=19 // pred_region
          %s215 = smul.u32 80, %s18
          %p216 = scmp.lt.s32.totalorder %s215, 159
          %s217 = scalar_select %p216, %s215, 159
          %p218 = scmp.lt.s32.totalorder %s17, 0
          %s219 = scalar_select %p218, %s17, 0
          %s220 = sadd.s32 %s219, %s217
          %s221 = smul.addr %s220, 4
          %s222 = scalar_lea.vmem %s1, %s221
          %s223 = smul.u32 80, %s18
        $region50: #{_lambda_.38} parent=19 // pred_fallthru
          _
      $region20: #{_lambda_.38} parent=5 // pred_fallthru
        _
      %p224 = scmp.le.s32.totalorder 1, %s9
      %p225 = scmp.lt.s32.totalorder %s9, 3
      %p226 = pnand %p224, %p225
      %p227 = pneg %p226
      // Predicated region
      $region51: #{_lambda_.38} parent=5 // pred_check
        _
      $region52: #{_lambda_.38} parent=5 // pred_check_branch
        %229 = sbr.rel (%p226) target = $region54
      $region53: #{_lambda_.38} parent=5 // pred_region
        %s230 = ssub.s32 %s9, 1
        %s231 = sand.u32 %s43, 1
        %s232 = sand.u32 %s43, 1
        %s233 = smul.addr %s232, 40
        %s234 = scalar_lea.vmem [#allocation3], %s233
        // Predicated region
        $region55: #{_lambda_.38} parent=53 // pred_check
          %p235 = pneg %p56
        $region56: #{_lambda_.38} parent=53 // pred_check_branch
          %237 = sbr.rel (%p235) target = $region58
        $region57: #{_lambda_.38} parent=53 // pred_region
          _
        $region58: #{_lambda_.38} parent=53 // pred_fallthru
          _
        %s238 = sand.u32 %s43, 1
        %s239 = sand.u32 %s43, 1
        %s240 = smul.addr %s239, 40
        %s241 = scalar_lea.vmem [#allocation3], %s240
        %p242 = pneg %p56
        %p243 = pneg %p53
        %s244 = smul.u32 80, %s21
        %p245 = scmp.lt.s32.totalorder %s244, 159
        %s246 = scalar_select %p245, %s244, 159
        %p247 = scmp.lt.s32.totalorder %s20, 0
        %s248 = scalar_select %p247, %s20, 0
        %s249 = sadd.s32 %s248, %s246
        %s250 = smul.addr %s249, 4
        %s251 = scalar_lea.vmem %s1, %s250
        %p252 = pneg %p84
        %p253 = pneg %p81
        %p254 = scmp.lt.s32.totalorder %s20, 0
        %s255 = scalar_select %p254, %s20, 0
        %s256 = scalar_lea.vmem %s2, %s255
        %p257 = pneg %p110
        %p258 = pneg %p107
        %p259 = pneg %p138
        %p260 = pneg %p135
        %s261 = smul.u32 2, %s19
        %p262 = scmp.lt.s32.totalorder %s261, 1
        %s263 = scalar_select %p262, %s261, 1
        %p264 = scmp.lt.s32.totalorder %s20, 0
        %s265 = scalar_select %p264, %s20, 0
        %s266 = sadd.s32 %s265, %s263
        %s267 = smul.addr %s266, 4
        %s268 = scalar_lea.vmem %s3, %s267
        %s269 = smul.u32 2, %s19
        %s270 = smul.u32 5, %s21
        %s271 = smul.u32 80, %s21
        %p272 = scmp.lt.s32.totalorder %s271, 159
        %s273 = scalar_select %p272, %s271, 159
        %p274 = scmp.lt.s32.totalorder %s20, 0
        %s275 = scalar_select %p274, %s20, 0
        %s276 = sadd.s32 %s275, %s273
        %s277 = smul.addr %s276, 4
        %s278 = scalar_lea.vmem %s1, %s277
        %s279 = smul.u32 80, %s21
        %p280 = scmp.lt.s32.totalorder %s20, 0
        %s281 = scalar_select %p280, %s20, 0
        %s282 = scalar_lea.vmem %s2, %s281
        %s283 = smul.u32 2, %s19
        %p284 = scmp.lt.s32.totalorder %s283, 1
        %s285 = scalar_select %p284, %s283, 1
        %p286 = scmp.lt.s32.totalorder %s20, 0
        %s287 = scalar_select %p286, %s20, 0
        %s288 = sadd.s32 %s287, %s285
        %s289 = smul.addr %s288, 4
        %s290 = scalar_lea.vmem %s3, %s289
        %s291 = smul.u32 2, %s19
        %p293 = scmp.eq.s32.totalorder %s21, 0
        // Predicated region
        $region59: #{_lambda_.38} parent=53 // pred_check
          %p294 = pneg %p293
        $region60: #{_lambda_.38} parent=53 // pred_check_branch
          %296 = sbr.rel (%p294) target = $region62
        $region61: #{_lambda_.38} parent=53 // pred_region
          %297 = vst [vmem:[#allocation2] sm:$0xff] 0.0
          %298 = vst [vmem:[#allocation2 + $0x8] sm:$0xff] 0.0
        $region62: #{_lambda_.38} parent=53 // pred_fallthru
          _
        %v299 = vld [vmem:[%s234] sm:$0xff]
        %v300 = vld [vmem:[%s234 + $0x8] sm:$0xff]
        %v301 = vld [vmem:[%s234 + $0x10] sm:$0xf]
        %v302 = vld [vmem:[%s234 + $0x14] sm:$0xff]
        %v303 = vld [vmem:[%s234 + $0x1c] sm:$0xff]
        %v304 = vld [vmem:[%s234 + $0x24] sm:$0xf]
        %v305 = vmax.bf16 %v299, 0
        %v306 = vmax.bf16 %v300, 0
        %v307 = vmax.bf16 %v301, 0
        %v308 = vmax.bf16 %v302, 0
        %v309 = vmax.bf16 %v303, 0
        %v310 = vmax.bf16 %v304, 0
        %v311 = vld [vmem:[#allocation2] sm:$0xff]
        %v312 = vld [vmem:[#allocation2 + $0x8] sm:$0xff]
        %v313 = vld [vmem:[%s278] sm:$0xf]
        %v314 = vld [vmem:[%s278 + $0x4] sm:$0xf]
        %v315 = vld [vmem:[%s278 + $0x8] sm:$0xf]
        %v316 = vld [vmem:[%s278 + $0xc] sm:$0xf]
        %v317 = vld [vmem:[%s278 + $0x10] sm:$0xf]
        %v318 = vld [vmem:[%s278 + $0x14] sm:$0xf]
        %v319 = vld [vmem:[%s278 + $0x18] sm:$0xf]
        %v320 = vld [vmem:[%s278 + $0x1c] sm:$0xf]
        %v321 = vld [vmem:[%s278 + $0x20] sm:$0xf]
        %v322 = vld [vmem:[%s278 + $0x24] sm:$0xf]
        %v323 = vld [vmem:[%s278 + $0x28] sm:$0xf]
        %v324 = vld [vmem:[%s278 + $0x2c] sm:$0xf]
        %v325 = vld [vmem:[%s278 + $0x30] sm:$0xf]
        %v326 = vld [vmem:[%s278 + $0x34] sm:$0xf]
        %v327 = vld [vmem:[%s278 + $0x38] sm:$0xf]
        %v328 = vld [vmem:[%s278 + $0x3c] sm:$0xf]
        %v329 = vld [vmem:[%s278 + $0x40] sm:$0xf]
        %v330 = vld [vmem:[%s278 + $0x44] sm:$0xf]
        %v331 = vld [vmem:[%s278 + $0x48] sm:$0xf]
        %v332 = vld [vmem:[%s278 + $0x4c] sm:$0xf]
        %v333 = vld [vmem:[%s278 + $0x50] sm:$0xf]
        %v334 = vld [vmem:[%s278 + $0x54] sm:$0xf]
        %v335 = vld [vmem:[%s278 + $0x58] sm:$0xf]
        %v336 = vld [vmem:[%s278 + $0x5c] sm:$0xf]
        %v337 = vld [vmem:[%s278 + $0x60] sm:$0xf]
        %v338 = vld [vmem:[%s278 + $0x64] sm:$0xf]
        %v339 = vld [vmem:[%s278 + $0x68] sm:$0xf]
        %v340 = vld [vmem:[%s278 + $0x6c] sm:$0xf]
        %v341 = vld [vmem:[%s278 + $0x70] sm:$0xf]
        %v342 = vld [vmem:[%s278 + $0x74] sm:$0xf]
        %v343 = vld [vmem:[%s278 + $0x78] sm:$0xf]
        %v344 = vld [vmem:[%s278 + $0x7c] sm:$0xf]
        %v345 = vld [vmem:[%s278 + $0x80] sm:$0xf]
        %v346 = vld [vmem:[%s278 + $0x84] sm:$0xf]
        %v347 = vld [vmem:[%s278 + $0x88] sm:$0xf]
        %v348 = vld [vmem:[%s278 + $0x8c] sm:$0xf]
        %v349 = vld [vmem:[%s278 + $0x90] sm:$0xf]
        %v350 = vld [vmem:[%s278 + $0x94] sm:$0xf]
        %v351 = vld [vmem:[%s278 + $0x98] sm:$0xf]
        %v352 = vld [vmem:[%s278 + $0x9c] sm:$0xf]
        %v353 = vld [vmem:[%s278 + $0xa0] sm:$0xf]
        %v354 = vld [vmem:[%s278 + $0xa4] sm:$0xf]
        %v355 = vld [vmem:[%s278 + $0xa8] sm:$0xf]
        %v356 = vld [vmem:[%s278 + $0xac] sm:$0xf]
        %v357 = vld [vmem:[%s278 + $0xb0] sm:$0xf]
        %v358 = vld [vmem:[%s278 + $0xb4] sm:$0xf]
        %v359 = vld [vmem:[%s278 + $0xb8] sm:$0xf]
        %v360 = vld [vmem:[%s278 + $0xbc] sm:$0xf]
        %v361 = vld [vmem:[%s278 + $0xc0] sm:$0xf]
        %v362 = vld [vmem:[%s278 + $0xc4] sm:$0xf]
        %v363 = vld [vmem:[%s278 + $0xc8] sm:$0xf]
        %v364 = vld [vmem:[%s278 + $0xcc] sm:$0xf]
        %v365 = vld [vmem:[%s278 + $0xd0] sm:$0xf]
        %v366 = vld [vmem:[%s278 + $0xd4] sm:$0xf]
        %v367 = vld [vmem:[%s278 + $0xd8] sm:$0xf]
        %v368 = vld [vmem:[%s278 + $0xdc] sm:$0xf]
        %v369 = vld [vmem:[%s278 + $0xe0] sm:$0xf]
        %v370 = vld [vmem:[%s278 + $0xe4] sm:$0xf]
        %v371 = vld [vmem:[%s278 + $0xe8] sm:$0xf]
        %v372 = vld [vmem:[%s278 + $0xec] sm:$0xf]
        %v373 = vld [vmem:[%s278 + $0xf0] sm:$0xf]
        %v374 = vld [vmem:[%s278 + $0xf4] sm:$0xf]
        %v375 = vld [vmem:[%s278 + $0xf8] sm:$0xf]
        %v376 = vld [vmem:[%s278 + $0xfc] sm:$0xf]
        %v377 = vld [vmem:[%s278 + $0x100] sm:$0xf]
        %v378 = vld [vmem:[%s278 + $0x104] sm:$0xf]
        %v379 = vld [vmem:[%s278 + $0x108] sm:$0xf]
        %v380 = vld [vmem:[%s278 + $0x10c] sm:$0xf]
        %v381 = vld [vmem:[%s278 + $0x110] sm:$0xf]
        %v382 = vld [vmem:[%s278 + $0x114] sm:$0xf]
        %v383 = vld [vmem:[%s278 + $0x118] sm:$0xf]
        %v384 = vld [vmem:[%s278 + $0x11c] sm:$0xf]
        %v385 = vld [vmem:[%s278 + $0x120] sm:$0xf]
        %v386 = vld [vmem:[%s278 + $0x124] sm:$0xf]
        %v387 = vld [vmem:[%s278 + $0x128] sm:$0xf]
        %v388 = vld [vmem:[%s278 + $0x12c] sm:$0xf]
        %v389 = vld [vmem:[%s278 + $0x130] sm:$0xf]
        %v390 = vld [vmem:[%s278 + $0x134] sm:$0xf]
        %v391 = vld [vmem:[%s278 + $0x138] sm:$0xf]
        %v392 = vld [vmem:[%s278 + $0x13c] sm:$0xf]
        %v399 = vunpack.c.l.b16 %v305
        %v400 = vunpack.c.h.b16 %v305
        %v401 = vunpack.c.l.b16 %v306
        %v402 = vunpack.c.h.b16 %v306
        %v403 = vunpack.c.l.b16 %v307
        %v404 = vunpack.c.l.b16 %v308
        %v405 = vunpack.c.h.b16 %v308
        %v406 = vunpack.c.l.b16 %v309
        %v407 = vunpack.c.h.b16 %v309
        %v408 = vunpack.c.l.b16 %v310
        %v409 = vpack.c.b16 %v404, %v399
        %v410 = vpack.c.b16 %v405, %v400
        %v411 = vpack.c.b16 %v406, %v401
        %v412 = vpack.c.b16 %v407, %v402
        %v413 = vpack.c.b16 %v408, %v403
        %v499 = vunpack.c.l.b16 %v313
        %v500 = vunpack.c.l.b16 %v314
        %v501 = vunpack.c.l.b16 %v315
        %v502 = vunpack.c.l.b16 %v316
        %v503 = vunpack.c.l.b16 %v317
        %v504 = vunpack.c.l.b16 %v318
        %v505 = vunpack.c.l.b16 %v319
        %v506 = vunpack.c.l.b16 %v320
        %v507 = vunpack.c.l.b16 %v321
        %v508 = vunpack.c.l.b16 %v322
        %v509 = vunpack.c.l.b16 %v323
        %v510 = vunpack.c.l.b16 %v324
        %v511 = vunpack.c.l.b16 %v325
        %v512 = vunpack.c.l.b16 %v326
        %v513 = vunpack.c.l.b16 %v327
        %v514 = vunpack.c.l.b16 %v328
        %v515 = vunpack.c.l.b16 %v329
        %v516 = vunpack.c.l.b16 %v330
        %v517 = vunpack.c.l.b16 %v331
        %v518 = vunpack.c.l.b16 %v332
        %v519 = vunpack.c.l.b16 %v333
        %v520 = vunpack.c.l.b16 %v334
        %v521 = vunpack.c.l.b16 %v335
        %v522 = vunpack.c.l.b16 %v336
        %v523 = vunpack.c.l.b16 %v337
        %v524 = vunpack.c.l.b16 %v338
        %v525 = vunpack.c.l.b16 %v339
        %v526 = vunpack.c.l.b16 %v340
        %v527 = vunpack.c.l.b16 %v341
        %v528 = vunpack.c.l.b16 %v342
        %v529 = vunpack.c.l.b16 %v343
        %v530 = vunpack.c.l.b16 %v344
        %v531 = vunpack.c.l.b16 %v345
        %v532 = vunpack.c.l.b16 %v346
        %v533 = vunpack.c.l.b16 %v347
        %v534 = vunpack.c.l.b16 %v348
        %v535 = vunpack.c.l.b16 %v349
        %v536 = vunpack.c.l.b16 %v350
        %v537 = vunpack.c.l.b16 %v351
        %v538 = vunpack.c.l.b16 %v352
        %v539 = vunpack.c.l.b16 %v353
        %v540 = vunpack.c.l.b16 %v354
        %v541 = vunpack.c.l.b16 %v355
        %v542 = vunpack.c.l.b16 %v356
        %v543 = vunpack.c.l.b16 %v357
        %v544 = vunpack.c.l.b16 %v358
        %v545 = vunpack.c.l.b16 %v359
        %v546 = vunpack.c.l.b16 %v360
        %v547 = vunpack.c.l.b16 %v361
        %v548 = vunpack.c.l.b16 %v362
        %v549 = vunpack.c.l.b16 %v363
        %v550 = vunpack.c.l.b16 %v364
        %v551 = vunpack.c.l.b16 %v365
        %v552 = vunpack.c.l.b16 %v366
        %v553 = vunpack.c.l.b16 %v367
        %v554 = vunpack.c.l.b16 %v368
        %v555 = vunpack.c.l.b16 %v369
        %v556 = vunpack.c.l.b16 %v370
        %v557 = vunpack.c.l.b16 %v371
        %v558 = vunpack.c.l.b16 %v372
        %v559 = vunpack.c.l.b16 %v373
        %v560 = vunpack.c.l.b16 %v374
        %v561 = vunpack.c.l.b16 %v375
        %v562 = vunpack.c.l.b16 %v376
        %v563 = vunpack.c.l.b16 %v377
        %v564 = vunpack.c.l.b16 %v378
        %v565 = vunpack.c.l.b16 %v379
        %v566 = vunpack.c.l.b16 %v380
        %v567 = vunpack.c.l.b16 %v381
        %v568 = vunpack.c.l.b16 %v382
        %v569 = vunpack.c.l.b16 %v383
        %v570 = vunpack.c.l.b16 %v384
        %v571 = vunpack.c.l.b16 %v385
        %v572 = vunpack.c.l.b16 %v386
        %v573 = vunpack.c.l.b16 %v387
        %v574 = vunpack.c.l.b16 %v388
        %v575 = vunpack.c.l.b16 %v389
        %v576 = vunpack.c.l.b16 %v390
        %v577 = vunpack.c.l.b16 %v391
        %v578 = vunpack.c.l.b16 %v392
        %v579 = vpack.c.b16 %v500, %v499
        %v580 = vpack.c.b16 %v502, %v501
        %v581 = vpack.c.b16 %v504, %v503
        %v582 = vpack.c.b16 %v506, %v505
        %v583 = vpack.c.b16 %v508, %v507
        %v584 = vpack.c.b16 %v510, %v509
        %v585 = vpack.c.b16 %v512, %v511
        %v586 = vpack.c.b16 %v514, %v513
        %v587 = vpack.c.b16 %v516, %v515
        %v588 = vpack.c.b16 %v518, %v517
        %v589 = vpack.c.b16 %v520, %v519
        %v590 = vpack.c.b16 %v522, %v521
        %v591 = vpack.c.b16 %v524, %v523
        %v592 = vpack.c.b16 %v526, %v525
        %v593 = vpack.c.b16 %v528, %v527
        %v594 = vpack.c.b16 %v530, %v529
        %v595 = vpack.c.b16 %v532, %v531
        %v596 = vpack.c.b16 %v534, %v533
        %v597 = vpack.c.b16 %v536, %v535
        %v598 = vpack.c.b16 %v538, %v537
        %v599 = vpack.c.b16 %v540, %v539
        %v600 = vpack.c.b16 %v542, %v541
        %v601 = vpack.c.b16 %v544, %v543
        %v602 = vpack.c.b16 %v546, %v545
        %v603 = vpack.c.b16 %v548, %v547
        %v604 = vpack.c.b16 %v550, %v549
        %v605 = vpack.c.b16 %v552, %v551
        %v606 = vpack.c.b16 %v554, %v553
        %v607 = vpack.c.b16 %v556, %v555
        %v608 = vpack.c.b16 %v558, %v557
        %v609 = vpack.c.b16 %v560, %v559
        %v610 = vpack.c.b16 %v562, %v561
        %v611 = vpack.c.b16 %v564, %v563
        %v612 = vpack.c.b16 %v566, %v565
        %v613 = vpack.c.b16 %v568, %v567
        %v614 = vpack.c.b16 %v570, %v569
        %v615 = vpack.c.b16 %v572, %v571
        %v616 = vpack.c.b16 %v574, %v573
        %v617 = vpack.c.b16 %v576, %v575
        %v618 = vpack.c.b16 %v578, %v577
        %659 = vmatprep.subr.bf16.mxu0 0
        %660 = vmatpush1.bf16.msra.mxu0 %v579
        %661 = vmatprep.subr.bf16.mxu0 0
        %662 = vmatpush1.bf16.msra.mxu0 %v580
        %663 = vmatprep.subr.bf16.mxu0 0
        %664 = vmatpush1.bf16.msra.mxu0 %v581
        %665 = vmatprep.subr.bf16.mxu0 0
        %666 = vmatpush1.bf16.msra.mxu0 %v582
        %667 = vmatprep.subr.bf16.mxu0 0
        %668 = vmatpush1.bf16.msra.mxu0 %v583
        %669 = vmatprep.subr.bf16.mxu0 0
        %670 = vmatpush1.bf16.msra.mxu0 %v584
        %671 = vmatprep.subr.bf16.mxu0 0
        %672 = vmatpush1.bf16.msra.mxu0 %v585
        %673 = vmatprep.subr.bf16.mxu0 0
        %674 = vmatpush1.bf16.msra.mxu0 %v586
        %675 = vmatprep.subr.bf16.mxu0 0
        %676 = vmatpush1.bf16.msra.mxu0 %v587
        %677 = vmatprep.subr.bf16.mxu0 0
        %678 = vmatpush1.bf16.msra.mxu0 %v588
        %679 = vmatprep.subr.bf16.mxu0 0
        %680 = vmatpush1.bf16.msra.mxu0 %v589
        %681 = vmatprep.subr.bf16.mxu0 0
        %682 = vmatpush1.bf16.msra.mxu0 %v590
        %683 = vmatprep.subr.bf16.mxu0 0
        %684 = vmatpush1.bf16.msra.mxu0 %v591
        %685 = vmatprep.subr.bf16.mxu0 0
        %686 = vmatpush1.bf16.msra.mxu0 %v592
        %687 = vmatprep.subr.bf16.mxu0 0
        %688 = vmatpush1.bf16.msra.mxu0 %v593
        %689 = vmatprep.subr.bf16.mxu0 0
        %690 = vmatpush1.bf16.msra.mxu0 %v594
        %691 = vmatprep.mubr.bf16.mxu0 %v410
        %692 = vmatmul.mubr.bf16.gmra.mrb[0].mxu0 %v409
        %v693 = vpop.f32.mrb[0].mxu0
        %v694 = vadd.f32 0.0, %v693
        %v695 = vpop.f32.mrb[0].mxu0
        %v696 = vpop.f32.mrb[0].mxu0
        %v697 = vadd.f32 0.0, %v696
        %v698 = vpop.f32.mrb[0].mxu0
        %699 = vdwg.mxu0
        %700 = vmatprep.subr.bf16.mxu0 0
        %701 = vmatpush1.bf16.msra.mxu0 %v595
        %702 = vmatprep.subr.bf16.mxu0 0
        %703 = vmatpush1.bf16.msra.mxu0 %v596
        %704 = vmatprep.subr.bf16.mxu0 0
        %705 = vmatpush1.bf16.msra.mxu0 %v597
        %706 = vmatprep.subr.bf16.mxu0 0
        %707 = vmatpush1.bf16.msra.mxu0 %v598
        %708 = vmatprep.subr.bf16.mxu0 0
        %709 = vmatpush1.bf16.msra.mxu0 %v599
        %710 = vmatprep.subr.bf16.mxu0 0
        %711 = vmatpush1.bf16.msra.mxu0 %v600
        %712 = vmatprep.subr.bf16.mxu0 0
        %713 = vmatpush1.bf16.msra.mxu0 %v601
        %714 = vmatprep.subr.bf16.mxu0 0
        %715 = vmatpush1.bf16.msra.mxu0 %v602
        %716 = vmatprep.subr.bf16.mxu0 0
        %717 = vmatpush1.bf16.msra.mxu0 %v603
        %718 = vmatprep.subr.bf16.mxu0 0
        %719 = vmatpush1.bf16.msra.mxu0 %v604
        %720 = vmatprep.subr.bf16.mxu0 0
        %721 = vmatpush1.bf16.msra.mxu0 %v605
        %722 = vmatprep.subr.bf16.mxu0 0
        %723 = vmatpush1.bf16.msra.mxu0 %v606
        %724 = vmatprep.subr.bf16.mxu0 0
        %725 = vmatpush1.bf16.msra.mxu0 %v607
        %726 = vmatprep.subr.bf16.mxu0 0
        %727 = vmatpush1.bf16.msra.mxu0 %v608
        %728 = vmatprep.subr.bf16.mxu0 0
        %729 = vmatpush1.bf16.msra.mxu0 %v609
        %730 = vmatprep.subr.bf16.mxu0 0
        %731 = vmatpush1.bf16.msra.mxu0 %v610
        %732 = vmatprep.mubr.bf16.mxu0 %v412
        %733 = vmatmul.mubr.bf16.gmra.mrb[0].mxu0 %v411
        %v734 = vpop.f32.mrb[0].mxu0
        %v735 = vadd.f32 %v694, %v734
        %v736 = vpop.f32.mrb[0].mxu0
        %v737 = vpop.f32.mrb[0].mxu0
        %v738 = vadd.f32 %v697, %v737
        %v739 = vpop.f32.mrb[0].mxu0
        %740 = vdwg.mxu0
        %741 = vmatprep.subr.bf16.mxu0 0
        %742 = vmatpush1.bf16.msra.mxu0 %v611
        %743 = vmatprep.subr.bf16.mxu0 0
        %744 = vmatpush1.bf16.msra.mxu0 %v612
        %745 = vmatprep.subr.bf16.mxu0 0
        %746 = vmatpush1.bf16.msra.mxu0 %v613
        %747 = vmatprep.subr.bf16.mxu0 0
        %748 = vmatpush1.bf16.msra.mxu0 %v614
        %749 = vmatprep.subr.bf16.mxu0 0
        %750 = vmatpush1.bf16.msra.mxu0 %v615
        %751 = vmatprep.subr.bf16.mxu0 0
        %752 = vmatpush1.bf16.msra.mxu0 %v616
        %753 = vmatprep.subr.bf16.mxu0 0
        %754 = vmatpush1.bf16.msra.mxu0 %v617
        %755 = vmatprep.subr.bf16.mxu0 0
        %756 = vmatpush1.bf16.msra.mxu0 %v618
        %757 = vmatprep.subr.bf16.mxu0 0
        %758 = vmatpush1.bf16.msra.mxu0 0
        %759 = vmatprep.subr.bf16.mxu0 0
        %760 = vmatpush1.bf16.msra.mxu0 0
        %761 = vmatprep.subr.bf16.mxu0 0
        %762 = vmatpush1.bf16.msra.mxu0 0
        %763 = vmatprep.subr.bf16.mxu0 0
        %764 = vmatpush1.bf16.msra.mxu0 0
        %765 = vmatprep.subr.bf16.mxu0 0
        %766 = vmatpush1.bf16.msra.mxu0 0
        %767 = vmatprep.subr.bf16.mxu0 0
        %768 = vmatpush1.bf16.msra.mxu0 0
        %769 = vmatprep.subr.bf16.mxu0 0
        %770 = vmatpush1.bf16.msra.mxu0 0
        %771 = vmatprep.subr.bf16.mxu0 0
        %772 = vmatpush1.bf16.msra.mxu0 0
        %773 = vmatprep.mubr.bf16.mxu0 0
        %774 = vmatmul.mubr.bf16.gmra.mrb[0].mxu0 %v413
        %v775 = vpop.f32.mrb[0].mxu0
        %v776 = vadd.f32 %v735, %v775
        %v777 = vpop.f32.mrb[0].mxu0
        %v778 = vpop.f32.mrb[0].mxu0
        %v779 = vadd.f32 %v738, %v778
        %v780 = vpop.f32.mrb[0].mxu0
        %781 = vdwg.mxu0
        %v782 = vadd.f32 %v311, %v776
        %v783 = vadd.f32 %v312, %v779
        %784 = vst [vmem:[#allocation2] sm:$0xff] %v782
        %785 = vst [vmem:[#allocation2 + $0x8] sm:$0xff] %v783
        %p786 = scmp.eq.s32.totalorder %s21, 1
        // Predicated region
        $region63: #{_lambda_.38} parent=53 // pred_check
          %p787 = pneg %p786
        $region64: #{_lambda_.38} parent=53 // pred_check_branch
          %789 = sbr.rel (%p787) target = $region66
        $region65: #{_lambda_.38} parent=53 // pred_region
          %v790 = vld [vmem:[#allocation2] sm:$0xff]
          %v791 = vld [vmem:[#allocation2 + $0x8] sm:$0xff]
          %v792 = vld [vmem:[%s282] sm:$0x1]
          %v794 = vlaneseq
          %v795 = vshrl.u32 %v794, 7
          %v796 = vsub.s32 0, %v795
          %v797 = vrot.slane %v792, %v796
          %v799 = vadd.f32 %v790, %v797
          %v800 = vadd.f32 %v791, %v797
          %v801 = vpack.c.bf16 %v800, %v799
          %v803 = vunpack.c.l.b16 %v801
          %v804 = vunpack.c.h.b16 %v801
          %v805 = vpack.c.b16 %v803, %v803
          %v806 = vpack.c.b16 %v804, %v804
          %809 = vst [vmem:[%s290] sm:$0xf] %v805
          %810 = vst [vmem:[%s290 + $0x4] sm:$0xf] %v806
        $region66: #{_lambda_.38} parent=53 // pred_fallthru
          _
        %s811 = smul.u32 2, %s19
        %p812 = scmp.lt.s32.totalorder %s811, 1
        %s813 = scalar_select %p812, %s811, 1
        %p814 = scmp.lt.s32.totalorder %s20, 0
        %s815 = scalar_select %p814, %s20, 0
        %s816 = sadd.s32 %s815, %s813
        %s817 = smul.addr %s816, 4
        %s818 = scalar_lea.vmem %s3, %s817
        // Predicated region
        $region67: #{_lambda_.38} parent=53 // pred_check
          %p819 = pneg %p135
        $region68: #{_lambda_.38} parent=53 // pred_check_branch
          %821 = sbr.rel (%p819) target = $region70
        $region69: #{_lambda_.38} parent=53 // pred_region
          %s822 = smul.u32 2, %s19
        $region70: #{_lambda_.38} parent=53 // pred_fallthru
          _
        // Predicated region
        $region71: #{_lambda_.38} parent=53 // pred_check
          %p823 = pneg %p135
        $region72: #{_lambda_.38} parent=53 // pred_check_branch
          %825 = sbr.rel (%p823) target = $region74
        $region73: #{_lambda_.38} parent=53 // pred_region
          %s826 = smul.u32 2, %s19
          %p827 = scmp.lt.s32.totalorder %s826, 1
          %s828 = scalar_select %p827, %s826, 1
          %p829 = scmp.lt.s32.totalorder %s20, 0
          %s830 = scalar_select %p829, %s20, 0
          %s831 = sadd.s32 %s830, %s828
          %s832 = smul.addr %s831, 4
          %s833 = scalar_lea.vmem %s3, %s832
        $region74: #{_lambda_.38} parent=53 // pred_fallthru
          _
      $region54: #{_lambda_.38} parent=5 // pred_fallthru
        _
      %p834 = scmp.le.s32.totalorder 2, %s9
      // Predicated region
      $region75: #{_lambda_.38} parent=5 // pred_check
        %p835 = pneg %p834
      $region76: #{_lambda_.38} parent=5 // pred_check_branch
        %837 = sbr.rel (%p835) target = $region78
      $region77: #{_lambda_.38} parent=5 // pred_region
        %s838 = ssub.s32 %s9, 2
      $region78: #{_lambda_.38} parent=5 // pred_fallthru
        _
    $region6: #{_lambda_.38} parent=1 // loop_footer
      %s13 = sadd.s32 1, %s9
    $region7: #{_lambda_.38} parent=1 // loop_footer_branch
      %8 = sbr.rel target = $region3
    $region8: #{_lambda_.38} parent=1 // loop_exit
      _

// kernel: _lambda_.41
$region0: #{_lambda_.41}
  #allocation0 [shape = 'u32[]', space=smem, size = 0x4, offset = 0x4, fixed_abs, tag = 'smem constant byte address 0x4 - core index']
  #allocation1 [shape = 'u32[144,128]{1,0:T(1,128)}', space=vmem, size = 0x12000, scoped, tag = 'internal scratch']
  %s0 = inlined_call_operand.vmem [shape: bf16[32,640], index: 0, kind: input, shape index: {}]
  %s1 = inlined_call_operand.vmem [shape: bf16[640,128], index: 1, kind: input, shape index: {}]
  %s2 = inlined_call_operand.vmem [shape: f32[1,128], index: 2, kind: input, shape index: {}]
  %s3 = inlined_call_operand.vmem [shape: bf16[32,128], index: 3, kind: output, shape index: {}]
  %s4 = sld [smem:[#allocation0]]
  $region22: #{_lambda_.41} parent=0
    _
  %s6 = ssub.s32 1, %s4
  %s7 = scalar_select 0, %s6, %s4
  // Predicated region
  $region2: #{_lambda_.41} parent=0 // pred_check
    _
  $region3: #{_lambda_.41} parent=0 // pred_check_branch
    %9 = sbr.rel (0) target = $region5
  $region4: #{_lambda_.41} parent=0 // pred_region
    _
  $region5: #{_lambda_.41} parent=0 // pred_fallthru
    _
  // Predicated region
  $region6: #{_lambda_.41} parent=0 // pred_check
    _
  $region7: #{_lambda_.41} parent=0 // pred_check_branch
    %11 = sbr.rel (0) target = $region9
  $region8: #{_lambda_.41} parent=0 // pred_region
    _
  $region9: #{_lambda_.41} parent=0 // pred_fallthru
    _
  // Predicated region
  $region10: #{_lambda_.41} parent=0 // pred_check
    _
  $region11: #{_lambda_.41} parent=0 // pred_check_branch
    %13 = sbr.rel (0) target = $region13
  $region12: #{_lambda_.41} parent=0 // pred_region
    _
  $region13: #{_lambda_.41} parent=0 // pred_fallthru
    _
  %v15 = vld [vmem:[%s0] sm:$0xff]
  %v16 = vld [vmem:[%s0 + $0x8] sm:$0xff]
  %v17 = vld [vmem:[%s0 + $0x10] sm:$0xf]
  %v18 = vld [vmem:[%s0 + $0x14] sm:$0xff]
  %v19 = vld [vmem:[%s0 + $0x1c] sm:$0xff]
  %v20 = vld [vmem:[%s0 + $0x24] sm:$0xf]
  %v21 = vld [vmem:[%s0 + $0x28] sm:$0xff]
  %v22 = vld [vmem:[%s0 + $0x30] sm:$0xff]
  %v23 = vld [vmem:[%s0 + $0x38] sm:$0xf]
  %v24 = vld [vmem:[%s0 + $0x3c] sm:$0xff]
  %v25 = vld [vmem:[%s0 + $0x44] sm:$0xff]
  %v26 = vld [vmem:[%s0 + $0x4c] sm:$0xf]
  %v27 = vmax.bf16 %v15, 0
  %v28 = vmax.bf16 %v16, 0
  %v29 = vmax.bf16 %v17, 0
  %v30 = vmax.bf16 %v18, 0
  %v31 = vmax.bf16 %v19, 0
  %v32 = vmax.bf16 %v20, 0
  %v33 = vmax.bf16 %v21, 0
  %v34 = vmax.bf16 %v22, 0
  %v35 = vmax.bf16 %v23, 0
  %v36 = vmax.bf16 %v24, 0
  %v37 = vmax.bf16 %v25, 0
  %v38 = vmax.bf16 %v26, 0
  %v39 = vld [vmem:[%s1] sm:$0xf]
  %v40 = vld [vmem:[%s1 + $0x4] sm:$0xf]
  %v41 = vld [vmem:[%s1 + $0x8] sm:$0xf]
  %v42 = vld [vmem:[%s1 + $0xc] sm:$0xf]
  %v43 = vld [vmem:[%s1 + $0x10] sm:$0xf]
  %v44 = vld [vmem:[%s1 + $0x14] sm:$0xf]
  %v45 = vld [vmem:[%s1 + $0x18] sm:$0xf]
  %v46 = vld [vmem:[%s1 + $0x1c] sm:$0xf]
  %v47 = vld [vmem:[%s1 + $0x20] sm:$0xf]
  %v48 = vld [vmem:[%s1 + $0x24] sm:$0xf]
  %v49 = vld [vmem:[%s1 + $0x28] sm:$0xf]
  %v50 = vld [vmem:[%s1 + $0x2c] sm:$0xf]
  %v51 = vld [vmem:[%s1 + $0x30] sm:$0xf]
  %v52 = vld [vmem:[%s1 + $0x34] sm:$0xf]
  %v53 = vld [vmem:[%s1 + $0x38] sm:$0xf]
  %v54 = vld [vmem:[%s1 + $0x3c] sm:$0xf]
  %v55 = vld [vmem:[%s1 + $0x40] sm:$0xf]
  %v56 = vld [vmem:[%s1 + $0x44] sm:$0xf]
  %v57 = vld [vmem:[%s1 + $0x48] sm:$0xf]
  %v58 = vld [vmem:[%s1 + $0x4c] sm:$0xf]
  %v59 = vld [vmem:[%s1 + $0x50] sm:$0xf]
  %v60 = vld [vmem:[%s1 + $0x54] sm:$0xf]
  %v61 = vld [vmem:[%s1 + $0x58] sm:$0xf]
  %v62 = vld [vmem:[%s1 + $0x5c] sm:$0xf]
  %v63 = vld [vmem:[%s1 + $0x60] sm:$0xf]
  %v64 = vld [vmem:[%s1 + $0x64] sm:$0xf]
  %v65 = vld [vmem:[%s1 + $0x68] sm:$0xf]
  %v66 = vld [vmem:[%s1 + $0x6c] sm:$0xf]
  %v67 = vld [vmem:[%s1 + $0x70] sm:$0xf]
  %v68 = vld [vmem:[%s1 + $0x74] sm:$0xf]
  %v69 = vld [vmem:[%s1 + $0x78] sm:$0xf]
  %v70 = vld [vmem:[%s1 + $0x7c] sm:$0xf]
  %v71 = vld [vmem:[%s1 + $0x80] sm:$0xf]
  %v72 = vld [vmem:[%s1 + $0x84] sm:$0xf]
  %v73 = vld [vmem:[%s1 + $0x88] sm:$0xf]
  %v74 = vld [vmem:[%s1 + $0x8c] sm:$0xf]
  %v75 = vld [vmem:[%s1 + $0x90] sm:$0xf]
  %v76 = vld [vmem:[%s1 + $0x94] sm:$0xf]
  %v77 = vld [vmem:[%s1 + $0x98] sm:$0xf]
  %v78 = vld [vmem:[%s1 + $0x9c] sm:$0xf]
  %v79 = vld [vmem:[%s1 + $0xa0] sm:$0xf]
  %v80 = vld [vmem:[%s1 + $0xa4] sm:$0xf]
  %v81 = vld [vmem:[%s1 + $0xa8] sm:$0xf]
  %v82 = vld [vmem:[%s1 + $0xac] sm:$0xf]
  %v83 = vld [vmem:[%s1 + $0xb0] sm:$0xf]
  %v84 = vld [vmem:[%s1 + $0xb4] sm:$0xf]
  %v85 = vld [vmem:[%s1 + $0xb8] sm:$0xf]
  %v86 = vld [vmem:[%s1 + $0xbc] sm:$0xf]
  %v87 = vld [vmem:[%s1 + $0xc0] sm:$0xf]
  %v88 = vld [vmem:[%s1 + $0xc4] sm:$0xf]
  %v89 = vld [vmem:[%s1 + $0xc8] sm:$0xf]
  %v90 = vld [vmem:[%s1 + $0xcc] sm:$0xf]
  %v91 = vld [vmem:[%s1 + $0xd0] sm:$0xf]
  %v92 = vld [vmem:[%s1 + $0xd4] sm:$0xf]
  %v93 = vld [vmem:[%s1 + $0xd8] sm:$0xf]
  %v94 = vld [vmem:[%s1 + $0xdc] sm:$0xf]
  %v95 = vld [vmem:[%s1 + $0xe0] sm:$0xf]
  %v96 = vld [vmem:[%s1 + $0xe4] sm:$0xf]
  %v97 = vld [vmem:[%s1 + $0xe8] sm:$0xf]
  %v98 = vld [vmem:[%s1 + $0xec] sm:$0xf]
  %v99 = vld [vmem:[%s1 + $0xf0] sm:$0xf]
  %v100 = vld [vmem:[%s1 + $0xf4] sm:$0xf]
  %v101 = vld [vmem:[%s1 + $0xf8] sm:$0xf]
  %v102 = vld [vmem:[%s1 + $0xfc] sm:$0xf]
  %v103 = vld [vmem:[%s1 + $0x100] sm:$0xf]
  %v104 = vld [vmem:[%s1 + $0x104] sm:$0xf]
  %v105 = vld [vmem:[%s1 + $0x108] sm:$0xf]
  %v106 = vld [vmem:[%s1 + $0x10c] sm:$0xf]
  %v107 = vld [vmem:[%s1 + $0x110] sm:$0xf]
  %v108 = vld [vmem:[%s1 + $0x114] sm:$0xf]
  %v109 = vld [vmem:[%s1 + $0x118] sm:$0xf]
  %v110 = vld [vmem:[%s1 + $0x11c] sm:$0xf]
  %v111 = vld [vmem:[%s1 + $0x120] sm:$0xf]
  %v112 = vld [vmem:[%s1 + $0x124] sm:$0xf]
  %v113 = vld [vmem:[%s1 + $0x128] sm:$0xf]
  %v114 = vld [vmem:[%s1 + $0x12c] sm:$0xf]
  %v115 = vld [vmem:[%s1 + $0x130] sm:$0xf]
  %v116 = vld [vmem:[%s1 + $0x134] sm:$0xf]
  %v117 = vld [vmem:[%s1 + $0x138] sm:$0xf]
  %v118 = vld [vmem:[%s1 + $0x13c] sm:$0xf]
  %v119 = vld [vmem:[%s2] sm:$0x1]
  %v121 = vlaneseq
  %v122 = vshrl.u32 %v121, 7
  %v123 = vsub.s32 0, %v122
  %v124 = vrot.slane %v119, %v123
  %v138 = vunpack.c.l.b16 %v27
  %v139 = vunpack.c.h.b16 %v27
  %v140 = vunpack.c.l.b16 %v28
  %v141 = vunpack.c.h.b16 %v28
  %v142 = vunpack.c.l.b16 %v29
  %v143 = vunpack.c.l.b16 %v30
  %v144 = vunpack.c.h.b16 %v30
  %v145 = vunpack.c.l.b16 %v31
  %v146 = vunpack.c.h.b16 %v31
  %v147 = vunpack.c.l.b16 %v32
  %v148 = vunpack.c.l.b16 %v33
  %v149 = vunpack.c.h.b16 %v33
  %v150 = vunpack.c.l.b16 %v34
  %v151 = vunpack.c.h.b16 %v34
  %v152 = vunpack.c.l.b16 %v35
  %v153 = vunpack.c.l.b16 %v36
  %v154 = vunpack.c.h.b16 %v36
  %v155 = vunpack.c.l.b16 %v37
  %v156 = vunpack.c.h.b16 %v37
  %v157 = vunpack.c.l.b16 %v38
  %v158 = vpack.c.b16 %v143, %v138
  %v159 = vpack.c.b16 %v144, %v139
  %v160 = vpack.c.b16 %v145, %v140
  %v161 = vpack.c.b16 %v146, %v141
  %v162 = vpack.c.b16 %v147, %v142
  %v163 = vpack.c.b16 %v153, %v148
  %v164 = vpack.c.b16 %v154, %v149
  %v165 = vpack.c.b16 %v155, %v150
  %v166 = vpack.c.b16 %v156, %v151
  %v167 = vpack.c.b16 %v157, %v152
  %v258 = vunpack.c.l.b16 %v39
  %v259 = vunpack.c.l.b16 %v40
  %v260 = vunpack.c.l.b16 %v41
  %v261 = vunpack.c.l.b16 %v42
  %v262 = vunpack.c.l.b16 %v43
  %v263 = vunpack.c.l.b16 %v44
  %v264 = vunpack.c.l.b16 %v45
  %v265 = vunpack.c.l.b16 %v46
  %v266 = vunpack.c.l.b16 %v47
  %v267 = vunpack.c.l.b16 %v48
  %v268 = vunpack.c.l.b16 %v49
  %v269 = vunpack.c.l.b16 %v50
  %v270 = vunpack.c.l.b16 %v51
  %v271 = vunpack.c.l.b16 %v52
  %v272 = vunpack.c.l.b16 %v53
  %v273 = vunpack.c.l.b16 %v54
  %v274 = vunpack.c.l.b16 %v55
  %v275 = vunpack.c.l.b16 %v56
  %v276 = vunpack.c.l.b16 %v57
  %v277 = vunpack.c.l.b16 %v58
  %v278 = vunpack.c.l.b16 %v59
  %v279 = vunpack.c.l.b16 %v60
  %v280 = vunpack.c.l.b16 %v61
  %v281 = vunpack.c.l.b16 %v62
  %v282 = vunpack.c.l.b16 %v63
  %v283 = vunpack.c.l.b16 %v64
  %v284 = vunpack.c.l.b16 %v65
  %v285 = vunpack.c.l.b16 %v66
  %v286 = vunpack.c.l.b16 %v67
  %v287 = vunpack.c.l.b16 %v68
  %v288 = vunpack.c.l.b16 %v69
  %v289 = vunpack.c.l.b16 %v70
  %v290 = vunpack.c.l.b16 %v71
  %v291 = vunpack.c.l.b16 %v72
  %v292 = vunpack.c.l.b16 %v73
  %v293 = vunpack.c.l.b16 %v74
  %v294 = vunpack.c.l.b16 %v75
  %v295 = vunpack.c.l.b16 %v76
  %v296 = vunpack.c.l.b16 %v77
  %v297 = vunpack.c.l.b16 %v78
  %v298 = vunpack.c.l.b16 %v79
  %v299 = vunpack.c.l.b16 %v80
  %v300 = vunpack.c.l.b16 %v81
  %v301 = vunpack.c.l.b16 %v82
  %v302 = vunpack.c.l.b16 %v83
  %v303 = vunpack.c.l.b16 %v84
  %v304 = vunpack.c.l.b16 %v85
  %v305 = vunpack.c.l.b16 %v86
  %v306 = vunpack.c.l.b16 %v87
  %v307 = vunpack.c.l.b16 %v88
  %v308 = vunpack.c.l.b16 %v89
  %v309 = vunpack.c.l.b16 %v90
  %v310 = vunpack.c.l.b16 %v91
  %v311 = vunpack.c.l.b16 %v92
  %v312 = vunpack.c.l.b16 %v93
  %v313 = vunpack.c.l.b16 %v94
  %v314 = vunpack.c.l.b16 %v95
  %v315 = vunpack.c.l.b16 %v96
  %v316 = vunpack.c.l.b16 %v97
  %v317 = vunpack.c.l.b16 %v98
  %v318 = vunpack.c.l.b16 %v99
  %v319 = vunpack.c.l.b16 %v100
  %v320 = vunpack.c.l.b16 %v101
  %v321 = vunpack.c.l.b16 %v102
  %v322 = vunpack.c.l.b16 %v103
  %v323 = vunpack.c.l.b16 %v104
  %v324 = vunpack.c.l.b16 %v105
  %v325 = vunpack.c.l.b16 %v106
  %v326 = vunpack.c.l.b16 %v107
  %v327 = vunpack.c.l.b16 %v108
  %v328 = vunpack.c.l.b16 %v109
  %v329 = vunpack.c.l.b16 %v110
  %v330 = vunpack.c.l.b16 %v111
  %v331 = vunpack.c.l.b16 %v112
  %v332 = vunpack.c.l.b16 %v113
  %v333 = vunpack.c.l.b16 %v114
  %v334 = vunpack.c.l.b16 %v115
  %v335 = vunpack.c.l.b16 %v116
  %v336 = vunpack.c.l.b16 %v117
  %v337 = vunpack.c.l.b16 %v118
  %v338 = vpack.c.b16 %v259, %v258
  %v339 = vpack.c.b16 %v261, %v260
  %v340 = vpack.c.b16 %v263, %v262
  %v341 = vpack.c.b16 %v265, %v264
  %v342 = vpack.c.b16 %v267, %v266
  %v343 = vpack.c.b16 %v269, %v268
  %v344 = vpack.c.b16 %v271, %v270
  %v345 = vpack.c.b16 %v273, %v272
  %v346 = vpack.c.b16 %v275, %v274
  %v347 = vpack.c.b16 %v277, %v276
  %v348 = vpack.c.b16 %v279, %v278
  %v349 = vpack.c.b16 %v281, %v280
  %v350 = vpack.c.b16 %v283, %v282
  %v351 = vpack.c.b16 %v285, %v284
  %v352 = vpack.c.b16 %v287, %v286
  %v353 = vpack.c.b16 %v289, %v288
  %v354 = vpack.c.b16 %v291, %v290
  %v355 = vpack.c.b16 %v293, %v292
  %v356 = vpack.c.b16 %v295, %v294
  %v357 = vpack.c.b16 %v297, %v296
  %v358 = vpack.c.b16 %v299, %v298
  %v359 = vpack.c.b16 %v301, %v300
  %v360 = vpack.c.b16 %v303, %v302
  %v361 = vpack.c.b16 %v305, %v304
  %v362 = vpack.c.b16 %v307, %v306
  %v363 = vpack.c.b16 %v309, %v308
  %v364 = vpack.c.b16 %v311, %v310
  %v365 = vpack.c.b16 %v313, %v312
  %v366 = vpack.c.b16 %v315, %v314
  %v367 = vpack.c.b16 %v317, %v316
  %v368 = vpack.c.b16 %v319, %v318
  %v369 = vpack.c.b16 %v321, %v320
  %v370 = vpack.c.b16 %v323, %v322
  %v371 = vpack.c.b16 %v325, %v324
  %v372 = vpack.c.b16 %v327, %v326
  %v373 = vpack.c.b16 %v329, %v328
  %v374 = vpack.c.b16 %v331, %v330
  %v375 = vpack.c.b16 %v333, %v332
  %v376 = vpack.c.b16 %v335, %v334
  %v377 = vpack.c.b16 %v337, %v336
  %418 = vmatprep.subr.bf16.mxu0 0
  %419 = vmatpush1.bf16.msra.mxu0 %v338
  %420 = vmatprep.subr.bf16.mxu0 0
  %421 = vmatpush1.bf16.msra.mxu0 %v339
  %422 = vmatprep.subr.bf16.mxu0 0
  %423 = vmatpush1.bf16.msra.mxu0 %v340
  %424 = vmatprep.subr.bf16.mxu0 0
  %425 = vmatpush1.bf16.msra.mxu0 %v341
  %426 = vmatprep.subr.bf16.mxu0 0
  %427 = vmatpush1.bf16.msra.mxu0 %v342
  %428 = vmatprep.subr.bf16.mxu0 0
  %429 = vmatpush1.bf16.msra.mxu0 %v343
  %430 = vmatprep.subr.bf16.mxu0 0
  %431 = vmatpush1.bf16.msra.mxu0 %v344
  %432 = vmatprep.subr.bf16.mxu0 0
  %433 = vmatpush1.bf16.msra.mxu0 %v345
  %434 = vmatprep.subr.bf16.mxu0 0
  %435 = vmatpush1.bf16.msra.mxu0 %v346
  %436 = vmatprep.subr.bf16.mxu0 0
  %437 = vmatpush1.bf16.msra.mxu0 %v347
  %438 = vmatprep.subr.bf16.mxu0 0
  %439 = vmatpush1.bf16.msra.mxu0 %v348
  %440 = vmatprep.subr.bf16.mxu0 0
  %441 = vmatpush1.bf16.msra.mxu0 %v349
  %442 = vmatprep.subr.bf16.mxu0 0
  %443 = vmatpush1.bf16.msra.mxu0 %v350
  %444 = vmatprep.subr.bf16.mxu0 0
  %445 = vmatpush1.bf16.msra.mxu0 %v351
  %446 = vmatprep.subr.bf16.mxu0 0
  %447 = vmatpush1.bf16.msra.mxu0 %v352
  %448 = vmatprep.subr.bf16.mxu0 0
  %449 = vmatpush1.bf16.msra.mxu0 %v353
  %450 = vmatprep.mubr.bf16.mxu0 %v159
  %451 = vmatmul.mubr.bf16.gmra.mrb[0].mxu0 %v158
  %v452 = vpop.f32.mrb[0].mxu0
  %v453 = vadd.f32 %v124, %v452
  %v454 = vpop.f32.mrb[0].mxu0
  %v455 = vpop.f32.mrb[0].mxu0
  %v456 = vadd.f32 %v124, %v455
  %v457 = vpop.f32.mrb[0].mxu0
  %458 = vmatprep.mubr.bf16.mxu0 %v164
  %459 = vmatmul.mubr.bf16.gmra.mrb[0].mxu0 %v163
  %v460 = vpop.f32.mrb[0].mxu0
  %v461 = vadd.f32 %v124, %v460
  %v462 = vpop.f32.mrb[0].mxu0
  %v463 = vpop.f32.mrb[0].mxu0
  %v464 = vadd.f32 %v124, %v463
  %v465 = vpop.f32.mrb[0].mxu0
  %466 = vdwg.mxu0
  %467 = vmatprep.subr.bf16.mxu0 0
  %468 = vmatpush1.bf16.msra.mxu0 %v354
  %469 = vmatprep.subr.bf16.mxu0 0
  %470 = vmatpush1.bf16.msra.mxu0 %v355
  %471 = vmatprep.subr.bf16.mxu0 0
  %472 = vmatpush1.bf16.msra.mxu0 %v356
  %473 = vmatprep.subr.bf16.mxu0 0
  %474 = vmatpush1.bf16.msra.mxu0 %v357
  %475 = vmatprep.subr.bf16.mxu0 0
  %476 = vmatpush1.bf16.msra.mxu0 %v358
  %477 = vmatprep.subr.bf16.mxu0 0
  %478 = vmatpush1.bf16.msra.mxu0 %v359
  %479 = vmatprep.subr.bf16.mxu0 0
  %480 = vmatpush1.bf16.msra.mxu0 %v360
  %481 = vmatprep.subr.bf16.mxu0 0
  %482 = vmatpush1.bf16.msra.mxu0 %v361
  %483 = vmatprep.subr.bf16.mxu0 0
  %484 = vmatpush1.bf16.msra.mxu0 %v362
  %485 = vmatprep.subr.bf16.mxu0 0
  %486 = vmatpush1.bf16.msra.mxu0 %v363
  %487 = vmatprep.subr.bf16.mxu0 0
  %488 = vmatpush1.bf16.msra.mxu0 %v364
  %489 = vmatprep.subr.bf16.mxu0 0
  %490 = vmatpush1.bf16.msra.mxu0 %v365
  %491 = vmatprep.subr.bf16.mxu0 0
  %492 = vmatpush1.bf16.msra.mxu0 %v366
  %493 = vmatprep.subr.bf16.mxu0 0
  %494 = vmatpush1.bf16.msra.mxu0 %v367
  %495 = vmatprep.subr.bf16.mxu0 0
  %496 = vmatpush1.bf16.msra.mxu0 %v368
  %497 = vmatprep.subr.bf16.mxu0 0
  %498 = vmatpush1.bf16.msra.mxu0 %v369
  %499 = vmatprep.mubr.bf16.mxu0 %v161
  %500 = vmatmul.mubr.bf16.gmra.mrb[0].mxu0 %v160
  %v501 = vpop.f32.mrb[0].mxu0
  %v502 = vadd.f32 %v453, %v501
  %v503 = vpop.f32.mrb[0].mxu0
  %v504 = vpop.f32.mrb[0].mxu0
  %v505 = vadd.f32 %v456, %v504
  %v506 = vpop.f32.mrb[0].mxu0
  %507 = vmatprep.mubr.bf16.mxu0 %v166
  %508 = vmatmul.mubr.bf16.gmra.mrb[0].mxu0 %v165
  %v509 = vpop.f32.mrb[0].mxu0
  %v510 = vadd.f32 %v461, %v509
  %v511 = vpop.f32.mrb[0].mxu0
  %v512 = vpop.f32.mrb[0].mxu0
  %v513 = vadd.f32 %v464, %v512
  %v514 = vpop.f32.mrb[0].mxu0
  %515 = vdwg.mxu0
  %516 = vmatprep.subr.bf16.mxu0 0
  %517 = vmatpush1.bf16.msra.mxu0 %v370
  %518 = vmatprep.subr.bf16.mxu0 0
  %519 = vmatpush1.bf16.msra.mxu0 %v371
  %520 = vmatprep.subr.bf16.mxu0 0
  %521 = vmatpush1.bf16.msra.mxu0 %v372
  %522 = vmatprep.subr.bf16.mxu0 0
  %523 = vmatpush1.bf16.msra.mxu0 %v373
  %524 = vmatprep.subr.bf16.mxu0 0
  %525 = vmatpush1.bf16.msra.mxu0 %v374
  %526 = vmatprep.subr.bf16.mxu0 0
  %527 = vmatpush1.bf16.msra.mxu0 %v375
  %528 = vmatprep.subr.bf16.mxu0 0
  %529 = vmatpush1.bf16.msra.mxu0 %v376
  %530 = vmatprep.subr.bf16.mxu0 0
  %531 = vmatpush1.bf16.msra.mxu0 %v377
  %532 = vmatprep.subr.bf16.mxu0 0
  %533 = vmatpush1.bf16.msra.mxu0 0
  %534 = vmatprep.subr.bf16.mxu0 0
  %535 = vmatpush1.bf16.msra.mxu0 0
  %536 = vmatprep.subr.bf16.mxu0 0
  %537 = vmatpush1.bf16.msra.mxu0 0
  %538 = vmatprep.subr.bf16.mxu0 0
  %539 = vmatpush1.bf16.msra.mxu0 0
  %540 = vmatprep.subr.bf16.mxu0 0
  %541 = vmatpush1.bf16.msra.mxu0 0
  %542 = vmatprep.subr.bf16.mxu0 0
  %543 = vmatpush1.bf16.msra.mxu0 0
  %544 = vmatprep.subr.bf16.mxu0 0
  %545 = vmatpush1.bf16.msra.mxu0 0
  %546 = vmatprep.subr.bf16.mxu0 0
  %547 = vmatpush1.bf16.msra.mxu0 0
  %548 = vmatprep.mubr.bf16.mxu0 0
  %549 = vmatmul.mubr.bf16.gmra.mrb[0].mxu0 %v162
  %v550 = vpop.f32.mrb[0].mxu0
  %v551 = vadd.f32 %v502, %v550
  %v552 = vpop.f32.mrb[0].mxu0
  %v553 = vpop.f32.mrb[0].mxu0
  %v554 = vadd.f32 %v505, %v553
  %v555 = vpop.f32.mrb[0].mxu0
  %556 = vmatprep.mubr.bf16.mxu0 0
  %557 = vmatmul.mubr.bf16.gmra.mrb[0].mxu0 %v167
  %v558 = vpop.f32.mrb[0].mxu0
  %v559 = vadd.f32 %v510, %v558
  %v560 = vpop.f32.mrb[0].mxu0
  %v561 = vpop.f32.mrb[0].mxu0
  %v562 = vadd.f32 %v513, %v561
  %v563 = vpop.f32.mrb[0].mxu0
  %564 = vdwg.mxu0
  %v565 = vpack.c.bf16 %v554, %v551
  %v566 = vpack.c.bf16 %v562, %v559
  %v569 = vunpack.c.l.b16 %v565
  %v570 = vunpack.c.h.b16 %v565
  %v571 = vunpack.c.l.b16 %v566
  %v572 = vunpack.c.h.b16 %v566
  %v573 = vpack.c.b16 %v569, %v569
  %v574 = vpack.c.b16 %v570, %v570
  %v575 = vpack.c.b16 %v571, %v571
  %v576 = vpack.c.b16 %v572, %v572
  %581 = vst [vmem:[%s3] sm:$0xf] %v573
  %582 = vst [vmem:[%s3 + $0x4] sm:$0xf] %v574
  %583 = vst [vmem:[%s3 + $0x8] sm:$0xf] %v575
  %584 = vst [vmem:[%s3 + $0xc] sm:$0xf] %v576
  // Predicated region
  $region14: #{_lambda_.41} parent=0 // pred_check
    _
  $region15: #{_lambda_.41} parent=0 // pred_check_branch
    %586 = sbr.rel (0) target = $region17
  $region16: #{_lambda_.41} parent=0 // pred_region
    _
  $region17: #{_lambda_.41} parent=0 // pred_fallthru
    _
  // Predicated region
  $region18: #{_lambda_.41} parent=0 // pred_check
    _
  $region19: #{_lambda_.41} parent=0 // pred_check_branch
    %588 = sbr.rel (0) target = $region21
  $region20: #{_lambda_.41} parent=0 // pred_region
    _
  $region21: #{_lambda_.41} parent=0 // pred_fallthru
    _

// kernel: _lambda_.44
$region0: #{_lambda_.44}
  #allocation0 [shape = 'u32[]', space=smem, size = 0x4, offset = 0x4, fixed_abs, tag = 'smem constant byte address 0x4 - core index']
  #allocation1 [shape = 'u32[144,128]{1,0:T(1,128)}', space=vmem, size = 0x12000, scoped, tag = 'internal scratch']
  %s0 = inlined_call_operand.vmem [shape: bf16[128,384], index: 0, kind: input, shape index: {}]
  %s1 = inlined_call_operand.vmem [shape: bf16[384,128], index: 1, kind: input, shape index: {}]
  %s2 = inlined_call_operand.vmem [shape: f32[1,128], index: 2, kind: input, shape index: {}]
  %s3 = inlined_call_operand.vmem [shape: bf16[128,128], index: 3, kind: output, shape index: {}]
  %s4 = sld [smem:[#allocation0]]
  $region22: #{_lambda_.44} parent=0
    _
  %s6 = ssub.s32 1, %s4
  %s7 = scalar_select 0, %s6, %s4
  // Predicated region
  $region2: #{_lambda_.44} parent=0 // pred_check
    _
  $region3: #{_lambda_.44} parent=0 // pred_check_branch
    %9 = sbr.rel (0) target = $region5
  $region4: #{_lambda_.44} parent=0 // pred_region
    _
  $region5: #{_lambda_.44} parent=0 // pred_fallthru
    _
  // Predicated region
  $region6: #{_lambda_.44} parent=0 // pred_check
    _
  $region7: #{_lambda_.44} parent=0 // pred_check_branch
    %11 = sbr.rel (0) target = $region9
  $region8: #{_lambda_.44} parent=0 // pred_region
    _
  $region9: #{_lambda_.44} parent=0 // pred_fallthru
    _
  // Predicated region
  $region10: #{_lambda_.44} parent=0 // pred_check
    _
  $region11: #{_lambda_.44} parent=0 // pred_check_branch
    %13 = sbr.rel (0) target = $region13
  $region12: #{_lambda_.44} parent=0 // pred_region
    _
  $region13: #{_lambda_.44} parent=0 // pred_fallthru
    _
  %v15 = vld [vmem:[%s0] sm:$0xff]
  %v16 = vld [vmem:[%s0 + $0x8] sm:$0xf]
  %v17 = vld [vmem:[%s0 + $0xc] sm:$0xff]
  %v18 = vld [vmem:[%s0 + $0x14] sm:$0xf]
  %v19 = vld [vmem:[%s0 + $0x18] sm:$0xff]
  %v20 = vld [vmem:[%s0 + $0x20] sm:$0xf]
  %v21 = vld [vmem:[%s0 + $0x24] sm:$0xff]
  %v22 = vld [vmem:[%s0 + $0x2c] sm:$0xf]
  %v23 = vld [vmem:[%s0 + $0x30] sm:$0xff]
  %v24 = vld [vmem:[%s0 + $0x38] sm:$0xf]
  %v25 = vld [vmem:[%s0 + $0x3c] sm:$0xff]
  %v26 = vld [vmem:[%s0 + $0x44] sm:$0xf]
  %v27 = vld [vmem:[%s0 + $0x48] sm:$0xff]
  %v28 = vld [vmem:[%s0 + $0x50] sm:$0xf]
  %v29 = vld [vmem:[%s0 + $0x54] sm:$0xff]
  %v30 = vld [vmem:[%s0 + $0x5c] sm:$0xf]
  %v31 = vld [vmem:[%s0 + $0x60] sm:$0xff]
  %v32 = vld [vmem:[%s0 + $0x68] sm:$0xf]
  %v33 = vld [vmem:[%s0 + $0x6c] sm:$0xff]
  %v34 = vld [vmem:[%s0 + $0x74] sm:$0xf]
  %v35 = vld [vmem:[%s0 + $0x78] sm:$0xff]
  %v36 = vld [vmem:[%s0 + $0x80] sm:$0xf]
  %v37 = vld [vmem:[%s0 + $0x84] sm:$0xff]
  %v38 = vld [vmem:[%s0 + $0x8c] sm:$0xf]
  %v39 = vld [vmem:[%s0 + $0x90] sm:$0xff]
  %v40 = vld [vmem:[%s0 + $0x98] sm:$0xf]
  %v41 = vld [vmem:[%s0 + $0x9c] sm:$0xff]
  %v42 = vld [vmem:[%s0 + $0xa4] sm:$0xf]
  %v43 = vld [vmem:[%s0 + $0xa8] sm:$0xff]
  %v44 = vld [vmem:[%s0 + $0xb0] sm:$0xf]
  %v45 = vld [vmem:[%s0 + $0xb4] sm:$0xff]
  %v46 = vld [vmem:[%s0 + $0xbc] sm:$0xf]
  %v47 = vmax.bf16 %v15, 0
  %v48 = vmax.bf16 %v16, 0
  %v49 = vmax.bf16 %v17, 0
  %v50 = vmax.bf16 %v18, 0
  %v51 = vmax.bf16 %v19, 0
  %v52 = vmax.bf16 %v20, 0
  %v53 = vmax.bf16 %v21, 0
  %v54 = vmax.bf16 %v22, 0
  %v55 = vmax.bf16 %v23, 0
  %v56 = vmax.bf16 %v24, 0
  %v57 = vmax.bf16 %v25, 0
  %v58 = vmax.bf16 %v26, 0
  %v59 = vmax.bf16 %v27, 0
  %v60 = vmax.bf16 %v28, 0
  %v61 = vmax.bf16 %v29, 0
  %v62 = vmax.bf16 %v30, 0
  %v63 = vmax.bf16 %v31, 0
  %v64 = vmax.bf16 %v32, 0
  %v65 = vmax.bf16 %v33, 0
  %v66 = vmax.bf16 %v34, 0
  %v67 = vmax.bf16 %v35, 0
  %v68 = vmax.bf16 %v36, 0
  %v69 = vmax.bf16 %v37, 0
  %v70 = vmax.bf16 %v38, 0
  %v71 = vmax.bf16 %v39, 0
  %v72 = vmax.bf16 %v40, 0
  %v73 = vmax.bf16 %v41, 0
  %v74 = vmax.bf16 %v42, 0
  %v75 = vmax.bf16 %v43, 0
  %v76 = vmax.bf16 %v44, 0
  %v77 = vmax.bf16 %v45, 0
  %v78 = vmax.bf16 %v46, 0
  %v79 = vld [vmem:[%s1] sm:$0xf]
  %v80 = vld [vmem:[%s1 + $0x4] sm:$0xf]
  %v81 = vld [vmem:[%s1 + $0x8] sm:$0xf]
  %v82 = vld [vmem:[%s1 + $0xc] sm:$0xf]
  %v83 = vld [vmem:[%s1 + $0x10] sm:$0xf]
  %v84 = vld [vmem:[%s1 + $0x14] sm:$0xf]
  %v85 = vld [vmem:[%s1 + $0x18] sm:$0xf]
  %v86 = vld [vmem:[%s1 + $0x1c] sm:$0xf]
  %v87 = vld [vmem:[%s1 + $0x20] sm:$0xf]
  %v88 = vld [vmem:[%s1 + $0x24] sm:$0xf]
  %v89 = vld [vmem:[%s1 + $0x28] sm:$0xf]
  %v90 = vld [vmem:[%s1 + $0x2c] sm:$0xf]
  %v91 = vld [vmem:[%s1 + $0x30] sm:$0xf]
  %v92 = vld [vmem:[%s1 + $0x34] sm:$0xf]
  %v93 = vld [vmem:[%s1 + $0x38] sm:$0xf]
  %v94 = vld [vmem:[%s1 + $0x3c] sm:$0xf]
  %v95 = vld [vmem:[%s1 + $0x40] sm:$0xf]
  %v96 = vld [vmem:[%s1 + $0x44] sm:$0xf]
  %v97 = vld [vmem:[%s1 + $0x48] sm:$0xf]
  %v98 = vld [vmem:[%s1 + $0x4c] sm:$0xf]
  %v99 = vld [vmem:[%s1 + $0x50] sm:$0xf]
  %v100 = vld [vmem:[%s1 + $0x54] sm:$0xf]
  %v101 = vld [vmem:[%s1 + $0x58] sm:$0xf]
  %v102 = vld [vmem:[%s1 + $0x5c] sm:$0xf]
  %v103 = vld [vmem:[%s1 + $0x60] sm:$0xf]
  %v104 = vld [vmem:[%s1 + $0x64] sm:$0xf]
  %v105 = vld [vmem:[%s1 + $0x68] sm:$0xf]
  %v106 = vld [vmem:[%s1 + $0x6c] sm:$0xf]
  %v107 = vld [vmem:[%s1 + $0x70] sm:$0xf]
  %v108 = vld [vmem:[%s1 + $0x74] sm:$0xf]
  %v109 = vld [vmem:[%s1 + $0x78] sm:$0xf]
  %v110 = vld [vmem:[%s1 + $0x7c] sm:$0xf]
  %v111 = vld [vmem:[%s1 + $0x80] sm:$0xf]
  %v112 = vld [vmem:[%s1 + $0x84] sm:$0xf]
  %v113 = vld [vmem:[%s1 + $0x88] sm:$0xf]
  %v114 = vld [vmem:[%s1 + $0x8c] sm:$0xf]
  %v115 = vld [vmem:[%s1 + $0x90] sm:$0xf]
  %v116 = vld [vmem:[%s1 + $0x94] sm:$0xf]
  %v117 = vld [vmem:[%s1 + $0x98] sm:$0xf]
  %v118 = vld [vmem:[%s1 + $0x9c] sm:$0xf]
  %v119 = vld [vmem:[%s1 + $0xa0] sm:$0xf]
  %v120 = vld [vmem:[%s1 + $0xa4] sm:$0xf]
  %v121 = vld [vmem:[%s1 + $0xa8] sm:$0xf]
  %v122 = vld [vmem:[%s1 + $0xac] sm:$0xf]
  %v123 = vld [vmem:[%s1 + $0xb0] sm:$0xf]
  %v124 = vld [vmem:[%s1 + $0xb4] sm:$0xf]
  %v125 = vld [vmem:[%s1 + $0xb8] sm:$0xf]
  %v126 = vld [vmem:[%s1 + $0xbc] sm:$0xf]
  %v127 = vld [vmem:[%s2] sm:$0x1]
  %v129 = vlaneseq
  %v130 = vshrl.u32 %v129, 7
  %v131 = vsub.s32 0, %v130
  %v132 = vrot.slane %v127, %v131
  %v166 = vunpack.c.l.b16 %v47
  %v167 = vunpack.c.h.b16 %v47
  %v168 = vunpack.c.l.b16 %v48
  %v169 = vunpack.c.l.b16 %v49
  %v170 = vunpack.c.h.b16 %v49
  %v171 = vunpack.c.l.b16 %v50
  %v172 = vunpack.c.l.b16 %v51
  %v173 = vunpack.c.h.b16 %v51
  %v174 = vunpack.c.l.b16 %v52
  %v175 = vunpack.c.l.b16 %v53
  %v176 = vunpack.c.h.b16 %v53
  %v177 = vunpack.c.l.b16 %v54
  %v178 = vunpack.c.l.b16 %v55
  %v179 = vunpack.c.h.b16 %v55
  %v180 = vunpack.c.l.b16 %v56
  %v181 = vunpack.c.l.b16 %v57
  %v182 = vunpack.c.h.b16 %v57
  %v183 = vunpack.c.l.b16 %v58
  %v184 = vunpack.c.l.b16 %v59
  %v185 = vunpack.c.h.b16 %v59
  %v186 = vunpack.c.l.b16 %v60
  %v187 = vunpack.c.l.b16 %v61
  %v188 = vunpack.c.h.b16 %v61
  %v189 = vunpack.c.l.b16 %v62
  %v190 = vunpack.c.l.b16 %v63
  %v191 = vunpack.c.h.b16 %v63
  %v192 = vunpack.c.l.b16 %v64
  %v193 = vunpack.c.l.b16 %v65
  %v194 = vunpack.c.h.b16 %v65
  %v195 = vunpack.c.l.b16 %v66
  %v196 = vunpack.c.l.b16 %v67
  %v197 = vunpack.c.h.b16 %v67
  %v198 = vunpack.c.l.b16 %v68
  %v199 = vunpack.c.l.b16 %v69
  %v200 = vunpack.c.h.b16 %v69
  %v201 = vunpack.c.l.b16 %v70
  %v202 = vunpack.c.l.b16 %v71
  %v203 = vunpack.c.h.b16 %v71
  %v204 = vunpack.c.l.b16 %v72
  %v205 = vunpack.c.l.b16 %v73
  %v206 = vunpack.c.h.b16 %v73
  %v207 = vunpack.c.l.b16 %v74
  %v208 = vunpack.c.l.b16 %v75
  %v209 = vunpack.c.h.b16 %v75
  %v210 = vunpack.c.l.b16 %v76
  %v211 = vunpack.c.l.b16 %v77
  %v212 = vunpack.c.h.b16 %v77
  %v213 = vunpack.c.l.b16 %v78
  %v214 = vpack.c.b16 %v169, %v166
  %v215 = vpack.c.b16 %v170, %v167
  %v216 = vpack.c.b16 %v171, %v168
  %v217 = vpack.c.b16 %v175, %v172
  %v218 = vpack.c.b16 %v176, %v173
  %v219 = vpack.c.b16 %v177, %v174
  %v220 = vpack.c.b16 %v181, %v178
  %v221 = vpack.c.b16 %v182, %v179
  %v222 = vpack.c.b16 %v183, %v180
  %v223 = vpack.c.b16 %v187, %v184
  %v224 = vpack.c.b16 %v188, %v185
  %v225 = vpack.c.b16 %v189, %v186
  %v226 = vpack.c.b16 %v193, %v190
  %v227 = vpack.c.b16 %v194, %v191
  %v228 = vpack.c.b16 %v195, %v192
  %v229 = vpack.c.b16 %v199, %v196
  %v230 = vpack.c.b16 %v200, %v197
  %v231 = vpack.c.b16 %v201, %v198
  %v232 = vpack.c.b16 %v205, %v202
  %v233 = vpack.c.b16 %v206, %v203
  %v234 = vpack.c.b16 %v207, %v204
  %v235 = vpack.c.b16 %v211, %v208
  %v236 = vpack.c.b16 %v212, %v209
  %v237 = vpack.c.b16 %v213, %v210
  %v310 = vunpack.c.l.b16 %v79
  %v311 = vunpack.c.l.b16 %v80
  %v312 = vunpack.c.l.b16 %v81
  %v313 = vunpack.c.l.b16 %v82
  %v314 = vunpack.c.l.b16 %v83
  %v315 = vunpack.c.l.b16 %v84
  %v316 = vunpack.c.l.b16 %v85
  %v317 = vunpack.c.l.b16 %v86
  %v318 = vunpack.c.l.b16 %v87
  %v319 = vunpack.c.l.b16 %v88
  %v320 = vunpack.c.l.b16 %v89
  %v321 = vunpack.c.l.b16 %v90
  %v322 = vunpack.c.l.b16 %v91
  %v323 = vunpack.c.l.b16 %v92
  %v324 = vunpack.c.l.b16 %v93
  %v325 = vunpack.c.l.b16 %v94
  %v326 = vunpack.c.l.b16 %v95
  %v327 = vunpack.c.l.b16 %v96
  %v328 = vunpack.c.l.b16 %v97
  %v329 = vunpack.c.l.b16 %v98
  %v330 = vunpack.c.l.b16 %v99
  %v331 = vunpack.c.l.b16 %v100
  %v332 = vunpack.c.l.b16 %v101
  %v333 = vunpack.c.l.b16 %v102
  %v334 = vunpack.c.l.b16 %v103
  %v335 = vunpack.c.l.b16 %v104
  %v336 = vunpack.c.l.b16 %v105
  %v337 = vunpack.c.l.b16 %v106
  %v338 = vunpack.c.l.b16 %v107
  %v339 = vunpack.c.l.b16 %v108
  %v340 = vunpack.c.l.b16 %v109
  %v341 = vunpack.c.l.b16 %v110
  %v342 = vunpack.c.l.b16 %v111
  %v343 = vunpack.c.l.b16 %v112
  %v344 = vunpack.c.l.b16 %v113
  %v345 = vunpack.c.l.b16 %v114
  %v346 = vunpack.c.l.b16 %v115
  %v347 = vunpack.c.l.b16 %v116
  %v348 = vunpack.c.l.b16 %v117
  %v349 = vunpack.c.l.b16 %v118
  %v350 = vunpack.c.l.b16 %v119
  %v351 = vunpack.c.l.b16 %v120
  %v352 = vunpack.c.l.b16 %v121
  %v353 = vunpack.c.l.b16 %v122
  %v354 = vunpack.c.l.b16 %v123
  %v355 = vunpack.c.l.b16 %v124
  %v356 = vunpack.c.l.b16 %v125
  %v357 = vunpack.c.l.b16 %v126
  %v358 = vpack.c.b16 %v311, %v310
  %v359 = vpack.c.b16 %v313, %v312
  %v360 = vpack.c.b16 %v315, %v314
  %v361 = vpack.c.b16 %v317, %v316
  %v362 = vpack.c.b16 %v319, %v318
  %v363 = vpack.c.b16 %v321, %v320
  %v364 = vpack.c.b16 %v323, %v322
  %v365 = vpack.c.b16 %v325, %v324
  %v366 = vpack.c.b16 %v327, %v326
  %v367 = vpack.c.b16 %v329, %v328
  %v368 = vpack.c.b16 %v331, %v330
  %v369 = vpack.c.b16 %v333, %v332
  %v370 = vpack.c.b16 %v335, %v334
  %v371 = vpack.c.b16 %v337, %v336
  %v372 = vpack.c.b16 %v339, %v338
  %v373 = vpack.c.b16 %v341, %v340
  %v374 = vpack.c.b16 %v343, %v342
  %v375 = vpack.c.b16 %v345, %v344
  %v376 = vpack.c.b16 %v347, %v346
  %v377 = vpack.c.b16 %v349, %v348
  %v378 = vpack.c.b16 %v351, %v350
  %v379 = vpack.c.b16 %v353, %v352
  %v380 = vpack.c.b16 %v355, %v354
  %v381 = vpack.c.b16 %v357, %v356
  %406 = vmatprep.subr.bf16.mxu0 0
  %407 = vmatpush1.bf16.msra.mxu0 %v358
  %408 = vmatprep.subr.bf16.mxu0 0
  %409 = vmatpush1.bf16.msra.mxu0 %v359
  %410 = vmatprep.subr.bf16.mxu0 0
  %411 = vmatpush1.bf16.msra.mxu0 %v360
  %412 = vmatprep.subr.bf16.mxu0 0
  %413 = vmatpush1.bf16.msra.mxu0 %v361
  %414 = vmatprep.subr.bf16.mxu0 0
  %415 = vmatpush1.bf16.msra.mxu0 %v362
  %416 = vmatprep.subr.bf16.mxu0 0
  %417 = vmatpush1.bf16.msra.mxu0 %v363
  %418 = vmatprep.subr.bf16.mxu0 0
  %419 = vmatpush1.bf16.msra.mxu0 %v364
  %420 = vmatprep.subr.bf16.mxu0 0
  %421 = vmatpush1.bf16.msra.mxu0 %v365
  %422 = vmatprep.subr.bf16.mxu0 0
  %423 = vmatpush1.bf16.msra.mxu0 %v366
  %424 = vmatprep.subr.bf16.mxu0 0
  %425 = vmatpush1.bf16.msra.mxu0 %v367
  %426 = vmatprep.subr.bf16.mxu0 0
  %427 = vmatpush1.bf16.msra.mxu0 %v368
  %428 = vmatprep.subr.bf16.mxu0 0
  %429 = vmatpush1.bf16.msra.mxu0 %v369
  %430 = vmatprep.subr.bf16.mxu0 0
  %431 = vmatpush1.bf16.msra.mxu0 %v370
  %432 = vmatprep.subr.bf16.mxu0 0
  %433 = vmatpush1.bf16.msra.mxu0 %v371
  %434 = vmatprep.subr.bf16.mxu0 0
  %435 = vmatpush1.bf16.msra.mxu0 %v372
  %436 = vmatprep.subr.bf16.mxu0 0
  %437 = vmatpush1.bf16.msra.mxu0 %v373
  %438 = vmatprep.mubr.bf16.mxu0 %v215
  %439 = vmatmul.mubr.bf16.gmra.mrb[0].mxu0 %v214
  %v440 = vpop.f32.mrb[0].mxu0
  %v441 = vadd.f32 %v132, %v440
  %v442 = vpop.f32.mrb[0].mxu0
  %v443 = vpop.f32.mrb[0].mxu0
  %v444 = vadd.f32 %v132, %v443
  %v445 = vpop.f32.mrb[0].mxu0
  %446 = vmatprep.mubr.bf16.mxu0 %v218
  %447 = vmatmul.mubr.bf16.gmra.mrb[0].mxu0 %v217
  %v448 = vpop.f32.mrb[0].mxu0
  %v449 = vadd.f32 %v132, %v448
  %v450 = vpop.f32.mrb[0].mxu0
  %v451 = vpop.f32.mrb[0].mxu0
  %v452 = vadd.f32 %v132, %v451
  %v453 = vpop.f32.mrb[0].mxu0
  %454 = vmatprep.mubr.bf16.mxu0 %v221
  %455 = vmatmul.mubr.bf16.gmra.mrb[0].mxu0 %v220
  %v456 = vpop.f32.mrb[0].mxu0
  %v457 = vadd.f32 %v132, %v456
  %v458 = vpop.f32.mrb[0].mxu0
  %v459 = vpop.f32.mrb[0].mxu0
  %v460 = vadd.f32 %v132, %v459
  %v461 = vpop.f32.mrb[0].mxu0
  %462 = vmatprep.mubr.bf16.mxu0 %v224
  %463 = vmatmul.mubr.bf16.gmra.mrb[0].mxu0 %v223
  %v464 = vpop.f32.mrb[0].mxu0
  %v465 = vadd.f32 %v132, %v464
  %v466 = vpop.f32.mrb[0].mxu0
  %v467 = vpop.f32.mrb[0].mxu0
  %v468 = vadd.f32 %v132, %v467
  %v469 = vpop.f32.mrb[0].mxu0
  %470 = vmatprep.mubr.bf16.mxu0 %v227
  %471 = vmatmul.mubr.bf16.gmra.mrb[0].mxu0 %v226
  %v472 = vpop.f32.mrb[0].mxu0
  %v473 = vadd.f32 %v132, %v472
  %v474 = vpop.f32.mrb[0].mxu0
  %v475 = vpop.f32.mrb[0].mxu0
  %v476 = vadd.f32 %v132, %v475
  %v477 = vpop.f32.mrb[0].mxu0
  %478 = vmatprep.mubr.bf16.mxu0 %v230
  %479 = vmatmul.mubr.bf16.gmra.mrb[0].mxu0 %v229
  %v480 = vpop.f32.mrb[0].mxu0
  %v481 = vadd.f32 %v132, %v480
  %v482 = vpop.f32.mrb[0].mxu0
  %v483 = vpop.f32.mrb[0].mxu0
  %v484 = vadd.f32 %v132, %v483
  %v485 = vpop.f32.mrb[0].mxu0
  %486 = vmatprep.mubr.bf16.mxu0 %v233
  %487 = vmatmul.mubr.bf16.gmra.mrb[0].mxu0 %v232
  %v488 = vpop.f32.mrb[0].mxu0
  %v489 = vadd.f32 %v132, %v488
  %v490 = vpop.f32.mrb[0].mxu0
  %v491 = vpop.f32.mrb[0].mxu0
  %v492 = vadd.f32 %v132, %v491
  %v493 = vpop.f32.mrb[0].mxu0
  %494 = vmatprep.mubr.bf16.mxu0 %v236
  %495 = vmatmul.mubr.bf16.gmra.mrb[0].mxu0 %v235
  %v496 = vpop.f32.mrb[0].mxu0
  %v497 = vadd.f32 %v132, %v496
  %v498 = vpop.f32.mrb[0].mxu0
  %v499 = vpop.f32.mrb[0].mxu0
  %v500 = vadd.f32 %v132, %v499
  %v501 = vpop.f32.mrb[0].mxu0
  %502 = vdwg.mxu0
  %503 = vmatprep.subr.bf16.mxu0 0
  %504 = vmatpush1.bf16.msra.mxu0 %v374
  %505 = vmatprep.subr.bf16.mxu0 0
  %506 = vmatpush1.bf16.msra.mxu0 %v375
  %507 = vmatprep.subr.bf16.mxu0 0
  %508 = vmatpush1.bf16.msra.mxu0 %v376
  %509 = vmatprep.subr.bf16.mxu0 0
  %510 = vmatpush1.bf16.msra.mxu0 %v377
  %511 = vmatprep.subr.bf16.mxu0 0
  %512 = vmatpush1.bf16.msra.mxu0 %v378
  %513 = vmatprep.subr.bf16.mxu0 0
  %514 = vmatpush1.bf16.msra.mxu0 %v379
  %515 = vmatprep.subr.bf16.mxu0 0
  %516 = vmatpush1.bf16.msra.mxu0 %v380
  %517 = vmatprep.subr.bf16.mxu0 0
  %518 = vmatpush1.bf16.msra.mxu0 %v381
  %519 = vmatprep.subr.bf16.mxu0 0
  %520 = vmatpush1.bf16.msra.mxu0 0
  %521 = vmatprep.subr.bf16.mxu0 0
  %522 = vmatpush1.bf16.msra.mxu0 0
  %523 = vmatprep.subr.bf16.mxu0 0
  %524 = vmatpush1.bf16.msra.mxu0 0
  %525 = vmatprep.subr.bf16.mxu0 0
  %526 = vmatpush1.bf16.msra.mxu0 0
  %527 = vmatprep.subr.bf16.mxu0 0
  %528 = vmatpush1.bf16.msra.mxu0 0
  %529 = vmatprep.subr.bf16.mxu0 0
  %530 = vmatpush1.bf16.msra.mxu0 0
  %531 = vmatprep.subr.bf16.mxu0 0
  %532 = vmatpush1.bf16.msra.mxu0 0
  %533 = vmatprep.subr.bf16.mxu0 0
  %534 = vmatpush1.bf16.msra.mxu0 0
  %535 = vmatprep.mubr.bf16.mxu0 0
  %536 = vmatmul.mubr.bf16.gmra.mrb[0].mxu0 %v216
  %v537 = vpop.f32.mrb[0].mxu0
  %v538 = vadd.f32 %v441, %v537
  %v539 = vpop.f32.mrb[0].mxu0
  %v540 = vpop.f32.mrb[0].mxu0
  %v541 = vadd.f32 %v444, %v540
  %v542 = vpop.f32.mrb[0].mxu0
  %543 = vmatprep.mubr.bf16.mxu0 0
  %544 = vmatmul.mubr.bf16.gmra.mrb[0].mxu0 %v219
  %v545 = vpop.f32.mrb[0].mxu0
  %v546 = vadd.f32 %v449, %v545
  %v547 = vpop.f32.mrb[0].mxu0
  %v548 = vpop.f32.mrb[0].mxu0
  %v549 = vadd.f32 %v452, %v548
  %v550 = vpop.f32.mrb[0].mxu0
  %551 = vmatprep.mubr.bf16.mxu0 0
  %552 = vmatmul.mubr.bf16.gmra.mrb[0].mxu0 %v222
  %v553 = vpop.f32.mrb[0].mxu0
  %v554 = vadd.f32 %v457, %v553
  %v555 = vpop.f32.mrb[0].mxu0
  %v556 = vpop.f32.mrb[0].mxu0
  %v557 = vadd.f32 %v460, %v556
  %v558 = vpop.f32.mrb[0].mxu0
  %559 = vmatprep.mubr.bf16.mxu0 0
  %560 = vmatmul.mubr.bf16.gmra.mrb[0].mxu0 %v225
  %v561 = vpop.f32.mrb[0].mxu0
  %v562 = vadd.f32 %v465, %v561
  %v563 = vpop.f32.mrb[0].mxu0
  %v564 = vpop.f32.mrb[0].mxu0
  %v565 = vadd.f32 %v468, %v564
  %v566 = vpop.f32.mrb[0].mxu0
  %567 = vmatprep.mubr.bf16.mxu0 0
  %568 = vmatmul.mubr.bf16.gmra.mrb[0].mxu0 %v228
  %v569 = vpop.f32.mrb[0].mxu0
  %v570 = vadd.f32 %v473, %v569
  %v571 = vpop.f32.mrb[0].mxu0
  %v572 = vpop.f32.mrb[0].mxu0
  %v573 = vadd.f32 %v476, %v572
  %v574 = vpop.f32.mrb[0].mxu0
  %575 = vmatprep.mubr.bf16.mxu0 0
  %576 = vmatmul.mubr.bf16.gmra.mrb[0].mxu0 %v231
  %v577 = vpop.f32.mrb[0].mxu0
  %v578 = vadd.f32 %v481, %v577
  %v579 = vpop.f32.mrb[0].mxu0
  %v580 = vpop.f32.mrb[0].mxu0
  %v581 = vadd.f32 %v484, %v580
  %v582 = vpop.f32.mrb[0].mxu0
  %583 = vmatprep.mubr.bf16.mxu0 0
  %584 = vmatmul.mubr.bf16.gmra.mrb[0].mxu0 %v234
  %v585 = vpop.f32.mrb[0].mxu0
  %v586 = vadd.f32 %v489, %v585
  %v587 = vpop.f32.mrb[0].mxu0
  %v588 = vpop.f32.mrb[0].mxu0
  %v589 = vadd.f32 %v492, %v588
  %v590 = vpop.f32.mrb[0].mxu0
  %591 = vmatprep.mubr.bf16.mxu0 0
  %592 = vmatmul.mubr.bf16.gmra.mrb[0].mxu0 %v237
  %v593 = vpop.f32.mrb[0].mxu0
  %v594 = vadd.f32 %v497, %v593
  %v595 = vpop.f32.mrb[0].mxu0
  %v596 = vpop.f32.mrb[0].mxu0
  %v597 = vadd.f32 %v500, %v596
  %v598 = vpop.f32.mrb[0].mxu0
  %599 = vdwg.mxu0
  %v600 = vpack.c.bf16 %v541, %v538
  %v601 = vpack.c.bf16 %v549, %v546
  %v602 = vpack.c.bf16 %v557, %v554
  %v603 = vpack.c.bf16 %v565, %v562
  %v604 = vpack.c.bf16 %v573, %v570
  %v605 = vpack.c.bf16 %v581, %v578
  %v606 = vpack.c.bf16 %v589, %v586
  %v607 = vpack.c.bf16 %v597, %v594
  %v616 = vunpack.c.l.b16 %v600
  %v617 = vunpack.c.h.b16 %v600
  %v618 = vunpack.c.l.b16 %v601
  %v619 = vunpack.c.h.b16 %v601
  %v620 = vunpack.c.l.b16 %v602
  %v621 = vunpack.c.h.b16 %v602
  %v622 = vunpack.c.l.b16 %v603
  %v623 = vunpack.c.h.b16 %v603
  %v624 = vunpack.c.l.b16 %v604
  %v625 = vunpack.c.h.b16 %v604
  %v626 = vunpack.c.l.b16 %v605
  %v627 = vunpack.c.h.b16 %v605
  %v628 = vunpack.c.l.b16 %v606
  %v629 = vunpack.c.h.b16 %v606
  %v630 = vunpack.c.l.b16 %v607
  %v631 = vunpack.c.h.b16 %v607
  %v632 = vpack.c.b16 %v616, %v616
  %v633 = vpack.c.b16 %v617, %v617
  %v634 = vpack.c.b16 %v618, %v618
  %v635 = vpack.c.b16 %v619, %v619
  %v636 = vpack.c.b16 %v620, %v620
  %v637 = vpack.c.b16 %v621, %v621
  %v638 = vpack.c.b16 %v622, %v622
  %v639 = vpack.c.b16 %v623, %v623
  %v640 = vpack.c.b16 %v624, %v624
  %v641 = vpack.c.b16 %v625, %v625
  %v642 = vpack.c.b16 %v626, %v626
  %v643 = vpack.c.b16 %v627, %v627
  %v644 = vpack.c.b16 %v628, %v628
  %v645 = vpack.c.b16 %v629, %v629
  %v646 = vpack.c.b16 %v630, %v630
  %v647 = vpack.c.b16 %v631, %v631
  %664 = vst [vmem:[%s3] sm:$0xf] %v632
  %665 = vst [vmem:[%s3 + $0x4] sm:$0xf] %v633
  %666 = vst [vmem:[%s3 + $0x8] sm:$0xf] %v634
  %667 = vst [vmem:[%s3 + $0xc] sm:$0xf] %v635
  %668 = vst [vmem:[%s3 + $0x10] sm:$0xf] %v636
  %669 = vst [vmem:[%s3 + $0x14] sm:$0xf] %v637
  %670 = vst [vmem:[%s3 + $0x18] sm:$0xf] %v638
  %671 = vst [vmem:[%s3 + $0x1c] sm:$0xf] %v639
  %672 = vst [vmem:[%s3 + $0x20] sm:$0xf] %v640
  %673 = vst [vmem:[%s3 + $0x24] sm:$0xf] %v641
  %674 = vst [vmem:[%s3 + $0x28] sm:$0xf] %v642
  %675 = vst [vmem:[%s3 + $0x2c] sm:$0xf] %v643
  %676 = vst [vmem:[%s3 + $0x30] sm:$0xf] %v644
  %677 = vst [vmem:[%s3 + $0x34] sm:$0xf] %v645
  %678 = vst [vmem:[%s3 + $0x38] sm:$0xf] %v646
  %679 = vst [vmem:[%s3 + $0x3c] sm:$0xf] %v647
  // Predicated region
  $region14: #{_lambda_.44} parent=0 // pred_check
    _
  $region15: #{_lambda_.44} parent=0 // pred_check_branch
    %681 = sbr.rel (0) target = $region17
  $region16: #{_lambda_.44} parent=0 // pred_region
    _
  $region17: #{_lambda_.44} parent=0 // pred_fallthru
    _
  // Predicated region
  $region18: #{_lambda_.44} parent=0 // pred_check
    _
  $region19: #{_lambda_.44} parent=0 // pred_check_branch
    %683 = sbr.rel (0) target = $region21
  $region20: #{_lambda_.44} parent=0 // pred_region
    _
  $region21: #{_lambda_.44} parent=0 // pred_fallthru
    _

// kernel: _lambda_.45
$region0: #{_lambda_.45}
  #allocation0 [shape = 'u32[]', space=smem, size = 0x4, offset = 0x4, fixed_abs, tag = 'smem constant byte address 0x4 - core index']
  #allocation1 [shape = 'u32[144,128]{1,0:T(1,128)}', space=vmem, size = 0x12000, scoped, tag = 'internal scratch']
  #allocation2 [shape = 'f32[1,1,8]{2,1,0:T(1,128)}', space=vmem, size = 0x200, scoped, tag = 'scratch operand']
  #allocation3 [shape = 'f32[1,1,8]{2,1,0:T(1,128)}', space=vmem, size = 0x200, scoped, tag = 'scratch operand']
  %s0 = inlined_call_operand.vmem [shape: bf16[2,256,8], index: 0, kind: input, shape index: {}]
  %s1 = inlined_call_operand.vmem [shape: f32[2,1,8], index: 1, kind: output, shape index: {0}]
  %s2 = inlined_call_operand.vmem [shape: f32[2,1,8], index: 2, kind: output, shape index: {1}]
  %3 = xla_tuple %s1, %s2
  %s4 = sld [smem:[#allocation0]]
  $region53: #{_lambda_.45} parent=0
    _
  %s6 = ssub.s32 1, %s4
  %s7 = scalar_select 0, %s6, %s4
  loop: start=0, step=1, limit=4
  $region2: #{_lambda_.45} parent=0 // loop_pre_header
    _
  $region3: #{_lambda_.45} parent=0 // loop_header
    %s9 = sphi 0, %s13
    %p10 = scmp.ge.s32.totalorder %s9, 4
    %s16 = sphi 0, %s35
    %s17 = sphi 0, %s31
    %s18 = sphi 0, %s27
    %s19 = sphi 0, %s16
    %s20 = sphi 0, %s17
    %s21 = sphi 0, %s18
    %s22 = sphi 0, %s19
    %s23 = sphi 0, %s20
    %s24 = sphi 0, %s21
    %s42 = sphi 0, %s44
    %s45 = sphi 0, %s42
    %s46 = sphi 0, %s45
    %s62 = sphi 0, %s46
    %s70 = sphi 0, %s72
    %s73 = sphi 0, %s70
    %s74 = sphi 0, %s73
    %s90 = sphi 0, %s74
    %s98 = sphi 0, %s100
    %s101 = sphi 0, %s98
    %s102 = sphi 0, %s101
    %s118 = sphi 0, %s102
  $region4: #{_lambda_.45} parent=0 // loop_header_branch
    %12 = sbr.rel (%p10) target = $region8
  $region5: #{_lambda_.45} parent=0 // loop_body
    %s14 = ssub.s32 %s9, 1
    %s15 = ssub.s32 %s9, 2
    %s25 = sadd.s32 1, %s18
    %p26 = scmp.ge.s32.totalorder %s25, 1
    %s27 = scalar_select %p26, 0, %s25
    %s28 = sadd.s32 1, %s17
    %s29 = scalar_select %p26, %s28, %s17
    %p30 = scmp.ge.s32.totalorder %s29, 1
    %s31 = scalar_select %p30, 0, %s29
    %s32 = sadd.s32 1, %s16
    %s33 = scalar_select %p30, %s32, %s16
    %p34 = scmp.ge.s32.totalorder %s33, 2
    %s35 = scalar_select %p34, 0, %s33
    %s36 = ssub.s32 %s16, %s35
    %s37 = ssub.s32 %s18, %s27
    %s38 = sor.u32 %s36, %s37
    %s39 = ssub.s32 %s17, %s31
    %s40 = sor.u32 %s38, %s39
    %p41 = scmp.eq.s32.totalorder %s40, 0
    %s43 = sadd.s32 %s42, 1
    %s44 = scalar_select %p41, %s42, %s43
    %p47 = pneg %p41
    %p48 = scmp.eq.s32.totalorder %s9, 1
    %p49 = por %p47, %p48
    %p50 = scmp.ne.s32.totalorder %s42, %s45
    %p51 = scmp.eq.s32.totalorder %s9, 0
    %p52 = por %p50, %p51
    %p53 = scmp.ne.s32.totalorder %s42, %s45
    %p54 = scmp.eq.s32.totalorder %s14, 1
    %p55 = por %p53, %p54
    %p56 = scmp.ne.s32.totalorder %s45, %s46
    %p57 = scmp.eq.s32.totalorder %s14, 0
    %p58 = por %p56, %p57
    %p59 = scmp.ne.s32.totalorder %s45, %s46
    %p60 = scmp.eq.s32.totalorder %s15, 1
    %p61 = por %p59, %p60
    %p63 = scmp.ne.s32.totalorder %s46, %s62
    %p64 = scmp.eq.s32.totalorder %s15, 0
    %p65 = por %p63, %p64
    %s66 = ssub.s32 %s16, %s35
    %s67 = ssub.s32 %s17, %s31
    %s68 = sor.u32 %s66, %s67
    %p69 = scmp.eq.s32.totalorder %s68, 0
    %s71 = sadd.s32 %s70, 1
    %s72 = scalar_select %p69, %s70, %s71
    %p75 = pneg %p69
    %p76 = scmp.eq.s32.totalorder %s9, 1
    %p77 = por %p75, %p76
    %p78 = scmp.ne.s32.totalorder %s70, %s73
    %p79 = scmp.eq.s32.totalorder %s9, 0
    %p80 = por %p78, %p79
    %p81 = scmp.ne.s32.totalorder %s70, %s73
    %p82 = scmp.eq.s32.totalorder %s14, 1
    %p83 = por %p81, %p82
    %p84 = scmp.ne.s32.totalorder %s73, %s74
    %p85 = scmp.eq.s32.totalorder %s14, 0
    %p86 = por %p84, %p85
    %p87 = scmp.ne.s32.totalorder %s73, %s74
    %p88 = scmp.eq.s32.totalorder %s15, 1
    %p89 = por %p87, %p88
    %p91 = scmp.ne.s32.totalorder %s74, %s90
    %p92 = scmp.eq.s32.totalorder %s15, 0
    %p93 = por %p91, %p92
    %s94 = ssub.s32 %s16, %s35
    %s95 = ssub.s32 %s17, %s31
    %s96 = sor.u32 %s94, %s95
    %p97 = scmp.eq.s32.totalorder %s96, 0
    %s99 = sadd.s32 %s98, 1
    %s100 = scalar_select %p97, %s98, %s99
    %p103 = pneg %p97
    %p104 = scmp.eq.s32.totalorder %s9, 1
    %p105 = por %p103, %p104
    %p106 = scmp.ne.s32.totalorder %s98, %s101
    %p107 = scmp.eq.s32.totalorder %s9, 0
    %p108 = por %p106, %p107
    %p109 = scmp.ne.s32.totalorder %s98, %s101
    %p110 = scmp.eq.s32.totalorder %s14, 1
    %p111 = por %p109, %p110
    %p112 = scmp.ne.s32.totalorder %s101, %s102
    %p113 = scmp.eq.s32.totalorder %s14, 0
    %p114 = por %p112, %p113
    %p115 = scmp.ne.s32.totalorder %s101, %s102
    %p116 = scmp.eq.s32.totalorder %s15, 1
    %p117 = por %p115, %p116
    %p119 = scmp.ne.s32.totalorder %s102, %s118
    %p120 = scmp.eq.s32.totalorder %s15, 0
    %p121 = por %p119, %p120
    %p122 = scmp.le.s32.totalorder 1, %s9
    %p123 = scmp.lt.s32.totalorder %s9, 3
    %p124 = pnand %p122, %p123
    %p125 = pneg %p124
    // Predicated region
    $region9: #{_lambda_.45} parent=5 // pred_check
      _
    $region10: #{_lambda_.45} parent=5 // pred_check_branch
      %127 = sbr.rel (%p124) target = $region12
    $region11: #{_lambda_.45} parent=5 // pred_region
      %s128 = ssub.s32 %s9, 1
    $region12: #{_lambda_.45} parent=5 // pred_fallthru
      _
    %p129 = scmp.lt.s32.totalorder %s9, 2
    // Predicated region
    $region13: #{_lambda_.45} parent=5 // pred_check
      %p130 = pneg %p129
    $region14: #{_lambda_.45} parent=5 // pred_check_branch
      %132 = sbr.rel (%p130) target = $region16
    $region15: #{_lambda_.45} parent=5 // pred_region
      // Predicated region
      $region17: #{_lambda_.45} parent=15 // pred_check
        %p133 = pneg %p52
      $region18: #{_lambda_.45} parent=15 // pred_check_branch
        %135 = sbr.rel (%p133) target = $region20
      $region19: #{_lambda_.45} parent=15 // pred_region
        %s136 = smul.u32 32, %s18
        %p137 = scmp.lt.s32.totalorder %s16, 1
        %s138 = scalar_select %p137, %s16, 1
        %p139 = scmp.lt.s32.totalorder %s136, 31
        %s140 = scalar_select %p139, %s136, 31
        %p141 = scmp.lt.s32.totalorder %s17, 0
        %s142 = scalar_select %p141, %s17, 0
        %s143 = sadd.s32 %s142, %s140
        %s144 = smul.addr %s138, 32
        %s145 = sadd.s32 %s143, %s144
        %s146 = smul.addr %s145, 4
        %s147 = scalar_lea.vmem %s0, %s146
        %s148 = smul.u32 32, %s18
      $region20: #{_lambda_.45} parent=15 // pred_fallthru
        _
    $region16: #{_lambda_.45} parent=5 // pred_fallthru
      _
    %p149 = scmp.le.s32.totalorder 1, %s9
    %p150 = scmp.lt.s32.totalorder %s9, 3
    %p151 = pnand %p149, %p150
    %p152 = pneg %p151
    // Predicated region
    $region21: #{_lambda_.45} parent=5 // pred_check
      _
    $region22: #{_lambda_.45} parent=5 // pred_check_branch
      %154 = sbr.rel (%p151) target = $region24
    $region23: #{_lambda_.45} parent=5 // pred_region
      %s155 = ssub.s32 %s9, 1
      %s156 = smul.u32 32, %s21
      %p157 = scmp.lt.s32.totalorder %s19, 1
      %s158 = scalar_select %p157, %s19, 1
      %p159 = scmp.lt.s32.totalorder %s156, 31
      %s160 = scalar_select %p159, %s156, 31
      %p161 = scmp.lt.s32.totalorder %s20, 0
      %s162 = scalar_select %p161, %s20, 0
      %s163 = sadd.s32 %s162, %s160
      %s164 = smul.addr %s158, 32
      %s165 = sadd.s32 %s163, %s164
      %s166 = smul.addr %s165, 4
      %s167 = scalar_lea.vmem %s0, %s166
      %p168 = pneg %p58
      %p169 = pneg %p55
      %p170 = pneg %p86
      %p171 = pneg %p83
      %p172 = scmp.lt.s32.totalorder %s19, 1
      %s173 = scalar_select %p172, %s19, 1
      %p174 = scmp.lt.s32.totalorder %s20, 0
      %s175 = scalar_select %p174, %s20, 0
      %s176 = sadd.s32 %s175, %s173
      %s177 = scalar_lea.vmem %s1, %s176
      %p178 = pneg %p114
      %p179 = pneg %p111
      %p180 = scmp.lt.s32.totalorder %s19, 1
      %s181 = scalar_select %p180, %s19, 1
      %p182 = scmp.lt.s32.totalorder %s20, 0
      %s183 = scalar_select %p182, %s20, 0
      %s184 = sadd.s32 %s183, %s181
      %s185 = scalar_lea.vmem %s2, %s184
      %s186 = smul.u32 32, %s21
      %p187 = scmp.lt.s32.totalorder %s19, 1
      %s188 = scalar_select %p187, %s19, 1
      %p189 = scmp.lt.s32.totalorder %s186, 31
      %s190 = scalar_select %p189, %s186, 31
      %p191 = scmp.lt.s32.totalorder %s20, 0
      %s192 = scalar_select %p191, %s20, 0
      %s193 = sadd.s32 %s192, %s190
      %s194 = smul.addr %s188, 32
      %s195 = sadd.s32 %s193, %s194
      %s196 = smul.addr %s195, 4
      %s197 = scalar_lea.vmem %s0, %s196
      %s198 = smul.u32 32, %s21
      %p199 = scmp.lt.s32.totalorder %s19, 1
      %s200 = scalar_select %p199, %s19, 1
      %p201 = scmp.lt.s32.totalorder %s20, 0
      %s202 = scalar_select %p201, %s20, 0
      %s203 = sadd.s32 %s202, %s200
      %s204 = scalar_lea.vmem %s1, %s203
      %p205 = scmp.lt.s32.totalorder %s19, 1
      %s206 = scalar_select %p205, %s19, 1
      %p207 = scmp.lt.s32.totalorder %s20, 0
      %s208 = scalar_select %p207, %s20, 0
      %s209 = sadd.s32 %s208, %s206
      %s210 = scalar_lea.vmem %s2, %s209
      %p211 = scmp.eq.s32.totalorder %s21, 0
      // Predicated region
      $region25: #{_lambda_.45} parent=23 // pred_check
        %p212 = pneg %p211
      $region26: #{_lambda_.45} parent=23 // pred_check_branch
        %214 = sbr.rel (%p212) target = $region28
      $region27: #{_lambda_.45} parent=23 // pred_region
        %vm215 = vcmask 57344
        %216 = vst.msk [vmem:[#allocation2] sm:$0x1] %vm215, 0.0
        %217 = vst.msk [vmem:[#allocation3] sm:$0x1] %vm215, 0.0
      $region28: #{_lambda_.45} parent=23 // pred_fallthru
        _
      %v218 = vld [vmem:[%s197] sm:$0xf]
      %v219 = vld [vmem:[%s197 + $0x4] sm:$0xf]
      %v220 = vld [vmem:[%s197 + $0x8] sm:$0xf]
      %v221 = vld [vmem:[%s197 + $0xc] sm:$0xf]
      %v222 = vld [vmem:[%s197 + $0x10] sm:$0xf]
      %v223 = vld [vmem:[%s197 + $0x14] sm:$0xf]
      %v224 = vld [vmem:[%s197 + $0x18] sm:$0xf]
      %v225 = vld [vmem:[%s197 + $0x1c] sm:$0xf]
      %v226 = vld [vmem:[%s197 + $0x20] sm:$0xf]
      %v227 = vld [vmem:[%s197 + $0x24] sm:$0xf]
      %v228 = vld [vmem:[%s197 + $0x28] sm:$0xf]
      %v229 = vld [vmem:[%s197 + $0x2c] sm:$0xf]
      %v230 = vld [vmem:[%s197 + $0x30] sm:$0xf]
      %v231 = vld [vmem:[%s197 + $0x34] sm:$0xf]
      %v232 = vld [vmem:[%s197 + $0x38] sm:$0xf]
      %v233 = vld [vmem:[%s197 + $0x3c] sm:$0xf]
      %v234 = vld [vmem:[%s197 + $0x40] sm:$0xf]
      %v235 = vld [vmem:[%s197 + $0x44] sm:$0xf]
      %v236 = vld [vmem:[%s197 + $0x48] sm:$0xf]
      %v237 = vld [vmem:[%s197 + $0x4c] sm:$0xf]
      %v238 = vld [vmem:[%s197 + $0x50] sm:$0xf]
      %v239 = vld [vmem:[%s197 + $0x54] sm:$0xf]
      %v240 = vld [vmem:[%s197 + $0x58] sm:$0xf]
      %v241 = vld [vmem:[%s197 + $0x5c] sm:$0xf]
      %v242 = vld [vmem:[%s197 + $0x60] sm:$0xf]
      %v243 = vld [vmem:[%s197 + $0x64] sm:$0xf]
      %v244 = vld [vmem:[%s197 + $0x68] sm:$0xf]
      %v245 = vld [vmem:[%s197 + $0x6c] sm:$0xf]
      %v246 = vld [vmem:[%s197 + $0x70] sm:$0xf]
      %v247 = vld [vmem:[%s197 + $0x74] sm:$0xf]
      %v248 = vld [vmem:[%s197 + $0x78] sm:$0xf]
      %v249 = vld [vmem:[%s197 + $0x7c] sm:$0xf]
      %v250 = vunpack.c.l.bf16 %v218
      %v251 = vunpack.c.l.bf16 %v219
      %v252 = vunpack.c.l.bf16 %v220
      %v253 = vunpack.c.l.bf16 %v221
      %v254 = vunpack.c.l.bf16 %v222
      %v255 = vunpack.c.l.bf16 %v223
      %v256 = vunpack.c.l.bf16 %v224
      %v257 = vunpack.c.l.bf16 %v225
      %v258 = vunpack.c.l.bf16 %v226
      %v259 = vunpack.c.l.bf16 %v227
      %v260 = vunpack.c.l.bf16 %v228
      %v261 = vunpack.c.l.bf16 %v229
      %v262 = vunpack.c.l.bf16 %v230
      %v263 = vunpack.c.l.bf16 %v231
      %v264 = vunpack.c.l.bf16 %v232
      %v265 = vunpack.c.l.bf16 %v233
      %v266 = vunpack.c.l.bf16 %v234
      %v267 = vunpack.c.l.bf16 %v235
      %v268 = vunpack.c.l.bf16 %v236
      %v269 = vunpack.c.l.bf16 %v237
      %v270 = vunpack.c.l.bf16 %v238
      %v271 = vunpack.c.l.bf16 %v239
      %v272 = vunpack.c.l.bf16 %v240
      %v273 = vunpack.c.l.bf16 %v241
      %v274 = vunpack.c.l.bf16 %v242
      %v275 = vunpack.c.l.bf16 %v243
      %v276 = vunpack.c.l.bf16 %v244
      %v277 = vunpack.c.l.bf16 %v245
      %v278 = vunpack.c.l.bf16 %v246
      %v279 = vunpack.c.l.bf16 %v247
      %v280 = vunpack.c.l.bf16 %v248
      %v281 = vunpack.c.l.bf16 %v249
      %v282 = vld [vmem:[#allocation2] sm:$0x1]
      %vm283 = vcmask 64512
      %v284 = vsel %vm283, %v250, 0.0
      %v285 = vsel %vm283, %v251, 0.0
      %v286 = vadd.f32 %v284, %v285
      %v287 = vsel %vm283, %v252, 0.0
      %v288 = vadd.f32 %v286, %v287
      %v289 = vsel %vm283, %v253, 0.0
      %v290 = vadd.f32 %v288, %v289
      %v291 = vsel %vm283, %v254, 0.0
      %v292 = vadd.f32 %v290, %v291
      %v293 = vsel %vm283, %v255, 0.0
      %v294 = vadd.f32 %v292, %v293
      %v295 = vsel %vm283, %v256, 0.0
      %v296 = vadd.f32 %v294, %v295
      %v297 = vsel %vm283, %v257, 0.0
      %v298 = vadd.f32 %v296, %v297
      %v299 = vsel %vm283, %v258, 0.0
      %v300 = vadd.f32 %v298, %v299
      %v301 = vsel %vm283, %v259, 0.0
      %v302 = vadd.f32 %v300, %v301
      %v303 = vsel %vm283, %v260, 0.0
      %v304 = vadd.f32 %v302, %v303
      %v305 = vsel %vm283, %v261, 0.0
      %v306 = vadd.f32 %v304, %v305
      %v307 = vsel %vm283, %v262, 0.0
      %v308 = vadd.f32 %v306, %v307
      %v309 = vsel %vm283, %v263, 0.0
      %v310 = vadd.f32 %v308, %v309
      %v311 = vsel %vm283, %v264, 0.0
      %v312 = vadd.f32 %v310, %v311
      %v313 = vsel %vm283, %v265, 0.0
      %v314 = vadd.f32 %v312, %v313
      %v315 = vsel %vm283, %v266, 0.0
      %v316 = vadd.f32 %v314, %v315
      %v317 = vsel %vm283, %v267, 0.0
      %v318 = vadd.f32 %v316, %v317
      %v319 = vsel %vm283, %v268, 0.0
      %v320 = vadd.f32 %v318, %v319
      %v321 = vsel %vm283, %v269, 0.0
      %v322 = vadd.f32 %v320, %v321
      %v323 = vsel %vm283, %v270, 0.0
      %v324 = vadd.f32 %v322, %v323
      %v325 = vsel %vm283, %v271, 0.0
      %v326 = vadd.f32 %v324, %v325
      %v327 = vsel %vm283, %v272, 0.0
      %v328 = vadd.f32 %v326, %v327
      %v329 = vsel %vm283, %v273, 0.0
      %v330 = vadd.f32 %v328, %v329
      %v331 = vsel %vm283, %v274, 0.0
      %v332 = vadd.f32 %v330, %v331
      %v333 = vsel %vm283, %v275, 0.0
      %v334 = vadd.f32 %v332, %v333
      %v335 = vsel %vm283, %v276, 0.0
      %v336 = vadd.f32 %v334, %v335
      %v337 = vsel %vm283, %v277, 0.0
      %v338 = vadd.f32 %v336, %v337
      %v339 = vsel %vm283, %v278, 0.0
      %v340 = vadd.f32 %v338, %v339
      %v341 = vsel %vm283, %v279, 0.0
      %v342 = vadd.f32 %v340, %v341
      %v343 = vsel %vm283, %v280, 0.0
      %v344 = vadd.f32 %v342, %v343
      %v345 = vsel %vm283, %v281, 0.0
      %v346 = vadd.f32 %v344, %v345
      %v347 = vrot.slane %v346, 4
      %v348 = vadd.f32 %v346, %v347
      %v349 = vrot.slane %v348, 2
      %v350 = vadd.f32 %v348, %v349
      %v351 = vrot.slane %v350, 1
      %v352 = vadd.f32 %v350, %v351
      %v353 = vadd.f32 %v282, %v352
      %vm354 = vcmask 57344
      %355 = vst.msk [vmem:[#allocation2] sm:$0x1] %vm354, %v353
      %v356 = vld [vmem:[#allocation3] sm:$0x1]
      %v357 = vmul.f32 %v250, %v250
      %v358 = vmul.f32 %v251, %v251
      %v359 = vmul.f32 %v252, %v252
      %v360 = vmul.f32 %v253, %v253
      %v361 = vmul.f32 %v254, %v254
      %v362 = vmul.f32 %v255, %v255
      %v363 = vmul.f32 %v256, %v256
      %v364 = vmul.f32 %v257, %v257
      %v365 = vmul.f32 %v258, %v258
      %v366 = vmul.f32 %v259, %v259
      %v367 = vmul.f32 %v260, %v260
      %v368 = vmul.f32 %v261, %v261
      %v369 = vmul.f32 %v262, %v262
      %v370 = vmul.f32 %v263, %v263
      %v371 = vmul.f32 %v264, %v264
      %v372 = vmul.f32 %v265, %v265
      %v373 = vmul.f32 %v266, %v266
      %v374 = vmul.f32 %v267, %v267
      %v375 = vmul.f32 %v268, %v268
      %v376 = vmul.f32 %v269, %v269
      %v377 = vmul.f32 %v270, %v270
      %v378 = vmul.f32 %v271, %v271
      %v379 = vmul.f32 %v272, %v272
      %v380 = vmul.f32 %v273, %v273
      %v381 = vmul.f32 %v274, %v274
      %v382 = vmul.f32 %v275, %v275
      %v383 = vmul.f32 %v276, %v276
      %v384 = vmul.f32 %v277, %v277
      %v385 = vmul.f32 %v278, %v278
      %v386 = vmul.f32 %v279, %v279
      %v387 = vmul.f32 %v280, %v280
      %v388 = vmul.f32 %v281, %v281
      %v389 = vsel %vm283, %v357, 0.0
      %v390 = vsel %vm283, %v358, 0.0
      %v391 = vadd.f32 %v389, %v390
      %v392 = vsel %vm283, %v359, 0.0
      %v393 = vadd.f32 %v391, %v392
      %v394 = vsel %vm283, %v360, 0.0
      %v395 = vadd.f32 %v393, %v394
      %v396 = vsel %vm283, %v361, 0.0
      %v397 = vadd.f32 %v395, %v396
      %v398 = vsel %vm283, %v362, 0.0
      %v399 = vadd.f32 %v397, %v398
      %v400 = vsel %vm283, %v363, 0.0
      %v401 = vadd.f32 %v399, %v400
      %v402 = vsel %vm283, %v364, 0.0
      %v403 = vadd.f32 %v401, %v402
      %v404 = vsel %vm283, %v365, 0.0
      %v405 = vadd.f32 %v403, %v404
      %v406 = vsel %vm283, %v366, 0.0
      %v407 = vadd.f32 %v405, %v406
      %v408 = vsel %vm283, %v367, 0.0
      %v409 = vadd.f32 %v407, %v408
      %v410 = vsel %vm283, %v368, 0.0
      %v411 = vadd.f32 %v409, %v410
      %v412 = vsel %vm283, %v369, 0.0
      %v413 = vadd.f32 %v411, %v412
      %v414 = vsel %vm283, %v370, 0.0
      %v415 = vadd.f32 %v413, %v414
      %v416 = vsel %vm283, %v371, 0.0
      %v417 = vadd.f32 %v415, %v416
      %v418 = vsel %vm283, %v372, 0.0
      %v419 = vadd.f32 %v417, %v418
      %v420 = vsel %vm283, %v373, 0.0
      %v421 = vadd.f32 %v419, %v420
      %v422 = vsel %vm283, %v374, 0.0
      %v423 = vadd.f32 %v421, %v422
      %v424 = vsel %vm283, %v375, 0.0
      %v425 = vadd.f32 %v423, %v424
      %v426 = vsel %vm283, %v376, 0.0
      %v427 = vadd.f32 %v425, %v426
      %v428 = vsel %vm283, %v377, 0.0
      %v429 = vadd.f32 %v427, %v428
      %v430 = vsel %vm283, %v378, 0.0
      %v431 = vadd.f32 %v429, %v430
      %v432 = vsel %vm283, %v379, 0.0
      %v433 = vadd.f32 %v431, %v432
      %v434 = vsel %vm283, %v380, 0.0
      %v435 = vadd.f32 %v433, %v434
      %v436 = vsel %vm283, %v381, 0.0
      %v437 = vadd.f32 %v435, %v436
      %v438 = vsel %vm283, %v382, 0.0
      %v439 = vadd.f32 %v437, %v438
      %v440 = vsel %vm283, %v383, 0.0
      %v441 = vadd.f32 %v439, %v440
      %v442 = vsel %vm283, %v384, 0.0
      %v443 = vadd.f32 %v441, %v442
      %v444 = vsel %vm283, %v385, 0.0
      %v445 = vadd.f32 %v443, %v444
      %v446 = vsel %vm283, %v386, 0.0
      %v447 = vadd.f32 %v445, %v446
      %v448 = vsel %vm283, %v387, 0.0
      %v449 = vadd.f32 %v447, %v448
      %v450 = vsel %vm283, %v388, 0.0
      %v451 = vadd.f32 %v449, %v450
      %v452 = vrot.slane %v451, 4
      %v453 = vadd.f32 %v451, %v452
      %v454 = vrot.slane %v453, 2
      %v455 = vadd.f32 %v453, %v454
      %v456 = vrot.slane %v455, 1
      %v457 = vadd.f32 %v455, %v456
      %v458 = vadd.f32 %v356, %v457
      %459 = vst.msk [vmem:[#allocation3] sm:$0x1] %vm354, %v458
      // Predicated region
      $region29: #{_lambda_.45} parent=23 // pred_check
        %p460 = pneg %p211
      $region30: #{_lambda_.45} parent=23 // pred_check_branch
        %462 = sbr.rel (%p460) target = $region32
      $region31: #{_lambda_.45} parent=23 // pred_region
        %v463 = vld [vmem:[#allocation2] sm:$0x1]
        %v464 = vmul.f32 %v463, 0.00390625
        %v465 = vld [vmem:[#allocation3] sm:$0x1]
        %v466 = vmul.f32 %v465, 0.00390625
        %v467 = vmul.f32 %v464, %v464
        %v468 = vsub.f32 %v466, %v467
        %469 = vst.msk [vmem:[%s204] sm:$0x1] %vm354, %v464
        %v470 = vadd.f32 %v468, 1e-05
        %v471 = vrsqrt.pop %v470
        %472 = vst.msk [vmem:[%s210] sm:$0x1] %vm354, %v471
      $region32: #{_lambda_.45} parent=23 // pred_fallthru
        _
      %p473 = scmp.lt.s32.totalorder %s19, 1
      %s474 = scalar_select %p473, %s19, 1
      %p475 = scmp.lt.s32.totalorder %s20, 0
      %s476 = scalar_select %p475, %s20, 0
      %s477 = sadd.s32 %s476, %s474
      %s478 = scalar_lea.vmem %s1, %s477
      %p479 = scmp.lt.s32.totalorder %s19, 1
      %s480 = scalar_select %p479, %s19, 1
      %p481 = scmp.lt.s32.totalorder %s20, 0
      %s482 = scalar_select %p481, %s20, 0
      %s483 = sadd.s32 %s482, %s480
      %s484 = scalar_lea.vmem %s2, %s483
      // Predicated region
      $region33: #{_lambda_.45} parent=23 // pred_check
        %p485 = pneg %p83
      $region34: #{_lambda_.45} parent=23 // pred_check_branch
        %487 = sbr.rel (%p485) target = $region36
      $region35: #{_lambda_.45} parent=23 // pred_region
        _
      $region36: #{_lambda_.45} parent=23 // pred_fallthru
        _
      // Predicated region
      $region37: #{_lambda_.45} parent=23 // pred_check
        %p488 = pneg %p111
      $region38: #{_lambda_.45} parent=23 // pred_check_branch
        %490 = sbr.rel (%p488) target = $region40
      $region39: #{_lambda_.45} parent=23 // pred_region
        _
      $region40: #{_lambda_.45} parent=23 // pred_fallthru
        _
    $region24: #{_lambda_.45} parent=5 // pred_fallthru
      _
    %p491 = scmp.le.s32.totalorder 2, %s9
    // Predicated region
    $region41: #{_lambda_.45} parent=5 // pred_check
      %p492 = pneg %p491
    $region42: #{_lambda_.45} parent=5 // pred_check_branch
      %494 = sbr.rel (%p492) target = $region44
    $region43: #{_lambda_.45} parent=5 // pred_region
      %s495 = ssub.s32 %s9, 2
      // Predicated region
      $region45: #{_lambda_.45} parent=43 // pred_check
        %p496 = pneg %p89
      $region46: #{_lambda_.45} parent=43 // pred_check_branch
        %498 = sbr.rel (%p496) target = $region48
      $region47: #{_lambda_.45} parent=43 // pred_region
        %p499 = scmp.lt.s32.totalorder %s22, 1
        %s500 = scalar_select %p499, %s22, 1
        %p501 = scmp.lt.s32.totalorder %s23, 0
        %s502 = scalar_select %p501, %s23, 0
        %s503 = sadd.s32 %s502, %s500
        %s504 = scalar_lea.vmem %s1, %s503
      $region48: #{_lambda_.45} parent=43 // pred_fallthru
        _
      // Predicated region
      $region49: #{_lambda_.45} parent=43 // pred_check
        %p505 = pneg %p117
      $region50: #{_lambda_.45} parent=43 // pred_check_branch
        %507 = sbr.rel (%p505) target = $region52
      $region51: #{_lambda_.45} parent=43 // pred_region
        %p508 = scmp.lt.s32.totalorder %s22, 1
        %s509 = scalar_select %p508, %s22, 1
        %p510 = scmp.lt.s32.totalorder %s23, 0
        %s511 = scalar_select %p510, %s23, 0
        %s512 = sadd.s32 %s511, %s509
        %s513 = scalar_lea.vmem %s2, %s512
      $region52: #{_lambda_.45} parent=43 // pred_fallthru
        _
    $region44: #{_lambda_.45} parent=5 // pred_fallthru
      _
  $region6: #{_lambda_.45} parent=0 // loop_footer
    %s13 = sadd.s32 1, %s9
  $region7: #{_lambda_.45} parent=0 // loop_footer_branch
    %8 = sbr.rel target = $region3
  $region8: #{_lambda_.45} parent=0 // loop_exit
    _

// kernel: _lambda_.46
$region0: #{_lambda_.46}
  #allocation0 [shape = 'u32[]', space=smem, size = 0x4, offset = 0x4, fixed_abs, tag = 'smem constant byte address 0x4 - core index']
  #allocation1 [shape = 'u32[144,128]{1,0:T(1,128)}', space=vmem, size = 0x12000, scoped, tag = 'internal scratch']
  %s0 = inlined_call_operand.vmem [shape: bf16[2,256,8], index: 0, kind: input, shape index: {}]
  %s1 = inlined_call_operand.vmem [shape: f32[2,1,8], index: 1, kind: input, shape index: {}]
  %s2 = inlined_call_operand.vmem [shape: f32[2,1,8], index: 2, kind: input, shape index: {}]
  %s3 = inlined_call_operand.vmem [shape: bf16[2,256,8], index: 3, kind: output, shape index: {}]
  %s4 = sld [smem:[#allocation0]]
  $region45: #{_lambda_.46} parent=0
    _
  %s6 = ssub.s32 1, %s4
  %s7 = scalar_select 0, %s6, %s4
  loop: start=0, step=1, limit=4
  $region2: #{_lambda_.46} parent=0 // loop_pre_header
    _
  $region3: #{_lambda_.46} parent=0 // loop_header
    %s9 = sphi 0, %s13
    %p10 = scmp.ge.s32.totalorder %s9, 4
    %s16 = sphi 0, %s35
    %s17 = sphi 0, %s31
    %s18 = sphi 0, %s27
    %s19 = sphi 0, %s16
    %s20 = sphi 0, %s17
    %s21 = sphi 0, %s18
    %s22 = sphi 0, %s19
    %s23 = sphi 0, %s20
    %s24 = sphi 0, %s21
    %s42 = sphi 0, %s44
    %s45 = sphi 0, %s42
    %s46 = sphi 0, %s45
    %s62 = sphi 0, %s46
    %s70 = sphi 0, %s72
    %s73 = sphi 0, %s70
    %s74 = sphi 0, %s73
    %s90 = sphi 0, %s74
    %s98 = sphi 0, %s100
    %s101 = sphi 0, %s98
    %s102 = sphi 0, %s101
    %s118 = sphi 0, %s102
    %s128 = sphi 0, %s130
    %s131 = sphi 0, %s128
    %s132 = sphi 0, %s131
    %s148 = sphi 0, %s132
  $region4: #{_lambda_.46} parent=0 // loop_header_branch
    %12 = sbr.rel (%p10) target = $region8
  $region5: #{_lambda_.46} parent=0 // loop_body
    %s14 = ssub.s32 %s9, 1
    %s15 = ssub.s32 %s9, 2
    %s25 = sadd.s32 1, %s18
    %p26 = scmp.ge.s32.totalorder %s25, 1
    %s27 = scalar_select %p26, 0, %s25
    %s28 = sadd.s32 1, %s17
    %s29 = scalar_select %p26, %s28, %s17
    %p30 = scmp.ge.s32.totalorder %s29, 1
    %s31 = scalar_select %p30, 0, %s29
    %s32 = sadd.s32 1, %s16
    %s33 = scalar_select %p30, %s32, %s16
    %p34 = scmp.ge.s32.totalorder %s33, 2
    %s35 = scalar_select %p34, 0, %s33
    %s36 = ssub.s32 %s16, %s35
    %s37 = ssub.s32 %s18, %s27
    %s38 = sor.u32 %s36, %s37
    %s39 = ssub.s32 %s17, %s31
    %s40 = sor.u32 %s38, %s39
    %p41 = scmp.eq.s32.totalorder %s40, 0
    %s43 = sadd.s32 %s42, 1
    %s44 = scalar_select %p41, %s42, %s43
    %p47 = pneg %p41
    %p48 = scmp.eq.s32.totalorder %s9, 1
    %p49 = por %p47, %p48
    %p50 = scmp.ne.s32.totalorder %s42, %s45
    %p51 = scmp.eq.s32.totalorder %s9, 0
    %p52 = por %p50, %p51
    %p53 = scmp.ne.s32.totalorder %s42, %s45
    %p54 = scmp.eq.s32.totalorder %s14, 1
    %p55 = por %p53, %p54
    %p56 = scmp.ne.s32.totalorder %s45, %s46
    %p57 = scmp.eq.s32.totalorder %s14, 0
    %p58 = por %p56, %p57
    %p59 = scmp.ne.s32.totalorder %s45, %s46
    %p60 = scmp.eq.s32.totalorder %s15, 1
    %p61 = por %p59, %p60
    %p63 = scmp.ne.s32.totalorder %s46, %s62
    %p64 = scmp.eq.s32.totalorder %s15, 0
    %p65 = por %p63, %p64
    %s66 = ssub.s32 %s16, %s35
    %s67 = ssub.s32 %s17, %s31
    %s68 = sor.u32 %s66, %s67
    %p69 = scmp.eq.s32.totalorder %s68, 0
    %s71 = sadd.s32 %s70, 1
    %s72 = scalar_select %p69, %s70, %s71
    %p75 = pneg %p69
    %p76 = scmp.eq.s32.totalorder %s9, 1
    %p77 = por %p75, %p76
    %p78 = scmp.ne.s32.totalorder %s70, %s73
    %p79 = scmp.eq.s32.totalorder %s9, 0
    %p80 = por %p78, %p79
    %p81 = scmp.ne.s32.totalorder %s70, %s73
    %p82 = scmp.eq.s32.totalorder %s14, 1
    %p83 = por %p81, %p82
    %p84 = scmp.ne.s32.totalorder %s73, %s74
    %p85 = scmp.eq.s32.totalorder %s14, 0
    %p86 = por %p84, %p85
    %p87 = scmp.ne.s32.totalorder %s73, %s74
    %p88 = scmp.eq.s32.totalorder %s15, 1
    %p89 = por %p87, %p88
    %p91 = scmp.ne.s32.totalorder %s74, %s90
    %p92 = scmp.eq.s32.totalorder %s15, 0
    %p93 = por %p91, %p92
    %s94 = ssub.s32 %s16, %s35
    %s95 = ssub.s32 %s17, %s31
    %s96 = sor.u32 %s94, %s95
    %p97 = scmp.eq.s32.totalorder %s96, 0
    %s99 = sadd.s32 %s98, 1
    %s100 = scalar_select %p97, %s98, %s99
    %p103 = pneg %p97
    %p104 = scmp.eq.s32.totalorder %s9, 1
    %p105 = por %p103, %p104
    %p106 = scmp.ne.s32.totalorder %s98, %s101
    %p107 = scmp.eq.s32.totalorder %s9, 0
    %p108 = por %p106, %p107
    %p109 = scmp.ne.s32.totalorder %s98, %s101
    %p110 = scmp.eq.s32.totalorder %s14, 1
    %p111 = por %p109, %p110
    %p112 = scmp.ne.s32.totalorder %s101, %s102
    %p113 = scmp.eq.s32.totalorder %s14, 0
    %p114 = por %p112, %p113
    %p115 = scmp.ne.s32.totalorder %s101, %s102
    %p116 = scmp.eq.s32.totalorder %s15, 1
    %p117 = por %p115, %p116
    %p119 = scmp.ne.s32.totalorder %s102, %s118
    %p120 = scmp.eq.s32.totalorder %s15, 0
    %p121 = por %p119, %p120
    %s122 = ssub.s32 %s16, %s35
    %s123 = ssub.s32 %s18, %s27
    %s124 = sor.u32 %s122, %s123
    %s125 = ssub.s32 %s17, %s31
    %s126 = sor.u32 %s124, %s125
    %p127 = scmp.eq.s32.totalorder %s126, 0
    %s129 = sadd.s32 %s128, 1
    %s130 = scalar_select %p127, %s128, %s129
    %p133 = pneg %p127
    %p134 = scmp.eq.s32.totalorder %s9, 1
    %p135 = por %p133, %p134
    %p136 = scmp.ne.s32.totalorder %s128, %s131
    %p137 = scmp.eq.s32.totalorder %s9, 0
    %p138 = por %p136, %p137
    %p139 = scmp.ne.s32.totalorder %s128, %s131
    %p140 = scmp.eq.s32.totalorder %s14, 1
    %p141 = por %p139, %p140
    %p142 = scmp.ne.s32.totalorder %s131, %s132
    %p143 = scmp.eq.s32.totalorder %s14, 0
    %p144 = por %p142, %p143
    %p145 = scmp.ne.s32.totalorder %s131, %s132
    %p146 = scmp.eq.s32.totalorder %s15, 1
    %p147 = por %p145, %p146
    %p149 = scmp.ne.s32.totalorder %s132, %s148
    %p150 = scmp.eq.s32.totalorder %s15, 0
    %p151 = por %p149, %p150
    %p152 = scmp.le.s32.totalorder 1, %s9
    %p153 = scmp.lt.s32.totalorder %s9, 3
    %p154 = pnand %p152, %p153
    %p155 = pneg %p154
    // Predicated region
    $region9: #{_lambda_.46} parent=5 // pred_check
      _
    $region10: #{_lambda_.46} parent=5 // pred_check_branch
      %157 = sbr.rel (%p154) target = $region12
    $region11: #{_lambda_.46} parent=5 // pred_region
      %s158 = ssub.s32 %s9, 1
    $region12: #{_lambda_.46} parent=5 // pred_fallthru
      _
    %p159 = scmp.lt.s32.totalorder %s9, 2
    // Predicated region
    $region13: #{_lambda_.46} parent=5 // pred_check
      %p160 = pneg %p159
    $region14: #{_lambda_.46} parent=5 // pred_check_branch
      %162 = sbr.rel (%p160) target = $region16
    $region15: #{_lambda_.46} parent=5 // pred_region
      // Predicated region
      $region17: #{_lambda_.46} parent=15 // pred_check
        %p163 = pneg %p52
      $region18: #{_lambda_.46} parent=15 // pred_check_branch
        %165 = sbr.rel (%p163) target = $region20
      $region19: #{_lambda_.46} parent=15 // pred_region
        %s166 = smul.u32 32, %s18
        %p167 = scmp.lt.s32.totalorder %s16, 1
        %s168 = scalar_select %p167, %s16, 1
        %p169 = scmp.lt.s32.totalorder %s166, 31
        %s170 = scalar_select %p169, %s166, 31
        %p171 = scmp.lt.s32.totalorder %s17, 0
        %s172 = scalar_select %p171, %s17, 0
        %s173 = sadd.s32 %s172, %s170
        %s174 = smul.addr %s168, 32
        %s175 = sadd.s32 %s173, %s174
        %s176 = smul.addr %s175, 4
        %s177 = scalar_lea.vmem %s0, %s176
        %s178 = smul.u32 32, %s18
      $region20: #{_lambda_.46} parent=15 // pred_fallthru
        _
      // Predicated region
      $region21: #{_lambda_.46} parent=15 // pred_check
        %p179 = pneg %p80
      $region22: #{_lambda_.46} parent=15 // pred_check_branch
        %181 = sbr.rel (%p179) target = $region24
      $region23: #{_lambda_.46} parent=15 // pred_region
        %p182 = scmp.lt.s32.totalorder %s16, 1
        %s183 = scalar_select %p182, %s16, 1
        %p184 = scmp.lt.s32.totalorder %s17, 0
        %s185 = scalar_select %p184, %s17, 0
        %s186 = sadd.s32 %s185, %s183
        %s187 = scalar_lea.vmem %s1, %s186
      $region24: #{_lambda_.46} parent=15 // pred_fallthru
        _
      // Predicated region
      $region25: #{_lambda_.46} parent=15 // pred_check
        %p188 = pneg %p108
      $region26: #{_lambda_.46} parent=15 // pred_check_branch
        %190 = sbr.rel (%p188) target = $region28
      $region27: #{_lambda_.46} parent=15 // pred_region
        %p191 = scmp.lt.s32.totalorder %s16, 1
        %s192 = scalar_select %p191, %s16, 1
        %p193 = scmp.lt.s32.totalorder %s17, 0
        %s194 = scalar_select %p193, %s17, 0
        %s195 = sadd.s32 %s194, %s192
        %s196 = scalar_lea.vmem %s2, %s195
      $region28: #{_lambda_.46} parent=15 // pred_fallthru
        _
    $region16: #{_lambda_.46} parent=5 // pred_fallthru
      _
    %p197 = scmp.le.s32.totalorder 1, %s9
    %p198 = scmp.lt.s32.totalorder %s9, 3
    %p199 = pnand %p197, %p198
    %p200 = pneg %p199
    // Predicated region
    $region29: #{_lambda_.46} parent=5 // pred_check
      _
    $region30: #{_lambda_.46} parent=5 // pred_check_branch
      %202 = sbr.rel (%p199) target = $region32
    $region31: #{_lambda_.46} parent=5 // pred_region
      %s203 = ssub.s32 %s9, 1
      %s204 = smul.u32 32, %s21
      %p205 = scmp.lt.s32.totalorder %s19, 1
      %s206 = scalar_select %p205, %s19, 1
      %p207 = scmp.lt.s32.totalorder %s204, 31
      %s208 = scalar_select %p207, %s204, 31
      %p209 = scmp.lt.s32.totalorder %s20, 0
      %s210 = scalar_select %p209, %s20, 0
      %s211 = sadd.s32 %s210, %s208
      %s212 = smul.addr %s206, 32
      %s213 = sadd.s32 %s211, %s212
      %s214 = smul.addr %s213, 4
      %s215 = scalar_lea.vmem %s0, %s214
      %p216 = pneg %p58
      %p217 = pneg %p55
      %p218 = scmp.lt.s32.totalorder %s19, 1
      %s219 = scalar_select %p218, %s19, 1
      %p220 = scmp.lt.s32.totalorder %s20, 0
      %s221 = scalar_select %p220, %s20, 0
      %s222 = sadd.s32 %s221, %s219
      %s223 = scalar_lea.vmem %s1, %s222
      %p224 = pneg %p86
      %p225 = pneg %p83
      %p226 = scmp.lt.s32.totalorder %s19, 1
      %s227 = scalar_select %p226, %s19, 1
      %p228 = scmp.lt.s32.totalorder %s20, 0
      %s229 = scalar_select %p228, %s20, 0
      %s230 = sadd.s32 %s229, %s227
      %s231 = scalar_lea.vmem %s2, %s230
      %p232 = pneg %p114
      %p233 = pneg %p111
      %p234 = pneg %p144
      %p235 = pneg %p141
      %s236 = smul.u32 32, %s21
      %p237 = scmp.lt.s32.totalorder %s19, 1
      %s238 = scalar_select %p237, %s19, 1
      %p239 = scmp.lt.s32.totalorder %s236, 31
      %s240 = scalar_select %p239, %s236, 31
      %p241 = scmp.lt.s32.totalorder %s20, 0
      %s242 = scalar_select %p241, %s20, 0
      %s243 = sadd.s32 %s242, %s240
      %s244 = smul.addr %s238, 32
      %s245 = sadd.s32 %s243, %s244
      %s246 = smul.addr %s245, 4
      %s247 = scalar_lea.vmem %s3, %s246
      %s248 = smul.u32 32, %s21
      %p249 = scmp.lt.s32.totalorder %s19, 1
      %s250 = scalar_select %p249, %s19, 1
      %p251 = scmp.lt.s32.totalorder %s248, 31
      %s252 = scalar_select %p251, %s248, 31
      %p253 = scmp.lt.s32.totalorder %s20, 0
      %s254 = scalar_select %p253, %s20, 0
      %s255 = sadd.s32 %s254, %s252
      %s256 = smul.addr %s250, 32
      %s257 = sadd.s32 %s255, %s256
      %s258 = smul.addr %s257, 4
      %s259 = scalar_lea.vmem %s0, %s258
      %s260 = smul.u32 32, %s21
      %p261 = scmp.lt.s32.totalorder %s19, 1
      %s262 = scalar_select %p261, %s19, 1
      %p263 = scmp.lt.s32.totalorder %s20, 0
      %s264 = scalar_select %p263, %s20, 0
      %s265 = sadd.s32 %s264, %s262
      %s266 = scalar_lea.vmem %s1, %s265
      %p267 = scmp.lt.s32.totalorder %s19, 1
      %s268 = scalar_select %p267, %s19, 1
      %p269 = scmp.lt.s32.totalorder %s20, 0
      %s270 = scalar_select %p269, %s20, 0
      %s271 = sadd.s32 %s270, %s268
      %s272 = scalar_lea.vmem %s2, %s271
      %s273 = smul.u32 32, %s21
      %p274 = scmp.lt.s32.totalorder %s19, 1
      %s275 = scalar_select %p274, %s19, 1
      %p276 = scmp.lt.s32.totalorder %s273, 31
      %s277 = scalar_select %p276, %s273, 31
      %p278 = scmp.lt.s32.totalorder %s20, 0
      %s279 = scalar_select %p278, %s20, 0
      %s280 = sadd.s32 %s279, %s277
      %s281 = smul.addr %s275, 32
      %s282 = sadd.s32 %s280, %s281
      %s283 = smul.addr %s282, 4
      %s284 = scalar_lea.vmem %s3, %s283
      %s285 = smul.u32 32, %s21
      %v286 = vld [vmem:[%s259] sm:$0xf]
      %v287 = vld [vmem:[%s259 + $0x4] sm:$0xf]
      %v288 = vld [vmem:[%s259 + $0x8] sm:$0xf]
      %v289 = vld [vmem:[%s259 + $0xc] sm:$0xf]
      %v290 = vld [vmem:[%s259 + $0x10] sm:$0xf]
      %v291 = vld [vmem:[%s259 + $0x14] sm:$0xf]
      %v292 = vld [vmem:[%s259 + $0x18] sm:$0xf]
      %v293 = vld [vmem:[%s259 + $0x1c] sm:$0xf]
      %v294 = vld [vmem:[%s259 + $0x20] sm:$0xf]
      %v295 = vld [vmem:[%s259 + $0x24] sm:$0xf]
      %v296 = vld [vmem:[%s259 + $0x28] sm:$0xf]
      %v297 = vld [vmem:[%s259 + $0x2c] sm:$0xf]
      %v298 = vld [vmem:[%s259 + $0x30] sm:$0xf]
      %v299 = vld [vmem:[%s259 + $0x34] sm:$0xf]
      %v300 = vld [vmem:[%s259 + $0x38] sm:$0xf]
      %v301 = vld [vmem:[%s259 + $0x3c] sm:$0xf]
      %v302 = vld [vmem:[%s259 + $0x40] sm:$0xf]
      %v303 = vld [vmem:[%s259 + $0x44] sm:$0xf]
      %v304 = vld [vmem:[%s259 + $0x48] sm:$0xf]
      %v305 = vld [vmem:[%s259 + $0x4c] sm:$0xf]
      %v306 = vld [vmem:[%s259 + $0x50] sm:$0xf]
      %v307 = vld [vmem:[%s259 + $0x54] sm:$0xf]
      %v308 = vld [vmem:[%s259 + $0x58] sm:$0xf]
      %v309 = vld [vmem:[%s259 + $0x5c] sm:$0xf]
      %v310 = vld [vmem:[%s259 + $0x60] sm:$0xf]
      %v311 = vld [vmem:[%s259 + $0x64] sm:$0xf]
      %v312 = vld [vmem:[%s259 + $0x68] sm:$0xf]
      %v313 = vld [vmem:[%s259 + $0x6c] sm:$0xf]
      %v314 = vld [vmem:[%s259 + $0x70] sm:$0xf]
      %v315 = vld [vmem:[%s259 + $0x74] sm:$0xf]
      %v316 = vld [vmem:[%s259 + $0x78] sm:$0xf]
      %v317 = vld [vmem:[%s259 + $0x7c] sm:$0xf]
      %v318 = vunpack.c.l.bf16 %v286
      %v319 = vunpack.c.l.bf16 %v287
      %v320 = vunpack.c.l.bf16 %v288
      %v321 = vunpack.c.l.bf16 %v289
      %v322 = vunpack.c.l.bf16 %v290
      %v323 = vunpack.c.l.bf16 %v291
      %v324 = vunpack.c.l.bf16 %v292
      %v325 = vunpack.c.l.bf16 %v293
      %v326 = vunpack.c.l.bf16 %v294
      %v327 = vunpack.c.l.bf16 %v295
      %v328 = vunpack.c.l.bf16 %v296
      %v329 = vunpack.c.l.bf16 %v297
      %v330 = vunpack.c.l.bf16 %v298
      %v331 = vunpack.c.l.bf16 %v299
      %v332 = vunpack.c.l.bf16 %v300
      %v333 = vunpack.c.l.bf16 %v301
      %v334 = vunpack.c.l.bf16 %v302
      %v335 = vunpack.c.l.bf16 %v303
      %v336 = vunpack.c.l.bf16 %v304
      %v337 = vunpack.c.l.bf16 %v305
      %v338 = vunpack.c.l.bf16 %v306
      %v339 = vunpack.c.l.bf16 %v307
      %v340 = vunpack.c.l.bf16 %v308
      %v341 = vunpack.c.l.bf16 %v309
      %v342 = vunpack.c.l.bf16 %v310
      %v343 = vunpack.c.l.bf16 %v311
      %v344 = vunpack.c.l.bf16 %v312
      %v345 = vunpack.c.l.bf16 %v313
      %v346 = vunpack.c.l.bf16 %v314
      %v347 = vunpack.c.l.bf16 %v315
      %v348 = vunpack.c.l.bf16 %v316
      %v349 = vunpack.c.l.bf16 %v317
      %v350 = vld [vmem:[%s266] sm:$0x1]
      %v352 = vlaneseq
      %v353 = vshrl.u32 %v352, 7
      %v354 = vsub.s32 0, %v353
      %v355 = vrot.slane %v350, %v354
      %v357 = vsub.f32 %v318, %v355
      %v358 = vsub.f32 %v319, %v355
      %v359 = vsub.f32 %v320, %v355
      %v360 = vsub.f32 %v321, %v355
      %v361 = vsub.f32 %v322, %v355
      %v362 = vsub.f32 %v323, %v355
      %v363 = vsub.f32 %v324, %v355
      %v364 = vsub.f32 %v325, %v355
      %v365 = vsub.f32 %v326, %v355
      %v366 = vsub.f32 %v327, %v355
      %v367 = vsub.f32 %v328, %v355
      %v368 = vsub.f32 %v329, %v355
      %v369 = vsub.f32 %v330, %v355
      %v370 = vsub.f32 %v331, %v355
      %v371 = vsub.f32 %v332, %v355
      %v372 = vsub.f32 %v333, %v355
      %v373 = vsub.f32 %v334, %v355
      %v374 = vsub.f32 %v335, %v355
      %v375 = vsub.f32 %v336, %v355
      %v376 = vsub.f32 %v337, %v355
      %v377 = vsub.f32 %v338, %v355
      %v378 = vsub.f32 %v339, %v355
      %v379 = vsub.f32 %v340, %v355
      %v380 = vsub.f32 %v341, %v355
      %v381 = vsub.f32 %v342, %v355
      %v382 = vsub.f32 %v343, %v355
      %v383 = vsub.f32 %v344, %v355
      %v384 = vsub.f32 %v345, %v355
      %v385 = vsub.f32 %v346, %v355
      %v386 = vsub.f32 %v347, %v355
      %v387 = vsub.f32 %v348, %v355
      %v388 = vsub.f32 %v349, %v355
      %v389 = vld [vmem:[%s272] sm:$0x1]
      %v391 = vlaneseq
      %v392 = vshrl.u32 %v391, 7
      %v393 = vsub.s32 0, %v392
      %v394 = vrot.slane %v389, %v393
      %v396 = vmul.f32 %v357, %v394
      %v397 = vmul.f32 %v358, %v394
      %v398 = vmul.f32 %v359, %v394
      %v399 = vmul.f32 %v360, %v394
      %v400 = vmul.f32 %v361, %v394
      %v401 = vmul.f32 %v362, %v394
      %v402 = vmul.f32 %v363, %v394
      %v403 = vmul.f32 %v364, %v394
      %v404 = vmul.f32 %v365, %v394
      %v405 = vmul.f32 %v366, %v394
      %v406 = vmul.f32 %v367, %v394
      %v407 = vmul.f32 %v368, %v394
      %v408 = vmul.f32 %v369, %v394
      %v409 = vmul.f32 %v370, %v394
      %v410 = vmul.f32 %v371, %v394
      %v411 = vmul.f32 %v372, %v394
      %v412 = vmul.f32 %v373, %v394
      %v413 = vmul.f32 %v374, %v394
      %v414 = vmul.f32 %v375, %v394
      %v415 = vmul.f32 %v376, %v394
      %v416 = vmul.f32 %v377, %v394
      %v417 = vmul.f32 %v378, %v394
      %v418 = vmul.f32 %v379, %v394
      %v419 = vmul.f32 %v380, %v394
      %v420 = vmul.f32 %v381, %v394
      %v421 = vmul.f32 %v382, %v394
      %v422 = vmul.f32 %v383, %v394
      %v423 = vmul.f32 %v384, %v394
      %v424 = vmul.f32 %v385, %v394
      %v425 = vmul.f32 %v386, %v394
      %v426 = vmul.f32 %v387, %v394
      %v427 = vmul.f32 %v388, %v394
      %v428 = vpack.c.bf16 %v397, %v396
      %v429 = vpack.c.bf16 %v399, %v398
      %v430 = vpack.c.bf16 %v401, %v400
      %v431 = vpack.c.bf16 %v403, %v402
      %v432 = vpack.c.bf16 %v405, %v404
      %v433 = vpack.c.bf16 %v407, %v406
      %v434 = vpack.c.bf16 %v409, %v408
      %v435 = vpack.c.bf16 %v411, %v410
      %v436 = vpack.c.bf16 %v413, %v412
      %v437 = vpack.c.bf16 %v415, %v414
      %v438 = vpack.c.bf16 %v417, %v416
      %v439 = vpack.c.bf16 %v419, %v418
      %v440 = vpack.c.bf16 %v421, %v420
      %v441 = vpack.c.bf16 %v423, %v422
      %v442 = vpack.c.bf16 %v425, %v424
      %v443 = vpack.c.bf16 %v427, %v426
      %v460 = vunpack.c.l.b16 %v428
      %v461 = vunpack.c.h.b16 %v428
      %v462 = vunpack.c.l.b16 %v429
      %v463 = vunpack.c.h.b16 %v429
      %v464 = vunpack.c.l.b16 %v430
      %v465 = vunpack.c.h.b16 %v430
      %v466 = vunpack.c.l.b16 %v431
      %v467 = vunpack.c.h.b16 %v431
      %v468 = vunpack.c.l.b16 %v432
      %v469 = vunpack.c.h.b16 %v432
      %v470 = vunpack.c.l.b16 %v433
      %v471 = vunpack.c.h.b16 %v433
      %v472 = vunpack.c.l.b16 %v434
      %v473 = vunpack.c.h.b16 %v434
      %v474 = vunpack.c.l.b16 %v435
      %v475 = vunpack.c.h.b16 %v435
      %v476 = vunpack.c.l.b16 %v436
      %v477 = vunpack.c.h.b16 %v436
      %v478 = vunpack.c.l.b16 %v437
      %v479 = vunpack.c.h.b16 %v437
      %v480 = vunpack.c.l.b16 %v438
      %v481 = vunpack.c.h.b16 %v438
      %v482 = vunpack.c.l.b16 %v439
      %v483 = vunpack.c.h.b16 %v439
      %v484 = vunpack.c.l.b16 %v440
      %v485 = vunpack.c.h.b16 %v440
      %v486 = vunpack.c.l.b16 %v441
      %v487 = vunpack.c.h.b16 %v441
      %v488 = vunpack.c.l.b16 %v442
      %v489 = vunpack.c.h.b16 %v442
      %v490 = vunpack.c.l.b16 %v443
      %v491 = vunpack.c.h.b16 %v443
      %v492 = vpack.c.b16 %v460, %v460
      %v493 = vpack.c.b16 %v461, %v461
      %v494 = vpack.c.b16 %v462, %v462
      %v495 = vpack.c.b16 %v463, %v463
      %v496 = vpack.c.b16 %v464, %v464
      %v497 = vpack.c.b16 %v465, %v465
      %v498 = vpack.c.b16 %v466, %v466
      %v499 = vpack.c.b16 %v467, %v467
      %v500 = vpack.c.b16 %v468, %v468
      %v501 = vpack.c.b16 %v469, %v469
      %v502 = vpack.c.b16 %v470, %v470
      %v503 = vpack.c.b16 %v471, %v471
      %v504 = vpack.c.b16 %v472, %v472
      %v505 = vpack.c.b16 %v473, %v473
      %v506 = vpack.c.b16 %v474, %v474
      %v507 = vpack.c.b16 %v475, %v475
      %v508 = vpack.c.b16 %v476, %v476
      %v509 = vpack.c.b16 %v477, %v477
      %v510 = vpack.c.b16 %v478, %v478
      %v511 = vpack.c.b16 %v479, %v479
      %v512 = vpack.c.b16 %v480, %v480
      %v513 = vpack.c.b16 %v481, %v481
      %v514 = vpack.c.b16 %v482, %v482
      %v515 = vpack.c.b16 %v483, %v483
      %v516 = vpack.c.b16 %v484, %v484
      %v517 = vpack.c.b16 %v485, %v485
      %v518 = vpack.c.b16 %v486, %v486
      %v519 = vpack.c.b16 %v487, %v487
      %v520 = vpack.c.b16 %v488, %v488
      %v521 = vpack.c.b16 %v489, %v489
      %v522 = vpack.c.b16 %v490, %v490
      %v523 = vpack.c.b16 %v491, %v491
      %vm556 = vcmask 60416
      %557 = vst.msk [vmem:[%s284] sm:$0xf] %vm556, %v492
      %558 = vst.msk [vmem:[%s284 + $0x4] sm:$0xf] %vm556, %v493
      %559 = vst.msk [vmem:[%s284 + $0x8] sm:$0xf] %vm556, %v494
      %560 = vst.msk [vmem:[%s284 + $0xc] sm:$0xf] %vm556, %v495
      %561 = vst.msk [vmem:[%s284 + $0x10] sm:$0xf] %vm556, %v496
      %562 = vst.msk [vmem:[%s284 + $0x14] sm:$0xf] %vm556, %v497
      %563 = vst.msk [vmem:[%s284 + $0x18] sm:$0xf] %vm556, %v498
      %564 = vst.msk [vmem:[%s284 + $0x1c] sm:$0xf] %vm556, %v499
      %565 = vst.msk [vmem:[%s284 + $0x20] sm:$0xf] %vm556, %v500
      %566 = vst.msk [vmem:[%s284 + $0x24] sm:$0xf] %vm556, %v501
      %567 = vst.msk [vmem:[%s284 + $0x28] sm:$0xf] %vm556, %v502
      %568 = vst.msk [vmem:[%s284 + $0x2c] sm:$0xf] %vm556, %v503
      %569 = vst.msk [vmem:[%s284 + $0x30] sm:$0xf] %vm556, %v504
      %570 = vst.msk [vmem:[%s284 + $0x34] sm:$0xf] %vm556, %v505
      %571 = vst.msk [vmem:[%s284 + $0x38] sm:$0xf] %vm556, %v506
      %572 = vst.msk [vmem:[%s284 + $0x3c] sm:$0xf] %vm556, %v507
      %573 = vst.msk [vmem:[%s284 + $0x40] sm:$0xf] %vm556, %v508
      %574 = vst.msk [vmem:[%s284 + $0x44] sm:$0xf] %vm556, %v509
      %575 = vst.msk [vmem:[%s284 + $0x48] sm:$0xf] %vm556, %v510
      %576 = vst.msk [vmem:[%s284 + $0x4c] sm:$0xf] %vm556, %v511
      %577 = vst.msk [vmem:[%s284 + $0x50] sm:$0xf] %vm556, %v512
      %578 = vst.msk [vmem:[%s284 + $0x54] sm:$0xf] %vm556, %v513
      %579 = vst.msk [vmem:[%s284 + $0x58] sm:$0xf] %vm556, %v514
      %580 = vst.msk [vmem:[%s284 + $0x5c] sm:$0xf] %vm556, %v515
      %581 = vst.msk [vmem:[%s284 + $0x60] sm:$0xf] %vm556, %v516
      %582 = vst.msk [vmem:[%s284 + $0x64] sm:$0xf] %vm556, %v517
      %583 = vst.msk [vmem:[%s284 + $0x68] sm:$0xf] %vm556, %v518
      %584 = vst.msk [vmem:[%s284 + $0x6c] sm:$0xf] %vm556, %v519
      %585 = vst.msk [vmem:[%s284 + $0x70] sm:$0xf] %vm556, %v520
      %586 = vst.msk [vmem:[%s284 + $0x74] sm:$0xf] %vm556, %v521
      %587 = vst.msk [vmem:[%s284 + $0x78] sm:$0xf] %vm556, %v522
      %588 = vst.msk [vmem:[%s284 + $0x7c] sm:$0xf] %vm556, %v523
      %s589 = smul.u32 32, %s21
      %p590 = scmp.lt.s32.totalorder %s19, 1
      %s591 = scalar_select %p590, %s19, 1
      %p592 = scmp.lt.s32.totalorder %s589, 31
      %s593 = scalar_select %p592, %s589, 31
      %p594 = scmp.lt.s32.totalorder %s20, 0
      %s595 = scalar_select %p594, %s20, 0
      %s596 = sadd.s32 %s595, %s593
      %s597 = smul.addr %s591, 32
      %s598 = sadd.s32 %s596, %s597
      %s599 = smul.addr %s598, 4
      %s600 = scalar_lea.vmem %s3, %s599
      // Predicated region
      $region33: #{_lambda_.46} parent=31 // pred_check
        %p601 = pneg %p141
      $region34: #{_lambda_.46} parent=31 // pred_check_branch
        %603 = sbr.rel (%p601) target = $region36
      $region35: #{_lambda_.46} parent=31 // pred_region
        %s604 = smul.u32 32, %s21
      $region36: #{_lambda_.46} parent=31 // pred_fallthru
        _
    $region32: #{_lambda_.46} parent=5 // pred_fallthru
      _
    %p605 = scmp.le.s32.totalorder 2, %s9
    // Predicated region
    $region37: #{_lambda_.46} parent=5 // pred_check
      %p606 = pneg %p605
    $region38: #{_lambda_.46} parent=5 // pred_check_branch
      %608 = sbr.rel (%p606) target = $region40
    $region39: #{_lambda_.46} parent=5 // pred_region
      %s609 = ssub.s32 %s9, 2
      // Predicated region
      $region41: #{_lambda_.46} parent=39 // pred_check
        %p610 = pneg %p147
      $region42: #{_lambda_.46} parent=39 // pred_check_branch
        %612 = sbr.rel (%p610) target = $region44
      $region43: #{_lambda_.46} parent=39 // pred_region
        %s613 = smul.u32 32, %s24
        %p614 = scmp.lt.s32.totalorder %s22, 1
        %s615 = scalar_select %p614, %s22, 1
        %p616 = scmp.lt.s32.totalorder %s613, 31
        %s617 = scalar_select %p616, %s613, 31
        %p618 = scmp.lt.s32.totalorder %s23, 0
        %s619 = scalar_select %p618, %s23, 0
        %s620 = sadd.s32 %s619, %s617
        %s621 = smul.addr %s615, 32
        %s622 = sadd.s32 %s620, %s621
        %s623 = smul.addr %s622, 4
        %s624 = scalar_lea.vmem %s3, %s623
      $region44: #{_lambda_.46} parent=39 // pred_fallthru
        _
    $region40: #{_lambda_.46} parent=5 // pred_fallthru
      _
  $region6: #{_lambda_.46} parent=0 // loop_footer
    %s13 = sadd.s32 1, %s9
  $region7: #{_lambda_.46} parent=0 // loop_footer_branch
    %8 = sbr.rel target = $region3
  $region8: #{_lambda_.46} parent=0 // loop_exit
    _

// kernel: _lambda_.47
$region0: #{_lambda_.47}
  #allocation0 [shape = 'u32[]', space=smem, size = 0x4, offset = 0x4, fixed_abs, tag = 'smem constant byte address 0x4 - core index']
  #allocation1 [shape = 'u32[144,128]{1,0:T(1,128)}', space=vmem, size = 0x12000, scoped, tag = 'internal scratch']
  %s0 = inlined_call_operand.vmem [shape: bf16[512,256], index: 0, kind: input, shape index: {}]
  %s1 = inlined_call_operand.vmem [shape: bf16[256,128], index: 1, kind: input, shape index: {}]
  %s2 = inlined_call_operand.vmem [shape: f32[1,128], index: 2, kind: input, shape index: {}]
  %s3 = inlined_call_operand.vmem [shape: f32[512,128], index: 3, kind: output, shape index: {}]
  %s4 = sld [smem:[#allocation0]]
  $region22: #{_lambda_.47} parent=0
    _
  %s6 = ssub.s32 1, %s4
  %s7 = scalar_select 0, %s6, %s4
  // Predicated region
  $region2: #{_lambda_.47} parent=0 // pred_check
    _
  $region3: #{_lambda_.47} parent=0 // pred_check_branch
    %9 = sbr.rel (0) target = $region5
  $region4: #{_lambda_.47} parent=0 // pred_region
    _
  $region5: #{_lambda_.47} parent=0 // pred_fallthru
    _
  // Predicated region
  $region6: #{_lambda_.47} parent=0 // pred_check
    _
  $region7: #{_lambda_.47} parent=0 // pred_check_branch
    %11 = sbr.rel (0) target = $region9
  $region8: #{_lambda_.47} parent=0 // pred_region
    _
  $region9: #{_lambda_.47} parent=0 // pred_fallthru
    _
  // Predicated region
  $region10: #{_lambda_.47} parent=0 // pred_check
    _
  $region11: #{_lambda_.47} parent=0 // pred_check_branch
    %13 = sbr.rel (0) target = $region13
  $region12: #{_lambda_.47} parent=0 // pred_region
    _
  $region13: #{_lambda_.47} parent=0 // pred_fallthru
    _
  %v15 = vld [vmem:[%s0] sm:$0xff]
  %v16 = vld [vmem:[%s0 + $0x8] sm:$0xff]
  %v17 = vld [vmem:[%s0 + $0x10] sm:$0xff]
  %v18 = vld [vmem:[%s0 + $0x18] sm:$0xff]
  %v19 = vld [vmem:[%s0 + $0x20] sm:$0xff]
  %v20 = vld [vmem:[%s0 + $0x28] sm:$0xff]
  %v21 = vld [vmem:[%s0 + $0x30] sm:$0xff]
  %v22 = vld [vmem:[%s0 + $0x38] sm:$0xff]
  %v23 = vld [vmem:[%s0 + $0x40] sm:$0xff]
  %v24 = vld [vmem:[%s0 + $0x48] sm:$0xff]
  %v25 = vld [vmem:[%s0 + $0x50] sm:$0xff]
  %v26 = vld [vmem:[%s0 + $0x58] sm:$0xff]
  %v27 = vld [vmem:[%s0 + $0x60] sm:$0xff]
  %v28 = vld [vmem:[%s0 + $0x68] sm:$0xff]
  %v29 = vld [vmem:[%s0 + $0x70] sm:$0xff]
  %v30 = vld [vmem:[%s0 + $0x78] sm:$0xff]
  %v31 = vld [vmem:[%s0 + $0x80] sm:$0xff]
  %v32 = vld [vmem:[%s0 + $0x88] sm:$0xff]
  %v33 = vld [vmem:[%s0 + $0x90] sm:$0xff]
  %v34 = vld [vmem:[%s0 + $0x98] sm:$0xff]
  %v35 = vld [vmem:[%s0 + $0xa0] sm:$0xff]
  %v36 = vld [vmem:[%s0 + $0xa8] sm:$0xff]
  %v37 = vld [vmem:[%s0 + $0xb0] sm:$0xff]
  %v38 = vld [vmem:[%s0 + $0xb8] sm:$0xff]
  %v39 = vld [vmem:[%s0 + $0xc0] sm:$0xff]
  %v40 = vld [vmem:[%s0 + $0xc8] sm:$0xff]
  %v41 = vld [vmem:[%s0 + $0xd0] sm:$0xff]
  %v42 = vld [vmem:[%s0 + $0xd8] sm:$0xff]
  %v43 = vld [vmem:[%s0 + $0xe0] sm:$0xff]
  %v44 = vld [vmem:[%s0 + $0xe8] sm:$0xff]
  %v45 = vld [vmem:[%s0 + $0xf0] sm:$0xff]
  %v46 = vld [vmem:[%s0 + $0xf8] sm:$0xff]
  %v47 = vld [vmem:[%s0 + $0x100] sm:$0xff]
  %v48 = vld [vmem:[%s0 + $0x108] sm:$0xff]
  %v49 = vld [vmem:[%s0 + $0x110] sm:$0xff]
  %v50 = vld [vmem:[%s0 + $0x118] sm:$0xff]
  %v51 = vld [vmem:[%s0 + $0x120] sm:$0xff]
  %v52 = vld [vmem:[%s0 + $0x128] sm:$0xff]
  %v53 = vld [vmem:[%s0 + $0x130] sm:$0xff]
  %v54 = vld [vmem:[%s0 + $0x138] sm:$0xff]
  %v55 = vld [vmem:[%s0 + $0x140] sm:$0xff]
  %v56 = vld [vmem:[%s0 + $0x148] sm:$0xff]
  %v57 = vld [vmem:[%s0 + $0x150] sm:$0xff]
  %v58 = vld [vmem:[%s0 + $0x158] sm:$0xff]
  %v59 = vld [vmem:[%s0 + $0x160] sm:$0xff]
  %v60 = vld [vmem:[%s0 + $0x168] sm:$0xff]
  %v61 = vld [vmem:[%s0 + $0x170] sm:$0xff]
  %v62 = vld [vmem:[%s0 + $0x178] sm:$0xff]
  %v63 = vld [vmem:[%s0 + $0x180] sm:$0xff]
  %v64 = vld [vmem:[%s0 + $0x188] sm:$0xff]
  %v65 = vld [vmem:[%s0 + $0x190] sm:$0xff]
  %v66 = vld [vmem:[%s0 + $0x198] sm:$0xff]
  %v67 = vld [vmem:[%s0 + $0x1a0] sm:$0xff]
  %v68 = vld [vmem:[%s0 + $0x1a8] sm:$0xff]
  %v69 = vld [vmem:[%s0 + $0x1b0] sm:$0xff]
  %v70 = vld [vmem:[%s0 + $0x1b8] sm:$0xff]
  %v71 = vld [vmem:[%s0 + $0x1c0] sm:$0xff]
  %v72 = vld [vmem:[%s0 + $0x1c8] sm:$0xff]
  %v73 = vld [vmem:[%s0 + $0x1d0] sm:$0xff]
  %v74 = vld [vmem:[%s0 + $0x1d8] sm:$0xff]
  %v75 = vld [vmem:[%s0 + $0x1e0] sm:$0xff]
  %v76 = vld [vmem:[%s0 + $0x1e8] sm:$0xff]
  %v77 = vld [vmem:[%s0 + $0x1f0] sm:$0xff]
  %v78 = vld [vmem:[%s0 + $0x1f8] sm:$0xff]
  %v79 = vmax.bf16 %v15, 0
  %v80 = vmax.bf16 %v16, 0
  %v81 = vmax.bf16 %v17, 0
  %v82 = vmax.bf16 %v18, 0
  %v83 = vmax.bf16 %v19, 0
  %v84 = vmax.bf16 %v20, 0
  %v85 = vmax.bf16 %v21, 0
  %v86 = vmax.bf16 %v22, 0
  %v87 = vmax.bf16 %v23, 0
  %v88 = vmax.bf16 %v24, 0
  %v89 = vmax.bf16 %v25, 0
  %v90 = vmax.bf16 %v26, 0
  %v91 = vmax.bf16 %v27, 0
  %v92 = vmax.bf16 %v28, 0
  %v93 = vmax.bf16 %v29, 0
  %v94 = vmax.bf16 %v30, 0
  %v95 = vmax.bf16 %v31, 0
  %v96 = vmax.bf16 %v32, 0
  %v97 = vmax.bf16 %v33, 0
  %v98 = vmax.bf16 %v34, 0
  %v99 = vmax.bf16 %v35, 0
  %v100 = vmax.bf16 %v36, 0
  %v101 = vmax.bf16 %v37, 0
  %v102 = vmax.bf16 %v38, 0
  %v103 = vmax.bf16 %v39, 0
  %v104 = vmax.bf16 %v40, 0
  %v105 = vmax.bf16 %v41, 0
  %v106 = vmax.bf16 %v42, 0
  %v107 = vmax.bf16 %v43, 0
  %v108 = vmax.bf16 %v44, 0
  %v109 = vmax.bf16 %v45, 0
  %v110 = vmax.bf16 %v46, 0
  %v111 = vmax.bf16 %v47, 0
  %v112 = vmax.bf16 %v48, 0
  %v113 = vmax.bf16 %v49, 0
  %v114 = vmax.bf16 %v50, 0
  %v115 = vmax.bf16 %v51, 0
  %v116 = vmax.bf16 %v52, 0
  %v117 = vmax.bf16 %v53, 0
  %v118 = vmax.bf16 %v54, 0
  %v119 = vmax.bf16 %v55, 0
  %v120 = vmax.bf16 %v56, 0
  %v121 = vmax.bf16 %v57, 0
  %v122 = vmax.bf16 %v58, 0
  %v123 = vmax.bf16 %v59, 0
  %v124 = vmax.bf16 %v60, 0
  %v125 = vmax.bf16 %v61, 0
  %v126 = vmax.bf16 %v62, 0
  %v127 = vmax.bf16 %v63, 0
  %v128 = vmax.bf16 %v64, 0
  %v129 = vmax.bf16 %v65, 0
  %v130 = vmax.bf16 %v66, 0
  %v131 = vmax.bf16 %v67, 0
  %v132 = vmax.bf16 %v68, 0
  %v133 = vmax.bf16 %v69, 0
  %v134 = vmax.bf16 %v70, 0
  %v135 = vmax.bf16 %v71, 0
  %v136 = vmax.bf16 %v72, 0
  %v137 = vmax.bf16 %v73, 0
  %v138 = vmax.bf16 %v74, 0
  %v139 = vmax.bf16 %v75, 0
  %v140 = vmax.bf16 %v76, 0
  %v141 = vmax.bf16 %v77, 0
  %v142 = vmax.bf16 %v78, 0
  %v143 = vld [vmem:[%s1] sm:$0xf]
  %v144 = vld [vmem:[%s1 + $0x4] sm:$0xf]
  %v145 = vld [vmem:[%s1 + $0x8] sm:$0xf]
  %v146 = vld [vmem:[%s1 + $0xc] sm:$0xf]
  %v147 = vld [vmem:[%s1 + $0x10] sm:$0xf]
  %v148 = vld [vmem:[%s1 + $0x14] sm:$0xf]
  %v149 = vld [vmem:[%s1 + $0x18] sm:$0xf]
  %v150 = vld [vmem:[%s1 + $0x1c] sm:$0xf]
  %v151 = vld [vmem:[%s1 + $0x20] sm:$0xf]
  %v152 = vld [vmem:[%s1 + $0x24] sm:$0xf]
  %v153 = vld [vmem:[%s1 + $0x28] sm:$0xf]
  %v154 = vld [vmem:[%s1 + $0x2c] sm:$0xf]
  %v155 = vld [vmem:[%s1 + $0x30] sm:$0xf]
  %v156 = vld [vmem:[%s1 + $0x34] sm:$0xf]
  %v157 = vld [vmem:[%s1 + $0x38] sm:$0xf]
  %v158 = vld [vmem:[%s1 + $0x3c] sm:$0xf]
  %v159 = vld [vmem:[%s1 + $0x40] sm:$0xf]
  %v160 = vld [vmem:[%s1 + $0x44] sm:$0xf]
  %v161 = vld [vmem:[%s1 + $0x48] sm:$0xf]
  %v162 = vld [vmem:[%s1 + $0x4c] sm:$0xf]
  %v163 = vld [vmem:[%s1 + $0x50] sm:$0xf]
  %v164 = vld [vmem:[%s1 + $0x54] sm:$0xf]
  %v165 = vld [vmem:[%s1 + $0x58] sm:$0xf]
  %v166 = vld [vmem:[%s1 + $0x5c] sm:$0xf]
  %v167 = vld [vmem:[%s1 + $0x60] sm:$0xf]
  %v168 = vld [vmem:[%s1 + $0x64] sm:$0xf]
  %v169 = vld [vmem:[%s1 + $0x68] sm:$0xf]
  %v170 = vld [vmem:[%s1 + $0x6c] sm:$0xf]
  %v171 = vld [vmem:[%s1 + $0x70] sm:$0xf]
  %v172 = vld [vmem:[%s1 + $0x74] sm:$0xf]
  %v173 = vld [vmem:[%s1 + $0x78] sm:$0xf]
  %v174 = vld [vmem:[%s1 + $0x7c] sm:$0xf]
  %v175 = vld [vmem:[%s2] sm:$0x1]
  %v177 = vlaneseq
  %v178 = vshrl.u32 %v177, 7
  %v179 = vsub.s32 0, %v178
  %v180 = vrot.slane %v175, %v179
  %v246 = vunpack.c.l.b16 %v79
  %v247 = vunpack.c.h.b16 %v79
  %v248 = vunpack.c.l.b16 %v80
  %v249 = vunpack.c.h.b16 %v80
  %v250 = vunpack.c.l.b16 %v81
  %v251 = vunpack.c.h.b16 %v81
  %v252 = vunpack.c.l.b16 %v82
  %v253 = vunpack.c.h.b16 %v82
  %v254 = vunpack.c.l.b16 %v83
  %v255 = vunpack.c.h.b16 %v83
  %v256 = vunpack.c.l.b16 %v84
  %v257 = vunpack.c.h.b16 %v84
  %v258 = vunpack.c.l.b16 %v85
  %v259 = vunpack.c.h.b16 %v85
  %v260 = vunpack.c.l.b16 %v86
  %v261 = vunpack.c.h.b16 %v86
  %v262 = vunpack.c.l.b16 %v87
  %v263 = vunpack.c.h.b16 %v87
  %v264 = vunpack.c.l.b16 %v88
  %v265 = vunpack.c.h.b16 %v88
  %v266 = vunpack.c.l.b16 %v89
  %v267 = vunpack.c.h.b16 %v89
  %v268 = vunpack.c.l.b16 %v90
  %v269 = vunpack.c.h.b16 %v90
  %v270 = vunpack.c.l.b16 %v91
  %v271 = vunpack.c.h.b16 %v91
  %v272 = vunpack.c.l.b16 %v92
  %v273 = vunpack.c.h.b16 %v92
  %v274 = vunpack.c.l.b16 %v93
  %v275 = vunpack.c.h.b16 %v93
  %v276 = vunpack.c.l.b16 %v94
  %v277 = vunpack.c.h.b16 %v94
  %v278 = vunpack.c.l.b16 %v95
  %v279 = vunpack.c.h.b16 %v95
  %v280 = vunpack.c.l.b16 %v96
  %v281 = vunpack.c.h.b16 %v96
  %v282 = vunpack.c.l.b16 %v97
  %v283 = vunpack.c.h.b16 %v97
  %v284 = vunpack.c.l.b16 %v98
  %v285 = vunpack.c.h.b16 %v98
  %v286 = vunpack.c.l.b16 %v99
  %v287 = vunpack.c.h.b16 %v99
  %v288 = vunpack.c.l.b16 %v100
  %v289 = vunpack.c.h.b16 %v100
  %v290 = vunpack.c.l.b16 %v101
  %v291 = vunpack.c.h.b16 %v101
  %v292 = vunpack.c.l.b16 %v102
  %v293 = vunpack.c.h.b16 %v102
  %v294 = vunpack.c.l.b16 %v103
  %v295 = vunpack.c.h.b16 %v103
  %v296 = vunpack.c.l.b16 %v104
  %v297 = vunpack.c.h.b16 %v104
  %v298 = vunpack.c.l.b16 %v105
  %v299 = vunpack.c.h.b16 %v105
  %v300 = vunpack.c.l.b16 %v106
  %v301 = vunpack.c.h.b16 %v106
  %v302 = vunpack.c.l.b16 %v107
  %v303 = vunpack.c.h.b16 %v107
  %v304 = vunpack.c.l.b16 %v108
  %v305 = vunpack.c.h.b16 %v108
  %v306 = vunpack.c.l.b16 %v109
  %v307 = vunpack.c.h.b16 %v109
  %v308 = vunpack.c.l.b16 %v110
  %v309 = vunpack.c.h.b16 %v110
  %v310 = vunpack.c.l.b16 %v111
  %v311 = vunpack.c.h.b16 %v111
  %v312 = vunpack.c.l.b16 %v112
  %v313 = vunpack.c.h.b16 %v112
  %v314 = vunpack.c.l.b16 %v113
  %v315 = vunpack.c.h.b16 %v113
  %v316 = vunpack.c.l.b16 %v114
  %v317 = vunpack.c.h.b16 %v114
  %v318 = vunpack.c.l.b16 %v115
  %v319 = vunpack.c.h.b16 %v115
  %v320 = vunpack.c.l.b16 %v116
  %v321 = vunpack.c.h.b16 %v116
  %v322 = vunpack.c.l.b16 %v117
  %v323 = vunpack.c.h.b16 %v117
  %v324 = vunpack.c.l.b16 %v118
  %v325 = vunpack.c.h.b16 %v118
  %v326 = vunpack.c.l.b16 %v119
  %v327 = vunpack.c.h.b16 %v119
  %v328 = vunpack.c.l.b16 %v120
  %v329 = vunpack.c.h.b16 %v120
  %v330 = vunpack.c.l.b16 %v121
  %v331 = vunpack.c.h.b16 %v121
  %v332 = vunpack.c.l.b16 %v122
  %v333 = vunpack.c.h.b16 %v122
  %v334 = vunpack.c.l.b16 %v123
  %v335 = vunpack.c.h.b16 %v123
  %v336 = vunpack.c.l.b16 %v124
  %v337 = vunpack.c.h.b16 %v124
  %v338 = vunpack.c.l.b16 %v125
  %v339 = vunpack.c.h.b16 %v125
  %v340 = vunpack.c.l.b16 %v126
  %v341 = vunpack.c.h.b16 %v126
  %v342 = vunpack.c.l.b16 %v127
  %v343 = vunpack.c.h.b16 %v127
  %v344 = vunpack.c.l.b16 %v128
  %v345 = vunpack.c.h.b16 %v128
  %v346 = vunpack.c.l.b16 %v129
  %v347 = vunpack.c.h.b16 %v129
  %v348 = vunpack.c.l.b16 %v130
  %v349 = vunpack.c.h.b16 %v130
  %v350 = vunpack.c.l.b16 %v131
  %v351 = vunpack.c.h.b16 %v131
  %v352 = vunpack.c.l.b16 %v132
  %v353 = vunpack.c.h.b16 %v132
  %v354 = vunpack.c.l.b16 %v133
  %v355 = vunpack.c.h.b16 %v133
  %v356 = vunpack.c.l.b16 %v134
  %v357 = vunpack.c.h.b16 %v134
  %v358 = vunpack.c.l.b16 %v135
  %v359 = vunpack.c.h.b16 %v135
  %v360 = vunpack.c.l.b16 %v136
  %v361 = vunpack.c.h.b16 %v136
  %v362 = vunpack.c.l.b16 %v137
  %v363 = vunpack.c.h.b16 %v137
  %v364 = vunpack.c.l.b16 %v138
  %v365 = vunpack.c.h.b16 %v138
  %v366 = vunpack.c.l.b16 %v139
  %v367 = vunpack.c.h.b16 %v139
  %v368 = vunpack.c.l.b16 %v140
  %v369 = vunpack.c.h.b16 %v140
  %v370 = vunpack.c.l.b16 %v141
  %v371 = vunpack.c.h.b16 %v141
  %v372 = vunpack.c.l.b16 %v142
  %v373 = vunpack.c.h.b16 %v142
  %v374 = vpack.c.b16 %v248, %v246
  %v375 = vpack.c.b16 %v249, %v247
  %v376 = vpack.c.b16 %v252, %v250
  %v377 = vpack.c.b16 %v253, %v251
  %v378 = vpack.c.b16 %v256, %v254
  %v379 = vpack.c.b16 %v257, %v255
  %v380 = vpack.c.b16 %v260, %v258
  %v381 = vpack.c.b16 %v261, %v259
  %v382 = vpack.c.b16 %v264, %v262
  %v383 = vpack.c.b16 %v265, %v263
  %v384 = vpack.c.b16 %v268, %v266
  %v385 = vpack.c.b16 %v269, %v267
  %v386 = vpack.c.b16 %v272, %v270
  %v387 = vpack.c.b16 %v273, %v271
  %v388 = vpack.c.b16 %v276, %v274
  %v389 = vpack.c.b16 %v277, %v275
  %v390 = vpack.c.b16 %v280, %v278
  %v391 = vpack.c.b16 %v281, %v279
  %v392 = vpack.c.b16 %v284, %v282
  %v393 = vpack.c.b16 %v285, %v283
  %v394 = vpack.c.b16 %v288, %v286
  %v395 = vpack.c.b16 %v289, %v287
  %v396 = vpack.c.b16 %v292, %v290
  %v397 = vpack.c.b16 %v293, %v291
  %v398 = vpack.c.b16 %v296, %v294
  %v399 = vpack.c.b16 %v297, %v295
  %v400 = vpack.c.b16 %v300, %v298
  %v401 = vpack.c.b16 %v301, %v299
  %v402 = vpack.c.b16 %v304, %v302
  %v403 = vpack.c.b16 %v305, %v303
  %v404 = vpack.c.b16 %v308, %v306
  %v405 = vpack.c.b16 %v309, %v307
  %v406 = vpack.c.b16 %v312, %v310
  %v407 = vpack.c.b16 %v313, %v311
  %v408 = vpack.c.b16 %v316, %v314
  %v409 = vpack.c.b16 %v317, %v315
  %v410 = vpack.c.b16 %v320, %v318
  %v411 = vpack.c.b16 %v321, %v319
  %v412 = vpack.c.b16 %v324, %v322
  %v413 = vpack.c.b16 %v325, %v323
  %v414 = vpack.c.b16 %v328, %v326
  %v415 = vpack.c.b16 %v329, %v327
  %v416 = vpack.c.b16 %v332, %v330
  %v417 = vpack.c.b16 %v333, %v331
  %v418 = vpack.c.b16 %v336, %v334
  %v419 = vpack.c.b16 %v337, %v335
  %v420 = vpack.c.b16 %v340, %v338
  %v421 = vpack.c.b16 %v341, %v339
  %v422 = vpack.c.b16 %v344, %v342
  %v423 = vpack.c.b16 %v345, %v343
  %v424 = vpack.c.b16 %v348, %v346
  %v425 = vpack.c.b16 %v349, %v347
  %v426 = vpack.c.b16 %v352, %v350
  %v427 = vpack.c.b16 %v353, %v351
  %v428 = vpack.c.b16 %v356, %v354
  %v429 = vpack.c.b16 %v357, %v355
  %v430 = vpack.c.b16 %v360, %v358
  %v431 = vpack.c.b16 %v361, %v359
  %v432 = vpack.c.b16 %v364, %v362
  %v433 = vpack.c.b16 %v365, %v363
  %v434 = vpack.c.b16 %v368, %v366
  %v435 = vpack.c.b16 %v369, %v367
  %v436 = vpack.c.b16 %v372, %v370
  %v437 = vpack.c.b16 %v373, %v371
  %v534 = vunpack.c.l.b16 %v143
  %v535 = vunpack.c.l.b16 %v144
  %v536 = vunpack.c.l.b16 %v145
  %v537 = vunpack.c.l.b16 %v146
  %v538 = vunpack.c.l.b16 %v147
  %v539 = vunpack.c.l.b16 %v148
  %v540 = vunpack.c.l.b16 %v149
  %v541 = vunpack.c.l.b16 %v150
  %v542 = vunpack.c.l.b16 %v151
  %v543 = vunpack.c.l.b16 %v152
  %v544 = vunpack.c.l.b16 %v153
  %v545 = vunpack.c.l.b16 %v154
  %v546 = vunpack.c.l.b16 %v155
  %v547 = vunpack.c.l.b16 %v156
  %v548 = vunpack.c.l.b16 %v157
  %v549 = vunpack.c.l.b16 %v158
  %v550 = vunpack.c.l.b16 %v159
  %v551 = vunpack.c.l.b16 %v160
  %v552 = vunpack.c.l.b16 %v161
  %v553 = vunpack.c.l.b16 %v162
  %v554 = vunpack.c.l.b16 %v163
  %v555 = vunpack.c.l.b16 %v164
  %v556 = vunpack.c.l.b16 %v165
  %v557 = vunpack.c.l.b16 %v166
  %v558 = vunpack.c.l.b16 %v167
  %v559 = vunpack.c.l.b16 %v168
  %v560 = vunpack.c.l.b16 %v169
  %v561 = vunpack.c.l.b16 %v170
  %v562 = vunpack.c.l.b16 %v171
  %v563 = vunpack.c.l.b16 %v172
  %v564 = vunpack.c.l.b16 %v173
  %v565 = vunpack.c.l.b16 %v174
  %v566 = vpack.c.b16 %v535, %v534
  %v567 = vpack.c.b16 %v537, %v536
  %v568 = vpack.c.b16 %v539, %v538
  %v569 = vpack.c.b16 %v541, %v540
  %v570 = vpack.c.b16 %v543, %v542
  %v571 = vpack.c.b16 %v545, %v544
  %v572 = vpack.c.b16 %v547, %v546
  %v573 = vpack.c.b16 %v549, %v548
  %v574 = vpack.c.b16 %v551, %v550
  %v575 = vpack.c.b16 %v553, %v552
  %v576 = vpack.c.b16 %v555, %v554
  %v577 = vpack.c.b16 %v557, %v556
  %v578 = vpack.c.b16 %v559, %v558
  %v579 = vpack.c.b16 %v561, %v560
  %v580 = vpack.c.b16 %v563, %v562
  %v581 = vpack.c.b16 %v565, %v564
  %598 = vmatprep.subr.bf16.mxu0 0
  %599 = vmatpush1.bf16.msra.mxu0 %v566
  %600 = vmatprep.subr.bf16.mxu0 0
  %601 = vmatpush1.bf16.msra.mxu0 %v567
  %602 = vmatprep.subr.bf16.mxu0 0
  %603 = vmatpush1.bf16.msra.mxu0 %v568
  %604 = vmatprep.subr.bf16.mxu0 0
  %605 = vmatpush1.bf16.msra.mxu0 %v569
  %606 = vmatprep.subr.bf16.mxu0 0
  %607 = vmatpush1.bf16.msra.mxu0 %v570
  %608 = vmatprep.subr.bf16.mxu0 0
  %609 = vmatpush1.bf16.msra.mxu0 %v571
  %610 = vmatprep.subr.bf16.mxu0 0
  %611 = vmatpush1.bf16.msra.mxu0 %v572
  %612 = vmatprep.subr.bf16.mxu0 0
  %613 = vmatpush1.bf16.msra.mxu0 %v573
  %614 = vmatprep.subr.bf16.mxu0 0
  %615 = vmatpush1.bf16.msra.mxu0 %v574
  %616 = vmatprep.subr.bf16.mxu0 0
  %617 = vmatpush1.bf16.msra.mxu0 %v575
  %618 = vmatprep.subr.bf16.mxu0 0
  %619 = vmatpush1.bf16.msra.mxu0 %v576
  %620 = vmatprep.subr.bf16.mxu0 0
  %621 = vmatpush1.bf16.msra.mxu0 %v577
  %622 = vmatprep.subr.bf16.mxu0 0
  %623 = vmatpush1.bf16.msra.mxu0 %v578
  %624 = vmatprep.subr.bf16.mxu0 0
  %625 = vmatpush1.bf16.msra.mxu0 %v579
  %626 = vmatprep.subr.bf16.mxu0 0
  %627 = vmatpush1.bf16.msra.mxu0 %v580
  %628 = vmatprep.subr.bf16.mxu0 0
  %629 = vmatpush1.bf16.msra.mxu0 %v581
  %630 = vmatprep.mubr.bf16.mxu0 %v375
  %631 = vmatmul.mubr.bf16.gmra.mrb[0].mxu0 %v374
  %v632 = vpop.f32.mrb[0].mxu0
  %v633 = vadd.f32 %v180, %v632
  %v634 = vpop.f32.mrb[0].mxu0
  %v635 = vpop.f32.mrb[0].mxu0
  %v636 = vadd.f32 %v180, %v635
  %v637 = vpop.f32.mrb[0].mxu0
  %638 = vmatprep.mubr.bf16.mxu0 %v377
  %639 = vmatmul.mubr.bf16.gmra.mrb[0].mxu0 %v376
  %v640 = vpop.f32.mrb[0].mxu0
  %v641 = vadd.f32 %v180, %v640
  %v642 = vpop.f32.mrb[0].mxu0
  %v643 = vpop.f32.mrb[0].mxu0
  %v644 = vadd.f32 %v180, %v643
  %v645 = vpop.f32.mrb[0].mxu0
  %646 = vmatprep.mubr.bf16.mxu0 %v379
  %647 = vmatmul.mubr.bf16.gmra.mrb[0].mxu0 %v378
  %v648 = vpop.f32.mrb[0].mxu0
  %v649 = vadd.f32 %v180, %v648
  %v650 = vpop.f32.mrb[0].mxu0
  %v651 = vpop.f32.mrb[0].mxu0
  %v652 = vadd.f32 %v180, %v651
  %v653 = vpop.f32.mrb[0].mxu0
  %654 = vmatprep.mubr.bf16.mxu0 %v381
  %655 = vmatmul.mubr.bf16.gmra.mrb[0].mxu0 %v380
  %v656 = vpop.f32.mrb[0].mxu0
  %v657 = vadd.f32 %v180, %v656
  %v658 = vpop.f32.mrb[0].mxu0
  %v659 = vpop.f32.mrb[0].mxu0
  %v660 = vadd.f32 %v180, %v659
  %v661 = vpop.f32.mrb[0].mxu0
  %662 = vmatprep.mubr.bf16.mxu0 %v383
  %663 = vmatmul.mubr.bf16.gmra.mrb[0].mxu0 %v382
  %v664 = vpop.f32.mrb[0].mxu0
  %v665 = vadd.f32 %v180, %v664
  %v666 = vpop.f32.mrb[0].mxu0
  %v667 = vpop.f32.mrb[0].mxu0
  %v668 = vadd.f32 %v180, %v667
  %v669 = vpop.f32.mrb[0].mxu0
  %670 = vmatprep.mubr.bf16.mxu0 %v385
  %671 = vmatmul.mubr.bf16.gmra.mrb[0].mxu0 %v384
  %v672 = vpop.f32.mrb[0].mxu0
  %v673 = vadd.f32 %v180, %v672
  %v674 = vpop.f32.mrb[0].mxu0
  %v675 = vpop.f32.mrb[0].mxu0
  %v676 = vadd.f32 %v180, %v675
  %v677 = vpop.f32.mrb[0].mxu0
  %678 = vmatprep.mubr.bf16.mxu0 %v387
  %679 = vmatmul.mubr.bf16.gmra.mrb[0].mxu0 %v386
  %v680 = vpop.f32.mrb[0].mxu0
  %v681 = vadd.f32 %v180, %v680
  %v682 = vpop.f32.mrb[0].mxu0
  %v683 = vpop.f32.mrb[0].mxu0
  %v684 = vadd.f32 %v180, %v683
  %v685 = vpop.f32.mrb[0].mxu0
  %686 = vmatprep.mubr.bf16.mxu0 %v389
  %687 = vmatmul.mubr.bf16.gmra.mrb[0].mxu0 %v388
  %v688 = vpop.f32.mrb[0].mxu0
  %v689 = vadd.f32 %v180, %v688
  %v690 = vpop.f32.mrb[0].mxu0
  %v691 = vpop.f32.mrb[0].mxu0
  %v692 = vadd.f32 %v180, %v691
  %v693 = vpop.f32.mrb[0].mxu0
  %694 = vmatprep.mubr.bf16.mxu0 %v391
  %695 = vmatmul.mubr.bf16.gmra.mrb[0].mxu0 %v390
  %v696 = vpop.f32.mrb[0].mxu0
  %v697 = vadd.f32 %v180, %v696
  %v698 = vpop.f32.mrb[0].mxu0
  %v699 = vpop.f32.mrb[0].mxu0
  %v700 = vadd.f32 %v180, %v699
  %v701 = vpop.f32.mrb[0].mxu0
  %702 = vmatprep.mubr.bf16.mxu0 %v393
  %703 = vmatmul.mubr.bf16.gmra.mrb[0].mxu0 %v392
  %v704 = vpop.f32.mrb[0].mxu0
  %v705 = vadd.f32 %v180, %v704
  %v706 = vpop.f32.mrb[0].mxu0
  %v707 = vpop.f32.mrb[0].mxu0
  %v708 = vadd.f32 %v180, %v707
  %v709 = vpop.f32.mrb[0].mxu0
  %710 = vmatprep.mubr.bf16.mxu0 %v395
  %711 = vmatmul.mubr.bf16.gmra.mrb[0].mxu0 %v394
  %v712 = vpop.f32.mrb[0].mxu0
  %v713 = vadd.f32 %v180, %v712
  %v714 = vpop.f32.mrb[0].mxu0
  %v715 = vpop.f32.mrb[0].mxu0
  %v716 = vadd.f32 %v180, %v715
  %v717 = vpop.f32.mrb[0].mxu0
  %718 = vmatprep.mubr.bf16.mxu0 %v397
  %719 = vmatmul.mubr.bf16.gmra.mrb[0].mxu0 %v396
  %v720 = vpop.f32.mrb[0].mxu0
  %v721 = vadd.f32 %v180, %v720
  %v722 = vpop.f32.mrb[0].mxu0
  %v723 = vpop.f32.mrb[0].mxu0
  %v724 = vadd.f32 %v180, %v723
  %v725 = vpop.f32.mrb[0].mxu0
  %726 = vmatprep.mubr.bf16.mxu0 %v399
  %727 = vmatmul.mubr.bf16.gmra.mrb[0].mxu0 %v398
  %v728 = vpop.f32.mrb[0].mxu0
  %v729 = vadd.f32 %v180, %v728
  %v730 = vpop.f32.mrb[0].mxu0
  %v731 = vpop.f32.mrb[0].mxu0
  %v732 = vadd.f32 %v180, %v731
  %v733 = vpop.f32.mrb[0].mxu0
  %734 = vmatprep.mubr.bf16.mxu0 %v401
  %735 = vmatmul.mubr.bf16.gmra.mrb[0].mxu0 %v400
  %v736 = vpop.f32.mrb[0].mxu0
  %v737 = vadd.f32 %v180, %v736
  %v738 = vpop.f32.mrb[0].mxu0
  %v739 = vpop.f32.mrb[0].mxu0
  %v740 = vadd.f32 %v180, %v739
  %v741 = vpop.f32.mrb[0].mxu0
  %742 = vmatprep.mubr.bf16.mxu0 %v403
  %743 = vmatmul.mubr.bf16.gmra.mrb[0].mxu0 %v402
  %v744 = vpop.f32.mrb[0].mxu0
  %v745 = vadd.f32 %v180, %v744
  %v746 = vpop.f32.mrb[0].mxu0
  %v747 = vpop.f32.mrb[0].mxu0
  %v748 = vadd.f32 %v180, %v747
  %v749 = vpop.f32.mrb[0].mxu0
  %750 = vmatprep.mubr.bf16.mxu0 %v405
  %751 = vmatmul.mubr.bf16.gmra.mrb[0].mxu0 %v404
  %v752 = vpop.f32.mrb[0].mxu0
  %v753 = vadd.f32 %v180, %v752
  %v754 = vpop.f32.mrb[0].mxu0
  %v755 = vpop.f32.mrb[0].mxu0
  %v756 = vadd.f32 %v180, %v755
  %v757 = vpop.f32.mrb[0].mxu0
  %758 = vmatprep.mubr.bf16.mxu0 %v407
  %759 = vmatmul.mubr.bf16.gmra.mrb[0].mxu0 %v406
  %v760 = vpop.f32.mrb[0].mxu0
  %v761 = vadd.f32 %v180, %v760
  %v762 = vpop.f32.mrb[0].mxu0
  %v763 = vpop.f32.mrb[0].mxu0
  %v764 = vadd.f32 %v180, %v763
  %v765 = vpop.f32.mrb[0].mxu0
  %766 = vmatprep.mubr.bf16.mxu0 %v409
  %767 = vmatmul.mubr.bf16.gmra.mrb[0].mxu0 %v408
  %v768 = vpop.f32.mrb[0].mxu0
  %v769 = vadd.f32 %v180, %v768
  %v770 = vpop.f32.mrb[0].mxu0
  %v771 = vpop.f32.mrb[0].mxu0
  %v772 = vadd.f32 %v180, %v771
  %v773 = vpop.f32.mrb[0].mxu0
  %774 = vmatprep.mubr.bf16.mxu0 %v411
  %775 = vmatmul.mubr.bf16.gmra.mrb[0].mxu0 %v410
  %v776 = vpop.f32.mrb[0].mxu0
  %v777 = vadd.f32 %v180, %v776
  %v778 = vpop.f32.mrb[0].mxu0
  %v779 = vpop.f32.mrb[0].mxu0
  %v780 = vadd.f32 %v180, %v779
  %v781 = vpop.f32.mrb[0].mxu0
  %782 = vmatprep.mubr.bf16.mxu0 %v413
  %783 = vmatmul.mubr.bf16.gmra.mrb[0].mxu0 %v412
  %v784 = vpop.f32.mrb[0].mxu0
  %v785 = vadd.f32 %v180, %v784
  %v786 = vpop.f32.mrb[0].mxu0
  %v787 = vpop.f32.mrb[0].mxu0
  %v788 = vadd.f32 %v180, %v787
  %v789 = vpop.f32.mrb[0].mxu0
  %790 = vmatprep.mubr.bf16.mxu0 %v415
  %791 = vmatmul.mubr.bf16.gmra.mrb[0].mxu0 %v414
  %v792 = vpop.f32.mrb[0].mxu0
  %v793 = vadd.f32 %v180, %v792
  %v794 = vpop.f32.mrb[0].mxu0
  %v795 = vpop.f32.mrb[0].mxu0
  %v796 = vadd.f32 %v180, %v795
  %v797 = vpop.f32.mrb[0].mxu0
  %798 = vmatprep.mubr.bf16.mxu0 %v417
  %799 = vmatmul.mubr.bf16.gmra.mrb[0].mxu0 %v416
  %v800 = vpop.f32.mrb[0].mxu0
  %v801 = vadd.f32 %v180, %v800
  %v802 = vpop.f32.mrb[0].mxu0
  %v803 = vpop.f32.mrb[0].mxu0
  %v804 = vadd.f32 %v180, %v803
  %v805 = vpop.f32.mrb[0].mxu0
  %806 = vmatprep.mubr.bf16.mxu0 %v419
  %807 = vmatmul.mubr.bf16.gmra.mrb[0].mxu0 %v418
  %v808 = vpop.f32.mrb[0].mxu0
  %v809 = vadd.f32 %v180, %v808
  %v810 = vpop.f32.mrb[0].mxu0
  %v811 = vpop.f32.mrb[0].mxu0
  %v812 = vadd.f32 %v180, %v811
  %v813 = vpop.f32.mrb[0].mxu0
  %814 = vmatprep.mubr.bf16.mxu0 %v421
  %815 = vmatmul.mubr.bf16.gmra.mrb[0].mxu0 %v420
  %v816 = vpop.f32.mrb[0].mxu0
  %v817 = vadd.f32 %v180, %v816
  %v818 = vpop.f32.mrb[0].mxu0
  %v819 = vpop.f32.mrb[0].mxu0
  %v820 = vadd.f32 %v180, %v819
  %v821 = vpop.f32.mrb[0].mxu0
  %822 = vmatprep.mubr.bf16.mxu0 %v423
  %823 = vmatmul.mubr.bf16.gmra.mrb[0].mxu0 %v422
  %v824 = vpop.f32.mrb[0].mxu0
  %v825 = vadd.f32 %v180, %v824
  %v826 = vpop.f32.mrb[0].mxu0
  %v827 = vpop.f32.mrb[0].mxu0
  %v828 = vadd.f32 %v180, %v827
  %v829 = vpop.f32.mrb[0].mxu0
  %830 = vmatprep.mubr.bf16.mxu0 %v425
  %831 = vmatmul.mubr.bf16.gmra.mrb[0].mxu0 %v424
  %v832 = vpop.f32.mrb[0].mxu0
  %v833 = vadd.f32 %v180, %v832
  %v834 = vpop.f32.mrb[0].mxu0
  %v835 = vpop.f32.mrb[0].mxu0
  %v836 = vadd.f32 %v180, %v835
  %v837 = vpop.f32.mrb[0].mxu0
  %838 = vmatprep.mubr.bf16.mxu0 %v427
  %839 = vmatmul.mubr.bf16.gmra.mrb[0].mxu0 %v426
  %v840 = vpop.f32.mrb[0].mxu0
  %v841 = vadd.f32 %v180, %v840
  %v842 = vpop.f32.mrb[0].mxu0
  %v843 = vpop.f32.mrb[0].mxu0
  %v844 = vadd.f32 %v180, %v843
  %v845 = vpop.f32.mrb[0].mxu0
  %846 = vmatprep.mubr.bf16.mxu0 %v429
  %847 = vmatmul.mubr.bf16.gmra.mrb[0].mxu0 %v428
  %v848 = vpop.f32.mrb[0].mxu0
  %v849 = vadd.f32 %v180, %v848
  %v850 = vpop.f32.mrb[0].mxu0
  %v851 = vpop.f32.mrb[0].mxu0
  %v852 = vadd.f32 %v180, %v851
  %v853 = vpop.f32.mrb[0].mxu0
  %854 = vmatprep.mubr.bf16.mxu0 %v431
  %855 = vmatmul.mubr.bf16.gmra.mrb[0].mxu0 %v430
  %v856 = vpop.f32.mrb[0].mxu0
  %v857 = vadd.f32 %v180, %v856
  %v858 = vpop.f32.mrb[0].mxu0
  %v859 = vpop.f32.mrb[0].mxu0
  %v860 = vadd.f32 %v180, %v859
  %v861 = vpop.f32.mrb[0].mxu0
  %862 = vmatprep.mubr.bf16.mxu0 %v433
  %863 = vmatmul.mubr.bf16.gmra.mrb[0].mxu0 %v432
  %v864 = vpop.f32.mrb[0].mxu0
  %v865 = vadd.f32 %v180, %v864
  %v866 = vpop.f32.mrb[0].mxu0
  %v867 = vpop.f32.mrb[0].mxu0
  %v868 = vadd.f32 %v180, %v867
  %v869 = vpop.f32.mrb[0].mxu0
  %870 = vmatprep.mubr.bf16.mxu0 %v435
  %871 = vmatmul.mubr.bf16.gmra.mrb[0].mxu0 %v434
  %v872 = vpop.f32.mrb[0].mxu0
  %v873 = vadd.f32 %v180, %v872
  %v874 = vpop.f32.mrb[0].mxu0
  %v875 = vpop.f32.mrb[0].mxu0
  %v876 = vadd.f32 %v180, %v875
  %v877 = vpop.f32.mrb[0].mxu0
  %878 = vmatprep.mubr.bf16.mxu0 %v437
  %879 = vmatmul.mubr.bf16.gmra.mrb[0].mxu0 %v436
  %v880 = vpop.f32.mrb[0].mxu0
  %v881 = vadd.f32 %v180, %v880
  %v882 = vpop.f32.mrb[0].mxu0
  %v883 = vpop.f32.mrb[0].mxu0
  %v884 = vadd.f32 %v180, %v883
  %v885 = vpop.f32.mrb[0].mxu0
  %886 = vdwg.mxu0
  %v887 = vtanh.pop %v633
  %v888 = vtanh.pop %v636
  %v889 = vtanh.pop %v641
  %v890 = vtanh.pop %v644
  %v891 = vtanh.pop %v649
  %v892 = vtanh.pop %v652
  %v893 = vtanh.pop %v657
  %v894 = vtanh.pop %v660
  %v895 = vtanh.pop %v665
  %v896 = vtanh.pop %v668
  %v897 = vtanh.pop %v673
  %v898 = vtanh.pop %v676
  %v899 = vtanh.pop %v681
  %v900 = vtanh.pop %v684
  %v901 = vtanh.pop %v689
  %v902 = vtanh.pop %v692
  %v903 = vtanh.pop %v697
  %v904 = vtanh.pop %v700
  %v905 = vtanh.pop %v705
  %v906 = vtanh.pop %v708
  %v907 = vtanh.pop %v713
  %v908 = vtanh.pop %v716
  %v909 = vtanh.pop %v721
  %v910 = vtanh.pop %v724
  %v911 = vtanh.pop %v729
  %v912 = vtanh.pop %v732
  %v913 = vtanh.pop %v737
  %v914 = vtanh.pop %v740
  %v915 = vtanh.pop %v745
  %v916 = vtanh.pop %v748
  %v917 = vtanh.pop %v753
  %v918 = vtanh.pop %v756
  %v919 = vtanh.pop %v761
  %v920 = vtanh.pop %v764
  %v921 = vtanh.pop %v769
  %v922 = vtanh.pop %v772
  %v923 = vtanh.pop %v777
  %v924 = vtanh.pop %v780
  %v925 = vtanh.pop %v785
  %v926 = vtanh.pop %v788
  %v927 = vtanh.pop %v793
  %v928 = vtanh.pop %v796
  %v929 = vtanh.pop %v801
  %v930 = vtanh.pop %v804
  %v931 = vtanh.pop %v809
  %v932 = vtanh.pop %v812
  %v933 = vtanh.pop %v817
  %v934 = vtanh.pop %v820
  %v935 = vtanh.pop %v825
  %v936 = vtanh.pop %v828
  %v937 = vtanh.pop %v833
  %v938 = vtanh.pop %v836
  %v939 = vtanh.pop %v841
  %v940 = vtanh.pop %v844
  %v941 = vtanh.pop %v849
  %v942 = vtanh.pop %v852
  %v943 = vtanh.pop %v857
  %v944 = vtanh.pop %v860
  %v945 = vtanh.pop %v865
  %v946 = vtanh.pop %v868
  %v947 = vtanh.pop %v873
  %v948 = vtanh.pop %v876
  %v949 = vtanh.pop %v881
  %v950 = vtanh.pop %v884
  %951 = vst [vmem:[%s3] sm:$0xff] %v887
  %952 = vst [vmem:[%s3 + $0x8] sm:$0xff] %v888
  %953 = vst [vmem:[%s3 + $0x10] sm:$0xff] %v889
  %954 = vst [vmem:[%s3 + $0x18] sm:$0xff] %v890
  %955 = vst [vmem:[%s3 + $0x20] sm:$0xff] %v891
  %956 = vst [vmem:[%s3 + $0x28] sm:$0xff] %v892
  %957 = vst [vmem:[%s3 + $0x30] sm:$0xff] %v893
  %958 = vst [vmem:[%s3 + $0x38] sm:$0xff] %v894
  %959 = vst [vmem:[%s3 + $0x40] sm:$0xff] %v895
  %960 = vst [vmem:[%s3 + $0x48] sm:$0xff] %v896
  %961 = vst [vmem:[%s3 + $0x50] sm:$0xff] %v897
  %962 = vst [vmem:[%s3 + $0x58] sm:$0xff] %v898
  %963 = vst [vmem:[%s3 + $0x60] sm:$0xff] %v899
  %964 = vst [vmem:[%s3 + $0x68] sm:$0xff] %v900
  %965 = vst [vmem:[%s3 + $0x70] sm:$0xff] %v901
  %966 = vst [vmem:[%s3 + $0x78] sm:$0xff] %v902
  %967 = vst [vmem:[%s3 + $0x80] sm:$0xff] %v903
  %968 = vst [vmem:[%s3 + $0x88] sm:$0xff] %v904
  %969 = vst [vmem:[%s3 + $0x90] sm:$0xff] %v905
  %970 = vst [vmem:[%s3 + $0x98] sm:$0xff] %v906
  %971 = vst [vmem:[%s3 + $0xa0] sm:$0xff] %v907
  %972 = vst [vmem:[%s3 + $0xa8] sm:$0xff] %v908
  %973 = vst [vmem:[%s3 + $0xb0] sm:$0xff] %v909
  %974 = vst [vmem:[%s3 + $0xb8] sm:$0xff] %v910
  %975 = vst [vmem:[%s3 + $0xc0] sm:$0xff] %v911
  %976 = vst [vmem:[%s3 + $0xc8] sm:$0xff] %v912
  %977 = vst [vmem:[%s3 + $0xd0] sm:$0xff] %v913
  %978 = vst [vmem:[%s3 + $0xd8] sm:$0xff] %v914
  %979 = vst [vmem:[%s3 + $0xe0] sm:$0xff] %v915
  %980 = vst [vmem:[%s3 + $0xe8] sm:$0xff] %v916
  %981 = vst [vmem:[%s3 + $0xf0] sm:$0xff] %v917
  %982 = vst [vmem:[%s3 + $0xf8] sm:$0xff] %v918
  %983 = vst [vmem:[%s3 + $0x100] sm:$0xff] %v919
  %984 = vst [vmem:[%s3 + $0x108] sm:$0xff] %v920
  %985 = vst [vmem:[%s3 + $0x110] sm:$0xff] %v921
  %986 = vst [vmem:[%s3 + $0x118] sm:$0xff] %v922
  %987 = vst [vmem:[%s3 + $0x120] sm:$0xff] %v923
  %988 = vst [vmem:[%s3 + $0x128] sm:$0xff] %v924
  %989 = vst [vmem:[%s3 + $0x130] sm:$0xff] %v925
  %990 = vst [vmem:[%s3 + $0x138] sm:$0xff] %v926
  %991 = vst [vmem:[%s3 + $0x140] sm:$0xff] %v927
  %992 = vst [vmem:[%s3 + $0x148] sm:$0xff] %v928
  %993 = vst [vmem:[%s3 + $0x150] sm:$0xff] %v929
  %994 = vst [vmem:[%s3 + $0x158] sm:$0xff] %v930
  %995 = vst [vmem:[%s3 + $0x160] sm:$0xff] %v931
  %996 = vst [vmem:[%s3 + $0x168] sm:$0xff] %v932
  %997 = vst [vmem:[%s3 + $0x170] sm:$0xff] %v933
  %998 = vst [vmem:[%s3 + $0x178] sm:$0xff] %v934
  %999 = vst [vmem:[%s3 + $0x180] sm:$0xff] %v935
  %1000 = vst [vmem:[%s3 + $0x188] sm:$0xff] %v936
  %1001 = vst [vmem:[%s3 + $0x190] sm:$0xff] %v937
  %1002 = vst [vmem:[%s3 + $0x198] sm:$0xff] %v938
  %1003 = vst [vmem:[%s3 + $0x1a0] sm:$0xff] %v939
  %1004 = vst [vmem:[%s3 + $0x1a8] sm:$0xff] %v940
  %1005 = vst [vmem:[%s3 + $0x1b0] sm:$0xff] %v941
  %1006 = vst [vmem:[%s3 + $0x1b8] sm:$0xff] %v942
  %1007 = vst [vmem:[%s3 + $0x1c0] sm:$0xff] %v943
  %1008 = vst [vmem:[%s3 + $0x1c8] sm:$0xff] %v944
  %1009 = vst [vmem:[%s3 + $0x1d0] sm:$0xff] %v945
  %1010 = vst [vmem:[%s3 + $0x1d8] sm:$0xff] %v946
  %1011 = vst [vmem:[%s3 + $0x1e0] sm:$0xff] %v947
  %1012 = vst [vmem:[%s3 + $0x1e8] sm:$0xff] %v948
  %1013 = vst [vmem:[%s3 + $0x1f0] sm:$0xff] %v949
  %1014 = vst [vmem:[%s3 + $0x1f8] sm:$0xff] %v950
  // Predicated region
  $region14: #{_lambda_.47} parent=0 // pred_check
    _
  $region15: #{_lambda_.47} parent=0 // pred_check_branch
    %1016 = sbr.rel (0) target = $region17
  $region16: #{_lambda_.47} parent=0 // pred_region
    _
  $region17: #{_lambda_.47} parent=0 // pred_fallthru
    _
  // Predicated region
  $region18: #{_lambda_.47} parent=0 // pred_check
    _
  $region19: #{_lambda_.47} parent=0 // pred_check_branch
    %1018 = sbr.rel (0) target = $region21
  $region20: #{_lambda_.47} parent=0 // pred_region
    _
  $region21: #{_lambda_.47} parent=0 // pred_fallthru
    _

</llo_original>
